<compile_context>
chip_gen: v7x
topology: tpu7x:2x2x1
jax: 0.10.0
libtpu: 0.0.40
codegen_flags: <defaults>
</compile_context>

<pallas_src>
import math

import jax
import jax.numpy as jnp
from jax.experimental import pallas as pl
from jax.experimental.pallas import tpu as pltpu

D = 512           # feature dim (gcn_dims = [512, 512, 512, 512])
H = 8             # attention heads
DK = D // H       # per-head key dim
DV = D // H       # per-head value dim
NUM_GCN = 3


def _const_spec(shape):
    nd = len(shape)
    return pl.BlockSpec(shape, lambda l, _nd=nd: (0,) * _nd)


def _vmem_limit_bytes():
    # generation-aware: ~96 MiB on 128 MiB chips (v5e/v6e), ~48 MiB on v7x.
    try:
        cap = int(pltpu.get_tpu_info().vmem_capacity_bytes)
    except Exception:
        cap = 64 * 1024 * 1024
    return min(cap * 3 // 4, 100 * 1024 * 1024)


# --------------------------------------------------------------------------
# Fused kernel: grid over GCN layers; MHA pooling epilogue at the last step.
# --------------------------------------------------------------------------
def _fused_graph_cnn_kernel(x_ref, w_ref, b_ref, mask_ref, wv_ref, wl_ref,
                            selT_ref, wo_ref, gamma_ref, beta_ref, a_hbm_ref,
                            nfeat_ref, gfeat_ref,
                            a_vmem, a_sem, h_ref, cur_ref):
    l = pl.program_id(0)

    @pl.when(l == 0)
    def _init():
        # A_hat HBM->VMEM DMA (single buffer) overlaps the X @ W matmul below.
        pltpu.make_async_copy(a_hbm_ref, a_vmem, a_sem).start()
        h_ref[...] = jnp.zeros_like(h_ref)
        cur_ref[...] = x_ref[...]

    # ---- GCN layer l:  h += relu(A_hat @ (cur @ W_l) + b_l) ----
    cur = cur_ref[...]                                               # [N, D] bf16
    xw = jnp.dot(cur, w_ref[0], preferred_element_type=jnp.float32)  # [N, D] f32

    @pl.when(l == 0)
    def _wait_a():
        pltpu.make_async_copy(a_hbm_ref, a_vmem, a_sem).wait()

    ax = jnp.dot(a_vmem[...], xw.astype(jnp.bfloat16),
                 preferred_element_type=jnp.float32)                 # [N, D] f32
    h_ref[...] += jnp.maximum(ax + b_ref[0], 0.0)                    # relu + residual
    cur_ref[...] = h_ref[...].astype(jnp.bfloat16)                   # next layer's operand

    # ---- MHA (PMA-style) graph pooling: only at the last layer ----
    @pl.when(l == NUM_GCN - 1)
    def _epilogue():
        nfeat_ref[...] = h_ref[...]                                  # node-level features
        hb = cur_ref[...]                                            # [N, D] bf16

        v = jnp.dot(hb, wv_ref[...], preferred_element_type=jnp.float32)   # [N, D]
        # seed query + 1/sqrt(dk) folded into wl -> one [N,D]x[D,H] matmul
        logits = jnp.dot(hb, wl_ref[...], preferred_element_type=jnp.float32)  # [N, H]

        # per-graph masked max, laid out [Gp, H, N] so N stays lane-dense
        maskf = mask_ref[...]                                        # [Gp, N] bf16 {0,1}
        masked = jnp.where(maskf[:, None, :] > 0,
                           logits.T[None, :, :], -1e30)              # [Gp, H, N]
        mx = jnp.max(masked, axis=-1)                                # [Gp, H]
        mx_node = jnp.dot(maskf.astype(jnp.float32).T, mx,
                          preferred_element_type=jnp.float32)        # [N, H]

        e = jnp.exp(logits - mx_node)                                # [N, H] f32
        eb = e.astype(jnp.bfloat16)
        den = jnp.dot(maskf, eb, preferred_element_type=jnp.float32)          # [Gp, H]
        inv_den = pl.reciprocal(jnp.maximum(den, 1e-20), approx=True)         # [Gp, H]

        # per-head expansion via 0/1 selector matmul (no jnp.tile / repeat)
        selT = selT_ref[...]                                                  # [H, D] bf16
        ev = jnp.dot(eb, selT, preferred_element_type=jnp.float32) * v        # [N, D]
        num = jnp.dot(maskf, ev.astype(jnp.bfloat16),
                      preferred_element_type=jnp.float32)                     # [Gp, D]
        pooled = num * jnp.dot(inv_den.astype(jnp.bfloat16), selT,
                               preferred_element_type=jnp.float32)            # [Gp, D]

        out = jnp.dot(pooled.astype(jnp.bfloat16), wo_ref[...],
                      preferred_element_type=jnp.float32)                     # [Gp, D]

        # LayerNorm over feature dim (f32)
        mu = jnp.mean(out, axis=-1, keepdims=True)
        var = jnp.mean(jnp.square(out - mu), axis=-1, keepdims=True)
        out = (out - mu) * jax.lax.rsqrt(var + 1e-5)
        out = out * gamma_ref[...] + beta_ref[...]
        gfeat_ref[...] = out.astype(gfeat_ref.dtype)


# --------------------------------------------------------------------------
# Wrapper: pad G to a sublane tile, cast MXU operands to bf16, one launch.
# --------------------------------------------------------------------------
@jax.jit
def graph_cnn_forward(x, a_hat, mask, params):
    n = x.shape[0]
    g = mask.shape[0]
    g_pad = max(8, ((g + 7) // 8) * 8)

    mask_p = jnp.zeros((g_pad, n), jnp.bfloat16).at[:g, :].set(mask.astype(jnp.bfloat16))
    selT = (jnp.arange(D, dtype=jnp.int32)[None, :] // DV
            == jnp.arange(H, dtype=jnp.int32)[:, None]).astype(jnp.bfloat16)   # [H, D]

    # Weight fold (not input pre-scaling): logits = ((X Wk) * q) per-head-summed / sqrt(dk)
    #                                              == X @ Wl, with Wl computed once here.
    wl = ((params["wk"] * params["q_row"]).reshape(D, H, DK).sum(axis=-1)
          * (1.0 / math.sqrt(DK)))                                              # [D, H] f32

    w = jnp.stack(params["w_gcn"]).astype(jnp.bfloat16)                 # [3, D, D]
    b = jnp.stack(params["b_gcn"])                                      # [3, 1, D] f32

    inputs = (x.astype(jnp.bfloat16), w, b, mask_p,
              params["wv"].astype(jnp.bfloat16),
              wl.astype(jnp.bfloat16), selT,
              params["wo"].astype(jnp.bfloat16),
              params["gamma"], params["beta"],
              a_hat.astype(jnp.bfloat16))

    in_specs = [
        _const_spec((n, D)),                                   # x (layer 0 only)
        pl.BlockSpec((1, D, D), lambda l: (l, 0, 0)),          # W_l (layer l+1 prefetches)
        pl.BlockSpec((1, 1, D), lambda l: (l, 0, 0)),          # b_l
        _const_spec((g_pad, n)),                               # mask
        _const_spec((D, D)),                                   # wv
        _const_spec((D, H)),                                   # wl (folded key proj)
        _const_spec((H, D)),                                   # selector
        _const_spec((D, D)),                                   # wo
        _const_spec((1, D)),                                   # gamma
        _const_spec((1, D)),                                   # beta
        pl.BlockSpec(memory_space=pl.ANY),                     # A_hat (manual DMA, 1 buffer)
    ]

    n_feat, g_feat = pl.pallas_call(
        _fused_graph_cnn_kernel,
        out_shape=(jax.ShapeDtypeStruct((n, D), jnp.float32),
                   jax.ShapeDtypeStruct((g_pad, D), jnp.float32)),
        grid=(NUM_GCN,),
        in_specs=in_specs,
        out_specs=(_const_spec((n, D)), _const_spec((g_pad, D))),
        scratch_shapes=[
            pltpu.VMEM((n, n), jnp.bfloat16),      # resident A_hat (single buffer)
            pltpu.SemaphoreType.DMA,               # A_hat DMA completion
            pltpu.VMEM((n, D), jnp.float32),       # residual accumulator h
            pltpu.VMEM((n, D), jnp.bfloat16),      # current layer's bf16 MXU operand
        ],
        compiler_params=pltpu.CompilerParams(
            dimension_semantics=("arbitrary",),    # layers are sequential
            vmem_limit_bytes=_vmem_limit_bytes()),
    )(*inputs)

    return n_feat, g_feat[:g]


# --------------------------------------------------------------------------
# Plain-JAX glue: adjacency normalization, parameter init, f32 reference.
# --------------------------------------------------------------------------
def build_norm_adj(edge_index, num_nodes):
    src, dst = edge_index
    a = jnp.zeros((num_nodes, num_nodes), jnp.float32)
    a = a.at[dst, src].set(1.0)                          # messages flow src -> dst
    a = a + jnp.eye(num_nodes, dtype=jnp.float32)        # self loops (GCNConv default)
    deg = jnp.sum(a, axis=1)
    dinv = jax.lax.rsqrt(deg)
    return a * dinv[:, None] * dinv[None, :]


def init_params(key):
    ks = jax.random.split(key, 8)

    def glorot(k, shape):
        lim = math.sqrt(6.0 / (shape[0] + shape[1]))
        return jax.random.uniform(k, shape, jnp.float32, -lim, lim)

    seed_q = jax.random.normal(ks[6], (H, DK), jnp.float32) * 0.1
    return {
        # 3 x GCNConv(512 -> 512), bias=True (bias zero-init as in PyG)
        "w_gcn": [glorot(ks[i], (D, D)) for i in range(3)],
        "b_gcn": [jnp.zeros((1, D), jnp.float32) for _ in range(3)],
        # MHA pooling (head-major column layout for wk / wv / wo)
        "wk": glorot(ks[3], (D, D)),
        "wv": glorot(ks[4], (D, D)),
        "wo": glorot(ks[5], (D, D)),
        "q_row": seed_q.reshape(1, D),                   # flattened per-head seed query
        "gamma": jnp.ones((1, D), jnp.float32),
        "beta": jnp.zeros((1, D), jnp.float32),
    }


def reference_forward(x, a_hat, mask, params):
    """Pure-JAX f32 reference (same math as the kernel, no bf16 rounding)."""
    with jax.default_matmul_precision("highest"):
        h = x
        for i in range(NUM_GCN):
            act = jax.nn.relu(a_hat @ (h @ params["w_gcn"][i]) + params["b_gcn"][i])
            h = act if i == 0 else h + act
        k = h @ params["wk"]
        logits = ((k * params["q_row"]).reshape(-1, H, DK).sum(-1)
                  * (1.0 / math.sqrt(DK)))                           # [N, H]
        v = (h @ params["wv"]).reshape(-1, H, DV)                    # [N, H, DV]
        pooled = []
        for gi in range(mask.shape[0]):
            m = mask[gi] > 0
            lg = jnp.where(m[:, None], logits, -jnp.inf)
            att = jax.nn.softmax(lg, axis=0)                         # [N, H]
            pooled.append(jnp.einsum("nh,nhd->hd", att, v).reshape(-1))
        pooled = jnp.stack(pooled)                                   # [G, D]
        out = pooled @ params["wo"]
        mu = out.mean(-1, keepdims=True)
        var = ((out - mu) ** 2).mean(-1, keepdims=True)
        out = (out - mu) / jnp.sqrt(var + 1e-5) * params["gamma"] + params["beta"]
        return h, out


if __name__ == "__main__":
    N = 256                    # nodes in the batch
    G = 2                      # graphs in the batch
    npg = N // G               # nodes per graph

    key = jax.random.PRNGKey(0)
    k_x, k_p = jax.random.split(key)

    # node features [N, D]
    x = jax.random.normal(k_x, (N, D), jnp.float32)

    # batch vector (data.batch) and ring edges within each graph (symmetric)
    batch = jnp.repeat(jnp.arange(G, dtype=jnp.int32), npg)              # [N]
    idx = jnp.arange(N, dtype=jnp.int32)
    base = (idx // npg) * npg
    nxt = base + (idx % npg + 1) % npg
    src = jnp.concatenate([idx, nxt])
    dst = jnp.concatenate([nxt, idx])
    edge_index = jnp.stack([src, dst])                                   # [2, 2N]

    a_hat = build_norm_adj(edge_index, N)                                # [N, N]
    mask = (batch[None, :] == jnp.arange(G, dtype=jnp.int32)[:, None]
            ).astype(jnp.float32)                                        # [G, N]

    params = init_params(k_p)

    n_feat, g_feat = graph_cnn_forward(x, a_hat, mask, params)
    jax.block_until_ready((n_feat, g_feat))

    assert n_feat.shape == (N, D) and g_feat.shape == (G, D)
    assert bool(jnp.all(jnp.isfinite(n_feat))) and bool(jnp.all(jnp.isfinite(g_feat)))

    # tolerance check vs. pure-f32 reference (kernel uses bf16 MXU operands)
    n_ref, g_ref = reference_forward(x, a_hat, mask, params)

    def _rel(a, b):
        return float(jnp.linalg.norm(a - b) / (jnp.linalg.norm(b) + 1e-12))

    assert _rel(n_feat, n_ref) < 5e-2
    assert _rel(g_feat, g_ref) < 1e-1

    print("KERNEL_OK")
</pallas_src>

<mosaic_0001>
module attributes {stable_mosaic.version = 11 : i64} {
  func.func @_fused_graph_cnn_kernel(%arg0: i32, %arg1: memref<256x512xbf16, #tpu.memory_space<vmem>>, %arg2: memref<1x512x512xbf16, #tpu.memory_space<vmem>>, %arg3: memref<1x1x512xf32, #tpu.memory_space<vmem>>, %arg4: memref<8x256xbf16, #tpu.memory_space<vmem>>, %arg5: memref<512x512xbf16, #tpu.memory_space<vmem>>, %arg6: memref<512x8xbf16, #tpu.memory_space<vmem>>, %arg7: memref<8x512xbf16, #tpu.memory_space<vmem>>, %arg8: memref<512x512xbf16, #tpu.memory_space<vmem>>, %arg9: memref<1x512xf32, #tpu.memory_space<vmem>>, %arg10: memref<1x512xf32, #tpu.memory_space<vmem>>, %arg11: memref<256x256xbf16, #tpu.memory_space<any>>, %arg12: memref<256x512xf32, #tpu.memory_space<vmem>>, %arg13: memref<8x512xf32, #tpu.memory_space<vmem>>, %arg14: memref<256x256xbf16, #tpu.memory_space<vmem>>, %arg15: memref<!tpu.dma_semaphore, #tpu.memory_space<semaphore_mem>>, %arg16: memref<256x512xf32, #tpu.memory_space<vmem>>, %arg17: memref<256x512xbf16, #tpu.memory_space<vmem>>) attributes {dimension_semantics = [#tpu.dimension_semantics<arbitrary>], iteration_bounds = array<i64: 3>, scalar_prefetch = 0 : i64, scratch_operands = 4 : i64, tpu.core_type = #tpu.core_type<tc>, window_params = [{pipeline_mode = #tpu.pipeline_mode<synchronous>, transform_indices = @transform_0, window_bounds = array<i64: 256, 512>}, {transform_indices = @transform_1, window_bounds = array<i64: 1, 512, 512>}, {transform_indices = @transform_2, window_bounds = array<i64: 1, 1, 512>}, {pipeline_mode = #tpu.pipeline_mode<synchronous>, transform_indices = @transform_3, window_bounds = array<i64: 8, 256>}, {pipeline_mode = #tpu.pipeline_mode<synchronous>, transform_indices = @transform_4, window_bounds = array<i64: 512, 512>}, {pipeline_mode = #tpu.pipeline_mode<synchronous>, transform_indices = @transform_5, window_bounds = array<i64: 512, 8>}, {pipeline_mode = #tpu.pipeline_mode<synchronous>, transform_indices = @transform_6, window_bounds = array<i64: 8, 512>}, {pipeline_mode = #tpu.pipeline_mode<synchronous>, transform_indices = @transform_7, window_bounds = array<i64: 512, 512>}, {pipeline_mode = #tpu.pipeline_mode<synchronous>, transform_indices = @transform_8, window_bounds = array<i64: 1, 512>}, {pipeline_mode = #tpu.pipeline_mode<synchronous>, transform_indices = @transform_9, window_bounds = array<i64: 1, 512>}, {}, {pipeline_mode = #tpu.pipeline_mode<synchronous>, transform_indices = @transform_11, window_bounds = array<i64: 256, 512>}, {pipeline_mode = #tpu.pipeline_mode<synchronous>, transform_indices = @transform_12, window_bounds = array<i64: 8, 512>}]} {
    %c0_i32 = arith.constant 0 : i32
    %0 = arith.cmpi eq, %arg0, %c0_i32 : i32
    %1 = arith.extui %0 : i1 to i32
    %c0_i32_0 = arith.constant 0 : i32
    %2 = arith.cmpi ne, %1, %c0_i32_0 : i32
    scf.if %2 {
      tpu.enqueue_dma source(%arg11 : memref<256x256xbf16, #tpu.memory_space<any>>) target(%arg14 : memref<256x256xbf16, #tpu.memory_space<vmem>>) target_semaphore(%arg15 : memref<!tpu.dma_semaphore, #tpu.memory_space<semaphore_mem>>)
      %cst_23 = arith.constant 0.000000e+00 : f32
      %28 = vector.broadcast %cst_23 : f32 to vector<256x512xf32>
      %c0_24 = arith.constant 0 : index
      %c0_25 = arith.constant 0 : index
      %29 = vector.load %arg16[%c0_24, %c0_25] : memref<256x512xf32, #tpu.memory_space<vmem>>, vector<256x512xf32>
      tpu.vector_store %arg16[%c0_24, %c0_25], %28 {strides = array<i32>} : memref<256x512xf32, #tpu.memory_space<vmem>>, vector<256x512xf32>,
      %c0_26 = arith.constant 0 : index
      %c0_27 = arith.constant 0 : index
      %30 = vector.load %arg1[%c0_26, %c0_27] : memref<256x512xbf16, #tpu.memory_space<vmem>>, vector<256x512xbf16>
      %c0_28 = arith.constant 0 : index
      %c0_29 = arith.constant 0 : index
      %31 = vector.load %arg17[%c0_28, %c0_29] : memref<256x512xbf16, #tpu.memory_space<vmem>>, vector<256x512xbf16>
      tpu.vector_store %arg17[%c0_28, %c0_29], %30 {strides = array<i32>} : memref<256x512xbf16, #tpu.memory_space<vmem>>, vector<256x512xbf16>,
    } else {
    }
    %c0 = arith.constant 0 : index
    %c0_1 = arith.constant 0 : index
    %3 = vector.load %arg17[%c0, %c0_1] : memref<256x512xbf16, #tpu.memory_space<vmem>>, vector<256x512xbf16>
    %c0_2 = arith.constant 0 : index
    %c0_3 = arith.constant 0 : index
    %c0_4 = arith.constant 0 : index
    %4 = vector.load %arg2[%c0_2, %c0_3, %c0_4] : memref<1x512x512xbf16, #tpu.memory_space<vmem>>, vector<1x512x512xbf16>
    %5 = vector.shape_cast %4 : vector<1x512x512xbf16> to vector<512x512xbf16>
    %cst = arith.constant dense<0.000000e+00> : vector<256x512xf32>
    %6 = tpu.matmul %3, %5, %cst {dimension_numbers = #tpu.dot_dimension_numbers<[1], [0], [0], [1], [0, 0, 1, 1], [], []>} : vector<256x512xbf16>, vector<512x512xbf16>, vector<256x512xf32> -> vector<256x512xf32>
    %c0_i32_5 = arith.constant 0 : i32
    %7 = arith.cmpi eq, %arg0, %c0_i32_5 : i32
    %8 = arith.extui %7 : i1 to i32
    %c0_i32_6 = arith.constant 0 : i32
    %9 = arith.cmpi ne, %8, %c0_i32_6 : i32
    scf.if %9 {
      tpu.wait_dma2 semaphore(%arg15 : memref<!tpu.dma_semaphore, #tpu.memory_space<semaphore_mem>>) src(%arg11 : memref<256x256xbf16, #tpu.memory_space<any>>) dst(%arg14 : memref<256x256xbf16, #tpu.memory_space<vmem>>)
    } else {
    }
    %c0_7 = arith.constant 0 : index
    %c0_8 = arith.constant 0 : index
    %10 = vector.load %arg14[%c0_7, %c0_8] : memref<256x256xbf16, #tpu.memory_space<vmem>>, vector<256x256xbf16>
    %11 = arith.truncf %6 : vector<256x512xf32> to vector<256x512xbf16>
    %cst_9 = arith.constant dense<0.000000e+00> : vector<256x512xf32>
    %12 = tpu.matmul %10, %11, %cst_9 {dimension_numbers = #tpu.dot_dimension_numbers<[1], [0], [0], [1], [0, 0, 1, 1], [], []>} : vector<256x256xbf16>, vector<256x512xbf16>, vector<256x512xf32> -> vector<256x512xf32>
    %c0_10 = arith.constant 0 : index
    %c0_11 = arith.constant 0 : index
    %13 = vector.load %arg16[%c0_10, %c0_11] : memref<256x512xf32, #tpu.memory_space<vmem>>, vector<256x512xf32>
    %c0_12 = arith.constant 0 : index
    %c0_13 = arith.constant 0 : index
    %c0_14 = arith.constant 0 : index
    %14 = vector.load %arg3[%c0_12, %c0_13, %c0_14] : memref<1x1x512xf32, #tpu.memory_space<vmem>>, vector<1x1x512xf32>
    %15 = vector.shape_cast %14 : vector<1x1x512xf32> to vector<1x512xf32>
    %16 = vector.broadcast %15 : vector<1x512xf32> to vector<256x512xf32>
    %17 = arith.addf %12, %16 : vector<256x512xf32>
    %cst_15 = arith.constant 0.000000e+00 : f32
    %18 = vector.broadcast %cst_15 : f32 to vector<256x512xf32>
    %19 = arith.maximumf %17, %18 : vector<256x512xf32>
    %20 = arith.addf %13, %19 : vector<256x512xf32>
    %c0_16 = arith.constant 0 : index
    %c0_17 = arith.constant 0 : index
    %21 = vector.load %arg16[%c0_16, %c0_17] : memref<256x512xf32, #tpu.memory_space<vmem>>, vector<256x512xf32>
    tpu.vector_store %arg16[%c0_16, %c0_17], %20 {strides = array<i32>} : memref<256x512xf32, #tpu.memory_space<vmem>>, vector<256x512xf32>,
    %c0_18 = arith.constant 0 : index
    %c0_19 = arith.constant 0 : index
    %22 = vector.load %arg16[%c0_18, %c0_19] : memref<256x512xf32, #tpu.memory_space<vmem>>, vector<256x512xf32>
    %23 = arith.truncf %22 : vector<256x512xf32> to vector<256x512xbf16>
    %c0_20 = arith.constant 0 : index
    %c0_21 = arith.constant 0 : index
    %24 = vector.load %arg17[%c0_20, %c0_21] : memref<256x512xbf16, #tpu.memory_space<vmem>>, vector<256x512xbf16>
    tpu.vector_store %arg17[%c0_20, %c0_21], %23 {strides = array<i32>} : memref<256x512xbf16, #tpu.memory_space<vmem>>, vector<256x512xbf16>,
    %c2_i32 = arith.constant 2 : i32
    %25 = arith.cmpi eq, %arg0, %c2_i32 : i32
    %26 = arith.extui %25 : i1 to i32
    %c0_i32_22 = arith.constant 0 : i32
    %27 = arith.cmpi ne, %26, %c0_i32_22 : i32
    scf.if %27 {
      %c0_23 = arith.constant 0 : index
      %c0_24 = arith.constant 0 : index
      %28 = vector.load %arg16[%c0_23, %c0_24] : memref<256x512xf32, #tpu.memory_space<vmem>>, vector<256x512xf32>
      %c0_25 = arith.constant 0 : index
      %c0_26 = arith.constant 0 : index
      %29 = vector.load %arg12[%c0_25, %c0_26] : memref<256x512xf32, #tpu.memory_space<vmem>>, vector<256x512xf32>
      tpu.vector_store %arg12[%c0_25, %c0_26], %28 {strides = array<i32>} : memref<256x512xf32, #tpu.memory_space<vmem>>, vector<256x512xf32>,
      %c0_27 = arith.constant 0 : index
      %c0_28 = arith.constant 0 : index
      %30 = vector.load %arg17[%c0_27, %c0_28] : memref<256x512xbf16, #tpu.memory_space<vmem>>, vector<256x512xbf16>
      %c0_29 = arith.constant 0 : index
      %c0_30 = arith.constant 0 : index
      %31 = vector.load %arg5[%c0_29, %c0_30] : memref<512x512xbf16, #tpu.memory_space<vmem>>, vector<512x512xbf16>
      %cst_31 = arith.constant dense<0.000000e+00> : vector<256x512xf32>
      %32 = tpu.matmul %30, %31, %cst_31 {dimension_numbers = #tpu.dot_dimension_numbers<[1], [0], [0], [1], [0, 0, 1, 1], [], []>} : vector<256x512xbf16>, vector<512x512xbf16>, vector<256x512xf32> -> vector<256x512xf32>
      %c0_32 = arith.constant 0 : index
      %c0_33 = arith.constant 0 : index
      %33 = vector.load %arg6[%c0_32, %c0_33] : memref<512x8xbf16, #tpu.memory_space<vmem>>, vector<512x8xbf16>
      %cst_34 = arith.constant dense<0.000000e+00> : vector<256x8xf32>
      %34 = tpu.matmul %30, %33, %cst_34 {dimension_numbers = #tpu.dot_dimension_numbers<[1], [0], [0], [1], [0, 0, 1, 1], [], []>} : vector<256x512xbf16>, vector<512x8xbf16>, vector<256x8xf32> -> vector<256x8xf32>
      %c0_35 = arith.constant 0 : index
      %c0_36 = arith.constant 0 : index
      %35 = vector.load %arg4[%c0_35, %c0_36] : memref<8x256xbf16, #tpu.memory_space<vmem>>, vector<8x256xbf16>
      %36 = vector.shape_cast %35 : vector<8x256xbf16> to vector<8x1x256xbf16>
      %cst_37 = arith.constant 0.000000e+00 : bf16
      %37 = vector.broadcast %cst_37 : bf16 to vector<8x1x256xbf16>
      %38 = arith.cmpf ogt, %36, %37 : vector<8x1x256xbf16>
      %39 = tpu.transpose %34, [1, 0] : vector<256x8xf32> -> vector<8x256xf32>
      %40 = vector.shape_cast %39 : vector<8x256xf32> to vector<1x8x256xf32>
      %cst_38 = arith.constant -1.000000e+30 : f32
      %41 = vector.shape_cast %38 : vector<8x1x256xi1> to vector<8x1x256xi1>
      %42 = vector.broadcast %41 : vector<8x1x256xi1> to vector<8x8x256xi1>
      %43 = vector.shape_cast %40 : vector<1x8x256xf32> to vector<1x8x256xf32>
      %44 = vector.broadcast %43 : vector<1x8x256xf32> to vector<8x8x256xf32>
      %45 = vector.broadcast %cst_38 : f32 to vector<8x8x256xf32>
      %46 = arith.select %42, %44, %45 : vector<8x8x256xi1>, vector<8x8x256xf32>
      %cst_39 = arith.constant dense<0xFF800000> : vector<8x8xf32>
      %47 = vector.multi_reduction <maximumf>, %46, %cst_39 [2] : vector<8x8x256xf32> to vector<8x8xf32>
      %48 = arith.extf %35 : vector<8x256xbf16> to vector<8x256xf32>
      %49 = tpu.transpose %48, [1, 0] : vector<8x256xf32> -> vector<256x8xf32>
      %cst_40 = arith.constant dense<0.000000e+00> : vector<256x8xf32>
      %50 = tpu.matmul %49, %47, %cst_40 {dimension_numbers = #tpu.dot_dimension_numbers<[1], [0], [0], [1], [0, 0, 1, 1], [], []>} : vector<256x8xf32>, vector<8x8xf32>, vector<256x8xf32> -> vector<256x8xf32>
      %51 = arith.subf %34, %50 : vector<256x8xf32>
      %52 = math.exp %51 : vector<256x8xf32>
      %53 = arith.truncf %52 : vector<256x8xf32> to vector<256x8xbf16>
      %cst_41 = arith.constant dense<0.000000e+00> : vector<8x8xf32>
      %54 = tpu.matmul %35, %53, %cst_41 {dimension_numbers = #tpu.dot_dimension_numbers<[1], [0], [0], [1], [0, 0, 1, 1], [], []>} : vector<8x256xbf16>, vector<256x8xbf16>, vector<8x8xf32> -> vector<8x8xf32>
      %cst_42 = arith.constant 9.99999968E-21 : f32
      %55 = vector.broadcast %cst_42 : f32 to vector<8x8xf32>
      %56 = arith.maximumf %54, %55 : vector<8x8xf32>
      %57 = tpu.reciprocal %56 {approx = true} : vector<8x8xf32> -> vector<8x8xf32>
      %c0_43 = arith.constant 0 : index
      %c0_44 = arith.constant 0 : index
      %58 = vector.load %arg7[%c0_43, %c0_44] : memref<8x512xbf16, #tpu.memory_space<vmem>>, vector<8x512xbf16>
      %cst_45 = arith.constant dense<0.000000e+00> : vector<256x512xf32>
      %59 = tpu.matmul %53, %58, %cst_45 {dimension_numbers = #tpu.dot_dimension_numbers<[1], [0], [0], [1], [0, 0, 1, 1], [], []>} : vector<256x8xbf16>, vector<8x512xbf16>, vector<256x512xf32> -> vector<256x512xf32>
      %60 = arith.mulf %59, %32 : vector<256x512xf32>
      %61 = arith.truncf %60 : vector<256x512xf32> to vector<256x512xbf16>
      %cst_46 = arith.constant dense<0.000000e+00> : vector<8x512xf32>
      %62 = tpu.matmul %35, %61, %cst_46 {dimension_numbers = #tpu.dot_dimension_numbers<[1], [0], [0], [1], [0, 0, 1, 1], [], []>} : vector<8x256xbf16>, vector<256x512xbf16>, vector<8x512xf32> -> vector<8x512xf32>
      %63 = arith.truncf %57 : vector<8x8xf32> to vector<8x8xbf16>
      %cst_47 = arith.constant dense<0.000000e+00> : vector<8x512xf32>
      %64 = tpu.matmul %63, %58, %cst_47 {dimension_numbers = #tpu.dot_dimension_numbers<[1], [0], [0], [1], [0, 0, 1, 1], [], []>} : vector<8x8xbf16>, vector<8x512xbf16>, vector<8x512xf32> -> vector<8x512xf32>
      %65 = arith.mulf %62, %64 : vector<8x512xf32>
      %66 = arith.truncf %65 : vector<8x512xf32> to vector<8x512xbf16>
      %c0_48 = arith.constant 0 : index
      %c0_49 = arith.constant 0 : index
      %67 = vector.load %arg8[%c0_48, %c0_49] : memref<512x512xbf16, #tpu.memory_space<vmem>>, vector<512x512xbf16>
      %cst_50 = arith.constant dense<0.000000e+00> : vector<8x512xf32>
      %68 = tpu.matmul %66, %67, %cst_50 {dimension_numbers = #tpu.dot_dimension_numbers<[1], [0], [0], [1], [0, 0, 1, 1], [], []>} : vector<8x512xbf16>, vector<512x512xbf16>, vector<8x512xf32> -> vector<8x512xf32>
      %cst_51 = arith.constant dense<0.000000e+00> : vector<8xf32>
      %69 = vector.multi_reduction <add>, %68, %cst_51 [1] : vector<8x512xf32> to vector<8xf32>
      %70 = vector.shape_cast %69 : vector<8xf32> to vector<8x1xf32>
      %cst_52 = arith.constant 5.120000e+02 : f32
      %71 = vector.broadcast %cst_52 : f32 to vector<8x1xf32>
      %72 = arith.divf %70, %71 : vector<8x1xf32>
      %73 = vector.broadcast %72 : vector<8x1xf32> to vector<8x512xf32>
      %74 = arith.subf %68, %73 : vector<8x512xf32>
      %75 = arith.mulf %74, %74 : vector<8x512xf32>
      %cst_53 = arith.constant dense<0.000000e+00> : vector<8xf32>
      %76 = vector.multi_reduction <add>, %75, %cst_53 [1] : vector<8x512xf32> to vector<8xf32>
      %77 = vector.shape_cast %76 : vector<8xf32> to vector<8x1xf32>
      %cst_54 = arith.constant 5.120000e+02 : f32
      %78 = vector.broadcast %cst_54 : f32 to vector<8x1xf32>
      %79 = arith.divf %77, %78 : vector<8x1xf32>
      %80 = vector.broadcast %72 : vector<8x1xf32> to vector<8x512xf32>
      %81 = arith.subf %68, %80 : vector<8x512xf32>
      %cst_55 = arith.constant 9.99999974E-6 : f32
      %82 = vector.broadcast %cst_55 : f32 to vector<8x1xf32>
      %83 = arith.addf %79, %82 : vector<8x1xf32>
      %84 = math.rsqrt %83 : vector<8x1xf32>
      %85 = vector.broadcast %84 : vector<8x1xf32> to vector<8x512xf32>
      %86 = arith.mulf %81, %85 : vector<8x512xf32>
      %c0_56 = arith.constant 0 : index
      %c0_57 = arith.constant 0 : index
      %87 = vector.load %arg9[%c0_56, %c0_57] : memref<1x512xf32, #tpu.memory_space<vmem>>, vector<1x512xf32>
      %88 = vector.broadcast %87 : vector<1x512xf32> to vector<8x512xf32>
      %89 = arith.mulf %86, %88 : vector<8x512xf32>
      %c0_58 = arith.constant 0 : index
      %c0_59 = arith.constant 0 : index
      %90 = vector.load %arg10[%c0_58, %c0_59] : memref<1x512xf32, #tpu.memory_space<vmem>>, vector<1x512xf32>
      %91 = vector.broadcast %90 : vector<1x512xf32> to vector<8x512xf32>
      %92 = arith.addf %89, %91 : vector<8x512xf32>
      %c0_60 = arith.constant 0 : index
      %c0_61 = arith.constant 0 : index
      %93 = vector.load %arg13[%c0_60, %c0_61] : memref<8x512xf32, #tpu.memory_space<vmem>>, vector<8x512xf32>
      tpu.vector_store %arg13[%c0_60, %c0_61], %92 {strides = array<i32>} : memref<8x512xf32, #tpu.memory_space<vmem>>, vector<8x512xf32>,
    } else {
    }
    return
  }
  func.func @transform_0(%arg0: i32) -> (i32, i32) {
    %c0_i32 = arith.constant 0 : i32
    %c0_i32_0 = arith.constant 0 : i32
    %c0_i32_1 = arith.constant 0 : i32
    return %c0_i32, %c0_i32_0 : i32, i32
  }
  func.func @transform_1(%arg0: i32) -> (i32, i32, i32) {
    %c0_i32 = arith.constant 0 : i32
    %c0_i32_0 = arith.constant 0 : i32
    %c0_i32_1 = arith.constant 0 : i32
    return %arg0, %c0_i32, %c0_i32_0 : i32, i32, i32
  }
  func.func @transform_2(%arg0: i32) -> (i32, i32, i32) {
    %c0_i32 = arith.constant 0 : i32
    %c0_i32_0 = arith.constant 0 : i32
    %c0_i32_1 = arith.constant 0 : i32
    return %arg0, %c0_i32, %c0_i32_0 : i32, i32, i32
  }
  func.func @transform_3(%arg0: i32) -> (i32, i32) {
    %c0_i32 = arith.constant 0 : i32
    %c0_i32_0 = arith.constant 0 : i32
    %c0_i32_1 = arith.constant 0 : i32
    return %c0_i32, %c0_i32_0 : i32, i32
  }
  func.func @transform_4(%arg0: i32) -> (i32, i32) {
    %c0_i32 = arith.constant 0 : i32
    %c0_i32_0 = arith.constant 0 : i32
    %c0_i32_1 = arith.constant 0 : i32
    return %c0_i32, %c0_i32_0 : i32, i32
  }
  func.func @transform_5(%arg0: i32) -> (i32, i32) {
    %c0_i32 = arith.constant 0 : i32
    %c0_i32_0 = arith.constant 0 : i32
    %c0_i32_1 = arith.constant 0 : i32
    return %c0_i32, %c0_i32_0 : i32, i32
  }
  func.func @transform_6(%arg0: i32) -> (i32, i32) {
    %c0_i32 = arith.constant 0 : i32
    %c0_i32_0 = arith.constant 0 : i32
    %c0_i32_1 = arith.constant 0 : i32
    return %c0_i32, %c0_i32_0 : i32, i32
  }
  func.func @transform_7(%arg0: i32) -> (i32, i32) {
    %c0_i32 = arith.constant 0 : i32
    %c0_i32_0 = arith.constant 0 : i32
    %c0_i32_1 = arith.constant 0 : i32
    return %c0_i32, %c0_i32_0 : i32, i32
  }
  func.func @transform_8(%arg0: i32) -> (i32, i32) {
    %c0_i32 = arith.constant 0 : i32
    %c0_i32_0 = arith.constant 0 : i32
    %c0_i32_1 = arith.constant 0 : i32
    return %c0_i32, %c0_i32_0 : i32, i32
  }
  func.func @transform_9(%arg0: i32) -> (i32, i32) {
    %c0_i32 = arith.constant 0 : i32
    %c0_i32_0 = arith.constant 0 : i32
    %c0_i32_1 = arith.constant 0 : i32
    return %c0_i32, %c0_i32_0 : i32, i32
  }
  func.func @transform_11(%arg0: i32) -> (i32, i32) {
    %c0_i32 = arith.constant 0 : i32
    %c0_i32_0 = arith.constant 0 : i32
    %c0_i32_1 = arith.constant 0 : i32
    return %c0_i32, %c0_i32_0 : i32, i32
  }
  func.func @transform_12(%arg0: i32) -> (i32, i32) {
    %c0_i32 = arith.constant 0 : i32
    %c0_i32_0 = arith.constant 0 : i32
    %c0_i32_1 = arith.constant 0 : i32
    return %c0_i32, %c0_i32_0 : i32, i32
  }
}

</mosaic_0001>

<llo_original>
// kernel: graph_cnn_forward.1
$region0: #{graph_cnn_forward.1}
  #allocation0 [shape = 'u32[]', space=smem, size = 0x4, offset = 0x4, fixed_abs, tag = 'smem constant byte address 0x4 - core index']
  #allocation1 [shape = 'u32[144,128]{1,0:T(1,128)}', space=vmem, size = 0x12000, scoped, tag = 'internal scratch']
  #allocation2 [shape = 'bf16[256,256]{1,0:T(16,128)(2,1)}', space=vmem, size = 0x20000, scoped, tag = 'scratch operand']
  #allocation3 [shape = 's32[1]{0}', space=sflag, size = 0x4, scoped, tag = 'scratch operand']
  #allocation4 [shape = 'f32[256,512]{1,0:T(8,128)}', space=vmem, size = 0x80000, scoped, tag = 'scratch operand']
  #allocation5 [shape = 'bf16[256,512]{1,0:T(16,128)(2,1)}', space=vmem, size = 0x40000, scoped, tag = 'scratch operand']
  #allocation8 [shape = 's32[]', space=sflag, size = 0x4, offset = 0, fixed_abs, tag = 'sflag constant byte address 0x0 - dummy sync flag']
  %s0 = inlined_call_operand.vmem [shape: bf16[256,512], index: 0, kind: input, shape index: {}]
  %s1 = inlined_call_operand.vmem [shape: bf16[3,512,512], index: 1, kind: input, shape index: {}]
  %s2 = inlined_call_operand.vmem [shape: f32[3,1,512], index: 2, kind: input, shape index: {}]
  %s3 = inlined_call_operand.vmem [shape: bf16[8,256], index: 3, kind: input, shape index: {}]
  %s4 = inlined_call_operand.vmem [shape: bf16[512,512], index: 4, kind: input, shape index: {}]
  %s5 = inlined_call_operand.vmem [shape: bf16[512,8], index: 5, kind: input, shape index: {}]
  %s6 = inlined_call_operand.vmem [shape: bf16[8,512], index: 6, kind: input, shape index: {}]
  %s7 = inlined_call_operand.vmem [shape: bf16[512,512], index: 7, kind: input, shape index: {}]
  %s8 = inlined_call_operand.vmem [shape: f32[1,512], index: 8, kind: input, shape index: {}]
  %s9 = inlined_call_operand.vmem [shape: f32[1,512], index: 9, kind: input, shape index: {}]
  %s10 = inlined_call_operand.vmem [shape: bf16[256,256], index: 10, kind: input, shape index: {}]
  %s11 = inlined_call_operand.hbm [shape: f32[256,512], index: 11, kind: output, shape index: {0}]
  %s12 = inlined_call_operand.vmem [shape: f32[8,512], index: 12, kind: output, shape index: {1}]
  %13 = xla_tuple %s11, %s12
  %s14 = sld [smem:[#allocation0]]
  $region130: #{graph_cnn_forward.1} parent=0
    _
  %s16 = ssub.s32 1, %s14
  %s17 = scalar_select 0, %s16, %s14
  $region1: #{graph_cnn_forward.1} parent=0
    #allocation6 [shape = 'u8[524288]{0}', space=vmem, size = 0x80000, scoped, tag = 'output window, operand 0, single buffered']
    #allocation7 [shape = 's32[2]{0}', space=sflag, size = 0x8, scoped, tag = 'scoped memory for graph_cnn_forward.1']
    %18 = vsyncpa [#allocation7], 0
    loop: start=0, step=1, limit=5
    $region2: #{graph_cnn_forward.1} parent=1 // loop_pre_header
      _
    $region3: #{graph_cnn_forward.1} parent=1 // loop_header
      %s20 = sphi 0, %s24
      %p21 = scmp.ge.s32.totalorder %s20, 5
      %s28 = sphi 0, %s28
      %s30 = sphi 0, %s28
      %s31 = sphi 0, %s30
      %s45 = sphi 0, %s31
      %s51 = sphi 0, %s53
      %s54 = sphi 0, %s51
      %s55 = sphi 0, %s54
      %s71 = sphi 0, %s55
      %s77 = sphi 0, %s79
      %s80 = sphi 0, %s77
      %s81 = sphi 0, %s80
      %s97 = sphi 0, %s81
      %s101 = sphi 0, %s101
      %s103 = sphi 0, %s101
      %s104 = sphi 0, %s103
      %s118 = sphi 0, %s104
      %s122 = sphi 0, %s122
      %s124 = sphi 0, %s122
      %s125 = sphi 0, %s124
      %s139 = sphi 0, %s125
      %s143 = sphi 0, %s143
      %s145 = sphi 0, %s143
      %s146 = sphi 0, %s145
      %s160 = sphi 0, %s146
      %s164 = sphi 0, %s164
      %s166 = sphi 0, %s164
      %s167 = sphi 0, %s166
      %s181 = sphi 0, %s167
      %s185 = sphi 0, %s185
      %s187 = sphi 0, %s185
      %s188 = sphi 0, %s187
      %s202 = sphi 0, %s188
      %s206 = sphi 0, %s206
      %s208 = sphi 0, %s206
      %s209 = sphi 0, %s208
      %s223 = sphi 0, %s209
      %s227 = sphi 0, %s227
      %s229 = sphi 0, %s227
      %s230 = sphi 0, %s229
      %s244 = sphi 0, %s230
      %s248 = sphi 0, %s248
      %s250 = sphi 0, %s248
      %s251 = sphi 0, %s250
      %s265 = sphi 0, %s251
      %s269 = sphi 0, %s269
      %s271 = sphi 0, %s269
      %s272 = sphi 0, %s271
      %s286 = sphi 0, %s272
    $region4: #{graph_cnn_forward.1} parent=1 // loop_header_branch
      %23 = sbr.rel (%p21) target = $region8
    $region5: #{graph_cnn_forward.1} parent=1 // loop_body
      %s25 = ssub.s32 %s20, 1
      %s26 = ssub.s32 %s20, 2
      %s27 = sadd.s32 %s20, 1
      %s29 = sadd.s32 %s28, 1
      %p32 = scmp.eq.s32.totalorder %s20, 2
      %p33 = scmp.ne.s32.totalorder %s28, %s30
      %p34 = scmp.eq.s32.totalorder %s20, 0
      %p35 = por %p33, %p34
      %p36 = scmp.ne.s32.totalorder %s28, %s30
      %p37 = scmp.eq.s32.totalorder %s25, 2
      %p38 = por %p36, %p37
      %p39 = scmp.ne.s32.totalorder %s30, %s31
      %p40 = scmp.eq.s32.totalorder %s25, 0
      %p41 = por %p39, %p40
      %p42 = scmp.ne.s32.totalorder %s30, %s31
      %p43 = scmp.eq.s32.totalorder %s26, 2
      %p44 = por %p42, %p43
      %p46 = scmp.ne.s32.totalorder %s31, %s45
      %p47 = scmp.eq.s32.totalorder %s26, 0
      %p48 = por %p46, %p47
      %s49 = ssub.s32 %s20, %s27
      %p50 = scmp.eq.s32.totalorder %s49, 0
      %s52 = sadd.s32 %s51, 1
      %s53 = scalar_select %p50, %s51, %s52
      %p56 = pneg %p50
      %p57 = scmp.eq.s32.totalorder %s20, 2
      %p58 = por %p56, %p57
      %p59 = scmp.ne.s32.totalorder %s51, %s54
      %p60 = scmp.eq.s32.totalorder %s20, 0
      %p61 = por %p59, %p60
      %p62 = scmp.ne.s32.totalorder %s51, %s54
      %p63 = scmp.eq.s32.totalorder %s25, 2
      %p64 = por %p62, %p63
      %p65 = scmp.ne.s32.totalorder %s54, %s55
      %p66 = scmp.eq.s32.totalorder %s25, 0
      %p67 = por %p65, %p66
      %p68 = scmp.ne.s32.totalorder %s54, %s55
      %p69 = scmp.eq.s32.totalorder %s26, 2
      %p70 = por %p68, %p69
      %p72 = scmp.ne.s32.totalorder %s55, %s71
      %p73 = scmp.eq.s32.totalorder %s26, 0
      %p74 = por %p72, %p73
      %s75 = ssub.s32 %s20, %s27
      %p76 = scmp.eq.s32.totalorder %s75, 0
      %s78 = sadd.s32 %s77, 1
      %s79 = scalar_select %p76, %s77, %s78
      %p82 = pneg %p76
      %p83 = scmp.eq.s32.totalorder %s20, 2
      %p84 = por %p82, %p83
      %p85 = scmp.ne.s32.totalorder %s77, %s80
      %p86 = scmp.eq.s32.totalorder %s20, 0
      %p87 = por %p85, %p86
      %p88 = scmp.ne.s32.totalorder %s77, %s80
      %p89 = scmp.eq.s32.totalorder %s25, 2
      %p90 = por %p88, %p89
      %p91 = scmp.ne.s32.totalorder %s80, %s81
      %p92 = scmp.eq.s32.totalorder %s25, 0
      %p93 = por %p91, %p92
      %p94 = scmp.ne.s32.totalorder %s80, %s81
      %p95 = scmp.eq.s32.totalorder %s26, 2
      %p96 = por %p94, %p95
      %p98 = scmp.ne.s32.totalorder %s81, %s97
      %p99 = scmp.eq.s32.totalorder %s26, 0
      %p100 = por %p98, %p99
      %s102 = sadd.s32 %s101, 1
      %p105 = scmp.eq.s32.totalorder %s20, 2
      %p106 = scmp.ne.s32.totalorder %s101, %s103
      %p107 = scmp.eq.s32.totalorder %s20, 0
      %p108 = por %p106, %p107
      %p109 = scmp.ne.s32.totalorder %s101, %s103
      %p110 = scmp.eq.s32.totalorder %s25, 2
      %p111 = por %p109, %p110
      %p112 = scmp.ne.s32.totalorder %s103, %s104
      %p113 = scmp.eq.s32.totalorder %s25, 0
      %p114 = por %p112, %p113
      %p115 = scmp.ne.s32.totalorder %s103, %s104
      %p116 = scmp.eq.s32.totalorder %s26, 2
      %p117 = por %p115, %p116
      %p119 = scmp.ne.s32.totalorder %s104, %s118
      %p120 = scmp.eq.s32.totalorder %s26, 0
      %p121 = por %p119, %p120
      %s123 = sadd.s32 %s122, 1
      %p126 = scmp.eq.s32.totalorder %s20, 2
      %p127 = scmp.ne.s32.totalorder %s122, %s124
      %p128 = scmp.eq.s32.totalorder %s20, 0
      %p129 = por %p127, %p128
      %p130 = scmp.ne.s32.totalorder %s122, %s124
      %p131 = scmp.eq.s32.totalorder %s25, 2
      %p132 = por %p130, %p131
      %p133 = scmp.ne.s32.totalorder %s124, %s125
      %p134 = scmp.eq.s32.totalorder %s25, 0
      %p135 = por %p133, %p134
      %p136 = scmp.ne.s32.totalorder %s124, %s125
      %p137 = scmp.eq.s32.totalorder %s26, 2
      %p138 = por %p136, %p137
      %p140 = scmp.ne.s32.totalorder %s125, %s139
      %p141 = scmp.eq.s32.totalorder %s26, 0
      %p142 = por %p140, %p141
      %s144 = sadd.s32 %s143, 1
      %p147 = scmp.eq.s32.totalorder %s20, 2
      %p148 = scmp.ne.s32.totalorder %s143, %s145
      %p149 = scmp.eq.s32.totalorder %s20, 0
      %p150 = por %p148, %p149
      %p151 = scmp.ne.s32.totalorder %s143, %s145
      %p152 = scmp.eq.s32.totalorder %s25, 2
      %p153 = por %p151, %p152
      %p154 = scmp.ne.s32.totalorder %s145, %s146
      %p155 = scmp.eq.s32.totalorder %s25, 0
      %p156 = por %p154, %p155
      %p157 = scmp.ne.s32.totalorder %s145, %s146
      %p158 = scmp.eq.s32.totalorder %s26, 2
      %p159 = por %p157, %p158
      %p161 = scmp.ne.s32.totalorder %s146, %s160
      %p162 = scmp.eq.s32.totalorder %s26, 0
      %p163 = por %p161, %p162
      %s165 = sadd.s32 %s164, 1
      %p168 = scmp.eq.s32.totalorder %s20, 2
      %p169 = scmp.ne.s32.totalorder %s164, %s166
      %p170 = scmp.eq.s32.totalorder %s20, 0
      %p171 = por %p169, %p170
      %p172 = scmp.ne.s32.totalorder %s164, %s166
      %p173 = scmp.eq.s32.totalorder %s25, 2
      %p174 = por %p172, %p173
      %p175 = scmp.ne.s32.totalorder %s166, %s167
      %p176 = scmp.eq.s32.totalorder %s25, 0
      %p177 = por %p175, %p176
      %p178 = scmp.ne.s32.totalorder %s166, %s167
      %p179 = scmp.eq.s32.totalorder %s26, 2
      %p180 = por %p178, %p179
      %p182 = scmp.ne.s32.totalorder %s167, %s181
      %p183 = scmp.eq.s32.totalorder %s26, 0
      %p184 = por %p182, %p183
      %s186 = sadd.s32 %s185, 1
      %p189 = scmp.eq.s32.totalorder %s20, 2
      %p190 = scmp.ne.s32.totalorder %s185, %s187
      %p191 = scmp.eq.s32.totalorder %s20, 0
      %p192 = por %p190, %p191
      %p193 = scmp.ne.s32.totalorder %s185, %s187
      %p194 = scmp.eq.s32.totalorder %s25, 2
      %p195 = por %p193, %p194
      %p196 = scmp.ne.s32.totalorder %s187, %s188
      %p197 = scmp.eq.s32.totalorder %s25, 0
      %p198 = por %p196, %p197
      %p199 = scmp.ne.s32.totalorder %s187, %s188
      %p200 = scmp.eq.s32.totalorder %s26, 2
      %p201 = por %p199, %p200
      %p203 = scmp.ne.s32.totalorder %s188, %s202
      %p204 = scmp.eq.s32.totalorder %s26, 0
      %p205 = por %p203, %p204
      %s207 = sadd.s32 %s206, 1
      %p210 = scmp.eq.s32.totalorder %s20, 2
      %p211 = scmp.ne.s32.totalorder %s206, %s208
      %p212 = scmp.eq.s32.totalorder %s20, 0
      %p213 = por %p211, %p212
      %p214 = scmp.ne.s32.totalorder %s206, %s208
      %p215 = scmp.eq.s32.totalorder %s25, 2
      %p216 = por %p214, %p215
      %p217 = scmp.ne.s32.totalorder %s208, %s209
      %p218 = scmp.eq.s32.totalorder %s25, 0
      %p219 = por %p217, %p218
      %p220 = scmp.ne.s32.totalorder %s208, %s209
      %p221 = scmp.eq.s32.totalorder %s26, 2
      %p222 = por %p220, %p221
      %p224 = scmp.ne.s32.totalorder %s209, %s223
      %p225 = scmp.eq.s32.totalorder %s26, 0
      %p226 = por %p224, %p225
      %s228 = sadd.s32 %s227, 1
      %p231 = scmp.eq.s32.totalorder %s20, 2
      %p232 = scmp.ne.s32.totalorder %s227, %s229
      %p233 = scmp.eq.s32.totalorder %s20, 0
      %p234 = por %p232, %p233
      %p235 = scmp.ne.s32.totalorder %s227, %s229
      %p236 = scmp.eq.s32.totalorder %s25, 2
      %p237 = por %p235, %p236
      %p238 = scmp.ne.s32.totalorder %s229, %s230
      %p239 = scmp.eq.s32.totalorder %s25, 0
      %p240 = por %p238, %p239
      %p241 = scmp.ne.s32.totalorder %s229, %s230
      %p242 = scmp.eq.s32.totalorder %s26, 2
      %p243 = por %p241, %p242
      %p245 = scmp.ne.s32.totalorder %s230, %s244
      %p246 = scmp.eq.s32.totalorder %s26, 0
      %p247 = por %p245, %p246
      %s249 = sadd.s32 %s248, 1
      %p252 = scmp.eq.s32.totalorder %s20, 2
      %p253 = scmp.ne.s32.totalorder %s248, %s250
      %p254 = scmp.eq.s32.totalorder %s20, 0
      %p255 = por %p253, %p254
      %p256 = scmp.ne.s32.totalorder %s248, %s250
      %p257 = scmp.eq.s32.totalorder %s25, 2
      %p258 = por %p256, %p257
      %p259 = scmp.ne.s32.totalorder %s250, %s251
      %p260 = scmp.eq.s32.totalorder %s25, 0
      %p261 = por %p259, %p260
      %p262 = scmp.ne.s32.totalorder %s250, %s251
      %p263 = scmp.eq.s32.totalorder %s26, 2
      %p264 = por %p262, %p263
      %p266 = scmp.ne.s32.totalorder %s251, %s265
      %p267 = scmp.eq.s32.totalorder %s26, 0
      %p268 = por %p266, %p267
      %s270 = sadd.s32 %s269, 1
      %p273 = scmp.eq.s32.totalorder %s20, 2
      %p274 = scmp.ne.s32.totalorder %s269, %s271
      %p275 = scmp.eq.s32.totalorder %s20, 0
      %p276 = por %p274, %p275
      %p277 = scmp.ne.s32.totalorder %s269, %s271
      %p278 = scmp.eq.s32.totalorder %s25, 2
      %p279 = por %p277, %p278
      %p280 = scmp.ne.s32.totalorder %s271, %s272
      %p281 = scmp.eq.s32.totalorder %s25, 0
      %p282 = por %p280, %p281
      %p283 = scmp.ne.s32.totalorder %s271, %s272
      %p284 = scmp.eq.s32.totalorder %s26, 2
      %p285 = por %p283, %p284
      %p287 = scmp.ne.s32.totalorder %s272, %s286
      %p288 = scmp.eq.s32.totalorder %s26, 0
      %p289 = por %p287, %p288
      %p290 = scmp.le.s32.totalorder 1, %s20
      %p291 = scmp.lt.s32.totalorder %s20, 4
      %p292 = pnand %p290, %p291
      %p293 = pneg %p292
      // Predicated region
      $region9: #{graph_cnn_forward.1} parent=5 // pred_check
        _
      $region10: #{graph_cnn_forward.1} parent=5 // pred_check_branch
        %295 = sbr.rel (%p292) target = $region12
      $region11: #{graph_cnn_forward.1} parent=5 // pred_region
        %s296 = ssub.s32 %s20, 1
        // Predicated region
        $region13: #{graph_cnn_forward.1} parent=11 // pred_check
          %p297 = pneg %p41
        $region14: #{graph_cnn_forward.1} parent=11 // pred_check_branch
          %299 = sbr.rel (%p297) target = $region16
        $region15: #{graph_cnn_forward.1} parent=11 // pred_region
          _
        $region16: #{graph_cnn_forward.1} parent=11 // pred_fallthru
          _
        // Predicated region
        $region17: #{graph_cnn_forward.1} parent=11 // pred_check
          %p300 = pneg %p114
        $region18: #{graph_cnn_forward.1} parent=11 // pred_check_branch
          %302 = sbr.rel (%p300) target = $region20
        $region19: #{graph_cnn_forward.1} parent=11 // pred_region
          _
        $region20: #{graph_cnn_forward.1} parent=11 // pred_fallthru
          _
        // Predicated region
        $region21: #{graph_cnn_forward.1} parent=11 // pred_check
          %p303 = pneg %p135
        $region22: #{graph_cnn_forward.1} parent=11 // pred_check_branch
          %305 = sbr.rel (%p303) target = $region24
        $region23: #{graph_cnn_forward.1} parent=11 // pred_region
          _
        $region24: #{graph_cnn_forward.1} parent=11 // pred_fallthru
          _
        // Predicated region
        $region25: #{graph_cnn_forward.1} parent=11 // pred_check
          %p306 = pneg %p156
        $region26: #{graph_cnn_forward.1} parent=11 // pred_check_branch
          %308 = sbr.rel (%p306) target = $region28
        $region27: #{graph_cnn_forward.1} parent=11 // pred_region
          _
        $region28: #{graph_cnn_forward.1} parent=11 // pred_fallthru
          _
        // Predicated region
        $region29: #{graph_cnn_forward.1} parent=11 // pred_check
          %p309 = pneg %p177
        $region30: #{graph_cnn_forward.1} parent=11 // pred_check_branch
          %311 = sbr.rel (%p309) target = $region32
        $region31: #{graph_cnn_forward.1} parent=11 // pred_region
          _
        $region32: #{graph_cnn_forward.1} parent=11 // pred_fallthru
          _
        // Predicated region
        $region33: #{graph_cnn_forward.1} parent=11 // pred_check
          %p312 = pneg %p198
        $region34: #{graph_cnn_forward.1} parent=11 // pred_check_branch
          %314 = sbr.rel (%p312) target = $region36
        $region35: #{graph_cnn_forward.1} parent=11 // pred_region
          _
        $region36: #{graph_cnn_forward.1} parent=11 // pred_fallthru
          _
        // Predicated region
        $region37: #{graph_cnn_forward.1} parent=11 // pred_check
          %p315 = pneg %p219
        $region38: #{graph_cnn_forward.1} parent=11 // pred_check_branch
          %317 = sbr.rel (%p315) target = $region40
        $region39: #{graph_cnn_forward.1} parent=11 // pred_region
          _
        $region40: #{graph_cnn_forward.1} parent=11 // pred_fallthru
          _
        // Predicated region
        $region41: #{graph_cnn_forward.1} parent=11 // pred_check
          %p318 = pneg %p240
        $region42: #{graph_cnn_forward.1} parent=11 // pred_check_branch
          %320 = sbr.rel (%p318) target = $region44
        $region43: #{graph_cnn_forward.1} parent=11 // pred_region
          _
        $region44: #{graph_cnn_forward.1} parent=11 // pred_fallthru
          _
      $region12: #{graph_cnn_forward.1} parent=5 // pred_fallthru
        _
      %p321 = scmp.lt.s32.totalorder %s20, 3
      // Predicated region
      $region45: #{graph_cnn_forward.1} parent=5 // pred_check
        %p322 = pneg %p321
      $region46: #{graph_cnn_forward.1} parent=5 // pred_check_branch
        %324 = sbr.rel (%p322) target = $region48
      $region47: #{graph_cnn_forward.1} parent=5 // pred_region
        // Predicated region
        $region49: #{graph_cnn_forward.1} parent=47 // pred_check
          %p325 = pneg %p61
        $region50: #{graph_cnn_forward.1} parent=47 // pred_check_branch
          %327 = sbr.rel (%p325) target = $region52
        $region51: #{graph_cnn_forward.1} parent=47 // pred_region
          %p328 = scmp.lt.s32.totalorder %s20, 2
          %s329 = scalar_select %p328, %s20, 2
          %s330 = smul.addr %s329, 256
          %s331 = smul.addr %s330, 4
          %s332 = scalar_lea.vmem %s1, %s331
        $region52: #{graph_cnn_forward.1} parent=47 // pred_fallthru
          _
        // Predicated region
        $region53: #{graph_cnn_forward.1} parent=47 // pred_check
          %p333 = pneg %p87
        $region54: #{graph_cnn_forward.1} parent=47 // pred_check_branch
          %335 = sbr.rel (%p333) target = $region56
        $region55: #{graph_cnn_forward.1} parent=47 // pred_region
          %p336 = scmp.lt.s32.totalorder %s20, 2
          %s337 = scalar_select %p336, %s20, 2
          %s338 = smul.addr %s337, 4
          %s339 = scalar_lea.vmem %s2, %s338
        $region56: #{graph_cnn_forward.1} parent=47 // pred_fallthru
          _
      $region48: #{graph_cnn_forward.1} parent=5 // pred_fallthru
        _
      %p340 = scmp.le.s32.totalorder 1, %s20
      %p341 = scmp.lt.s32.totalorder %s20, 4
      %p342 = pnand %p340, %p341
      %p343 = pneg %p342
      // Predicated region
      $region57: #{graph_cnn_forward.1} parent=5 // pred_check
        _
      $region58: #{graph_cnn_forward.1} parent=5 // pred_check_branch
        %345 = sbr.rel (%p342) target = $region60
      $region59: #{graph_cnn_forward.1} parent=5 // pred_region
        %s346 = ssub.s32 %s20, 1
        %p347 = pneg %p41
        %p348 = pneg %p38
        %p349 = scmp.lt.s32.totalorder %s25, 2
        %s350 = scalar_select %p349, %s25, 2
        %s351 = smul.addr %s350, 256
        %s352 = smul.addr %s351, 4
        %s353 = scalar_lea.vmem %s1, %s352
        %p354 = pneg %p67
        %p355 = pneg %p64
        %p356 = scmp.lt.s32.totalorder %s25, 2
        %s357 = scalar_select %p356, %s25, 2
        %s358 = smul.addr %s357, 4
        %s359 = scalar_lea.vmem %s2, %s358
        %p360 = pneg %p93
        %p361 = pneg %p90
        %p362 = pneg %p114
        %p363 = pneg %p111
        %p364 = pneg %p135
        %p365 = pneg %p132
        %p366 = pneg %p156
        %p367 = pneg %p153
        %p368 = pneg %p177
        %p369 = pneg %p174
        %p370 = pneg %p198
        %p371 = pneg %p195
        %p372 = pneg %p219
        %p373 = pneg %p216
        %p374 = pneg %p240
        %p375 = pneg %p237
        %p376 = pneg %p261
        %p377 = pneg %p258
        %p378 = pneg %p282
        %p379 = pneg %p279
        %p380 = scmp.lt.s32.totalorder %s25, 2
        %s381 = scalar_select %p380, %s25, 2
        %s382 = smul.addr %s381, 256
        %s383 = smul.addr %s382, 4
        %s384 = scalar_lea.vmem %s1, %s383
        %p385 = scmp.lt.s32.totalorder %s25, 2
        %s386 = scalar_select %p385, %s25, 2
        %s387 = smul.addr %s386, 4
        %s388 = scalar_lea.vmem %s2, %s387
        %p392 = scmp.eq.s32.totalorder %s25, 0
        // Predicated region
        $region61: #{graph_cnn_forward.1} parent=59 // pred_check
          %p393 = pneg %p392
        $region62: #{graph_cnn_forward.1} parent=59 // pred_check_branch
          %395 = sbr.rel (%p393) target = $region64
        $region63: #{graph_cnn_forward.1} parent=59 // pred_region
          %p397 = scmp.lt.u32.totalorder 4, 8
          %p398 = pneg %p397
          // Predicated region
          $region65: #{graph_cnn_forward.1} parent=63 // pred_check
            _
          $region66: #{graph_cnn_forward.1} parent=63 // pred_check_branch
            %400 = sbr.rel (%p397) target = $region68
          $region67: #{graph_cnn_forward.1} parent=63 // pred_region
            %s541 = sand.u32 4, 7
            %p542 = scmp.eq.s32.totalorder %s541, 0
            %p543 = pneg %p542
            // Predicated region
            $region80: #{graph_cnn_forward.1} parent=67 // pred_check
              _
            $region81: #{graph_cnn_forward.1} parent=67 // pred_check_branch
              %545 = sbr.rel (%p542) target = $region83
            $region82: #{graph_cnn_forward.1} parent=67 // pred_region
              %s546 = sand.u32 4, 7
              %s547 = ssub.s32 4, %s546
              %s548 = scalar_lea.vmem %s10, %s547
              %s549 = ssub.s32 4, %s546
              %s550 = scalar_lea.vmem [#allocation2], %s549
              loop: start=0, step=1, limit=1
              $region84: #{graph_cnn_forward.1} parent=82 // loop_pre_header
                _
              $region85: #{graph_cnn_forward.1} parent=82 // loop_header
                %s552 = sphi 0, %s556
                %p553 = scmp.ge.s32.totalorder %s552, 1
                %s557 = sphi %s10, %s10
                %s558 = sphi [#allocation2], [#allocation2]
              $region86: #{graph_cnn_forward.1} parent=82 // loop_header_branch
                %555 = sbr.rel (%p553) target = $region90
              $region87: #{graph_cnn_forward.1} parent=82 // loop_body
                _
              $region88: #{graph_cnn_forward.1} parent=82 // loop_footer
                %s556 = sadd.s32 1, %s552
              $region89: #{graph_cnn_forward.1} parent=82 // loop_footer_branch
                %551 = sbr.rel target = $region85
              $region90: #{graph_cnn_forward.1} parent=82 // loop_exit
                _
              %s559 = sshllo.u32 0, %s546
              loop: start=0, step=1, limit=1
              $region91: #{graph_cnn_forward.1} parent=82 // loop_pre_header
                _
              $region92: #{graph_cnn_forward.1} parent=82 // loop_header
                %s561 = sphi 0, %s565
                %p562 = scmp.ge.s32.totalorder %s561, 1
                %s566 = sphi %s548, %s548
                %s567 = sphi %s550, %s550
              $region93: #{graph_cnn_forward.1} parent=82 // loop_header_branch
                %564 = sbr.rel (%p562) target = $region97
              $region94: #{graph_cnn_forward.1} parent=82 // loop_body
                %v568 = vld [vmem:[%s566] sm:%s559]
                %569 = vst [vmem:[%s567] sm:%s559] %v568
                %v570 = vld [vmem:[%s566 + $0x8] sm:%s559]
                %571 = vst [vmem:[%s567 + $0x4] sm:%s559] %v570
                %v572 = vld [vmem:[%s566 + $0x4] sm:%s559]
                %573 = vst [vmem:[%s567 + $0x8] sm:%s559] %v572
                %v574 = vld [vmem:[%s566 + $0xc] sm:%s559]
                %575 = vst [vmem:[%s567 + $0xc] sm:%s559] %v574
                %v576 = vld [vmem:[%s566 + $0x10] sm:%s559]
                %577 = vst [vmem:[%s567 + $0x10] sm:%s559] %v576
                %v578 = vld [vmem:[%s566 + $0x18] sm:%s559]
                %579 = vst [vmem:[%s567 + $0x14] sm:%s559] %v578
                %v580 = vld [vmem:[%s566 + $0x14] sm:%s559]
                %581 = vst [vmem:[%s567 + $0x18] sm:%s559] %v580
                %v582 = vld [vmem:[%s566 + $0x1c] sm:%s559]
                %583 = vst [vmem:[%s567 + $0x1c] sm:%s559] %v582
                %v584 = vld [vmem:[%s566 + $0x20] sm:%s559]
                %585 = vst [vmem:[%s567 + $0x20] sm:%s559] %v584
                %v586 = vld [vmem:[%s566 + $0x28] sm:%s559]
                %587 = vst [vmem:[%s567 + $0x24] sm:%s559] %v586
                %v588 = vld [vmem:[%s566 + $0x24] sm:%s559]
                %589 = vst [vmem:[%s567 + $0x28] sm:%s559] %v588
                %v590 = vld [vmem:[%s566 + $0x2c] sm:%s559]
                %591 = vst [vmem:[%s567 + $0x2c] sm:%s559] %v590
                %v592 = vld [vmem:[%s566 + $0x30] sm:%s559]
                %593 = vst [vmem:[%s567 + $0x30] sm:%s559] %v592
                %v594 = vld [vmem:[%s566 + $0x38] sm:%s559]
                %595 = vst [vmem:[%s567 + $0x34] sm:%s559] %v594
                %v596 = vld [vmem:[%s566 + $0x34] sm:%s559]
                %597 = vst [vmem:[%s567 + $0x38] sm:%s559] %v596
                %v598 = vld [vmem:[%s566 + $0x3c] sm:%s559]
                %599 = vst [vmem:[%s567 + $0x3c] sm:%s559] %v598
                %v600 = vld [vmem:[%s566 + $0x40] sm:%s559]
                %601 = vst [vmem:[%s567 + $0x40] sm:%s559] %v600
                %v602 = vld [vmem:[%s566 + $0x48] sm:%s559]
                %603 = vst [vmem:[%s567 + $0x44] sm:%s559] %v602
                %v604 = vld [vmem:[%s566 + $0x44] sm:%s559]
                %605 = vst [vmem:[%s567 + $0x48] sm:%s559] %v604
                %v606 = vld [vmem:[%s566 + $0x4c] sm:%s559]
                %607 = vst [vmem:[%s567 + $0x4c] sm:%s559] %v606
                %v608 = vld [vmem:[%s566 + $0x50] sm:%s559]
                %609 = vst [vmem:[%s567 + $0x50] sm:%s559] %v608
                %v610 = vld [vmem:[%s566 + $0x58] sm:%s559]
                %611 = vst [vmem:[%s567 + $0x54] sm:%s559] %v610
                %v612 = vld [vmem:[%s566 + $0x54] sm:%s559]
                %613 = vst [vmem:[%s567 + $0x58] sm:%s559] %v612
                %v614 = vld [vmem:[%s566 + $0x5c] sm:%s559]
                %615 = vst [vmem:[%s567 + $0x5c] sm:%s559] %v614
                %v616 = vld [vmem:[%s566 + $0x60] sm:%s559]
                %617 = vst [vmem:[%s567 + $0x60] sm:%s559] %v616
                %v618 = vld [vmem:[%s566 + $0x68] sm:%s559]
                %619 = vst [vmem:[%s567 + $0x64] sm:%s559] %v618
                %v620 = vld [vmem:[%s566 + $0x64] sm:%s559]
                %621 = vst [vmem:[%s567 + $0x68] sm:%s559] %v620
                %v622 = vld [vmem:[%s566 + $0x6c] sm:%s559]
                %623 = vst [vmem:[%s567 + $0x6c] sm:%s559] %v622
                %v624 = vld [vmem:[%s566 + $0x70] sm:%s559]
                %625 = vst [vmem:[%s567 + $0x70] sm:%s559] %v624
                %v626 = vld [vmem:[%s566 + $0x78] sm:%s559]
                %627 = vst [vmem:[%s567 + $0x74] sm:%s559] %v626
                %v628 = vld [vmem:[%s566 + $0x74] sm:%s559]
                %629 = vst [vmem:[%s567 + $0x78] sm:%s559] %v628
                %v630 = vld [vmem:[%s566 + $0x7c] sm:%s559]
                %631 = vst [vmem:[%s567 + $0x7c] sm:%s559] %v630
                %v632 = vld [vmem:[%s566 + $0x80] sm:%s559]
                %633 = vst [vmem:[%s567 + $0x80] sm:%s559] %v632
                %v634 = vld [vmem:[%s566 + $0x88] sm:%s559]
                %635 = vst [vmem:[%s567 + $0x84] sm:%s559] %v634
                %v636 = vld [vmem:[%s566 + $0x84] sm:%s559]
                %637 = vst [vmem:[%s567 + $0x88] sm:%s559] %v636
                %v638 = vld [vmem:[%s566 + $0x8c] sm:%s559]
                %639 = vst [vmem:[%s567 + $0x8c] sm:%s559] %v638
                %v640 = vld [vmem:[%s566 + $0x90] sm:%s559]
                %641 = vst [vmem:[%s567 + $0x90] sm:%s559] %v640
                %v642 = vld [vmem:[%s566 + $0x98] sm:%s559]
                %643 = vst [vmem:[%s567 + $0x94] sm:%s559] %v642
                %v644 = vld [vmem:[%s566 + $0x94] sm:%s559]
                %645 = vst [vmem:[%s567 + $0x98] sm:%s559] %v644
                %v646 = vld [vmem:[%s566 + $0x9c] sm:%s559]
                %647 = vst [vmem:[%s567 + $0x9c] sm:%s559] %v646
                %v648 = vld [vmem:[%s566 + $0xa0] sm:%s559]
                %649 = vst [vmem:[%s567 + $0xa0] sm:%s559] %v648
                %v650 = vld [vmem:[%s566 + $0xa8] sm:%s559]
                %651 = vst [vmem:[%s567 + $0xa4] sm:%s559] %v650
                %v652 = vld [vmem:[%s566 + $0xa4] sm:%s559]
                %653 = vst [vmem:[%s567 + $0xa8] sm:%s559] %v652
                %v654 = vld [vmem:[%s566 + $0xac] sm:%s559]
                %655 = vst [vmem:[%s567 + $0xac] sm:%s559] %v654
                %v656 = vld [vmem:[%s566 + $0xb0] sm:%s559]
                %657 = vst [vmem:[%s567 + $0xb0] sm:%s559] %v656
                %v658 = vld [vmem:[%s566 + $0xb8] sm:%s559]
                %659 = vst [vmem:[%s567 + $0xb4] sm:%s559] %v658
                %v660 = vld [vmem:[%s566 + $0xb4] sm:%s559]
                %661 = vst [vmem:[%s567 + $0xb8] sm:%s559] %v660
                %v662 = vld [vmem:[%s566 + $0xbc] sm:%s559]
                %663 = vst [vmem:[%s567 + $0xbc] sm:%s559] %v662
                %v664 = vld [vmem:[%s566 + $0xc0] sm:%s559]
                %665 = vst [vmem:[%s567 + $0xc0] sm:%s559] %v664
                %v666 = vld [vmem:[%s566 + $0xc8] sm:%s559]
                %667 = vst [vmem:[%s567 + $0xc4] sm:%s559] %v666
                %v668 = vld [vmem:[%s566 + $0xc4] sm:%s559]
                %669 = vst [vmem:[%s567 + $0xc8] sm:%s559] %v668
                %v670 = vld [vmem:[%s566 + $0xcc] sm:%s559]
                %671 = vst [vmem:[%s567 + $0xcc] sm:%s559] %v670
                %v672 = vld [vmem:[%s566 + $0xd0] sm:%s559]
                %673 = vst [vmem:[%s567 + $0xd0] sm:%s559] %v672
                %v674 = vld [vmem:[%s566 + $0xd8] sm:%s559]
                %675 = vst [vmem:[%s567 + $0xd4] sm:%s559] %v674
                %v676 = vld [vmem:[%s566 + $0xd4] sm:%s559]
                %677 = vst [vmem:[%s567 + $0xd8] sm:%s559] %v676
                %v678 = vld [vmem:[%s566 + $0xdc] sm:%s559]
                %679 = vst [vmem:[%s567 + $0xdc] sm:%s559] %v678
                %v680 = vld [vmem:[%s566 + $0xe0] sm:%s559]
                %681 = vst [vmem:[%s567 + $0xe0] sm:%s559] %v680
                %v682 = vld [vmem:[%s566 + $0xe8] sm:%s559]
                %683 = vst [vmem:[%s567 + $0xe4] sm:%s559] %v682
                %v684 = vld [vmem:[%s566 + $0xe4] sm:%s559]
                %685 = vst [vmem:[%s567 + $0xe8] sm:%s559] %v684
                %v686 = vld [vmem:[%s566 + $0xec] sm:%s559]
                %687 = vst [vmem:[%s567 + $0xec] sm:%s559] %v686
                %v688 = vld [vmem:[%s566 + $0xf0] sm:%s559]
                %689 = vst [vmem:[%s567 + $0xf0] sm:%s559] %v688
                %v690 = vld [vmem:[%s566 + $0xf8] sm:%s559]
                %691 = vst [vmem:[%s567 + $0xf4] sm:%s559] %v690
                %v692 = vld [vmem:[%s566 + $0xf4] sm:%s559]
                %693 = vst [vmem:[%s567 + $0xf8] sm:%s559] %v692
                %v694 = vld [vmem:[%s566 + $0xfc] sm:%s559]
                %695 = vst [vmem:[%s567 + $0xfc] sm:%s559] %v694
              $region95: #{graph_cnn_forward.1} parent=82 // loop_footer
                %s565 = sadd.s32 1, %s561
              $region96: #{graph_cnn_forward.1} parent=82 // loop_footer_branch
                %560 = sbr.rel target = $region92
              $region97: #{graph_cnn_forward.1} parent=82 // loop_exit
                _
            $region83: #{graph_cnn_forward.1} parent=67 // pred_fallthru
              _
          $region68: #{graph_cnn_forward.1} parent=63 // pred_fallthru
            _
          // Predicated region
          $region69: #{graph_cnn_forward.1} parent=63 // pred_check
            %p401 = pneg %p397
          $region70: #{graph_cnn_forward.1} parent=63 // pred_check_branch
            %403 = sbr.rel (%p401) target = $region72
          $region71: #{graph_cnn_forward.1} parent=63 // pred_region
            %s404 = sshllo.u32 0, 4
            loop: start=0, step=1, limit=1
            $region73: #{graph_cnn_forward.1} parent=71 // loop_pre_header
              _
            $region74: #{graph_cnn_forward.1} parent=71 // loop_header
              %s406 = sphi 0, %s410
              %p407 = scmp.ge.s32.totalorder %s406, 1
              %s411 = sphi %s10, %s10
              %s412 = sphi [#allocation2], [#allocation2]
            $region75: #{graph_cnn_forward.1} parent=71 // loop_header_branch
              %409 = sbr.rel (%p407) target = $region79
            $region76: #{graph_cnn_forward.1} parent=71 // loop_body
              %v413 = vld [vmem:[%s411] sm:%s404]
              %414 = vst [vmem:[%s412] sm:%s404] %v413
              %v415 = vld [vmem:[%s411 + $0x8] sm:%s404]
              %416 = vst [vmem:[%s412 + $0x4] sm:%s404] %v415
              %v417 = vld [vmem:[%s411 + $0x4] sm:%s404]
              %418 = vst [vmem:[%s412 + $0x8] sm:%s404] %v417
              %v419 = vld [vmem:[%s411 + $0xc] sm:%s404]
              %420 = vst [vmem:[%s412 + $0xc] sm:%s404] %v419
              %v421 = vld [vmem:[%s411 + $0x10] sm:%s404]
              %422 = vst [vmem:[%s412 + $0x10] sm:%s404] %v421
              %v423 = vld [vmem:[%s411 + $0x18] sm:%s404]
              %424 = vst [vmem:[%s412 + $0x14] sm:%s404] %v423
              %v425 = vld [vmem:[%s411 + $0x14] sm:%s404]
              %426 = vst [vmem:[%s412 + $0x18] sm:%s404] %v425
              %v427 = vld [vmem:[%s411 + $0x1c] sm:%s404]
              %428 = vst [vmem:[%s412 + $0x1c] sm:%s404] %v427
              %v429 = vld [vmem:[%s411 + $0x20] sm:%s404]
              %430 = vst [vmem:[%s412 + $0x20] sm:%s404] %v429
              %v431 = vld [vmem:[%s411 + $0x28] sm:%s404]
              %432 = vst [vmem:[%s412 + $0x24] sm:%s404] %v431
              %v433 = vld [vmem:[%s411 + $0x24] sm:%s404]
              %434 = vst [vmem:[%s412 + $0x28] sm:%s404] %v433
              %v435 = vld [vmem:[%s411 + $0x2c] sm:%s404]
              %436 = vst [vmem:[%s412 + $0x2c] sm:%s404] %v435
              %v437 = vld [vmem:[%s411 + $0x30] sm:%s404]
              %438 = vst [vmem:[%s412 + $0x30] sm:%s404] %v437
              %v439 = vld [vmem:[%s411 + $0x38] sm:%s404]
              %440 = vst [vmem:[%s412 + $0x34] sm:%s404] %v439
              %v441 = vld [vmem:[%s411 + $0x34] sm:%s404]
              %442 = vst [vmem:[%s412 + $0x38] sm:%s404] %v441
              %v443 = vld [vmem:[%s411 + $0x3c] sm:%s404]
              %444 = vst [vmem:[%s412 + $0x3c] sm:%s404] %v443
              %v445 = vld [vmem:[%s411 + $0x40] sm:%s404]
              %446 = vst [vmem:[%s412 + $0x40] sm:%s404] %v445
              %v447 = vld [vmem:[%s411 + $0x48] sm:%s404]
              %448 = vst [vmem:[%s412 + $0x44] sm:%s404] %v447
              %v449 = vld [vmem:[%s411 + $0x44] sm:%s404]
              %450 = vst [vmem:[%s412 + $0x48] sm:%s404] %v449
              %v451 = vld [vmem:[%s411 + $0x4c] sm:%s404]
              %452 = vst [vmem:[%s412 + $0x4c] sm:%s404] %v451
              %v453 = vld [vmem:[%s411 + $0x50] sm:%s404]
              %454 = vst [vmem:[%s412 + $0x50] sm:%s404] %v453
              %v455 = vld [vmem:[%s411 + $0x58] sm:%s404]
              %456 = vst [vmem:[%s412 + $0x54] sm:%s404] %v455
              %v457 = vld [vmem:[%s411 + $0x54] sm:%s404]
              %458 = vst [vmem:[%s412 + $0x58] sm:%s404] %v457
              %v459 = vld [vmem:[%s411 + $0x5c] sm:%s404]
              %460 = vst [vmem:[%s412 + $0x5c] sm:%s404] %v459
              %v461 = vld [vmem:[%s411 + $0x60] sm:%s404]
              %462 = vst [vmem:[%s412 + $0x60] sm:%s404] %v461
              %v463 = vld [vmem:[%s411 + $0x68] sm:%s404]
              %464 = vst [vmem:[%s412 + $0x64] sm:%s404] %v463
              %v465 = vld [vmem:[%s411 + $0x64] sm:%s404]
              %466 = vst [vmem:[%s412 + $0x68] sm:%s404] %v465
              %v467 = vld [vmem:[%s411 + $0x6c] sm:%s404]
              %468 = vst [vmem:[%s412 + $0x6c] sm:%s404] %v467
              %v469 = vld [vmem:[%s411 + $0x70] sm:%s404]
              %470 = vst [vmem:[%s412 + $0x70] sm:%s404] %v469
              %v471 = vld [vmem:[%s411 + $0x78] sm:%s404]
              %472 = vst [vmem:[%s412 + $0x74] sm:%s404] %v471
              %v473 = vld [vmem:[%s411 + $0x74] sm:%s404]
              %474 = vst [vmem:[%s412 + $0x78] sm:%s404] %v473
              %v475 = vld [vmem:[%s411 + $0x7c] sm:%s404]
              %476 = vst [vmem:[%s412 + $0x7c] sm:%s404] %v475
              %v477 = vld [vmem:[%s411 + $0x80] sm:%s404]
              %478 = vst [vmem:[%s412 + $0x80] sm:%s404] %v477
              %v479 = vld [vmem:[%s411 + $0x88] sm:%s404]
              %480 = vst [vmem:[%s412 + $0x84] sm:%s404] %v479
              %v481 = vld [vmem:[%s411 + $0x84] sm:%s404]
              %482 = vst [vmem:[%s412 + $0x88] sm:%s404] %v481
              %v483 = vld [vmem:[%s411 + $0x8c] sm:%s404]
              %484 = vst [vmem:[%s412 + $0x8c] sm:%s404] %v483
              %v485 = vld [vmem:[%s411 + $0x90] sm:%s404]
              %486 = vst [vmem:[%s412 + $0x90] sm:%s404] %v485
              %v487 = vld [vmem:[%s411 + $0x98] sm:%s404]
              %488 = vst [vmem:[%s412 + $0x94] sm:%s404] %v487
              %v489 = vld [vmem:[%s411 + $0x94] sm:%s404]
              %490 = vst [vmem:[%s412 + $0x98] sm:%s404] %v489
              %v491 = vld [vmem:[%s411 + $0x9c] sm:%s404]
              %492 = vst [vmem:[%s412 + $0x9c] sm:%s404] %v491
              %v493 = vld [vmem:[%s411 + $0xa0] sm:%s404]
              %494 = vst [vmem:[%s412 + $0xa0] sm:%s404] %v493
              %v495 = vld [vmem:[%s411 + $0xa8] sm:%s404]
              %496 = vst [vmem:[%s412 + $0xa4] sm:%s404] %v495
              %v497 = vld [vmem:[%s411 + $0xa4] sm:%s404]
              %498 = vst [vmem:[%s412 + $0xa8] sm:%s404] %v497
              %v499 = vld [vmem:[%s411 + $0xac] sm:%s404]
              %500 = vst [vmem:[%s412 + $0xac] sm:%s404] %v499
              %v501 = vld [vmem:[%s411 + $0xb0] sm:%s404]
              %502 = vst [vmem:[%s412 + $0xb0] sm:%s404] %v501
              %v503 = vld [vmem:[%s411 + $0xb8] sm:%s404]
              %504 = vst [vmem:[%s412 + $0xb4] sm:%s404] %v503
              %v505 = vld [vmem:[%s411 + $0xb4] sm:%s404]
              %506 = vst [vmem:[%s412 + $0xb8] sm:%s404] %v505
              %v507 = vld [vmem:[%s411 + $0xbc] sm:%s404]
              %508 = vst [vmem:[%s412 + $0xbc] sm:%s404] %v507
              %v509 = vld [vmem:[%s411 + $0xc0] sm:%s404]
              %510 = vst [vmem:[%s412 + $0xc0] sm:%s404] %v509
              %v511 = vld [vmem:[%s411 + $0xc8] sm:%s404]
              %512 = vst [vmem:[%s412 + $0xc4] sm:%s404] %v511
              %v513 = vld [vmem:[%s411 + $0xc4] sm:%s404]
              %514 = vst [vmem:[%s412 + $0xc8] sm:%s404] %v513
              %v515 = vld [vmem:[%s411 + $0xcc] sm:%s404]
              %516 = vst [vmem:[%s412 + $0xcc] sm:%s404] %v515
              %v517 = vld [vmem:[%s411 + $0xd0] sm:%s404]
              %518 = vst [vmem:[%s412 + $0xd0] sm:%s404] %v517
              %v519 = vld [vmem:[%s411 + $0xd8] sm:%s404]
              %520 = vst [vmem:[%s412 + $0xd4] sm:%s404] %v519
              %v521 = vld [vmem:[%s411 + $0xd4] sm:%s404]
              %522 = vst [vmem:[%s412 + $0xd8] sm:%s404] %v521
              %v523 = vld [vmem:[%s411 + $0xdc] sm:%s404]
              %524 = vst [vmem:[%s412 + $0xdc] sm:%s404] %v523
              %v525 = vld [vmem:[%s411 + $0xe0] sm:%s404]
              %526 = vst [vmem:[%s412 + $0xe0] sm:%s404] %v525
              %v527 = vld [vmem:[%s411 + $0xe8] sm:%s404]
              %528 = vst [vmem:[%s412 + $0xe4] sm:%s404] %v527
              %v529 = vld [vmem:[%s411 + $0xe4] sm:%s404]
              %530 = vst [vmem:[%s412 + $0xe8] sm:%s404] %v529
              %v531 = vld [vmem:[%s411 + $0xec] sm:%s404]
              %532 = vst [vmem:[%s412 + $0xec] sm:%s404] %v531
              %v533 = vld [vmem:[%s411 + $0xf0] sm:%s404]
              %534 = vst [vmem:[%s412 + $0xf0] sm:%s404] %v533
              %v535 = vld [vmem:[%s411 + $0xf8] sm:%s404]
              %536 = vst [vmem:[%s412 + $0xf4] sm:%s404] %v535
              %v537 = vld [vmem:[%s411 + $0xf4] sm:%s404]
              %538 = vst [vmem:[%s412 + $0xf8] sm:%s404] %v537
              %v539 = vld [vmem:[%s411 + $0xfc] sm:%s404]
              %540 = vst [vmem:[%s412 + $0xfc] sm:%s404] %v539
            $region77: #{graph_cnn_forward.1} parent=71 // loop_footer
              %s410 = sadd.s32 1, %s406
            $region78: #{graph_cnn_forward.1} parent=71 // loop_footer_branch
              %405 = sbr.rel target = $region74
            $region79: #{graph_cnn_forward.1} parent=71 // loop_exit
              _
          $region72: #{graph_cnn_forward.1} parent=63 // pred_fallthru
            _
          // Predicated region
          $region98: #{graph_cnn_forward.1} parent=63 // pred_check
            _
          $region99: #{graph_cnn_forward.1} parent=63 // pred_check_branch
            %698 = sbr.rel (0) target = $region101
          $region100: #{graph_cnn_forward.1} parent=63 // pred_region
            %699 = vsyncadd [#allocation3], 4096
          $region101: #{graph_cnn_forward.1} parent=63 // pred_fallthru
            _
          %700 = vst [vmem:[#allocation4] sm:$0xff] 0.0
          %701 = vst [vmem:[#allocation4 + $0x8] sm:$0xff] 0.0
          %702 = vst [vmem:[#allocation4 + $0x10] sm:$0xff] 0.0
          %703 = vst [vmem:[#allocation4 + $0x18] sm:$0xff] 0.0
          %704 = vst [vmem:[#allocation4 + $0x20] sm:$0xff] 0.0
          %705 = vst [vmem:[#allocation4 + $0x28] sm:$0xff] 0.0
          %706 = vst [vmem:[#allocation4 + $0x30] sm:$0xff] 0.0
          %707 = vst [vmem:[#allocation4 + $0x38] sm:$0xff] 0.0
          %708 = vst [vmem:[#allocation4 + $0x40] sm:$0xff] 0.0
          %709 = vst [vmem:[#allocation4 + $0x48] sm:$0xff] 0.0
          %710 = vst [vmem:[#allocation4 + $0x50] sm:$0xff] 0.0
          %711 = vst [vmem:[#allocation4 + $0x58] sm:$0xff] 0.0
          %712 = vst [vmem:[#allocation4 + $0x60] sm:$0xff] 0.0
          %713 = vst [vmem:[#allocation4 + $0x68] sm:$0xff] 0.0
          %714 = vst [vmem:[#allocation4 + $0x70] sm:$0xff] 0.0
          %715 = vst [vmem:[#allocation4 + $0x78] sm:$0xff] 0.0
          %716 = vst [vmem:[#allocation4 + $0x80] sm:$0xff] 0.0
          %717 = vst [vmem:[#allocation4 + $0x88] sm:$0xff] 0.0
          %718 = vst [vmem:[#allocation4 + $0x90] sm:$0xff] 0.0
          %719 = vst [vmem:[#allocation4 + $0x98] sm:$0xff] 0.0
          %720 = vst [vmem:[#allocation4 + $0xa0] sm:$0xff] 0.0
          %721 = vst [vmem:[#allocation4 + $0xa8] sm:$0xff] 0.0
          %722 = vst [vmem:[#allocation4 + $0xb0] sm:$0xff] 0.0
          %723 = vst [vmem:[#allocation4 + $0xb8] sm:$0xff] 0.0
          %724 = vst [vmem:[#allocation4 + $0xc0] sm:$0xff] 0.0
          %725 = vst [vmem:[#allocation4 + $0xc8] sm:$0xff] 0.0
          %726 = vst [vmem:[#allocation4 + $0xd0] sm:$0xff] 0.0
          %727 = vst [vmem:[#allocation4 + $0xd8] sm:$0xff] 0.0
          %728 = vst [vmem:[#allocation4 + $0xe0] sm:$0xff] 0.0
          %729 = vst [vmem:[#allocation4 + $0xe8] sm:$0xff] 0.0
          %730 = vst [vmem:[#allocation4 + $0xf0] sm:$0xff] 0.0
          %731 = vst [vmem:[#allocation4 + $0xf8] sm:$0xff] 0.0
          %732 = vst [vmem:[#allocation4 + $0x100] sm:$0xff] 0.0
          %733 = vst [vmem:[#allocation4 + $0x108] sm:$0xff] 0.0
          %734 = vst [vmem:[#allocation4 + $0x110] sm:$0xff] 0.0
          %735 = vst [vmem:[#allocation4 + $0x118] sm:$0xff] 0.0
          %736 = vst [vmem:[#allocation4 + $0x120] sm:$0xff] 0.0
          %737 = vst [vmem:[#allocation4 + $0x128] sm:$0xff] 0.0
          %738 = vst [vmem:[#allocation4 + $0x130] sm:$0xff] 0.0
          %739 = vst [vmem:[#allocation4 + $0x138] sm:$0xff] 0.0
          %740 = vst [vmem:[#allocation4 + $0x140] sm:$0xff] 0.0
          %741 = vst [vmem:[#allocation4 + $0x148] sm:$0xff] 0.0
          %742 = vst [vmem:[#allocation4 + $0x150] sm:$0xff] 0.0
          %743 = vst [vmem:[#allocation4 + $0x158] sm:$0xff] 0.0
          %744 = vst [vmem:[#allocation4 + $0x160] sm:$0xff] 0.0
          %745 = vst [vmem:[#allocation4 + $0x168] sm:$0xff] 0.0
          %746 = vst [vmem:[#allocation4 + $0x170] sm:$0xff] 0.0
          %747 = vst [vmem:[#allocation4 + $0x178] sm:$0xff] 0.0
          %748 = vst [vmem:[#allocation4 + $0x180] sm:$0xff] 0.0
          %749 = vst [vmem:[#allocation4 + $0x188] sm:$0xff] 0.0
          %750 = vst [vmem:[#allocation4 + $0x190] sm:$0xff] 0.0
          %751 = vst [vmem:[#allocation4 + $0x198] sm:$0xff] 0.0
          %752 = vst [vmem:[#allocation4 + $0x1a0] sm:$0xff] 0.0
          %753 = vst [vmem:[#allocation4 + $0x1a8] sm:$0xff] 0.0
          %754 = vst [vmem:[#allocation4 + $0x1b0] sm:$0xff] 0.0
          %755 = vst [vmem:[#allocation4 + $0x1b8] sm:$0xff] 0.0
          %756 = vst [vmem:[#allocation4 + $0x1c0] sm:$0xff] 0.0
          %757 = vst [vmem:[#allocation4 + $0x1c8] sm:$0xff] 0.0
          %758 = vst [vmem:[#allocation4 + $0x1d0] sm:$0xff] 0.0
          %759 = vst [vmem:[#allocation4 + $0x1d8] sm:$0xff] 0.0
          %760 = vst [vmem:[#allocation4 + $0x1e0] sm:$0xff] 0.0
          %761 = vst [vmem:[#allocation4 + $0x1e8] sm:$0xff] 0.0
          %762 = vst [vmem:[#allocation4 + $0x1f0] sm:$0xff] 0.0
          %763 = vst [vmem:[#allocation4 + $0x1f8] sm:$0xff] 0.0
          %764 = vst [vmem:[#allocation4 + $0x200] sm:$0xff] 0.0
          %765 = vst [vmem:[#allocation4 + $0x208] sm:$0xff] 0.0
          %766 = vst [vmem:[#allocation4 + $0x210] sm:$0xff] 0.0
          %767 = vst [vmem:[#allocation4 + $0x218] sm:$0xff] 0.0
          %768 = vst [vmem:[#allocation4 + $0x220] sm:$0xff] 0.0
          %769 = vst [vmem:[#allocation4 + $0x228] sm:$0xff] 0.0
          %770 = vst [vmem:[#allocation4 + $0x230] sm:$0xff] 0.0
          %771 = vst [vmem:[#allocation4 + $0x238] sm:$0xff] 0.0
          %772 = vst [vmem:[#allocation4 + $0x240] sm:$0xff] 0.0
          %773 = vst [vmem:[#allocation4 + $0x248] sm:$0xff] 0.0
          %774 = vst [vmem:[#allocation4 + $0x250] sm:$0xff] 0.0
          %775 = vst [vmem:[#allocation4 + $0x258] sm:$0xff] 0.0
          %776 = vst [vmem:[#allocation4 + $0x260] sm:$0xff] 0.0
          %777 = vst [vmem:[#allocation4 + $0x268] sm:$0xff] 0.0
          %778 = vst [vmem:[#allocation4 + $0x270] sm:$0xff] 0.0
          %779 = vst [vmem:[#allocation4 + $0x278] sm:$0xff] 0.0
          %780 = vst [vmem:[#allocation4 + $0x280] sm:$0xff] 0.0
          %781 = vst [vmem:[#allocation4 + $0x288] sm:$0xff] 0.0
          %782 = vst [vmem:[#allocation4 + $0x290] sm:$0xff] 0.0
          %783 = vst [vmem:[#allocation4 + $0x298] sm:$0xff] 0.0
          %784 = vst [vmem:[#allocation4 + $0x2a0] sm:$0xff] 0.0
          %785 = vst [vmem:[#allocation4 + $0x2a8] sm:$0xff] 0.0
          %786 = vst [vmem:[#allocation4 + $0x2b0] sm:$0xff] 0.0
          %787 = vst [vmem:[#allocation4 + $0x2b8] sm:$0xff] 0.0
          %788 = vst [vmem:[#allocation4 + $0x2c0] sm:$0xff] 0.0
          %789 = vst [vmem:[#allocation4 + $0x2c8] sm:$0xff] 0.0
          %790 = vst [vmem:[#allocation4 + $0x2d0] sm:$0xff] 0.0
          %791 = vst [vmem:[#allocation4 + $0x2d8] sm:$0xff] 0.0
          %792 = vst [vmem:[#allocation4 + $0x2e0] sm:$0xff] 0.0
          %793 = vst [vmem:[#allocation4 + $0x2e8] sm:$0xff] 0.0
          %794 = vst [vmem:[#allocation4 + $0x2f0] sm:$0xff] 0.0
          %795 = vst [vmem:[#allocation4 + $0x2f8] sm:$0xff] 0.0
          %796 = vst [vmem:[#allocation4 + $0x300] sm:$0xff] 0.0
          %797 = vst [vmem:[#allocation4 + $0x308] sm:$0xff] 0.0
          %798 = vst [vmem:[#allocation4 + $0x310] sm:$0xff] 0.0
          %799 = vst [vmem:[#allocation4 + $0x318] sm:$0xff] 0.0
          %800 = vst [vmem:[#allocation4 + $0x320] sm:$0xff] 0.0
          %801 = vst [vmem:[#allocation4 + $0x328] sm:$0xff] 0.0
          %802 = vst [vmem:[#allocation4 + $0x330] sm:$0xff] 0.0
          %803 = vst [vmem:[#allocation4 + $0x338] sm:$0xff] 0.0
          %804 = vst [vmem:[#allocation4 + $0x340] sm:$0xff] 0.0
          %805 = vst [vmem:[#allocation4 + $0x348] sm:$0xff] 0.0
          %806 = vst [vmem:[#allocation4 + $0x350] sm:$0xff] 0.0
          %807 = vst [vmem:[#allocation4 + $0x358] sm:$0xff] 0.0
          %808 = vst [vmem:[#allocation4 + $0x360] sm:$0xff] 0.0
          %809 = vst [vmem:[#allocation4 + $0x368] sm:$0xff] 0.0
          %810 = vst [vmem:[#allocation4 + $0x370] sm:$0xff] 0.0
          %811 = vst [vmem:[#allocation4 + $0x378] sm:$0xff] 0.0
          %812 = vst [vmem:[#allocation4 + $0x380] sm:$0xff] 0.0
          %813 = vst [vmem:[#allocation4 + $0x388] sm:$0xff] 0.0
          %814 = vst [vmem:[#allocation4 + $0x390] sm:$0xff] 0.0
          %815 = vst [vmem:[#allocation4 + $0x398] sm:$0xff] 0.0
          %816 = vst [vmem:[#allocation4 + $0x3a0] sm:$0xff] 0.0
          %817 = vst [vmem:[#allocation4 + $0x3a8] sm:$0xff] 0.0
          %818 = vst [vmem:[#allocation4 + $0x3b0] sm:$0xff] 0.0
          %819 = vst [vmem:[#allocation4 + $0x3b8] sm:$0xff] 0.0
          %820 = vst [vmem:[#allocation4 + $0x3c0] sm:$0xff] 0.0
          %821 = vst [vmem:[#allocation4 + $0x3c8] sm:$0xff] 0.0
          %822 = vst [vmem:[#allocation4 + $0x3d0] sm:$0xff] 0.0
          %823 = vst [vmem:[#allocation4 + $0x3d8] sm:$0xff] 0.0
          %824 = vst [vmem:[#allocation4 + $0x3e0] sm:$0xff] 0.0
          %825 = vst [vmem:[#allocation4 + $0x3e8] sm:$0xff] 0.0
          %826 = vst [vmem:[#allocation4 + $0x3f0] sm:$0xff] 0.0
          %827 = vst [vmem:[#allocation4 + $0x3f8] sm:$0xff] 0.0
          %v828 = vld [vmem:[%s0] sm:$0xff]
          %v829 = vld [vmem:[%s0 + $0x8] sm:$0xff]
          %v830 = vld [vmem:[%s0 + $0x10] sm:$0xff]
          %v831 = vld [vmem:[%s0 + $0x18] sm:$0xff]
          %v832 = vld [vmem:[%s0 + $0x20] sm:$0xff]
          %v833 = vld [vmem:[%s0 + $0x28] sm:$0xff]
          %v834 = vld [vmem:[%s0 + $0x30] sm:$0xff]
          %v835 = vld [vmem:[%s0 + $0x38] sm:$0xff]
          %v836 = vld [vmem:[%s0 + $0x40] sm:$0xff]
          %v837 = vld [vmem:[%s0 + $0x48] sm:$0xff]
          %v838 = vld [vmem:[%s0 + $0x50] sm:$0xff]
          %v839 = vld [vmem:[%s0 + $0x58] sm:$0xff]
          %v840 = vld [vmem:[%s0 + $0x60] sm:$0xff]
          %v841 = vld [vmem:[%s0 + $0x68] sm:$0xff]
          %v842 = vld [vmem:[%s0 + $0x70] sm:$0xff]
          %v843 = vld [vmem:[%s0 + $0x78] sm:$0xff]
          %v844 = vld [vmem:[%s0 + $0x80] sm:$0xff]
          %v845 = vld [vmem:[%s0 + $0x88] sm:$0xff]
          %v846 = vld [vmem:[%s0 + $0x90] sm:$0xff]
          %v847 = vld [vmem:[%s0 + $0x98] sm:$0xff]
          %v848 = vld [vmem:[%s0 + $0xa0] sm:$0xff]
          %v849 = vld [vmem:[%s0 + $0xa8] sm:$0xff]
          %v850 = vld [vmem:[%s0 + $0xb0] sm:$0xff]
          %v851 = vld [vmem:[%s0 + $0xb8] sm:$0xff]
          %v852 = vld [vmem:[%s0 + $0xc0] sm:$0xff]
          %v853 = vld [vmem:[%s0 + $0xc8] sm:$0xff]
          %v854 = vld [vmem:[%s0 + $0xd0] sm:$0xff]
          %v855 = vld [vmem:[%s0 + $0xd8] sm:$0xff]
          %v856 = vld [vmem:[%s0 + $0xe0] sm:$0xff]
          %v857 = vld [vmem:[%s0 + $0xe8] sm:$0xff]
          %v858 = vld [vmem:[%s0 + $0xf0] sm:$0xff]
          %v859 = vld [vmem:[%s0 + $0xf8] sm:$0xff]
          %v860 = vld [vmem:[%s0 + $0x100] sm:$0xff]
          %v861 = vld [vmem:[%s0 + $0x108] sm:$0xff]
          %v862 = vld [vmem:[%s0 + $0x110] sm:$0xff]
          %v863 = vld [vmem:[%s0 + $0x118] sm:$0xff]
          %v864 = vld [vmem:[%s0 + $0x120] sm:$0xff]
          %v865 = vld [vmem:[%s0 + $0x128] sm:$0xff]
          %v866 = vld [vmem:[%s0 + $0x130] sm:$0xff]
          %v867 = vld [vmem:[%s0 + $0x138] sm:$0xff]
          %v868 = vld [vmem:[%s0 + $0x140] sm:$0xff]
          %v869 = vld [vmem:[%s0 + $0x148] sm:$0xff]
          %v870 = vld [vmem:[%s0 + $0x150] sm:$0xff]
          %v871 = vld [vmem:[%s0 + $0x158] sm:$0xff]
          %v872 = vld [vmem:[%s0 + $0x160] sm:$0xff]
          %v873 = vld [vmem:[%s0 + $0x168] sm:$0xff]
          %v874 = vld [vmem:[%s0 + $0x170] sm:$0xff]
          %v875 = vld [vmem:[%s0 + $0x178] sm:$0xff]
          %v876 = vld [vmem:[%s0 + $0x180] sm:$0xff]
          %v877 = vld [vmem:[%s0 + $0x188] sm:$0xff]
          %v878 = vld [vmem:[%s0 + $0x190] sm:$0xff]
          %v879 = vld [vmem:[%s0 + $0x198] sm:$0xff]
          %v880 = vld [vmem:[%s0 + $0x1a0] sm:$0xff]
          %v881 = vld [vmem:[%s0 + $0x1a8] sm:$0xff]
          %v882 = vld [vmem:[%s0 + $0x1b0] sm:$0xff]
          %v883 = vld [vmem:[%s0 + $0x1b8] sm:$0xff]
          %v884 = vld [vmem:[%s0 + $0x1c0] sm:$0xff]
          %v885 = vld [vmem:[%s0 + $0x1c8] sm:$0xff]
          %v886 = vld [vmem:[%s0 + $0x1d0] sm:$0xff]
          %v887 = vld [vmem:[%s0 + $0x1d8] sm:$0xff]
          %v888 = vld [vmem:[%s0 + $0x1e0] sm:$0xff]
          %v889 = vld [vmem:[%s0 + $0x1e8] sm:$0xff]
          %v890 = vld [vmem:[%s0 + $0x1f0] sm:$0xff]
          %v891 = vld [vmem:[%s0 + $0x1f8] sm:$0xff]
          %v956 = vunpack.c.l.b16 %v828
          %v957 = vunpack.c.h.b16 %v828
          %v958 = vunpack.c.l.b16 %v829
          %v959 = vunpack.c.h.b16 %v829
          %v960 = vunpack.c.l.b16 %v830
          %v961 = vunpack.c.h.b16 %v830
          %v962 = vunpack.c.l.b16 %v831
          %v963 = vunpack.c.h.b16 %v831
          %v964 = vunpack.c.l.b16 %v832
          %v965 = vunpack.c.h.b16 %v832
          %v966 = vunpack.c.l.b16 %v833
          %v967 = vunpack.c.h.b16 %v833
          %v968 = vunpack.c.l.b16 %v834
          %v969 = vunpack.c.h.b16 %v834
          %v970 = vunpack.c.l.b16 %v835
          %v971 = vunpack.c.h.b16 %v835
          %v972 = vunpack.c.l.b16 %v836
          %v973 = vunpack.c.h.b16 %v836
          %v974 = vunpack.c.l.b16 %v837
          %v975 = vunpack.c.h.b16 %v837
          %v976 = vunpack.c.l.b16 %v838
          %v977 = vunpack.c.h.b16 %v838
          %v978 = vunpack.c.l.b16 %v839
          %v979 = vunpack.c.h.b16 %v839
          %v980 = vunpack.c.l.b16 %v840
          %v981 = vunpack.c.h.b16 %v840
          %v982 = vunpack.c.l.b16 %v841
          %v983 = vunpack.c.h.b16 %v841
          %v984 = vunpack.c.l.b16 %v842
          %v985 = vunpack.c.h.b16 %v842
          %v986 = vunpack.c.l.b16 %v843
          %v987 = vunpack.c.h.b16 %v843
          %v988 = vunpack.c.l.b16 %v844
          %v989 = vunpack.c.h.b16 %v844
          %v990 = vunpack.c.l.b16 %v845
          %v991 = vunpack.c.h.b16 %v845
          %v992 = vunpack.c.l.b16 %v846
          %v993 = vunpack.c.h.b16 %v846
          %v994 = vunpack.c.l.b16 %v847
          %v995 = vunpack.c.h.b16 %v847
          %v996 = vunpack.c.l.b16 %v848
          %v997 = vunpack.c.h.b16 %v848
          %v998 = vunpack.c.l.b16 %v849
          %v999 = vunpack.c.h.b16 %v849
          %v1000 = vunpack.c.l.b16 %v850
          %v1001 = vunpack.c.h.b16 %v850
          %v1002 = vunpack.c.l.b16 %v851
          %v1003 = vunpack.c.h.b16 %v851
          %v1004 = vunpack.c.l.b16 %v852
          %v1005 = vunpack.c.h.b16 %v852
          %v1006 = vunpack.c.l.b16 %v853
          %v1007 = vunpack.c.h.b16 %v853
          %v1008 = vunpack.c.l.b16 %v854
          %v1009 = vunpack.c.h.b16 %v854
          %v1010 = vunpack.c.l.b16 %v855
          %v1011 = vunpack.c.h.b16 %v855
          %v1012 = vunpack.c.l.b16 %v856
          %v1013 = vunpack.c.h.b16 %v856
          %v1014 = vunpack.c.l.b16 %v857
          %v1015 = vunpack.c.h.b16 %v857
          %v1016 = vunpack.c.l.b16 %v858
          %v1017 = vunpack.c.h.b16 %v858
          %v1018 = vunpack.c.l.b16 %v859
          %v1019 = vunpack.c.h.b16 %v859
          %v1020 = vunpack.c.l.b16 %v860
          %v1021 = vunpack.c.h.b16 %v860
          %v1022 = vunpack.c.l.b16 %v861
          %v1023 = vunpack.c.h.b16 %v861
          %v1024 = vunpack.c.l.b16 %v862
          %v1025 = vunpack.c.h.b16 %v862
          %v1026 = vunpack.c.l.b16 %v863
          %v1027 = vunpack.c.h.b16 %v863
          %v1028 = vunpack.c.l.b16 %v864
          %v1029 = vunpack.c.h.b16 %v864
          %v1030 = vunpack.c.l.b16 %v865
          %v1031 = vunpack.c.h.b16 %v865
          %v1032 = vunpack.c.l.b16 %v866
          %v1033 = vunpack.c.h.b16 %v866
          %v1034 = vunpack.c.l.b16 %v867
          %v1035 = vunpack.c.h.b16 %v867
          %v1036 = vunpack.c.l.b16 %v868
          %v1037 = vunpack.c.h.b16 %v868
          %v1038 = vunpack.c.l.b16 %v869
          %v1039 = vunpack.c.h.b16 %v869
          %v1040 = vunpack.c.l.b16 %v870
          %v1041 = vunpack.c.h.b16 %v870
          %v1042 = vunpack.c.l.b16 %v871
          %v1043 = vunpack.c.h.b16 %v871
          %v1044 = vunpack.c.l.b16 %v872
          %v1045 = vunpack.c.h.b16 %v872
          %v1046 = vunpack.c.l.b16 %v873
          %v1047 = vunpack.c.h.b16 %v873
          %v1048 = vunpack.c.l.b16 %v874
          %v1049 = vunpack.c.h.b16 %v874
          %v1050 = vunpack.c.l.b16 %v875
          %v1051 = vunpack.c.h.b16 %v875
          %v1052 = vunpack.c.l.b16 %v876
          %v1053 = vunpack.c.h.b16 %v876
          %v1054 = vunpack.c.l.b16 %v877
          %v1055 = vunpack.c.h.b16 %v877
          %v1056 = vunpack.c.l.b16 %v878
          %v1057 = vunpack.c.h.b16 %v878
          %v1058 = vunpack.c.l.b16 %v879
          %v1059 = vunpack.c.h.b16 %v879
          %v1060 = vunpack.c.l.b16 %v880
          %v1061 = vunpack.c.h.b16 %v880
          %v1062 = vunpack.c.l.b16 %v881
          %v1063 = vunpack.c.h.b16 %v881
          %v1064 = vunpack.c.l.b16 %v882
          %v1065 = vunpack.c.h.b16 %v882
          %v1066 = vunpack.c.l.b16 %v883
          %v1067 = vunpack.c.h.b16 %v883
          %v1068 = vunpack.c.l.b16 %v884
          %v1069 = vunpack.c.h.b16 %v884
          %v1070 = vunpack.c.l.b16 %v885
          %v1071 = vunpack.c.h.b16 %v885
          %v1072 = vunpack.c.l.b16 %v886
          %v1073 = vunpack.c.h.b16 %v886
          %v1074 = vunpack.c.l.b16 %v887
          %v1075 = vunpack.c.h.b16 %v887
          %v1076 = vunpack.c.l.b16 %v888
          %v1077 = vunpack.c.h.b16 %v888
          %v1078 = vunpack.c.l.b16 %v889
          %v1079 = vunpack.c.h.b16 %v889
          %v1080 = vunpack.c.l.b16 %v890
          %v1081 = vunpack.c.h.b16 %v890
          %v1082 = vunpack.c.l.b16 %v891
          %v1083 = vunpack.c.h.b16 %v891
          %v1084 = vpack.c.b16 %v960, %v956
          %v1085 = vpack.c.b16 %v961, %v957
          %v1086 = vpack.c.b16 %v962, %v958
          %v1087 = vpack.c.b16 %v963, %v959
          %v1088 = vpack.c.b16 %v968, %v964
          %v1089 = vpack.c.b16 %v969, %v965
          %v1090 = vpack.c.b16 %v970, %v966
          %v1091 = vpack.c.b16 %v971, %v967
          %v1092 = vpack.c.b16 %v976, %v972
          %v1093 = vpack.c.b16 %v977, %v973
          %v1094 = vpack.c.b16 %v978, %v974
          %v1095 = vpack.c.b16 %v979, %v975
          %v1096 = vpack.c.b16 %v984, %v980
          %v1097 = vpack.c.b16 %v985, %v981
          %v1098 = vpack.c.b16 %v986, %v982
          %v1099 = vpack.c.b16 %v987, %v983
          %v1100 = vpack.c.b16 %v992, %v988
          %v1101 = vpack.c.b16 %v993, %v989
          %v1102 = vpack.c.b16 %v994, %v990
          %v1103 = vpack.c.b16 %v995, %v991
          %v1104 = vpack.c.b16 %v1000, %v996
          %v1105 = vpack.c.b16 %v1001, %v997
          %v1106 = vpack.c.b16 %v1002, %v998
          %v1107 = vpack.c.b16 %v1003, %v999
          %v1108 = vpack.c.b16 %v1008, %v1004
          %v1109 = vpack.c.b16 %v1009, %v1005
          %v1110 = vpack.c.b16 %v1010, %v1006
          %v1111 = vpack.c.b16 %v1011, %v1007
          %v1112 = vpack.c.b16 %v1016, %v1012
          %v1113 = vpack.c.b16 %v1017, %v1013
          %v1114 = vpack.c.b16 %v1018, %v1014
          %v1115 = vpack.c.b16 %v1019, %v1015
          %v1116 = vpack.c.b16 %v1024, %v1020
          %v1117 = vpack.c.b16 %v1025, %v1021
          %v1118 = vpack.c.b16 %v1026, %v1022
          %v1119 = vpack.c.b16 %v1027, %v1023
          %v1120 = vpack.c.b16 %v1032, %v1028
          %v1121 = vpack.c.b16 %v1033, %v1029
          %v1122 = vpack.c.b16 %v1034, %v1030
          %v1123 = vpack.c.b16 %v1035, %v1031
          %v1124 = vpack.c.b16 %v1040, %v1036
          %v1125 = vpack.c.b16 %v1041, %v1037
          %v1126 = vpack.c.b16 %v1042, %v1038
          %v1127 = vpack.c.b16 %v1043, %v1039
          %v1128 = vpack.c.b16 %v1048, %v1044
          %v1129 = vpack.c.b16 %v1049, %v1045
          %v1130 = vpack.c.b16 %v1050, %v1046
          %v1131 = vpack.c.b16 %v1051, %v1047
          %v1132 = vpack.c.b16 %v1056, %v1052
          %v1133 = vpack.c.b16 %v1057, %v1053
          %v1134 = vpack.c.b16 %v1058, %v1054
          %v1135 = vpack.c.b16 %v1059, %v1055
          %v1136 = vpack.c.b16 %v1064, %v1060
          %v1137 = vpack.c.b16 %v1065, %v1061
          %v1138 = vpack.c.b16 %v1066, %v1062
          %v1139 = vpack.c.b16 %v1067, %v1063
          %v1140 = vpack.c.b16 %v1072, %v1068
          %v1141 = vpack.c.b16 %v1073, %v1069
          %v1142 = vpack.c.b16 %v1074, %v1070
          %v1143 = vpack.c.b16 %v1075, %v1071
          %v1144 = vpack.c.b16 %v1080, %v1076
          %v1145 = vpack.c.b16 %v1081, %v1077
          %v1146 = vpack.c.b16 %v1082, %v1078
          %v1147 = vpack.c.b16 %v1083, %v1079
          %1212 = vst [vmem:[#allocation5] sm:$0xff] %v1084
          %1213 = vst [vmem:[#allocation5 + $0x8] sm:$0xff] %v1085
          %1214 = vst [vmem:[#allocation5 + $0x10] sm:$0xff] %v1086
          %1215 = vst [vmem:[#allocation5 + $0x18] sm:$0xff] %v1087
          %1216 = vst [vmem:[#allocation5 + $0x20] sm:$0xff] %v1088
          %1217 = vst [vmem:[#allocation5 + $0x28] sm:$0xff] %v1089
          %1218 = vst [vmem:[#allocation5 + $0x30] sm:$0xff] %v1090
          %1219 = vst [vmem:[#allocation5 + $0x38] sm:$0xff] %v1091
          %1220 = vst [vmem:[#allocation5 + $0x40] sm:$0xff] %v1092
          %1221 = vst [vmem:[#allocation5 + $0x48] sm:$0xff] %v1093
          %1222 = vst [vmem:[#allocation5 + $0x50] sm:$0xff] %v1094
          %1223 = vst [vmem:[#allocation5 + $0x58] sm:$0xff] %v1095
          %1224 = vst [vmem:[#allocation5 + $0x60] sm:$0xff] %v1096
          %1225 = vst [vmem:[#allocation5 + $0x68] sm:$0xff] %v1097
          %1226 = vst [vmem:[#allocation5 + $0x70] sm:$0xff] %v1098
          %1227 = vst [vmem:[#allocation5 + $0x78] sm:$0xff] %v1099
          %1228 = vst [vmem:[#allocation5 + $0x80] sm:$0xff] %v1100
          %1229 = vst [vmem:[#allocation5 + $0x88] sm:$0xff] %v1101
          %1230 = vst [vmem:[#allocation5 + $0x90] sm:$0xff] %v1102
          %1231 = vst [vmem:[#allocation5 + $0x98] sm:$0xff] %v1103
          %1232 = vst [vmem:[#allocation5 + $0xa0] sm:$0xff] %v1104
          %1233 = vst [vmem:[#allocation5 + $0xa8] sm:$0xff] %v1105
          %1234 = vst [vmem:[#allocation5 + $0xb0] sm:$0xff] %v1106
          %1235 = vst [vmem:[#allocation5 + $0xb8] sm:$0xff] %v1107
          %1236 = vst [vmem:[#allocation5 + $0xc0] sm:$0xff] %v1108
          %1237 = vst [vmem:[#allocation5 + $0xc8] sm:$0xff] %v1109
          %1238 = vst [vmem:[#allocation5 + $0xd0] sm:$0xff] %v1110
          %1239 = vst [vmem:[#allocation5 + $0xd8] sm:$0xff] %v1111
          %1240 = vst [vmem:[#allocation5 + $0xe0] sm:$0xff] %v1112
          %1241 = vst [vmem:[#allocation5 + $0xe8] sm:$0xff] %v1113
          %1242 = vst [vmem:[#allocation5 + $0xf0] sm:$0xff] %v1114
          %1243 = vst [vmem:[#allocation5 + $0xf8] sm:$0xff] %v1115
          %1244 = vst [vmem:[#allocation5 + $0x100] sm:$0xff] %v1116
          %1245 = vst [vmem:[#allocation5 + $0x108] sm:$0xff] %v1117
          %1246 = vst [vmem:[#allocation5 + $0x110] sm:$0xff] %v1118
          %1247 = vst [vmem:[#allocation5 + $0x118] sm:$0xff] %v1119
          %1248 = vst [vmem:[#allocation5 + $0x120] sm:$0xff] %v1120
          %1249 = vst [vmem:[#allocation5 + $0x128] sm:$0xff] %v1121
          %1250 = vst [vmem:[#allocation5 + $0x130] sm:$0xff] %v1122
          %1251 = vst [vmem:[#allocation5 + $0x138] sm:$0xff] %v1123
          %1252 = vst [vmem:[#allocation5 + $0x140] sm:$0xff] %v1124
          %1253 = vst [vmem:[#allocation5 + $0x148] sm:$0xff] %v1125
          %1254 = vst [vmem:[#allocation5 + $0x150] sm:$0xff] %v1126
          %1255 = vst [vmem:[#allocation5 + $0x158] sm:$0xff] %v1127
          %1256 = vst [vmem:[#allocation5 + $0x160] sm:$0xff] %v1128
          %1257 = vst [vmem:[#allocation5 + $0x168] sm:$0xff] %v1129
          %1258 = vst [vmem:[#allocation5 + $0x170] sm:$0xff] %v1130
          %1259 = vst [vmem:[#allocation5 + $0x178] sm:$0xff] %v1131
          %1260 = vst [vmem:[#allocation5 + $0x180] sm:$0xff] %v1132
          %1261 = vst [vmem:[#allocation5 + $0x188] sm:$0xff] %v1133
          %1262 = vst [vmem:[#allocation5 + $0x190] sm:$0xff] %v1134
          %1263 = vst [vmem:[#allocation5 + $0x198] sm:$0xff] %v1135
          %1264 = vst [vmem:[#allocation5 + $0x1a0] sm:$0xff] %v1136
          %1265 = vst [vmem:[#allocation5 + $0x1a8] sm:$0xff] %v1137
          %1266 = vst [vmem:[#allocation5 + $0x1b0] sm:$0xff] %v1138
          %1267 = vst [vmem:[#allocation5 + $0x1b8] sm:$0xff] %v1139
          %1268 = vst [vmem:[#allocation5 + $0x1c0] sm:$0xff] %v1140
          %1269 = vst [vmem:[#allocation5 + $0x1c8] sm:$0xff] %v1141
          %1270 = vst [vmem:[#allocation5 + $0x1d0] sm:$0xff] %v1142
          %1271 = vst [vmem:[#allocation5 + $0x1d8] sm:$0xff] %v1143
          %1272 = vst [vmem:[#allocation5 + $0x1e0] sm:$0xff] %v1144
          %1273 = vst [vmem:[#allocation5 + $0x1e8] sm:$0xff] %v1145
          %1274 = vst [vmem:[#allocation5 + $0x1f0] sm:$0xff] %v1146
          %1275 = vst [vmem:[#allocation5 + $0x1f8] sm:$0xff] %v1147
        $region64: #{graph_cnn_forward.1} parent=59 // pred_fallthru
          _
        %v1276 = vld [vmem:[#allocation5] sm:$0xff]
        %v1277 = vld [vmem:[#allocation5 + $0x8] sm:$0xff]
        %v1278 = vld [vmem:[#allocation5 + $0x10] sm:$0xff]
        %v1279 = vld [vmem:[#allocation5 + $0x18] sm:$0xff]
        %v1280 = vld [vmem:[#allocation5 + $0x20] sm:$0xff]
        %v1281 = vld [vmem:[#allocation5 + $0x28] sm:$0xff]
        %v1282 = vld [vmem:[#allocation5 + $0x30] sm:$0xff]
        %v1283 = vld [vmem:[#allocation5 + $0x38] sm:$0xff]
        %v1284 = vld [vmem:[#allocation5 + $0x40] sm:$0xff]
        %v1285 = vld [vmem:[#allocation5 + $0x48] sm:$0xff]
        %v1286 = vld [vmem:[#allocation5 + $0x50] sm:$0xff]
        %v1287 = vld [vmem:[#allocation5 + $0x58] sm:$0xff]
        %v1288 = vld [vmem:[#allocation5 + $0x60] sm:$0xff]
        %v1289 = vld [vmem:[#allocation5 + $0x68] sm:$0xff]
        %v1290 = vld [vmem:[#allocation5 + $0x70] sm:$0xff]
        %v1291 = vld [vmem:[#allocation5 + $0x78] sm:$0xff]
        %v1292 = vld [vmem:[#allocation5 + $0x80] sm:$0xff]
        %v1293 = vld [vmem:[#allocation5 + $0x88] sm:$0xff]
        %v1294 = vld [vmem:[#allocation5 + $0x90] sm:$0xff]
        %v1295 = vld [vmem:[#allocation5 + $0x98] sm:$0xff]
        %v1296 = vld [vmem:[#allocation5 + $0xa0] sm:$0xff]
        %v1297 = vld [vmem:[#allocation5 + $0xa8] sm:$0xff]
        %v1298 = vld [vmem:[#allocation5 + $0xb0] sm:$0xff]
        %v1299 = vld [vmem:[#allocation5 + $0xb8] sm:$0xff]
        %v1300 = vld [vmem:[#allocation5 + $0xc0] sm:$0xff]
        %v1301 = vld [vmem:[#allocation5 + $0xc8] sm:$0xff]
        %v1302 = vld [vmem:[#allocation5 + $0xd0] sm:$0xff]
        %v1303 = vld [vmem:[#allocation5 + $0xd8] sm:$0xff]
        %v1304 = vld [vmem:[#allocation5 + $0xe0] sm:$0xff]
        %v1305 = vld [vmem:[#allocation5 + $0xe8] sm:$0xff]
        %v1306 = vld [vmem:[#allocation5 + $0xf0] sm:$0xff]
        %v1307 = vld [vmem:[#allocation5 + $0xf8] sm:$0xff]
        %v1308 = vld [vmem:[#allocation5 + $0x100] sm:$0xff]
        %v1309 = vld [vmem:[#allocation5 + $0x108] sm:$0xff]
        %v1310 = vld [vmem:[#allocation5 + $0x110] sm:$0xff]
        %v1311 = vld [vmem:[#allocation5 + $0x118] sm:$0xff]
        %v1312 = vld [vmem:[#allocation5 + $0x120] sm:$0xff]
        %v1313 = vld [vmem:[#allocation5 + $0x128] sm:$0xff]
        %v1314 = vld [vmem:[#allocation5 + $0x130] sm:$0xff]
        %v1315 = vld [vmem:[#allocation5 + $0x138] sm:$0xff]
        %v1316 = vld [vmem:[#allocation5 + $0x140] sm:$0xff]
        %v1317 = vld [vmem:[#allocation5 + $0x148] sm:$0xff]
        %v1318 = vld [vmem:[#allocation5 + $0x150] sm:$0xff]
        %v1319 = vld [vmem:[#allocation5 + $0x158] sm:$0xff]
        %v1320 = vld [vmem:[#allocation5 + $0x160] sm:$0xff]
        %v1321 = vld [vmem:[#allocation5 + $0x168] sm:$0xff]
        %v1322 = vld [vmem:[#allocation5 + $0x170] sm:$0xff]
        %v1323 = vld [vmem:[#allocation5 + $0x178] sm:$0xff]
        %v1324 = vld [vmem:[#allocation5 + $0x180] sm:$0xff]
        %v1325 = vld [vmem:[#allocation5 + $0x188] sm:$0xff]
        %v1326 = vld [vmem:[#allocation5 + $0x190] sm:$0xff]
        %v1327 = vld [vmem:[#allocation5 + $0x198] sm:$0xff]
        %v1328 = vld [vmem:[#allocation5 + $0x1a0] sm:$0xff]
        %v1329 = vld [vmem:[#allocation5 + $0x1a8] sm:$0xff]
        %v1330 = vld [vmem:[#allocation5 + $0x1b0] sm:$0xff]
        %v1331 = vld [vmem:[#allocation5 + $0x1b8] sm:$0xff]
        %v1332 = vld [vmem:[#allocation5 + $0x1c0] sm:$0xff]
        %v1333 = vld [vmem:[#allocation5 + $0x1c8] sm:$0xff]
        %v1334 = vld [vmem:[#allocation5 + $0x1d0] sm:$0xff]
        %v1335 = vld [vmem:[#allocation5 + $0x1d8] sm:$0xff]
        %v1336 = vld [vmem:[#allocation5 + $0x1e0] sm:$0xff]
        %v1337 = vld [vmem:[#allocation5 + $0x1e8] sm:$0xff]
        %v1338 = vld [vmem:[#allocation5 + $0x1f0] sm:$0xff]
        %v1339 = vld [vmem:[#allocation5 + $0x1f8] sm:$0xff]
        %v1340 = vld [vmem:[%s384] sm:$0xff]
        %v1341 = vld [vmem:[%s384 + $0x8] sm:$0xff]
        %v1342 = vld [vmem:[%s384 + $0x10] sm:$0xff]
        %v1343 = vld [vmem:[%s384 + $0x18] sm:$0xff]
        %v1344 = vld [vmem:[%s384 + $0x20] sm:$0xff]
        %v1345 = vld [vmem:[%s384 + $0x28] sm:$0xff]
        %v1346 = vld [vmem:[%s384 + $0x30] sm:$0xff]
        %v1347 = vld [vmem:[%s384 + $0x38] sm:$0xff]
        %v1348 = vld [vmem:[%s384 + $0x40] sm:$0xff]
        %v1349 = vld [vmem:[%s384 + $0x48] sm:$0xff]
        %v1350 = vld [vmem:[%s384 + $0x50] sm:$0xff]
        %v1351 = vld [vmem:[%s384 + $0x58] sm:$0xff]
        %v1352 = vld [vmem:[%s384 + $0x60] sm:$0xff]
        %v1353 = vld [vmem:[%s384 + $0x68] sm:$0xff]
        %v1354 = vld [vmem:[%s384 + $0x70] sm:$0xff]
        %v1355 = vld [vmem:[%s384 + $0x78] sm:$0xff]
        %v1356 = vld [vmem:[%s384 + $0x80] sm:$0xff]
        %v1357 = vld [vmem:[%s384 + $0x88] sm:$0xff]
        %v1358 = vld [vmem:[%s384 + $0x90] sm:$0xff]
        %v1359 = vld [vmem:[%s384 + $0x98] sm:$0xff]
        %v1360 = vld [vmem:[%s384 + $0xa0] sm:$0xff]
        %v1361 = vld [vmem:[%s384 + $0xa8] sm:$0xff]
        %v1362 = vld [vmem:[%s384 + $0xb0] sm:$0xff]
        %v1363 = vld [vmem:[%s384 + $0xb8] sm:$0xff]
        %v1364 = vld [vmem:[%s384 + $0xc0] sm:$0xff]
        %v1365 = vld [vmem:[%s384 + $0xc8] sm:$0xff]
        %v1366 = vld [vmem:[%s384 + $0xd0] sm:$0xff]
        %v1367 = vld [vmem:[%s384 + $0xd8] sm:$0xff]
        %v1368 = vld [vmem:[%s384 + $0xe0] sm:$0xff]
        %v1369 = vld [vmem:[%s384 + $0xe8] sm:$0xff]
        %v1370 = vld [vmem:[%s384 + $0xf0] sm:$0xff]
        %v1371 = vld [vmem:[%s384 + $0xf8] sm:$0xff]
        %v1372 = vld [vmem:[%s384 + $0x100] sm:$0xff]
        %v1373 = vld [vmem:[%s384 + $0x108] sm:$0xff]
        %v1374 = vld [vmem:[%s384 + $0x110] sm:$0xff]
        %v1375 = vld [vmem:[%s384 + $0x118] sm:$0xff]
        %v1376 = vld [vmem:[%s384 + $0x120] sm:$0xff]
        %v1377 = vld [vmem:[%s384 + $0x128] sm:$0xff]
        %v1378 = vld [vmem:[%s384 + $0x130] sm:$0xff]
        %v1379 = vld [vmem:[%s384 + $0x138] sm:$0xff]
        %v1380 = vld [vmem:[%s384 + $0x140] sm:$0xff]
        %v1381 = vld [vmem:[%s384 + $0x148] sm:$0xff]
        %v1382 = vld [vmem:[%s384 + $0x150] sm:$0xff]
        %v1383 = vld [vmem:[%s384 + $0x158] sm:$0xff]
        %v1384 = vld [vmem:[%s384 + $0x160] sm:$0xff]
        %v1385 = vld [vmem:[%s384 + $0x168] sm:$0xff]
        %v1386 = vld [vmem:[%s384 + $0x170] sm:$0xff]
        %v1387 = vld [vmem:[%s384 + $0x178] sm:$0xff]
        %v1388 = vld [vmem:[%s384 + $0x180] sm:$0xff]
        %v1389 = vld [vmem:[%s384 + $0x188] sm:$0xff]
        %v1390 = vld [vmem:[%s384 + $0x190] sm:$0xff]
        %v1391 = vld [vmem:[%s384 + $0x198] sm:$0xff]
        %v1392 = vld [vmem:[%s384 + $0x1a0] sm:$0xff]
        %v1393 = vld [vmem:[%s384 + $0x1a8] sm:$0xff]
        %v1394 = vld [vmem:[%s384 + $0x1b0] sm:$0xff]
        %v1395 = vld [vmem:[%s384 + $0x1b8] sm:$0xff]
        %v1396 = vld [vmem:[%s384 + $0x1c0] sm:$0xff]
        %v1397 = vld [vmem:[%s384 + $0x1c8] sm:$0xff]
        %v1398 = vld [vmem:[%s384 + $0x1d0] sm:$0xff]
        %v1399 = vld [vmem:[%s384 + $0x1d8] sm:$0xff]
        %v1400 = vld [vmem:[%s384 + $0x1e0] sm:$0xff]
        %v1401 = vld [vmem:[%s384 + $0x1e8] sm:$0xff]
        %v1402 = vld [vmem:[%s384 + $0x1f0] sm:$0xff]
        %v1403 = vld [vmem:[%s384 + $0x1f8] sm:$0xff]
        %v1404 = vld [vmem:[%s384 + $0x200] sm:$0xff]
        %v1405 = vld [vmem:[%s384 + $0x208] sm:$0xff]
        %v1406 = vld [vmem:[%s384 + $0x210] sm:$0xff]
        %v1407 = vld [vmem:[%s384 + $0x218] sm:$0xff]
        %v1408 = vld [vmem:[%s384 + $0x220] sm:$0xff]
        %v1409 = vld [vmem:[%s384 + $0x228] sm:$0xff]
        %v1410 = vld [vmem:[%s384 + $0x230] sm:$0xff]
        %v1411 = vld [vmem:[%s384 + $0x238] sm:$0xff]
        %v1412 = vld [vmem:[%s384 + $0x240] sm:$0xff]
        %v1413 = vld [vmem:[%s384 + $0x248] sm:$0xff]
        %v1414 = vld [vmem:[%s384 + $0x250] sm:$0xff]
        %v1415 = vld [vmem:[%s384 + $0x258] sm:$0xff]
        %v1416 = vld [vmem:[%s384 + $0x260] sm:$0xff]
        %v1417 = vld [vmem:[%s384 + $0x268] sm:$0xff]
        %v1418 = vld [vmem:[%s384 + $0x270] sm:$0xff]
        %v1419 = vld [vmem:[%s384 + $0x278] sm:$0xff]
        %v1420 = vld [vmem:[%s384 + $0x280] sm:$0xff]
        %v1421 = vld [vmem:[%s384 + $0x288] sm:$0xff]
        %v1422 = vld [vmem:[%s384 + $0x290] sm:$0xff]
        %v1423 = vld [vmem:[%s384 + $0x298] sm:$0xff]
        %v1424 = vld [vmem:[%s384 + $0x2a0] sm:$0xff]
        %v1425 = vld [vmem:[%s384 + $0x2a8] sm:$0xff]
        %v1426 = vld [vmem:[%s384 + $0x2b0] sm:$0xff]
        %v1427 = vld [vmem:[%s384 + $0x2b8] sm:$0xff]
        %v1428 = vld [vmem:[%s384 + $0x2c0] sm:$0xff]
        %v1429 = vld [vmem:[%s384 + $0x2c8] sm:$0xff]
        %v1430 = vld [vmem:[%s384 + $0x2d0] sm:$0xff]
        %v1431 = vld [vmem:[%s384 + $0x2d8] sm:$0xff]
        %v1432 = vld [vmem:[%s384 + $0x2e0] sm:$0xff]
        %v1433 = vld [vmem:[%s384 + $0x2e8] sm:$0xff]
        %v1434 = vld [vmem:[%s384 + $0x2f0] sm:$0xff]
        %v1435 = vld [vmem:[%s384 + $0x2f8] sm:$0xff]
        %v1436 = vld [vmem:[%s384 + $0x300] sm:$0xff]
        %v1437 = vld [vmem:[%s384 + $0x308] sm:$0xff]
        %v1438 = vld [vmem:[%s384 + $0x310] sm:$0xff]
        %v1439 = vld [vmem:[%s384 + $0x318] sm:$0xff]
        %v1440 = vld [vmem:[%s384 + $0x320] sm:$0xff]
        %v1441 = vld [vmem:[%s384 + $0x328] sm:$0xff]
        %v1442 = vld [vmem:[%s384 + $0x330] sm:$0xff]
        %v1443 = vld [vmem:[%s384 + $0x338] sm:$0xff]
        %v1444 = vld [vmem:[%s384 + $0x340] sm:$0xff]
        %v1445 = vld [vmem:[%s384 + $0x348] sm:$0xff]
        %v1446 = vld [vmem:[%s384 + $0x350] sm:$0xff]
        %v1447 = vld [vmem:[%s384 + $0x358] sm:$0xff]
        %v1448 = vld [vmem:[%s384 + $0x360] sm:$0xff]
        %v1449 = vld [vmem:[%s384 + $0x368] sm:$0xff]
        %v1450 = vld [vmem:[%s384 + $0x370] sm:$0xff]
        %v1451 = vld [vmem:[%s384 + $0x378] sm:$0xff]
        %v1452 = vld [vmem:[%s384 + $0x380] sm:$0xff]
        %v1453 = vld [vmem:[%s384 + $0x388] sm:$0xff]
        %v1454 = vld [vmem:[%s384 + $0x390] sm:$0xff]
        %v1455 = vld [vmem:[%s384 + $0x398] sm:$0xff]
        %v1456 = vld [vmem:[%s384 + $0x3a0] sm:$0xff]
        %v1457 = vld [vmem:[%s384 + $0x3a8] sm:$0xff]
        %v1458 = vld [vmem:[%s384 + $0x3b0] sm:$0xff]
        %v1459 = vld [vmem:[%s384 + $0x3b8] sm:$0xff]
        %v1460 = vld [vmem:[%s384 + $0x3c0] sm:$0xff]
        %v1461 = vld [vmem:[%s384 + $0x3c8] sm:$0xff]
        %v1462 = vld [vmem:[%s384 + $0x3d0] sm:$0xff]
        %v1463 = vld [vmem:[%s384 + $0x3d8] sm:$0xff]
        %v1464 = vld [vmem:[%s384 + $0x3e0] sm:$0xff]
        %v1465 = vld [vmem:[%s384 + $0x3e8] sm:$0xff]
        %v1466 = vld [vmem:[%s384 + $0x3f0] sm:$0xff]
        %v1467 = vld [vmem:[%s384 + $0x3f8] sm:$0xff]
        %v1596 = vunpack.c.l.b16 %v1340
        %v1597 = vunpack.c.h.b16 %v1340
        %v1598 = vunpack.c.l.b16 %v1341
        %v1599 = vunpack.c.h.b16 %v1341
        %v1600 = vunpack.c.l.b16 %v1342
        %v1601 = vunpack.c.h.b16 %v1342
        %v1602 = vunpack.c.l.b16 %v1343
        %v1603 = vunpack.c.h.b16 %v1343
        %v1604 = vunpack.c.l.b16 %v1344
        %v1605 = vunpack.c.h.b16 %v1344
        %v1606 = vunpack.c.l.b16 %v1345
        %v1607 = vunpack.c.h.b16 %v1345
        %v1608 = vunpack.c.l.b16 %v1346
        %v1609 = vunpack.c.h.b16 %v1346
        %v1610 = vunpack.c.l.b16 %v1347
        %v1611 = vunpack.c.h.b16 %v1347
        %v1612 = vunpack.c.l.b16 %v1348
        %v1613 = vunpack.c.h.b16 %v1348
        %v1614 = vunpack.c.l.b16 %v1349
        %v1615 = vunpack.c.h.b16 %v1349
        %v1616 = vunpack.c.l.b16 %v1350
        %v1617 = vunpack.c.h.b16 %v1350
        %v1618 = vunpack.c.l.b16 %v1351
        %v1619 = vunpack.c.h.b16 %v1351
        %v1620 = vunpack.c.l.b16 %v1352
        %v1621 = vunpack.c.h.b16 %v1352
        %v1622 = vunpack.c.l.b16 %v1353
        %v1623 = vunpack.c.h.b16 %v1353
        %v1624 = vunpack.c.l.b16 %v1354
        %v1625 = vunpack.c.h.b16 %v1354
        %v1626 = vunpack.c.l.b16 %v1355
        %v1627 = vunpack.c.h.b16 %v1355
        %v1628 = vunpack.c.l.b16 %v1356
        %v1629 = vunpack.c.h.b16 %v1356
        %v1630 = vunpack.c.l.b16 %v1357
        %v1631 = vunpack.c.h.b16 %v1357
        %v1632 = vunpack.c.l.b16 %v1358
        %v1633 = vunpack.c.h.b16 %v1358
        %v1634 = vunpack.c.l.b16 %v1359
        %v1635 = vunpack.c.h.b16 %v1359
        %v1636 = vunpack.c.l.b16 %v1360
        %v1637 = vunpack.c.h.b16 %v1360
        %v1638 = vunpack.c.l.b16 %v1361
        %v1639 = vunpack.c.h.b16 %v1361
        %v1640 = vunpack.c.l.b16 %v1362
        %v1641 = vunpack.c.h.b16 %v1362
        %v1642 = vunpack.c.l.b16 %v1363
        %v1643 = vunpack.c.h.b16 %v1363
        %v1644 = vunpack.c.l.b16 %v1364
        %v1645 = vunpack.c.h.b16 %v1364
        %v1646 = vunpack.c.l.b16 %v1365
        %v1647 = vunpack.c.h.b16 %v1365
        %v1648 = vunpack.c.l.b16 %v1366
        %v1649 = vunpack.c.h.b16 %v1366
        %v1650 = vunpack.c.l.b16 %v1367
        %v1651 = vunpack.c.h.b16 %v1367
        %v1652 = vunpack.c.l.b16 %v1368
        %v1653 = vunpack.c.h.b16 %v1368
        %v1654 = vunpack.c.l.b16 %v1369
        %v1655 = vunpack.c.h.b16 %v1369
        %v1656 = vunpack.c.l.b16 %v1370
        %v1657 = vunpack.c.h.b16 %v1370
        %v1658 = vunpack.c.l.b16 %v1371
        %v1659 = vunpack.c.h.b16 %v1371
        %v1660 = vunpack.c.l.b16 %v1372
        %v1661 = vunpack.c.h.b16 %v1372
        %v1662 = vunpack.c.l.b16 %v1373
        %v1663 = vunpack.c.h.b16 %v1373
        %v1664 = vunpack.c.l.b16 %v1374
        %v1665 = vunpack.c.h.b16 %v1374
        %v1666 = vunpack.c.l.b16 %v1375
        %v1667 = vunpack.c.h.b16 %v1375
        %v1668 = vunpack.c.l.b16 %v1376
        %v1669 = vunpack.c.h.b16 %v1376
        %v1670 = vunpack.c.l.b16 %v1377
        %v1671 = vunpack.c.h.b16 %v1377
        %v1672 = vunpack.c.l.b16 %v1378
        %v1673 = vunpack.c.h.b16 %v1378
        %v1674 = vunpack.c.l.b16 %v1379
        %v1675 = vunpack.c.h.b16 %v1379
        %v1676 = vunpack.c.l.b16 %v1380
        %v1677 = vunpack.c.h.b16 %v1380
        %v1678 = vunpack.c.l.b16 %v1381
        %v1679 = vunpack.c.h.b16 %v1381
        %v1680 = vunpack.c.l.b16 %v1382
        %v1681 = vunpack.c.h.b16 %v1382
        %v1682 = vunpack.c.l.b16 %v1383
        %v1683 = vunpack.c.h.b16 %v1383
        %v1684 = vunpack.c.l.b16 %v1384
        %v1685 = vunpack.c.h.b16 %v1384
        %v1686 = vunpack.c.l.b16 %v1385
        %v1687 = vunpack.c.h.b16 %v1385
        %v1688 = vunpack.c.l.b16 %v1386
        %v1689 = vunpack.c.h.b16 %v1386
        %v1690 = vunpack.c.l.b16 %v1387
        %v1691 = vunpack.c.h.b16 %v1387
        %v1692 = vunpack.c.l.b16 %v1388
        %v1693 = vunpack.c.h.b16 %v1388
        %v1694 = vunpack.c.l.b16 %v1389
        %v1695 = vunpack.c.h.b16 %v1389
        %v1696 = vunpack.c.l.b16 %v1390
        %v1697 = vunpack.c.h.b16 %v1390
        %v1698 = vunpack.c.l.b16 %v1391
        %v1699 = vunpack.c.h.b16 %v1391
        %v1700 = vunpack.c.l.b16 %v1392
        %v1701 = vunpack.c.h.b16 %v1392
        %v1702 = vunpack.c.l.b16 %v1393
        %v1703 = vunpack.c.h.b16 %v1393
        %v1704 = vunpack.c.l.b16 %v1394
        %v1705 = vunpack.c.h.b16 %v1394
        %v1706 = vunpack.c.l.b16 %v1395
        %v1707 = vunpack.c.h.b16 %v1395
        %v1708 = vunpack.c.l.b16 %v1396
        %v1709 = vunpack.c.h.b16 %v1396
        %v1710 = vunpack.c.l.b16 %v1397
        %v1711 = vunpack.c.h.b16 %v1397
        %v1712 = vunpack.c.l.b16 %v1398
        %v1713 = vunpack.c.h.b16 %v1398
        %v1714 = vunpack.c.l.b16 %v1399
        %v1715 = vunpack.c.h.b16 %v1399
        %v1716 = vunpack.c.l.b16 %v1400
        %v1717 = vunpack.c.h.b16 %v1400
        %v1718 = vunpack.c.l.b16 %v1401
        %v1719 = vunpack.c.h.b16 %v1401
        %v1720 = vunpack.c.l.b16 %v1402
        %v1721 = vunpack.c.h.b16 %v1402
        %v1722 = vunpack.c.l.b16 %v1403
        %v1723 = vunpack.c.h.b16 %v1403
        %v1724 = vunpack.c.l.b16 %v1404
        %v1725 = vunpack.c.h.b16 %v1404
        %v1726 = vunpack.c.l.b16 %v1405
        %v1727 = vunpack.c.h.b16 %v1405
        %v1728 = vunpack.c.l.b16 %v1406
        %v1729 = vunpack.c.h.b16 %v1406
        %v1730 = vunpack.c.l.b16 %v1407
        %v1731 = vunpack.c.h.b16 %v1407
        %v1732 = vunpack.c.l.b16 %v1408
        %v1733 = vunpack.c.h.b16 %v1408
        %v1734 = vunpack.c.l.b16 %v1409
        %v1735 = vunpack.c.h.b16 %v1409
        %v1736 = vunpack.c.l.b16 %v1410
        %v1737 = vunpack.c.h.b16 %v1410
        %v1738 = vunpack.c.l.b16 %v1411
        %v1739 = vunpack.c.h.b16 %v1411
        %v1740 = vunpack.c.l.b16 %v1412
        %v1741 = vunpack.c.h.b16 %v1412
        %v1742 = vunpack.c.l.b16 %v1413
        %v1743 = vunpack.c.h.b16 %v1413
        %v1744 = vunpack.c.l.b16 %v1414
        %v1745 = vunpack.c.h.b16 %v1414
        %v1746 = vunpack.c.l.b16 %v1415
        %v1747 = vunpack.c.h.b16 %v1415
        %v1748 = vunpack.c.l.b16 %v1416
        %v1749 = vunpack.c.h.b16 %v1416
        %v1750 = vunpack.c.l.b16 %v1417
        %v1751 = vunpack.c.h.b16 %v1417
        %v1752 = vunpack.c.l.b16 %v1418
        %v1753 = vunpack.c.h.b16 %v1418
        %v1754 = vunpack.c.l.b16 %v1419
        %v1755 = vunpack.c.h.b16 %v1419
        %v1756 = vunpack.c.l.b16 %v1420
        %v1757 = vunpack.c.h.b16 %v1420
        %v1758 = vunpack.c.l.b16 %v1421
        %v1759 = vunpack.c.h.b16 %v1421
        %v1760 = vunpack.c.l.b16 %v1422
        %v1761 = vunpack.c.h.b16 %v1422
        %v1762 = vunpack.c.l.b16 %v1423
        %v1763 = vunpack.c.h.b16 %v1423
        %v1764 = vunpack.c.l.b16 %v1424
        %v1765 = vunpack.c.h.b16 %v1424
        %v1766 = vunpack.c.l.b16 %v1425
        %v1767 = vunpack.c.h.b16 %v1425
        %v1768 = vunpack.c.l.b16 %v1426
        %v1769 = vunpack.c.h.b16 %v1426
        %v1770 = vunpack.c.l.b16 %v1427
        %v1771 = vunpack.c.h.b16 %v1427
        %v1772 = vunpack.c.l.b16 %v1428
        %v1773 = vunpack.c.h.b16 %v1428
        %v1774 = vunpack.c.l.b16 %v1429
        %v1775 = vunpack.c.h.b16 %v1429
        %v1776 = vunpack.c.l.b16 %v1430
        %v1777 = vunpack.c.h.b16 %v1430
        %v1778 = vunpack.c.l.b16 %v1431
        %v1779 = vunpack.c.h.b16 %v1431
        %v1780 = vunpack.c.l.b16 %v1432
        %v1781 = vunpack.c.h.b16 %v1432
        %v1782 = vunpack.c.l.b16 %v1433
        %v1783 = vunpack.c.h.b16 %v1433
        %v1784 = vunpack.c.l.b16 %v1434
        %v1785 = vunpack.c.h.b16 %v1434
        %v1786 = vunpack.c.l.b16 %v1435
        %v1787 = vunpack.c.h.b16 %v1435
        %v1788 = vunpack.c.l.b16 %v1436
        %v1789 = vunpack.c.h.b16 %v1436
        %v1790 = vunpack.c.l.b16 %v1437
        %v1791 = vunpack.c.h.b16 %v1437
        %v1792 = vunpack.c.l.b16 %v1438
        %v1793 = vunpack.c.h.b16 %v1438
        %v1794 = vunpack.c.l.b16 %v1439
        %v1795 = vunpack.c.h.b16 %v1439
        %v1796 = vunpack.c.l.b16 %v1440
        %v1797 = vunpack.c.h.b16 %v1440
        %v1798 = vunpack.c.l.b16 %v1441
        %v1799 = vunpack.c.h.b16 %v1441
        %v1800 = vunpack.c.l.b16 %v1442
        %v1801 = vunpack.c.h.b16 %v1442
        %v1802 = vunpack.c.l.b16 %v1443
        %v1803 = vunpack.c.h.b16 %v1443
        %v1804 = vunpack.c.l.b16 %v1444
        %v1805 = vunpack.c.h.b16 %v1444
        %v1806 = vunpack.c.l.b16 %v1445
        %v1807 = vunpack.c.h.b16 %v1445
        %v1808 = vunpack.c.l.b16 %v1446
        %v1809 = vunpack.c.h.b16 %v1446
        %v1810 = vunpack.c.l.b16 %v1447
        %v1811 = vunpack.c.h.b16 %v1447
        %v1812 = vunpack.c.l.b16 %v1448
        %v1813 = vunpack.c.h.b16 %v1448
        %v1814 = vunpack.c.l.b16 %v1449
        %v1815 = vunpack.c.h.b16 %v1449
        %v1816 = vunpack.c.l.b16 %v1450
        %v1817 = vunpack.c.h.b16 %v1450
        %v1818 = vunpack.c.l.b16 %v1451
        %v1819 = vunpack.c.h.b16 %v1451
        %v1820 = vunpack.c.l.b16 %v1452
        %v1821 = vunpack.c.h.b16 %v1452
        %v1822 = vunpack.c.l.b16 %v1453
        %v1823 = vunpack.c.h.b16 %v1453
        %v1824 = vunpack.c.l.b16 %v1454
        %v1825 = vunpack.c.h.b16 %v1454
        %v1826 = vunpack.c.l.b16 %v1455
        %v1827 = vunpack.c.h.b16 %v1455
        %v1828 = vunpack.c.l.b16 %v1456
        %v1829 = vunpack.c.h.b16 %v1456
        %v1830 = vunpack.c.l.b16 %v1457
        %v1831 = vunpack.c.h.b16 %v1457
        %v1832 = vunpack.c.l.b16 %v1458
        %v1833 = vunpack.c.h.b16 %v1458
        %v1834 = vunpack.c.l.b16 %v1459
        %v1835 = vunpack.c.h.b16 %v1459
        %v1836 = vunpack.c.l.b16 %v1460
        %v1837 = vunpack.c.h.b16 %v1460
        %v1838 = vunpack.c.l.b16 %v1461
        %v1839 = vunpack.c.h.b16 %v1461
        %v1840 = vunpack.c.l.b16 %v1462
        %v1841 = vunpack.c.h.b16 %v1462
        %v1842 = vunpack.c.l.b16 %v1463
        %v1843 = vunpack.c.h.b16 %v1463
        %v1844 = vunpack.c.l.b16 %v1464
        %v1845 = vunpack.c.h.b16 %v1464
        %v1846 = vunpack.c.l.b16 %v1465
        %v1847 = vunpack.c.h.b16 %v1465
        %v1848 = vunpack.c.l.b16 %v1466
        %v1849 = vunpack.c.h.b16 %v1466
        %v1850 = vunpack.c.l.b16 %v1467
        %v1851 = vunpack.c.h.b16 %v1467
        %v1852 = vpack.c.b16 %v1600, %v1596
        %v1853 = vpack.c.b16 %v1601, %v1597
        %v1854 = vpack.c.b16 %v1602, %v1598
        %v1855 = vpack.c.b16 %v1603, %v1599
        %v1856 = vpack.c.b16 %v1608, %v1604
        %v1857 = vpack.c.b16 %v1609, %v1605
        %v1858 = vpack.c.b16 %v1610, %v1606
        %v1859 = vpack.c.b16 %v1611, %v1607
        %v1860 = vpack.c.b16 %v1616, %v1612
        %v1861 = vpack.c.b16 %v1617, %v1613
        %v1862 = vpack.c.b16 %v1618, %v1614
        %v1863 = vpack.c.b16 %v1619, %v1615
        %v1864 = vpack.c.b16 %v1624, %v1620
        %v1865 = vpack.c.b16 %v1625, %v1621
        %v1866 = vpack.c.b16 %v1626, %v1622
        %v1867 = vpack.c.b16 %v1627, %v1623
        %v1868 = vpack.c.b16 %v1632, %v1628
        %v1869 = vpack.c.b16 %v1633, %v1629
        %v1870 = vpack.c.b16 %v1634, %v1630
        %v1871 = vpack.c.b16 %v1635, %v1631
        %v1872 = vpack.c.b16 %v1640, %v1636
        %v1873 = vpack.c.b16 %v1641, %v1637
        %v1874 = vpack.c.b16 %v1642, %v1638
        %v1875 = vpack.c.b16 %v1643, %v1639
        %v1876 = vpack.c.b16 %v1648, %v1644
        %v1877 = vpack.c.b16 %v1649, %v1645
        %v1878 = vpack.c.b16 %v1650, %v1646
        %v1879 = vpack.c.b16 %v1651, %v1647
        %v1880 = vpack.c.b16 %v1656, %v1652
        %v1881 = vpack.c.b16 %v1657, %v1653
        %v1882 = vpack.c.b16 %v1658, %v1654
        %v1883 = vpack.c.b16 %v1659, %v1655
        %v1884 = vpack.c.b16 %v1664, %v1660
        %v1885 = vpack.c.b16 %v1665, %v1661
        %v1886 = vpack.c.b16 %v1666, %v1662
        %v1887 = vpack.c.b16 %v1667, %v1663
        %v1888 = vpack.c.b16 %v1672, %v1668
        %v1889 = vpack.c.b16 %v1673, %v1669
        %v1890 = vpack.c.b16 %v1674, %v1670
        %v1891 = vpack.c.b16 %v1675, %v1671
        %v1892 = vpack.c.b16 %v1680, %v1676
        %v1893 = vpack.c.b16 %v1681, %v1677
        %v1894 = vpack.c.b16 %v1682, %v1678
        %v1895 = vpack.c.b16 %v1683, %v1679
        %v1896 = vpack.c.b16 %v1688, %v1684
        %v1897 = vpack.c.b16 %v1689, %v1685
        %v1898 = vpack.c.b16 %v1690, %v1686
        %v1899 = vpack.c.b16 %v1691, %v1687
        %v1900 = vpack.c.b16 %v1696, %v1692
        %v1901 = vpack.c.b16 %v1697, %v1693
        %v1902 = vpack.c.b16 %v1698, %v1694
        %v1903 = vpack.c.b16 %v1699, %v1695
        %v1904 = vpack.c.b16 %v1704, %v1700
        %v1905 = vpack.c.b16 %v1705, %v1701
        %v1906 = vpack.c.b16 %v1706, %v1702
        %v1907 = vpack.c.b16 %v1707, %v1703
        %v1908 = vpack.c.b16 %v1712, %v1708
        %v1909 = vpack.c.b16 %v1713, %v1709
        %v1910 = vpack.c.b16 %v1714, %v1710
        %v1911 = vpack.c.b16 %v1715, %v1711
        %v1912 = vpack.c.b16 %v1720, %v1716
        %v1913 = vpack.c.b16 %v1721, %v1717
        %v1914 = vpack.c.b16 %v1722, %v1718
        %v1915 = vpack.c.b16 %v1723, %v1719
        %v1916 = vpack.c.b16 %v1728, %v1724
        %v1917 = vpack.c.b16 %v1729, %v1725
        %v1918 = vpack.c.b16 %v1730, %v1726
        %v1919 = vpack.c.b16 %v1731, %v1727
        %v1920 = vpack.c.b16 %v1736, %v1732
        %v1921 = vpack.c.b16 %v1737, %v1733
        %v1922 = vpack.c.b16 %v1738, %v1734
        %v1923 = vpack.c.b16 %v1739, %v1735
        %v1924 = vpack.c.b16 %v1744, %v1740
        %v1925 = vpack.c.b16 %v1745, %v1741
        %v1926 = vpack.c.b16 %v1746, %v1742
        %v1927 = vpack.c.b16 %v1747, %v1743
        %v1928 = vpack.c.b16 %v1752, %v1748
        %v1929 = vpack.c.b16 %v1753, %v1749
        %v1930 = vpack.c.b16 %v1754, %v1750
        %v1931 = vpack.c.b16 %v1755, %v1751
        %v1932 = vpack.c.b16 %v1760, %v1756
        %v1933 = vpack.c.b16 %v1761, %v1757
        %v1934 = vpack.c.b16 %v1762, %v1758
        %v1935 = vpack.c.b16 %v1763, %v1759
        %v1936 = vpack.c.b16 %v1768, %v1764
        %v1937 = vpack.c.b16 %v1769, %v1765
        %v1938 = vpack.c.b16 %v1770, %v1766
        %v1939 = vpack.c.b16 %v1771, %v1767
        %v1940 = vpack.c.b16 %v1776, %v1772
        %v1941 = vpack.c.b16 %v1777, %v1773
        %v1942 = vpack.c.b16 %v1778, %v1774
        %v1943 = vpack.c.b16 %v1779, %v1775
        %v1944 = vpack.c.b16 %v1784, %v1780
        %v1945 = vpack.c.b16 %v1785, %v1781
        %v1946 = vpack.c.b16 %v1786, %v1782
        %v1947 = vpack.c.b16 %v1787, %v1783
        %v1948 = vpack.c.b16 %v1792, %v1788
        %v1949 = vpack.c.b16 %v1793, %v1789
        %v1950 = vpack.c.b16 %v1794, %v1790
        %v1951 = vpack.c.b16 %v1795, %v1791
        %v1952 = vpack.c.b16 %v1800, %v1796
        %v1953 = vpack.c.b16 %v1801, %v1797
        %v1954 = vpack.c.b16 %v1802, %v1798
        %v1955 = vpack.c.b16 %v1803, %v1799
        %v1956 = vpack.c.b16 %v1808, %v1804
        %v1957 = vpack.c.b16 %v1809, %v1805
        %v1958 = vpack.c.b16 %v1810, %v1806
        %v1959 = vpack.c.b16 %v1811, %v1807
        %v1960 = vpack.c.b16 %v1816, %v1812
        %v1961 = vpack.c.b16 %v1817, %v1813
        %v1962 = vpack.c.b16 %v1818, %v1814
        %v1963 = vpack.c.b16 %v1819, %v1815
        %v1964 = vpack.c.b16 %v1824, %v1820
        %v1965 = vpack.c.b16 %v1825, %v1821
        %v1966 = vpack.c.b16 %v1826, %v1822
        %v1967 = vpack.c.b16 %v1827, %v1823
        %v1968 = vpack.c.b16 %v1832, %v1828
        %v1969 = vpack.c.b16 %v1833, %v1829
        %v1970 = vpack.c.b16 %v1834, %v1830
        %v1971 = vpack.c.b16 %v1835, %v1831
        %v1972 = vpack.c.b16 %v1840, %v1836
        %v1973 = vpack.c.b16 %v1841, %v1837
        %v1974 = vpack.c.b16 %v1842, %v1838
        %v1975 = vpack.c.b16 %v1843, %v1839
        %v1976 = vpack.c.b16 %v1848, %v1844
        %v1977 = vpack.c.b16 %v1849, %v1845
        %v1978 = vpack.c.b16 %v1850, %v1846
        %v1979 = vpack.c.b16 %v1851, %v1847
        %2108 = vmatprep.subr.bf16.mxu0 %v1853
        %2109 = vmatpush1.bf16.msra.mxu0 %v1852
        %2110 = vmatprep.subr.bf16.mxu0 %v1857
        %2111 = vmatpush1.bf16.msra.mxu0 %v1856
        %2112 = vmatprep.subr.bf16.mxu0 %v1861
        %2113 = vmatpush1.bf16.msra.mxu0 %v1860
        %2114 = vmatprep.subr.bf16.mxu0 %v1865
        %2115 = vmatpush1.bf16.msra.mxu0 %v1864
        %2116 = vmatprep.subr.bf16.mxu0 %v1869
        %2117 = vmatpush1.bf16.msra.mxu0 %v1868
        %2118 = vmatprep.subr.bf16.mxu0 %v1873
        %2119 = vmatpush1.bf16.msra.mxu0 %v1872
        %2120 = vmatprep.subr.bf16.mxu0 %v1877
        %2121 = vmatpush1.bf16.msra.mxu0 %v1876
        %2122 = vmatprep.subr.bf16.mxu0 %v1881
        %2123 = vmatpush1.bf16.msra.mxu0 %v1880
        %2124 = vmatprep.subr.bf16.mxu0 %v1885
        %2125 = vmatpush1.bf16.msra.mxu0 %v1884
        %2126 = vmatprep.subr.bf16.mxu0 %v1889
        %2127 = vmatpush1.bf16.msra.mxu0 %v1888
        %2128 = vmatprep.subr.bf16.mxu0 %v1893
        %2129 = vmatpush1.bf16.msra.mxu0 %v1892
        %2130 = vmatprep.subr.bf16.mxu0 %v1897
        %2131 = vmatpush1.bf16.msra.mxu0 %v1896
        %2132 = vmatprep.subr.bf16.mxu0 %v1901
        %2133 = vmatpush1.bf16.msra.mxu0 %v1900
        %2134 = vmatprep.subr.bf16.mxu0 %v1905
        %2135 = vmatpush1.bf16.msra.mxu0 %v1904
        %2136 = vmatprep.subr.bf16.mxu0 %v1909
        %2137 = vmatpush1.bf16.msra.mxu0 %v1908
        %2138 = vmatprep.subr.bf16.mxu0 %v1913
        %2139 = vmatpush1.bf16.msra.mxu0 %v1912
        %2140 = vmatprep.mubr.bf16.mxu0 %v1277
        %2141 = vmatmul.mubr.bf16.gmra.mrb[0].mxu0 %v1276
        %v2142 = vpop.f32.mrb[0].mxu0
        %v2143 = vadd.f32 0.0, %v2142
        %v2144 = vpop.f32.mrb[0].mxu0
        %v2145 = vadd.f32 0.0, %v2144
        %v2146 = vpop.f32.mrb[0].mxu0
        %v2147 = vadd.f32 0.0, %v2146
        %v2148 = vpop.f32.mrb[0].mxu0
        %v2149 = vadd.f32 0.0, %v2148
        %2150 = vmatprep.mubr.bf16.mxu0 %v1281
        %2151 = vmatmul.mubr.bf16.gmra.mrb[0].mxu0 %v1280
        %v2152 = vpop.f32.mrb[0].mxu0
        %v2153 = vadd.f32 0.0, %v2152
        %v2154 = vpop.f32.mrb[0].mxu0
        %v2155 = vadd.f32 0.0, %v2154
        %v2156 = vpop.f32.mrb[0].mxu0
        %v2157 = vadd.f32 0.0, %v2156
        %v2158 = vpop.f32.mrb[0].mxu0
        %v2159 = vadd.f32 0.0, %v2158
        %2160 = vmatprep.mubr.bf16.mxu0 %v1285
        %2161 = vmatmul.mubr.bf16.gmra.mrb[0].mxu0 %v1284
        %v2162 = vpop.f32.mrb[0].mxu0
        %v2163 = vadd.f32 0.0, %v2162
        %v2164 = vpop.f32.mrb[0].mxu0
        %v2165 = vadd.f32 0.0, %v2164
        %v2166 = vpop.f32.mrb[0].mxu0
        %v2167 = vadd.f32 0.0, %v2166
        %v2168 = vpop.f32.mrb[0].mxu0
        %v2169 = vadd.f32 0.0, %v2168
        %2170 = vmatprep.mubr.bf16.mxu0 %v1289
        %2171 = vmatmul.mubr.bf16.gmra.mrb[0].mxu0 %v1288
        %v2172 = vpop.f32.mrb[0].mxu0
        %v2173 = vadd.f32 0.0, %v2172
        %v2174 = vpop.f32.mrb[0].mxu0
        %v2175 = vadd.f32 0.0, %v2174
        %v2176 = vpop.f32.mrb[0].mxu0
        %v2177 = vadd.f32 0.0, %v2176
        %v2178 = vpop.f32.mrb[0].mxu0
        %v2179 = vadd.f32 0.0, %v2178
        %2180 = vmatprep.mubr.bf16.mxu0 %v1293
        %2181 = vmatmul.mubr.bf16.gmra.mrb[0].mxu0 %v1292
        %v2182 = vpop.f32.mrb[0].mxu0
        %v2183 = vadd.f32 0.0, %v2182
        %v2184 = vpop.f32.mrb[0].mxu0
        %v2185 = vadd.f32 0.0, %v2184
        %v2186 = vpop.f32.mrb[0].mxu0
        %v2187 = vadd.f32 0.0, %v2186
        %v2188 = vpop.f32.mrb[0].mxu0
        %v2189 = vadd.f32 0.0, %v2188
        %2190 = vmatprep.mubr.bf16.mxu0 %v1297
        %2191 = vmatmul.mubr.bf16.gmra.mrb[0].mxu0 %v1296
        %v2192 = vpop.f32.mrb[0].mxu0
        %v2193 = vadd.f32 0.0, %v2192
        %v2194 = vpop.f32.mrb[0].mxu0
        %v2195 = vadd.f32 0.0, %v2194
        %v2196 = vpop.f32.mrb[0].mxu0
        %v2197 = vadd.f32 0.0, %v2196
        %v2198 = vpop.f32.mrb[0].mxu0
        %v2199 = vadd.f32 0.0, %v2198
        %2200 = vmatprep.mubr.bf16.mxu0 %v1301
        %2201 = vmatmul.mubr.bf16.gmra.mrb[0].mxu0 %v1300
        %v2202 = vpop.f32.mrb[0].mxu0
        %v2203 = vadd.f32 0.0, %v2202
        %v2204 = vpop.f32.mrb[0].mxu0
        %v2205 = vadd.f32 0.0, %v2204
        %v2206 = vpop.f32.mrb[0].mxu0
        %v2207 = vadd.f32 0.0, %v2206
        %v2208 = vpop.f32.mrb[0].mxu0
        %v2209 = vadd.f32 0.0, %v2208
        %2210 = vmatprep.mubr.bf16.mxu0 %v1305
        %2211 = vmatmul.mubr.bf16.gmra.mrb[0].mxu0 %v1304
        %v2212 = vpop.f32.mrb[0].mxu0
        %v2213 = vadd.f32 0.0, %v2212
        %v2214 = vpop.f32.mrb[0].mxu0
        %v2215 = vadd.f32 0.0, %v2214
        %v2216 = vpop.f32.mrb[0].mxu0
        %v2217 = vadd.f32 0.0, %v2216
        %v2218 = vpop.f32.mrb[0].mxu0
        %v2219 = vadd.f32 0.0, %v2218
        %2220 = vmatprep.mubr.bf16.mxu0 %v1309
        %2221 = vmatmul.mubr.bf16.gmra.mrb[0].mxu0 %v1308
        %v2222 = vpop.f32.mrb[0].mxu0
        %v2223 = vadd.f32 0.0, %v2222
        %v2224 = vpop.f32.mrb[0].mxu0
        %v2225 = vadd.f32 0.0, %v2224
        %v2226 = vpop.f32.mrb[0].mxu0
        %v2227 = vadd.f32 0.0, %v2226
        %v2228 = vpop.f32.mrb[0].mxu0
        %v2229 = vadd.f32 0.0, %v2228
        %2230 = vmatprep.mubr.bf16.mxu0 %v1313
        %2231 = vmatmul.mubr.bf16.gmra.mrb[0].mxu0 %v1312
        %v2232 = vpop.f32.mrb[0].mxu0
        %v2233 = vadd.f32 0.0, %v2232
        %v2234 = vpop.f32.mrb[0].mxu0
        %v2235 = vadd.f32 0.0, %v2234
        %v2236 = vpop.f32.mrb[0].mxu0
        %v2237 = vadd.f32 0.0, %v2236
        %v2238 = vpop.f32.mrb[0].mxu0
        %v2239 = vadd.f32 0.0, %v2238
        %2240 = vmatprep.mubr.bf16.mxu0 %v1317
        %2241 = vmatmul.mubr.bf16.gmra.mrb[0].mxu0 %v1316
        %v2242 = vpop.f32.mrb[0].mxu0
        %v2243 = vadd.f32 0.0, %v2242
        %v2244 = vpop.f32.mrb[0].mxu0
        %v2245 = vadd.f32 0.0, %v2244
        %v2246 = vpop.f32.mrb[0].mxu0
        %v2247 = vadd.f32 0.0, %v2246
        %v2248 = vpop.f32.mrb[0].mxu0
        %v2249 = vadd.f32 0.0, %v2248
        %2250 = vmatprep.mubr.bf16.mxu0 %v1321
        %2251 = vmatmul.mubr.bf16.gmra.mrb[0].mxu0 %v1320
        %v2252 = vpop.f32.mrb[0].mxu0
        %v2253 = vadd.f32 0.0, %v2252
        %v2254 = vpop.f32.mrb[0].mxu0
        %v2255 = vadd.f32 0.0, %v2254
        %v2256 = vpop.f32.mrb[0].mxu0
        %v2257 = vadd.f32 0.0, %v2256
        %v2258 = vpop.f32.mrb[0].mxu0
        %v2259 = vadd.f32 0.0, %v2258
        %2260 = vmatprep.mubr.bf16.mxu0 %v1325
        %2261 = vmatmul.mubr.bf16.gmra.mrb[0].mxu0 %v1324
        %v2262 = vpop.f32.mrb[0].mxu0
        %v2263 = vadd.f32 0.0, %v2262
        %v2264 = vpop.f32.mrb[0].mxu0
        %v2265 = vadd.f32 0.0, %v2264
        %v2266 = vpop.f32.mrb[0].mxu0
        %v2267 = vadd.f32 0.0, %v2266
        %v2268 = vpop.f32.mrb[0].mxu0
        %v2269 = vadd.f32 0.0, %v2268
        %2270 = vmatprep.mubr.bf16.mxu0 %v1329
        %2271 = vmatmul.mubr.bf16.gmra.mrb[0].mxu0 %v1328
        %v2272 = vpop.f32.mrb[0].mxu0
        %v2273 = vadd.f32 0.0, %v2272
        %v2274 = vpop.f32.mrb[0].mxu0
        %v2275 = vadd.f32 0.0, %v2274
        %v2276 = vpop.f32.mrb[0].mxu0
        %v2277 = vadd.f32 0.0, %v2276
        %v2278 = vpop.f32.mrb[0].mxu0
        %v2279 = vadd.f32 0.0, %v2278
        %2280 = vmatprep.mubr.bf16.mxu0 %v1333
        %2281 = vmatmul.mubr.bf16.gmra.mrb[0].mxu0 %v1332
        %v2282 = vpop.f32.mrb[0].mxu0
        %v2283 = vadd.f32 0.0, %v2282
        %v2284 = vpop.f32.mrb[0].mxu0
        %v2285 = vadd.f32 0.0, %v2284
        %v2286 = vpop.f32.mrb[0].mxu0
        %v2287 = vadd.f32 0.0, %v2286
        %v2288 = vpop.f32.mrb[0].mxu0
        %v2289 = vadd.f32 0.0, %v2288
        %2290 = vmatprep.mubr.bf16.mxu0 %v1337
        %2291 = vmatmul.mubr.bf16.gmra.mrb[0].mxu0 %v1336
        %v2292 = vpop.f32.mrb[0].mxu0
        %v2293 = vadd.f32 0.0, %v2292
        %v2294 = vpop.f32.mrb[0].mxu0
        %v2295 = vadd.f32 0.0, %v2294
        %v2296 = vpop.f32.mrb[0].mxu0
        %v2297 = vadd.f32 0.0, %v2296
        %v2298 = vpop.f32.mrb[0].mxu0
        %v2299 = vadd.f32 0.0, %v2298
        %2300 = vdwg.mxu0
        %2301 = vmatprep.subr.bf16.mxu0 %v1917
        %2302 = vmatpush1.bf16.msra.mxu0 %v1916
        %2303 = vmatprep.subr.bf16.mxu0 %v1921
        %2304 = vmatpush1.bf16.msra.mxu0 %v1920
        %2305 = vmatprep.subr.bf16.mxu0 %v1925
        %2306 = vmatpush1.bf16.msra.mxu0 %v1924
        %2307 = vmatprep.subr.bf16.mxu0 %v1929
        %2308 = vmatpush1.bf16.msra.mxu0 %v1928
        %2309 = vmatprep.subr.bf16.mxu0 %v1933
        %2310 = vmatpush1.bf16.msra.mxu0 %v1932
        %2311 = vmatprep.subr.bf16.mxu0 %v1937
        %2312 = vmatpush1.bf16.msra.mxu0 %v1936
        %2313 = vmatprep.subr.bf16.mxu0 %v1941
        %2314 = vmatpush1.bf16.msra.mxu0 %v1940
        %2315 = vmatprep.subr.bf16.mxu0 %v1945
        %2316 = vmatpush1.bf16.msra.mxu0 %v1944
        %2317 = vmatprep.subr.bf16.mxu0 %v1949
        %2318 = vmatpush1.bf16.msra.mxu0 %v1948
        %2319 = vmatprep.subr.bf16.mxu0 %v1953
        %2320 = vmatpush1.bf16.msra.mxu0 %v1952
        %2321 = vmatprep.subr.bf16.mxu0 %v1957
        %2322 = vmatpush1.bf16.msra.mxu0 %v1956
        %2323 = vmatprep.subr.bf16.mxu0 %v1961
        %2324 = vmatpush1.bf16.msra.mxu0 %v1960
        %2325 = vmatprep.subr.bf16.mxu0 %v1965
        %2326 = vmatpush1.bf16.msra.mxu0 %v1964
        %2327 = vmatprep.subr.bf16.mxu0 %v1969
        %2328 = vmatpush1.bf16.msra.mxu0 %v1968
        %2329 = vmatprep.subr.bf16.mxu0 %v1973
        %2330 = vmatpush1.bf16.msra.mxu0 %v1972
        %2331 = vmatprep.subr.bf16.mxu0 %v1977
        %2332 = vmatpush1.bf16.msra.mxu0 %v1976
        %2333 = vmatprep.mubr.bf16.mxu0 %v1279
        %2334 = vmatmul.mubr.bf16.gmra.mrb[0].mxu0 %v1278
        %v2335 = vpop.f32.mrb[0].mxu0
        %v2336 = vadd.f32 %v2143, %v2335
        %v2337 = vpop.f32.mrb[0].mxu0
        %v2338 = vadd.f32 %v2145, %v2337
        %v2339 = vpop.f32.mrb[0].mxu0
        %v2340 = vadd.f32 %v2147, %v2339
        %v2341 = vpop.f32.mrb[0].mxu0
        %v2342 = vadd.f32 %v2149, %v2341
        %2343 = vmatprep.mubr.bf16.mxu0 %v1283
        %2344 = vmatmul.mubr.bf16.gmra.mrb[0].mxu0 %v1282
        %v2345 = vpop.f32.mrb[0].mxu0
        %v2346 = vadd.f32 %v2153, %v2345
        %v2347 = vpop.f32.mrb[0].mxu0
        %v2348 = vadd.f32 %v2155, %v2347
        %v2349 = vpop.f32.mrb[0].mxu0
        %v2350 = vadd.f32 %v2157, %v2349
        %v2351 = vpop.f32.mrb[0].mxu0
        %v2352 = vadd.f32 %v2159, %v2351
        %2353 = vmatprep.mubr.bf16.mxu0 %v1287
        %2354 = vmatmul.mubr.bf16.gmra.mrb[0].mxu0 %v1286
        %v2355 = vpop.f32.mrb[0].mxu0
        %v2356 = vadd.f32 %v2163, %v2355
        %v2357 = vpop.f32.mrb[0].mxu0
        %v2358 = vadd.f32 %v2165, %v2357
        %v2359 = vpop.f32.mrb[0].mxu0
        %v2360 = vadd.f32 %v2167, %v2359
        %v2361 = vpop.f32.mrb[0].mxu0
        %v2362 = vadd.f32 %v2169, %v2361
        %2363 = vmatprep.mubr.bf16.mxu0 %v1291
        %2364 = vmatmul.mubr.bf16.gmra.mrb[0].mxu0 %v1290
        %v2365 = vpop.f32.mrb[0].mxu0
        %v2366 = vadd.f32 %v2173, %v2365
        %v2367 = vpop.f32.mrb[0].mxu0
        %v2368 = vadd.f32 %v2175, %v2367
        %v2369 = vpop.f32.mrb[0].mxu0
        %v2370 = vadd.f32 %v2177, %v2369
        %v2371 = vpop.f32.mrb[0].mxu0
        %v2372 = vadd.f32 %v2179, %v2371
        %2373 = vmatprep.mubr.bf16.mxu0 %v1295
        %2374 = vmatmul.mubr.bf16.gmra.mrb[0].mxu0 %v1294
        %v2375 = vpop.f32.mrb[0].mxu0
        %v2376 = vadd.f32 %v2183, %v2375
        %v2377 = vpop.f32.mrb[0].mxu0
        %v2378 = vadd.f32 %v2185, %v2377
        %v2379 = vpop.f32.mrb[0].mxu0
        %v2380 = vadd.f32 %v2187, %v2379
        %v2381 = vpop.f32.mrb[0].mxu0
        %v2382 = vadd.f32 %v2189, %v2381
        %2383 = vmatprep.mubr.bf16.mxu0 %v1299
        %2384 = vmatmul.mubr.bf16.gmra.mrb[0].mxu0 %v1298
        %v2385 = vpop.f32.mrb[0].mxu0
        %v2386 = vadd.f32 %v2193, %v2385
        %v2387 = vpop.f32.mrb[0].mxu0
        %v2388 = vadd.f32 %v2195, %v2387
        %v2389 = vpop.f32.mrb[0].mxu0
        %v2390 = vadd.f32 %v2197, %v2389
        %v2391 = vpop.f32.mrb[0].mxu0
        %v2392 = vadd.f32 %v2199, %v2391
        %2393 = vmatprep.mubr.bf16.mxu0 %v1303
        %2394 = vmatmul.mubr.bf16.gmra.mrb[0].mxu0 %v1302
        %v2395 = vpop.f32.mrb[0].mxu0
        %v2396 = vadd.f32 %v2203, %v2395
        %v2397 = vpop.f32.mrb[0].mxu0
        %v2398 = vadd.f32 %v2205, %v2397
        %v2399 = vpop.f32.mrb[0].mxu0
        %v2400 = vadd.f32 %v2207, %v2399
        %v2401 = vpop.f32.mrb[0].mxu0
        %v2402 = vadd.f32 %v2209, %v2401
        %2403 = vmatprep.mubr.bf16.mxu0 %v1307
        %2404 = vmatmul.mubr.bf16.gmra.mrb[0].mxu0 %v1306
        %v2405 = vpop.f32.mrb[0].mxu0
        %v2406 = vadd.f32 %v2213, %v2405
        %v2407 = vpop.f32.mrb[0].mxu0
        %v2408 = vadd.f32 %v2215, %v2407
        %v2409 = vpop.f32.mrb[0].mxu0
        %v2410 = vadd.f32 %v2217, %v2409
        %v2411 = vpop.f32.mrb[0].mxu0
        %v2412 = vadd.f32 %v2219, %v2411
        %2413 = vmatprep.mubr.bf16.mxu0 %v1311
        %2414 = vmatmul.mubr.bf16.gmra.mrb[0].mxu0 %v1310
        %v2415 = vpop.f32.mrb[0].mxu0
        %v2416 = vadd.f32 %v2223, %v2415
        %v2417 = vpop.f32.mrb[0].mxu0
        %v2418 = vadd.f32 %v2225, %v2417
        %v2419 = vpop.f32.mrb[0].mxu0
        %v2420 = vadd.f32 %v2227, %v2419
        %v2421 = vpop.f32.mrb[0].mxu0
        %v2422 = vadd.f32 %v2229, %v2421
        %2423 = vmatprep.mubr.bf16.mxu0 %v1315
        %2424 = vmatmul.mubr.bf16.gmra.mrb[0].mxu0 %v1314
        %v2425 = vpop.f32.mrb[0].mxu0
        %v2426 = vadd.f32 %v2233, %v2425
        %v2427 = vpop.f32.mrb[0].mxu0
        %v2428 = vadd.f32 %v2235, %v2427
        %v2429 = vpop.f32.mrb[0].mxu0
        %v2430 = vadd.f32 %v2237, %v2429
        %v2431 = vpop.f32.mrb[0].mxu0
        %v2432 = vadd.f32 %v2239, %v2431
        %2433 = vmatprep.mubr.bf16.mxu0 %v1319
        %2434 = vmatmul.mubr.bf16.gmra.mrb[0].mxu0 %v1318
        %v2435 = vpop.f32.mrb[0].mxu0
        %v2436 = vadd.f32 %v2243, %v2435
        %v2437 = vpop.f32.mrb[0].mxu0
        %v2438 = vadd.f32 %v2245, %v2437
        %v2439 = vpop.f32.mrb[0].mxu0
        %v2440 = vadd.f32 %v2247, %v2439
        %v2441 = vpop.f32.mrb[0].mxu0
        %v2442 = vadd.f32 %v2249, %v2441
        %2443 = vmatprep.mubr.bf16.mxu0 %v1323
        %2444 = vmatmul.mubr.bf16.gmra.mrb[0].mxu0 %v1322
        %v2445 = vpop.f32.mrb[0].mxu0
        %v2446 = vadd.f32 %v2253, %v2445
        %v2447 = vpop.f32.mrb[0].mxu0
        %v2448 = vadd.f32 %v2255, %v2447
        %v2449 = vpop.f32.mrb[0].mxu0
        %v2450 = vadd.f32 %v2257, %v2449
        %v2451 = vpop.f32.mrb[0].mxu0
        %v2452 = vadd.f32 %v2259, %v2451
        %2453 = vmatprep.mubr.bf16.mxu0 %v1327
        %2454 = vmatmul.mubr.bf16.gmra.mrb[0].mxu0 %v1326
        %v2455 = vpop.f32.mrb[0].mxu0
        %v2456 = vadd.f32 %v2263, %v2455
        %v2457 = vpop.f32.mrb[0].mxu0
        %v2458 = vadd.f32 %v2265, %v2457
        %v2459 = vpop.f32.mrb[0].mxu0
        %v2460 = vadd.f32 %v2267, %v2459
        %v2461 = vpop.f32.mrb[0].mxu0
        %v2462 = vadd.f32 %v2269, %v2461
        %2463 = vmatprep.mubr.bf16.mxu0 %v1331
        %2464 = vmatmul.mubr.bf16.gmra.mrb[0].mxu0 %v1330
        %v2465 = vpop.f32.mrb[0].mxu0
        %v2466 = vadd.f32 %v2273, %v2465
        %v2467 = vpop.f32.mrb[0].mxu0
        %v2468 = vadd.f32 %v2275, %v2467
        %v2469 = vpop.f32.mrb[0].mxu0
        %v2470 = vadd.f32 %v2277, %v2469
        %v2471 = vpop.f32.mrb[0].mxu0
        %v2472 = vadd.f32 %v2279, %v2471
        %2473 = vmatprep.mubr.bf16.mxu0 %v1335
        %2474 = vmatmul.mubr.bf16.gmra.mrb[0].mxu0 %v1334
        %v2475 = vpop.f32.mrb[0].mxu0
        %v2476 = vadd.f32 %v2283, %v2475
        %v2477 = vpop.f32.mrb[0].mxu0
        %v2478 = vadd.f32 %v2285, %v2477
        %v2479 = vpop.f32.mrb[0].mxu0
        %v2480 = vadd.f32 %v2287, %v2479
        %v2481 = vpop.f32.mrb[0].mxu0
        %v2482 = vadd.f32 %v2289, %v2481
        %2483 = vmatprep.mubr.bf16.mxu0 %v1339
        %2484 = vmatmul.mubr.bf16.gmra.mrb[0].mxu0 %v1338
        %v2485 = vpop.f32.mrb[0].mxu0
        %v2486 = vadd.f32 %v2293, %v2485
        %v2487 = vpop.f32.mrb[0].mxu0
        %v2488 = vadd.f32 %v2295, %v2487
        %v2489 = vpop.f32.mrb[0].mxu0
        %v2490 = vadd.f32 %v2297, %v2489
        %v2491 = vpop.f32.mrb[0].mxu0
        %v2492 = vadd.f32 %v2299, %v2491
        %2493 = vdwg.mxu0
        %2494 = vmatprep.subr.bf16.mxu0 %v1855
        %2495 = vmatpush1.bf16.msra.mxu0 %v1854
        %2496 = vmatprep.subr.bf16.mxu0 %v1859
        %2497 = vmatpush1.bf16.msra.mxu0 %v1858
        %2498 = vmatprep.subr.bf16.mxu0 %v1863
        %2499 = vmatpush1.bf16.msra.mxu0 %v1862
        %2500 = vmatprep.subr.bf16.mxu0 %v1867
        %2501 = vmatpush1.bf16.msra.mxu0 %v1866
        %2502 = vmatprep.subr.bf16.mxu0 %v1871
        %2503 = vmatpush1.bf16.msra.mxu0 %v1870
        %2504 = vmatprep.subr.bf16.mxu0 %v1875
        %2505 = vmatpush1.bf16.msra.mxu0 %v1874
        %2506 = vmatprep.subr.bf16.mxu0 %v1879
        %2507 = vmatpush1.bf16.msra.mxu0 %v1878
        %2508 = vmatprep.subr.bf16.mxu0 %v1883
        %2509 = vmatpush1.bf16.msra.mxu0 %v1882
        %2510 = vmatprep.subr.bf16.mxu0 %v1887
        %2511 = vmatpush1.bf16.msra.mxu0 %v1886
        %2512 = vmatprep.subr.bf16.mxu0 %v1891
        %2513 = vmatpush1.bf16.msra.mxu0 %v1890
        %2514 = vmatprep.subr.bf16.mxu0 %v1895
        %2515 = vmatpush1.bf16.msra.mxu0 %v1894
        %2516 = vmatprep.subr.bf16.mxu0 %v1899
        %2517 = vmatpush1.bf16.msra.mxu0 %v1898
        %2518 = vmatprep.subr.bf16.mxu0 %v1903
        %2519 = vmatpush1.bf16.msra.mxu0 %v1902
        %2520 = vmatprep.subr.bf16.mxu0 %v1907
        %2521 = vmatpush1.bf16.msra.mxu0 %v1906
        %2522 = vmatprep.subr.bf16.mxu0 %v1911
        %2523 = vmatpush1.bf16.msra.mxu0 %v1910
        %2524 = vmatprep.subr.bf16.mxu0 %v1915
        %2525 = vmatpush1.bf16.msra.mxu0 %v1914
        %2526 = vmatprep.mubr.bf16.mxu0 %v1277
        %2527 = vmatmul.mubr.bf16.gmra.mrb[0].mxu0 %v1276
        %v2528 = vpop.f32.mrb[0].mxu0
        %v2529 = vadd.f32 0.0, %v2528
        %v2530 = vpop.f32.mrb[0].mxu0
        %v2531 = vadd.f32 0.0, %v2530
        %v2532 = vpop.f32.mrb[0].mxu0
        %v2533 = vadd.f32 0.0, %v2532
        %v2534 = vpop.f32.mrb[0].mxu0
        %v2535 = vadd.f32 0.0, %v2534
        %2536 = vmatprep.mubr.bf16.mxu0 %v1281
        %2537 = vmatmul.mubr.bf16.gmra.mrb[0].mxu0 %v1280
        %v2538 = vpop.f32.mrb[0].mxu0
        %v2539 = vadd.f32 0.0, %v2538
        %v2540 = vpop.f32.mrb[0].mxu0
        %v2541 = vadd.f32 0.0, %v2540
        %v2542 = vpop.f32.mrb[0].mxu0
        %v2543 = vadd.f32 0.0, %v2542
        %v2544 = vpop.f32.mrb[0].mxu0
        %v2545 = vadd.f32 0.0, %v2544
        %2546 = vmatprep.mubr.bf16.mxu0 %v1285
        %2547 = vmatmul.mubr.bf16.gmra.mrb[0].mxu0 %v1284
        %v2548 = vpop.f32.mrb[0].mxu0
        %v2549 = vadd.f32 0.0, %v2548
        %v2550 = vpop.f32.mrb[0].mxu0
        %v2551 = vadd.f32 0.0, %v2550
        %v2552 = vpop.f32.mrb[0].mxu0
        %v2553 = vadd.f32 0.0, %v2552
        %v2554 = vpop.f32.mrb[0].mxu0
        %v2555 = vadd.f32 0.0, %v2554
        %2556 = vmatprep.mubr.bf16.mxu0 %v1289
        %2557 = vmatmul.mubr.bf16.gmra.mrb[0].mxu0 %v1288
        %v2558 = vpop.f32.mrb[0].mxu0
        %v2559 = vadd.f32 0.0, %v2558
        %v2560 = vpop.f32.mrb[0].mxu0
        %v2561 = vadd.f32 0.0, %v2560
        %v2562 = vpop.f32.mrb[0].mxu0
        %v2563 = vadd.f32 0.0, %v2562
        %v2564 = vpop.f32.mrb[0].mxu0
        %v2565 = vadd.f32 0.0, %v2564
        %2566 = vmatprep.mubr.bf16.mxu0 %v1293
        %2567 = vmatmul.mubr.bf16.gmra.mrb[0].mxu0 %v1292
        %v2568 = vpop.f32.mrb[0].mxu0
        %v2569 = vadd.f32 0.0, %v2568
        %v2570 = vpop.f32.mrb[0].mxu0
        %v2571 = vadd.f32 0.0, %v2570
        %v2572 = vpop.f32.mrb[0].mxu0
        %v2573 = vadd.f32 0.0, %v2572
        %v2574 = vpop.f32.mrb[0].mxu0
        %v2575 = vadd.f32 0.0, %v2574
        %2576 = vmatprep.mubr.bf16.mxu0 %v1297
        %2577 = vmatmul.mubr.bf16.gmra.mrb[0].mxu0 %v1296
        %v2578 = vpop.f32.mrb[0].mxu0
        %v2579 = vadd.f32 0.0, %v2578
        %v2580 = vpop.f32.mrb[0].mxu0
        %v2581 = vadd.f32 0.0, %v2580
        %v2582 = vpop.f32.mrb[0].mxu0
        %v2583 = vadd.f32 0.0, %v2582
        %v2584 = vpop.f32.mrb[0].mxu0
        %v2585 = vadd.f32 0.0, %v2584
        %2586 = vmatprep.mubr.bf16.mxu0 %v1301
        %2587 = vmatmul.mubr.bf16.gmra.mrb[0].mxu0 %v1300
        %v2588 = vpop.f32.mrb[0].mxu0
        %v2589 = vadd.f32 0.0, %v2588
        %v2590 = vpop.f32.mrb[0].mxu0
        %v2591 = vadd.f32 0.0, %v2590
        %v2592 = vpop.f32.mrb[0].mxu0
        %v2593 = vadd.f32 0.0, %v2592
        %v2594 = vpop.f32.mrb[0].mxu0
        %v2595 = vadd.f32 0.0, %v2594
        %2596 = vmatprep.mubr.bf16.mxu0 %v1305
        %2597 = vmatmul.mubr.bf16.gmra.mrb[0].mxu0 %v1304
        %v2598 = vpop.f32.mrb[0].mxu0
        %v2599 = vadd.f32 0.0, %v2598
        %v2600 = vpop.f32.mrb[0].mxu0
        %v2601 = vadd.f32 0.0, %v2600
        %v2602 = vpop.f32.mrb[0].mxu0
        %v2603 = vadd.f32 0.0, %v2602
        %v2604 = vpop.f32.mrb[0].mxu0
        %v2605 = vadd.f32 0.0, %v2604
        %2606 = vmatprep.mubr.bf16.mxu0 %v1309
        %2607 = vmatmul.mubr.bf16.gmra.mrb[0].mxu0 %v1308
        %v2608 = vpop.f32.mrb[0].mxu0
        %v2609 = vadd.f32 0.0, %v2608
        %v2610 = vpop.f32.mrb[0].mxu0
        %v2611 = vadd.f32 0.0, %v2610
        %v2612 = vpop.f32.mrb[0].mxu0
        %v2613 = vadd.f32 0.0, %v2612
        %v2614 = vpop.f32.mrb[0].mxu0
        %v2615 = vadd.f32 0.0, %v2614
        %2616 = vmatprep.mubr.bf16.mxu0 %v1313
        %2617 = vmatmul.mubr.bf16.gmra.mrb[0].mxu0 %v1312
        %v2618 = vpop.f32.mrb[0].mxu0
        %v2619 = vadd.f32 0.0, %v2618
        %v2620 = vpop.f32.mrb[0].mxu0
        %v2621 = vadd.f32 0.0, %v2620
        %v2622 = vpop.f32.mrb[0].mxu0
        %v2623 = vadd.f32 0.0, %v2622
        %v2624 = vpop.f32.mrb[0].mxu0
        %v2625 = vadd.f32 0.0, %v2624
        %2626 = vmatprep.mubr.bf16.mxu0 %v1317
        %2627 = vmatmul.mubr.bf16.gmra.mrb[0].mxu0 %v1316
        %v2628 = vpop.f32.mrb[0].mxu0
        %v2629 = vadd.f32 0.0, %v2628
        %v2630 = vpop.f32.mrb[0].mxu0
        %v2631 = vadd.f32 0.0, %v2630
        %v2632 = vpop.f32.mrb[0].mxu0
        %v2633 = vadd.f32 0.0, %v2632
        %v2634 = vpop.f32.mrb[0].mxu0
        %v2635 = vadd.f32 0.0, %v2634
        %2636 = vmatprep.mubr.bf16.mxu0 %v1321
        %2637 = vmatmul.mubr.bf16.gmra.mrb[0].mxu0 %v1320
        %v2638 = vpop.f32.mrb[0].mxu0
        %v2639 = vadd.f32 0.0, %v2638
        %v2640 = vpop.f32.mrb[0].mxu0
        %v2641 = vadd.f32 0.0, %v2640
        %v2642 = vpop.f32.mrb[0].mxu0
        %v2643 = vadd.f32 0.0, %v2642
        %v2644 = vpop.f32.mrb[0].mxu0
        %v2645 = vadd.f32 0.0, %v2644
        %2646 = vmatprep.mubr.bf16.mxu0 %v1325
        %2647 = vmatmul.mubr.bf16.gmra.mrb[0].mxu0 %v1324
        %v2648 = vpop.f32.mrb[0].mxu0
        %v2649 = vadd.f32 0.0, %v2648
        %v2650 = vpop.f32.mrb[0].mxu0
        %v2651 = vadd.f32 0.0, %v2650
        %v2652 = vpop.f32.mrb[0].mxu0
        %v2653 = vadd.f32 0.0, %v2652
        %v2654 = vpop.f32.mrb[0].mxu0
        %v2655 = vadd.f32 0.0, %v2654
        %2656 = vmatprep.mubr.bf16.mxu0 %v1329
        %2657 = vmatmul.mubr.bf16.gmra.mrb[0].mxu0 %v1328
        %v2658 = vpop.f32.mrb[0].mxu0
        %v2659 = vadd.f32 0.0, %v2658
        %v2660 = vpop.f32.mrb[0].mxu0
        %v2661 = vadd.f32 0.0, %v2660
        %v2662 = vpop.f32.mrb[0].mxu0
        %v2663 = vadd.f32 0.0, %v2662
        %v2664 = vpop.f32.mrb[0].mxu0
        %v2665 = vadd.f32 0.0, %v2664
        %2666 = vmatprep.mubr.bf16.mxu0 %v1333
        %2667 = vmatmul.mubr.bf16.gmra.mrb[0].mxu0 %v1332
        %v2668 = vpop.f32.mrb[0].mxu0
        %v2669 = vadd.f32 0.0, %v2668
        %v2670 = vpop.f32.mrb[0].mxu0
        %v2671 = vadd.f32 0.0, %v2670
        %v2672 = vpop.f32.mrb[0].mxu0
        %v2673 = vadd.f32 0.0, %v2672
        %v2674 = vpop.f32.mrb[0].mxu0
        %v2675 = vadd.f32 0.0, %v2674
        %2676 = vmatprep.mubr.bf16.mxu0 %v1337
        %2677 = vmatmul.mubr.bf16.gmra.mrb[0].mxu0 %v1336
        %v2678 = vpop.f32.mrb[0].mxu0
        %v2679 = vadd.f32 0.0, %v2678
        %v2680 = vpop.f32.mrb[0].mxu0
        %v2681 = vadd.f32 0.0, %v2680
        %v2682 = vpop.f32.mrb[0].mxu0
        %v2683 = vadd.f32 0.0, %v2682
        %v2684 = vpop.f32.mrb[0].mxu0
        %v2685 = vadd.f32 0.0, %v2684
        %2686 = vdwg.mxu0
        %2687 = vmatprep.subr.bf16.mxu0 %v1919
        %2688 = vmatpush1.bf16.msra.mxu0 %v1918
        %2689 = vmatprep.subr.bf16.mxu0 %v1923
        %2690 = vmatpush1.bf16.msra.mxu0 %v1922
        %2691 = vmatprep.subr.bf16.mxu0 %v1927
        %2692 = vmatpush1.bf16.msra.mxu0 %v1926
        %2693 = vmatprep.subr.bf16.mxu0 %v1931
        %2694 = vmatpush1.bf16.msra.mxu0 %v1930
        %2695 = vmatprep.subr.bf16.mxu0 %v1935
        %2696 = vmatpush1.bf16.msra.mxu0 %v1934
        %2697 = vmatprep.subr.bf16.mxu0 %v1939
        %2698 = vmatpush1.bf16.msra.mxu0 %v1938
        %2699 = vmatprep.subr.bf16.mxu0 %v1943
        %2700 = vmatpush1.bf16.msra.mxu0 %v1942
        %2701 = vmatprep.subr.bf16.mxu0 %v1947
        %2702 = vmatpush1.bf16.msra.mxu0 %v1946
        %2703 = vmatprep.subr.bf16.mxu0 %v1951
        %2704 = vmatpush1.bf16.msra.mxu0 %v1950
        %2705 = vmatprep.subr.bf16.mxu0 %v1955
        %2706 = vmatpush1.bf16.msra.mxu0 %v1954
        %2707 = vmatprep.subr.bf16.mxu0 %v1959
        %2708 = vmatpush1.bf16.msra.mxu0 %v1958
        %2709 = vmatprep.subr.bf16.mxu0 %v1963
        %2710 = vmatpush1.bf16.msra.mxu0 %v1962
        %2711 = vmatprep.subr.bf16.mxu0 %v1967
        %2712 = vmatpush1.bf16.msra.mxu0 %v1966
        %2713 = vmatprep.subr.bf16.mxu0 %v1971
        %2714 = vmatpush1.bf16.msra.mxu0 %v1970
        %2715 = vmatprep.subr.bf16.mxu0 %v1975
        %2716 = vmatpush1.bf16.msra.mxu0 %v1974
        %2717 = vmatprep.subr.bf16.mxu0 %v1979
        %2718 = vmatpush1.bf16.msra.mxu0 %v1978
        %2719 = vmatprep.mubr.bf16.mxu0 %v1279
        %2720 = vmatmul.mubr.bf16.gmra.mrb[0].mxu0 %v1278
        %v2721 = vpop.f32.mrb[0].mxu0
        %v2722 = vadd.f32 %v2529, %v2721
        %v2723 = vpop.f32.mrb[0].mxu0
        %v2724 = vadd.f32 %v2531, %v2723
        %v2725 = vpop.f32.mrb[0].mxu0
        %v2726 = vadd.f32 %v2533, %v2725
        %v2727 = vpop.f32.mrb[0].mxu0
        %v2728 = vadd.f32 %v2535, %v2727
        %2729 = vmatprep.mubr.bf16.mxu0 %v1283
        %2730 = vmatmul.mubr.bf16.gmra.mrb[0].mxu0 %v1282
        %v2731 = vpop.f32.mrb[0].mxu0
        %v2732 = vadd.f32 %v2539, %v2731
        %v2733 = vpop.f32.mrb[0].mxu0
        %v2734 = vadd.f32 %v2541, %v2733
        %v2735 = vpop.f32.mrb[0].mxu0
        %v2736 = vadd.f32 %v2543, %v2735
        %v2737 = vpop.f32.mrb[0].mxu0
        %v2738 = vadd.f32 %v2545, %v2737
        %2739 = vmatprep.mubr.bf16.mxu0 %v1287
        %2740 = vmatmul.mubr.bf16.gmra.mrb[0].mxu0 %v1286
        %v2741 = vpop.f32.mrb[0].mxu0
        %v2742 = vadd.f32 %v2549, %v2741
        %v2743 = vpop.f32.mrb[0].mxu0
        %v2744 = vadd.f32 %v2551, %v2743
        %v2745 = vpop.f32.mrb[0].mxu0
        %v2746 = vadd.f32 %v2553, %v2745
        %v2747 = vpop.f32.mrb[0].mxu0
        %v2748 = vadd.f32 %v2555, %v2747
        %2749 = vmatprep.mubr.bf16.mxu0 %v1291
        %2750 = vmatmul.mubr.bf16.gmra.mrb[0].mxu0 %v1290
        %v2751 = vpop.f32.mrb[0].mxu0
        %v2752 = vadd.f32 %v2559, %v2751
        %v2753 = vpop.f32.mrb[0].mxu0
        %v2754 = vadd.f32 %v2561, %v2753
        %v2755 = vpop.f32.mrb[0].mxu0
        %v2756 = vadd.f32 %v2563, %v2755
        %v2757 = vpop.f32.mrb[0].mxu0
        %v2758 = vadd.f32 %v2565, %v2757
        %2759 = vmatprep.mubr.bf16.mxu0 %v1295
        %2760 = vmatmul.mubr.bf16.gmra.mrb[0].mxu0 %v1294
        %v2761 = vpop.f32.mrb[0].mxu0
        %v2762 = vadd.f32 %v2569, %v2761
        %v2763 = vpop.f32.mrb[0].mxu0
        %v2764 = vadd.f32 %v2571, %v2763
        %v2765 = vpop.f32.mrb[0].mxu0
        %v2766 = vadd.f32 %v2573, %v2765
        %v2767 = vpop.f32.mrb[0].mxu0
        %v2768 = vadd.f32 %v2575, %v2767
        %2769 = vmatprep.mubr.bf16.mxu0 %v1299
        %2770 = vmatmul.mubr.bf16.gmra.mrb[0].mxu0 %v1298
        %v2771 = vpop.f32.mrb[0].mxu0
        %v2772 = vadd.f32 %v2579, %v2771
        %v2773 = vpop.f32.mrb[0].mxu0
        %v2774 = vadd.f32 %v2581, %v2773
        %v2775 = vpop.f32.mrb[0].mxu0
        %v2776 = vadd.f32 %v2583, %v2775
        %v2777 = vpop.f32.mrb[0].mxu0
        %v2778 = vadd.f32 %v2585, %v2777
        %2779 = vmatprep.mubr.bf16.mxu0 %v1303
        %2780 = vmatmul.mubr.bf16.gmra.mrb[0].mxu0 %v1302
        %v2781 = vpop.f32.mrb[0].mxu0
        %v2782 = vadd.f32 %v2589, %v2781
        %v2783 = vpop.f32.mrb[0].mxu0
        %v2784 = vadd.f32 %v2591, %v2783
        %v2785 = vpop.f32.mrb[0].mxu0
        %v2786 = vadd.f32 %v2593, %v2785
        %v2787 = vpop.f32.mrb[0].mxu0
        %v2788 = vadd.f32 %v2595, %v2787
        %2789 = vmatprep.mubr.bf16.mxu0 %v1307
        %2790 = vmatmul.mubr.bf16.gmra.mrb[0].mxu0 %v1306
        %v2791 = vpop.f32.mrb[0].mxu0
        %v2792 = vadd.f32 %v2599, %v2791
        %v2793 = vpop.f32.mrb[0].mxu0
        %v2794 = vadd.f32 %v2601, %v2793
        %v2795 = vpop.f32.mrb[0].mxu0
        %v2796 = vadd.f32 %v2603, %v2795
        %v2797 = vpop.f32.mrb[0].mxu0
        %v2798 = vadd.f32 %v2605, %v2797
        %2799 = vmatprep.mubr.bf16.mxu0 %v1311
        %2800 = vmatmul.mubr.bf16.gmra.mrb[0].mxu0 %v1310
        %v2801 = vpop.f32.mrb[0].mxu0
        %v2802 = vadd.f32 %v2609, %v2801
        %v2803 = vpop.f32.mrb[0].mxu0
        %v2804 = vadd.f32 %v2611, %v2803
        %v2805 = vpop.f32.mrb[0].mxu0
        %v2806 = vadd.f32 %v2613, %v2805
        %v2807 = vpop.f32.mrb[0].mxu0
        %v2808 = vadd.f32 %v2615, %v2807
        %2809 = vmatprep.mubr.bf16.mxu0 %v1315
        %2810 = vmatmul.mubr.bf16.gmra.mrb[0].mxu0 %v1314
        %v2811 = vpop.f32.mrb[0].mxu0
        %v2812 = vadd.f32 %v2619, %v2811
        %v2813 = vpop.f32.mrb[0].mxu0
        %v2814 = vadd.f32 %v2621, %v2813
        %v2815 = vpop.f32.mrb[0].mxu0
        %v2816 = vadd.f32 %v2623, %v2815
        %v2817 = vpop.f32.mrb[0].mxu0
        %v2818 = vadd.f32 %v2625, %v2817
        %2819 = vmatprep.mubr.bf16.mxu0 %v1319
        %2820 = vmatmul.mubr.bf16.gmra.mrb[0].mxu0 %v1318
        %v2821 = vpop.f32.mrb[0].mxu0
        %v2822 = vadd.f32 %v2629, %v2821
        %v2823 = vpop.f32.mrb[0].mxu0
        %v2824 = vadd.f32 %v2631, %v2823
        %v2825 = vpop.f32.mrb[0].mxu0
        %v2826 = vadd.f32 %v2633, %v2825
        %v2827 = vpop.f32.mrb[0].mxu0
        %v2828 = vadd.f32 %v2635, %v2827
        %2829 = vmatprep.mubr.bf16.mxu0 %v1323
        %2830 = vmatmul.mubr.bf16.gmra.mrb[0].mxu0 %v1322
        %v2831 = vpop.f32.mrb[0].mxu0
        %v2832 = vadd.f32 %v2639, %v2831
        %v2833 = vpop.f32.mrb[0].mxu0
        %v2834 = vadd.f32 %v2641, %v2833
        %v2835 = vpop.f32.mrb[0].mxu0
        %v2836 = vadd.f32 %v2643, %v2835
        %v2837 = vpop.f32.mrb[0].mxu0
        %v2838 = vadd.f32 %v2645, %v2837
        %2839 = vmatprep.mubr.bf16.mxu0 %v1327
        %2840 = vmatmul.mubr.bf16.gmra.mrb[0].mxu0 %v1326
        %v2841 = vpop.f32.mrb[0].mxu0
        %v2842 = vadd.f32 %v2649, %v2841
        %v2843 = vpop.f32.mrb[0].mxu0
        %v2844 = vadd.f32 %v2651, %v2843
        %v2845 = vpop.f32.mrb[0].mxu0
        %v2846 = vadd.f32 %v2653, %v2845
        %v2847 = vpop.f32.mrb[0].mxu0
        %v2848 = vadd.f32 %v2655, %v2847
        %2849 = vmatprep.mubr.bf16.mxu0 %v1331
        %2850 = vmatmul.mubr.bf16.gmra.mrb[0].mxu0 %v1330
        %v2851 = vpop.f32.mrb[0].mxu0
        %v2852 = vadd.f32 %v2659, %v2851
        %v2853 = vpop.f32.mrb[0].mxu0
        %v2854 = vadd.f32 %v2661, %v2853
        %v2855 = vpop.f32.mrb[0].mxu0
        %v2856 = vadd.f32 %v2663, %v2855
        %v2857 = vpop.f32.mrb[0].mxu0
        %v2858 = vadd.f32 %v2665, %v2857
        %2859 = vmatprep.mubr.bf16.mxu0 %v1335
        %2860 = vmatmul.mubr.bf16.gmra.mrb[0].mxu0 %v1334
        %v2861 = vpop.f32.mrb[0].mxu0
        %v2862 = vadd.f32 %v2669, %v2861
        %v2863 = vpop.f32.mrb[0].mxu0
        %v2864 = vadd.f32 %v2671, %v2863
        %v2865 = vpop.f32.mrb[0].mxu0
        %v2866 = vadd.f32 %v2673, %v2865
        %v2867 = vpop.f32.mrb[0].mxu0
        %v2868 = vadd.f32 %v2675, %v2867
        %2869 = vmatprep.mubr.bf16.mxu0 %v1339
        %2870 = vmatmul.mubr.bf16.gmra.mrb[0].mxu0 %v1338
        %v2871 = vpop.f32.mrb[0].mxu0
        %v2872 = vadd.f32 %v2679, %v2871
        %v2873 = vpop.f32.mrb[0].mxu0
        %v2874 = vadd.f32 %v2681, %v2873
        %v2875 = vpop.f32.mrb[0].mxu0
        %v2876 = vadd.f32 %v2683, %v2875
        %v2877 = vpop.f32.mrb[0].mxu0
        %v2878 = vadd.f32 %v2685, %v2877
        %2879 = vdwg.mxu0
        // Predicated region
        $region102: #{graph_cnn_forward.1} parent=59 // pred_check
          %p2880 = pneg %p392
        $region103: #{graph_cnn_forward.1} parent=59 // pred_check_branch
          %2882 = sbr.rel (%p2880) target = $region105
        $region104: #{graph_cnn_forward.1} parent=59 // pred_region
          %s2883 = smul.u32 4, 32
          %s2884 = smul.u32 %s2883, 2
          %s2885 = sshll.u32 %s2884, 4
          %2886 = dma.done [#allocation3], %s2885
        $region105: #{graph_cnn_forward.1} parent=59 // pred_fallthru
          _
        %v2887 = vld [vmem:[#allocation2] sm:$0xff]
        %v2888 = vld [vmem:[#allocation2 + $0x8] sm:$0xff]
        %v2889 = vld [vmem:[#allocation2 + $0x10] sm:$0xff]
        %v2890 = vld [vmem:[#allocation2 + $0x18] sm:$0xff]
        %v2891 = vld [vmem:[#allocation2 + $0x20] sm:$0xff]
        %v2892 = vld [vmem:[#allocation2 + $0x28] sm:$0xff]
        %v2893 = vld [vmem:[#allocation2 + $0x30] sm:$0xff]
        %v2894 = vld [vmem:[#allocation2 + $0x38] sm:$0xff]
        %v2895 = vld [vmem:[#allocation2 + $0x40] sm:$0xff]
        %v2896 = vld [vmem:[#allocation2 + $0x48] sm:$0xff]
        %v2897 = vld [vmem:[#allocation2 + $0x50] sm:$0xff]
        %v2898 = vld [vmem:[#allocation2 + $0x58] sm:$0xff]
        %v2899 = vld [vmem:[#allocation2 + $0x60] sm:$0xff]
        %v2900 = vld [vmem:[#allocation2 + $0x68] sm:$0xff]
        %v2901 = vld [vmem:[#allocation2 + $0x70] sm:$0xff]
        %v2902 = vld [vmem:[#allocation2 + $0x78] sm:$0xff]
        %v2903 = vld [vmem:[#allocation2 + $0x80] sm:$0xff]
        %v2904 = vld [vmem:[#allocation2 + $0x88] sm:$0xff]
        %v2905 = vld [vmem:[#allocation2 + $0x90] sm:$0xff]
        %v2906 = vld [vmem:[#allocation2 + $0x98] sm:$0xff]
        %v2907 = vld [vmem:[#allocation2 + $0xa0] sm:$0xff]
        %v2908 = vld [vmem:[#allocation2 + $0xa8] sm:$0xff]
        %v2909 = vld [vmem:[#allocation2 + $0xb0] sm:$0xff]
        %v2910 = vld [vmem:[#allocation2 + $0xb8] sm:$0xff]
        %v2911 = vld [vmem:[#allocation2 + $0xc0] sm:$0xff]
        %v2912 = vld [vmem:[#allocation2 + $0xc8] sm:$0xff]
        %v2913 = vld [vmem:[#allocation2 + $0xd0] sm:$0xff]
        %v2914 = vld [vmem:[#allocation2 + $0xd8] sm:$0xff]
        %v2915 = vld [vmem:[#allocation2 + $0xe0] sm:$0xff]
        %v2916 = vld [vmem:[#allocation2 + $0xe8] sm:$0xff]
        %v2917 = vld [vmem:[#allocation2 + $0xf0] sm:$0xff]
        %v2918 = vld [vmem:[#allocation2 + $0xf8] sm:$0xff]
        %v2919 = vpack.c.bf16 %v2340, %v2336
        %v2920 = vpack.c.bf16 %v2342, %v2338
        %v2921 = vpack.c.bf16 %v2726, %v2722
        %v2922 = vpack.c.bf16 %v2728, %v2724
        %v2923 = vpack.c.bf16 %v2350, %v2346
        %v2924 = vpack.c.bf16 %v2352, %v2348
        %v2925 = vpack.c.bf16 %v2736, %v2732
        %v2926 = vpack.c.bf16 %v2738, %v2734
        %v2927 = vpack.c.bf16 %v2360, %v2356
        %v2928 = vpack.c.bf16 %v2362, %v2358
        %v2929 = vpack.c.bf16 %v2746, %v2742
        %v2930 = vpack.c.bf16 %v2748, %v2744
        %v2931 = vpack.c.bf16 %v2370, %v2366
        %v2932 = vpack.c.bf16 %v2372, %v2368
        %v2933 = vpack.c.bf16 %v2756, %v2752
        %v2934 = vpack.c.bf16 %v2758, %v2754
        %v2935 = vpack.c.bf16 %v2380, %v2376
        %v2936 = vpack.c.bf16 %v2382, %v2378
        %v2937 = vpack.c.bf16 %v2766, %v2762
        %v2938 = vpack.c.bf16 %v2768, %v2764
        %v2939 = vpack.c.bf16 %v2390, %v2386
        %v2940 = vpack.c.bf16 %v2392, %v2388
        %v2941 = vpack.c.bf16 %v2776, %v2772
        %v2942 = vpack.c.bf16 %v2778, %v2774
        %v2943 = vpack.c.bf16 %v2400, %v2396
        %v2944 = vpack.c.bf16 %v2402, %v2398
        %v2945 = vpack.c.bf16 %v2786, %v2782
        %v2946 = vpack.c.bf16 %v2788, %v2784
        %v2947 = vpack.c.bf16 %v2410, %v2406
        %v2948 = vpack.c.bf16 %v2412, %v2408
        %v2949 = vpack.c.bf16 %v2796, %v2792
        %v2950 = vpack.c.bf16 %v2798, %v2794
        %v2951 = vpack.c.bf16 %v2420, %v2416
        %v2952 = vpack.c.bf16 %v2422, %v2418
        %v2953 = vpack.c.bf16 %v2806, %v2802
        %v2954 = vpack.c.bf16 %v2808, %v2804
        %v2955 = vpack.c.bf16 %v2430, %v2426
        %v2956 = vpack.c.bf16 %v2432, %v2428
        %v2957 = vpack.c.bf16 %v2816, %v2812
        %v2958 = vpack.c.bf16 %v2818, %v2814
        %v2959 = vpack.c.bf16 %v2440, %v2436
        %v2960 = vpack.c.bf16 %v2442, %v2438
        %v2961 = vpack.c.bf16 %v2826, %v2822
        %v2962 = vpack.c.bf16 %v2828, %v2824
        %v2963 = vpack.c.bf16 %v2450, %v2446
        %v2964 = vpack.c.bf16 %v2452, %v2448
        %v2965 = vpack.c.bf16 %v2836, %v2832
        %v2966 = vpack.c.bf16 %v2838, %v2834
        %v2967 = vpack.c.bf16 %v2460, %v2456
        %v2968 = vpack.c.bf16 %v2462, %v2458
        %v2969 = vpack.c.bf16 %v2846, %v2842
        %v2970 = vpack.c.bf16 %v2848, %v2844
        %v2971 = vpack.c.bf16 %v2470, %v2466
        %v2972 = vpack.c.bf16 %v2472, %v2468
        %v2973 = vpack.c.bf16 %v2856, %v2852
        %v2974 = vpack.c.bf16 %v2858, %v2854
        %v2975 = vpack.c.bf16 %v2480, %v2476
        %v2976 = vpack.c.bf16 %v2482, %v2478
        %v2977 = vpack.c.bf16 %v2866, %v2862
        %v2978 = vpack.c.bf16 %v2868, %v2864
        %v2979 = vpack.c.bf16 %v2490, %v2486
        %v2980 = vpack.c.bf16 %v2492, %v2488
        %v2981 = vpack.c.bf16 %v2876, %v2872
        %v2982 = vpack.c.bf16 %v2878, %v2874
        %v2983 = vld [vmem:[#allocation4] sm:$0xff]
        %v2984 = vld [vmem:[#allocation4 + $0x8] sm:$0xff]
        %v2985 = vld [vmem:[#allocation4 + $0x10] sm:$0xff]
        %v2986 = vld [vmem:[#allocation4 + $0x18] sm:$0xff]
        %v2987 = vld [vmem:[#allocation4 + $0x20] sm:$0xff]
        %v2988 = vld [vmem:[#allocation4 + $0x28] sm:$0xff]
        %v2989 = vld [vmem:[#allocation4 + $0x30] sm:$0xff]
        %v2990 = vld [vmem:[#allocation4 + $0x38] sm:$0xff]
        %v2991 = vld [vmem:[#allocation4 + $0x40] sm:$0xff]
        %v2992 = vld [vmem:[#allocation4 + $0x48] sm:$0xff]
        %v2993 = vld [vmem:[#allocation4 + $0x50] sm:$0xff]
        %v2994 = vld [vmem:[#allocation4 + $0x58] sm:$0xff]
        %v2995 = vld [vmem:[#allocation4 + $0x60] sm:$0xff]
        %v2996 = vld [vmem:[#allocation4 + $0x68] sm:$0xff]
        %v2997 = vld [vmem:[#allocation4 + $0x70] sm:$0xff]
        %v2998 = vld [vmem:[#allocation4 + $0x78] sm:$0xff]
        %v2999 = vld [vmem:[#allocation4 + $0x80] sm:$0xff]
        %v3000 = vld [vmem:[#allocation4 + $0x88] sm:$0xff]
        %v3001 = vld [vmem:[#allocation4 + $0x90] sm:$0xff]
        %v3002 = vld [vmem:[#allocation4 + $0x98] sm:$0xff]
        %v3003 = vld [vmem:[#allocation4 + $0xa0] sm:$0xff]
        %v3004 = vld [vmem:[#allocation4 + $0xa8] sm:$0xff]
        %v3005 = vld [vmem:[#allocation4 + $0xb0] sm:$0xff]
        %v3006 = vld [vmem:[#allocation4 + $0xb8] sm:$0xff]
        %v3007 = vld [vmem:[#allocation4 + $0xc0] sm:$0xff]
        %v3008 = vld [vmem:[#allocation4 + $0xc8] sm:$0xff]
        %v3009 = vld [vmem:[#allocation4 + $0xd0] sm:$0xff]
        %v3010 = vld [vmem:[#allocation4 + $0xd8] sm:$0xff]
        %v3011 = vld [vmem:[#allocation4 + $0xe0] sm:$0xff]
        %v3012 = vld [vmem:[#allocation4 + $0xe8] sm:$0xff]
        %v3013 = vld [vmem:[#allocation4 + $0xf0] sm:$0xff]
        %v3014 = vld [vmem:[#allocation4 + $0xf8] sm:$0xff]
        %v3015 = vld [vmem:[#allocation4 + $0x100] sm:$0xff]
        %v3016 = vld [vmem:[#allocation4 + $0x108] sm:$0xff]
        %v3017 = vld [vmem:[#allocation4 + $0x110] sm:$0xff]
        %v3018 = vld [vmem:[#allocation4 + $0x118] sm:$0xff]
        %v3019 = vld [vmem:[#allocation4 + $0x120] sm:$0xff]
        %v3020 = vld [vmem:[#allocation4 + $0x128] sm:$0xff]
        %v3021 = vld [vmem:[#allocation4 + $0x130] sm:$0xff]
        %v3022 = vld [vmem:[#allocation4 + $0x138] sm:$0xff]
        %v3023 = vld [vmem:[#allocation4 + $0x140] sm:$0xff]
        %v3024 = vld [vmem:[#allocation4 + $0x148] sm:$0xff]
        %v3025 = vld [vmem:[#allocation4 + $0x150] sm:$0xff]
        %v3026 = vld [vmem:[#allocation4 + $0x158] sm:$0xff]
        %v3027 = vld [vmem:[#allocation4 + $0x160] sm:$0xff]
        %v3028 = vld [vmem:[#allocation4 + $0x168] sm:$0xff]
        %v3029 = vld [vmem:[#allocation4 + $0x170] sm:$0xff]
        %v3030 = vld [vmem:[#allocation4 + $0x178] sm:$0xff]
        %v3031 = vld [vmem:[#allocation4 + $0x180] sm:$0xff]
        %v3032 = vld [vmem:[#allocation4 + $0x188] sm:$0xff]
        %v3033 = vld [vmem:[#allocation4 + $0x190] sm:$0xff]
        %v3034 = vld [vmem:[#allocation4 + $0x198] sm:$0xff]
        %v3035 = vld [vmem:[#allocation4 + $0x1a0] sm:$0xff]
        %v3036 = vld [vmem:[#allocation4 + $0x1a8] sm:$0xff]
        %v3037 = vld [vmem:[#allocation4 + $0x1b0] sm:$0xff]
        %v3038 = vld [vmem:[#allocation4 + $0x1b8] sm:$0xff]
        %v3039 = vld [vmem:[#allocation4 + $0x1c0] sm:$0xff]
        %v3040 = vld [vmem:[#allocation4 + $0x1c8] sm:$0xff]
        %v3041 = vld [vmem:[#allocation4 + $0x1d0] sm:$0xff]
        %v3042 = vld [vmem:[#allocation4 + $0x1d8] sm:$0xff]
        %v3043 = vld [vmem:[#allocation4 + $0x1e0] sm:$0xff]
        %v3044 = vld [vmem:[#allocation4 + $0x1e8] sm:$0xff]
        %v3045 = vld [vmem:[#allocation4 + $0x1f0] sm:$0xff]
        %v3046 = vld [vmem:[#allocation4 + $0x1f8] sm:$0xff]
        %v3047 = vld [vmem:[#allocation4 + $0x200] sm:$0xff]
        %v3048 = vld [vmem:[#allocation4 + $0x208] sm:$0xff]
        %v3049 = vld [vmem:[#allocation4 + $0x210] sm:$0xff]
        %v3050 = vld [vmem:[#allocation4 + $0x218] sm:$0xff]
        %v3051 = vld [vmem:[#allocation4 + $0x220] sm:$0xff]
        %v3052 = vld [vmem:[#allocation4 + $0x228] sm:$0xff]
        %v3053 = vld [vmem:[#allocation4 + $0x230] sm:$0xff]
        %v3054 = vld [vmem:[#allocation4 + $0x238] sm:$0xff]
        %v3055 = vld [vmem:[#allocation4 + $0x240] sm:$0xff]
        %v3056 = vld [vmem:[#allocation4 + $0x248] sm:$0xff]
        %v3057 = vld [vmem:[#allocation4 + $0x250] sm:$0xff]
        %v3058 = vld [vmem:[#allocation4 + $0x258] sm:$0xff]
        %v3059 = vld [vmem:[#allocation4 + $0x260] sm:$0xff]
        %v3060 = vld [vmem:[#allocation4 + $0x268] sm:$0xff]
        %v3061 = vld [vmem:[#allocation4 + $0x270] sm:$0xff]
        %v3062 = vld [vmem:[#allocation4 + $0x278] sm:$0xff]
        %v3063 = vld [vmem:[#allocation4 + $0x280] sm:$0xff]
        %v3064 = vld [vmem:[#allocation4 + $0x288] sm:$0xff]
        %v3065 = vld [vmem:[#allocation4 + $0x290] sm:$0xff]
        %v3066 = vld [vmem:[#allocation4 + $0x298] sm:$0xff]
        %v3067 = vld [vmem:[#allocation4 + $0x2a0] sm:$0xff]
        %v3068 = vld [vmem:[#allocation4 + $0x2a8] sm:$0xff]
        %v3069 = vld [vmem:[#allocation4 + $0x2b0] sm:$0xff]
        %v3070 = vld [vmem:[#allocation4 + $0x2b8] sm:$0xff]
        %v3071 = vld [vmem:[#allocation4 + $0x2c0] sm:$0xff]
        %v3072 = vld [vmem:[#allocation4 + $0x2c8] sm:$0xff]
        %v3073 = vld [vmem:[#allocation4 + $0x2d0] sm:$0xff]
        %v3074 = vld [vmem:[#allocation4 + $0x2d8] sm:$0xff]
        %v3075 = vld [vmem:[#allocation4 + $0x2e0] sm:$0xff]
        %v3076 = vld [vmem:[#allocation4 + $0x2e8] sm:$0xff]
        %v3077 = vld [vmem:[#allocation4 + $0x2f0] sm:$0xff]
        %v3078 = vld [vmem:[#allocation4 + $0x2f8] sm:$0xff]
        %v3079 = vld [vmem:[#allocation4 + $0x300] sm:$0xff]
        %v3080 = vld [vmem:[#allocation4 + $0x308] sm:$0xff]
        %v3081 = vld [vmem:[#allocation4 + $0x310] sm:$0xff]
        %v3082 = vld [vmem:[#allocation4 + $0x318] sm:$0xff]
        %v3083 = vld [vmem:[#allocation4 + $0x320] sm:$0xff]
        %v3084 = vld [vmem:[#allocation4 + $0x328] sm:$0xff]
        %v3085 = vld [vmem:[#allocation4 + $0x330] sm:$0xff]
        %v3086 = vld [vmem:[#allocation4 + $0x338] sm:$0xff]
        %v3087 = vld [vmem:[#allocation4 + $0x340] sm:$0xff]
        %v3088 = vld [vmem:[#allocation4 + $0x348] sm:$0xff]
        %v3089 = vld [vmem:[#allocation4 + $0x350] sm:$0xff]
        %v3090 = vld [vmem:[#allocation4 + $0x358] sm:$0xff]
        %v3091 = vld [vmem:[#allocation4 + $0x360] sm:$0xff]
        %v3092 = vld [vmem:[#allocation4 + $0x368] sm:$0xff]
        %v3093 = vld [vmem:[#allocation4 + $0x370] sm:$0xff]
        %v3094 = vld [vmem:[#allocation4 + $0x378] sm:$0xff]
        %v3095 = vld [vmem:[#allocation4 + $0x380] sm:$0xff]
        %v3096 = vld [vmem:[#allocation4 + $0x388] sm:$0xff]
        %v3097 = vld [vmem:[#allocation4 + $0x390] sm:$0xff]
        %v3098 = vld [vmem:[#allocation4 + $0x398] sm:$0xff]
        %v3099 = vld [vmem:[#allocation4 + $0x3a0] sm:$0xff]
        %v3100 = vld [vmem:[#allocation4 + $0x3a8] sm:$0xff]
        %v3101 = vld [vmem:[#allocation4 + $0x3b0] sm:$0xff]
        %v3102 = vld [vmem:[#allocation4 + $0x3b8] sm:$0xff]
        %v3103 = vld [vmem:[#allocation4 + $0x3c0] sm:$0xff]
        %v3104 = vld [vmem:[#allocation4 + $0x3c8] sm:$0xff]
        %v3105 = vld [vmem:[#allocation4 + $0x3d0] sm:$0xff]
        %v3106 = vld [vmem:[#allocation4 + $0x3d8] sm:$0xff]
        %v3107 = vld [vmem:[#allocation4 + $0x3e0] sm:$0xff]
        %v3108 = vld [vmem:[#allocation4 + $0x3e8] sm:$0xff]
        %v3109 = vld [vmem:[#allocation4 + $0x3f0] sm:$0xff]
        %v3110 = vld [vmem:[#allocation4 + $0x3f8] sm:$0xff]
        %v3111 = vld [vmem:[%s388] sm:$0xf]
        %v3113 = vlaneseq
        %v3114 = vshrl.u32 %v3113, 7
        %v3115 = vsub.s32 0, %v3114
        %v3116 = vrot.slane %v3111, %v3115
        %v3117 = vlaneseq
        %v3118 = vshrl.u32 %v3117, 7
        %v3119 = vsub.s32 1, %v3118
        %v3120 = vrot.slane %v3111, %v3119
        %v3121 = vlaneseq
        %v3122 = vshrl.u32 %v3121, 7
        %v3123 = vsub.s32 2, %v3122
        %v3124 = vrot.slane %v3111, %v3123
        %v3125 = vlaneseq
        %v3126 = vshrl.u32 %v3125, 7
        %v3127 = vsub.s32 3, %v3126
        %v3128 = vrot.slane %v3111, %v3127
        %3133 = vmatprep.subr.bf16.mxu0 %v2920
        %3134 = vmatpush1.bf16.msra.mxu0 %v2919
        %3135 = vmatprep.subr.bf16.mxu0 %v2924
        %3136 = vmatpush1.bf16.msra.mxu0 %v2923
        %3137 = vmatprep.subr.bf16.mxu0 %v2928
        %3138 = vmatpush1.bf16.msra.mxu0 %v2927
        %3139 = vmatprep.subr.bf16.mxu0 %v2932
        %3140 = vmatpush1.bf16.msra.mxu0 %v2931
        %3141 = vmatprep.subr.bf16.mxu0 %v2936
        %3142 = vmatpush1.bf16.msra.mxu0 %v2935
        %3143 = vmatprep.subr.bf16.mxu0 %v2940
        %3144 = vmatpush1.bf16.msra.mxu0 %v2939
        %3145 = vmatprep.subr.bf16.mxu0 %v2944
        %3146 = vmatpush1.bf16.msra.mxu0 %v2943
        %3147 = vmatprep.subr.bf16.mxu0 %v2948
        %3148 = vmatpush1.bf16.msra.mxu0 %v2947
        %3149 = vmatprep.subr.bf16.mxu0 %v2952
        %3150 = vmatpush1.bf16.msra.mxu0 %v2951
        %3151 = vmatprep.subr.bf16.mxu0 %v2956
        %3152 = vmatpush1.bf16.msra.mxu0 %v2955
        %3153 = vmatprep.subr.bf16.mxu0 %v2960
        %3154 = vmatpush1.bf16.msra.mxu0 %v2959
        %3155 = vmatprep.subr.bf16.mxu0 %v2964
        %3156 = vmatpush1.bf16.msra.mxu0 %v2963
        %3157 = vmatprep.subr.bf16.mxu0 %v2968
        %3158 = vmatpush1.bf16.msra.mxu0 %v2967
        %3159 = vmatprep.subr.bf16.mxu0 %v2972
        %3160 = vmatpush1.bf16.msra.mxu0 %v2971
        %3161 = vmatprep.subr.bf16.mxu0 %v2976
        %3162 = vmatpush1.bf16.msra.mxu0 %v2975
        %3163 = vmatprep.subr.bf16.mxu0 %v2980
        %3164 = vmatpush1.bf16.msra.mxu0 %v2979
        %3165 = vmatprep.mubr.bf16.mxu0 %v2888
        %3166 = vmatmul.mubr.bf16.gmra.mrb[0].mxu0 %v2887
        %v3167 = vpop.f32.mrb[0].mxu0
        %v3168 = vadd.f32 %v3116, %v3167
        %v3169 = vpop.f32.mrb[0].mxu0
        %v3170 = vadd.f32 %v3120, %v3169
        %v3171 = vpop.f32.mrb[0].mxu0
        %v3172 = vadd.f32 %v3116, %v3171
        %v3173 = vpop.f32.mrb[0].mxu0
        %v3174 = vadd.f32 %v3120, %v3173
        %3175 = vmatprep.mubr.bf16.mxu0 %v2890
        %3176 = vmatmul.mubr.bf16.gmra.mrb[0].mxu0 %v2889
        %v3177 = vpop.f32.mrb[0].mxu0
        %v3178 = vadd.f32 %v3116, %v3177
        %v3179 = vpop.f32.mrb[0].mxu0
        %v3180 = vadd.f32 %v3120, %v3179
        %v3181 = vpop.f32.mrb[0].mxu0
        %v3182 = vadd.f32 %v3116, %v3181
        %v3183 = vpop.f32.mrb[0].mxu0
        %v3184 = vadd.f32 %v3120, %v3183
        %3185 = vmatprep.mubr.bf16.mxu0 %v2892
        %3186 = vmatmul.mubr.bf16.gmra.mrb[0].mxu0 %v2891
        %v3187 = vpop.f32.mrb[0].mxu0
        %v3188 = vadd.f32 %v3116, %v3187
        %v3189 = vpop.f32.mrb[0].mxu0
        %v3190 = vadd.f32 %v3120, %v3189
        %v3191 = vpop.f32.mrb[0].mxu0
        %v3192 = vadd.f32 %v3116, %v3191
        %v3193 = vpop.f32.mrb[0].mxu0
        %v3194 = vadd.f32 %v3120, %v3193
        %3195 = vmatprep.mubr.bf16.mxu0 %v2894
        %3196 = vmatmul.mubr.bf16.gmra.mrb[0].mxu0 %v2893
        %v3197 = vpop.f32.mrb[0].mxu0
        %v3198 = vadd.f32 %v3116, %v3197
        %v3199 = vpop.f32.mrb[0].mxu0
        %v3200 = vadd.f32 %v3120, %v3199
        %v3201 = vpop.f32.mrb[0].mxu0
        %v3202 = vadd.f32 %v3116, %v3201
        %v3203 = vpop.f32.mrb[0].mxu0
        %v3204 = vadd.f32 %v3120, %v3203
        %3205 = vmatprep.mubr.bf16.mxu0 %v2896
        %3206 = vmatmul.mubr.bf16.gmra.mrb[0].mxu0 %v2895
        %v3207 = vpop.f32.mrb[0].mxu0
        %v3208 = vadd.f32 %v3116, %v3207
        %v3209 = vpop.f32.mrb[0].mxu0
        %v3210 = vadd.f32 %v3120, %v3209
        %v3211 = vpop.f32.mrb[0].mxu0
        %v3212 = vadd.f32 %v3116, %v3211
        %v3213 = vpop.f32.mrb[0].mxu0
        %v3214 = vadd.f32 %v3120, %v3213
        %3215 = vmatprep.mubr.bf16.mxu0 %v2898
        %3216 = vmatmul.mubr.bf16.gmra.mrb[0].mxu0 %v2897
        %v3217 = vpop.f32.mrb[0].mxu0
        %v3218 = vadd.f32 %v3116, %v3217
        %v3219 = vpop.f32.mrb[0].mxu0
        %v3220 = vadd.f32 %v3120, %v3219
        %v3221 = vpop.f32.mrb[0].mxu0
        %v3222 = vadd.f32 %v3116, %v3221
        %v3223 = vpop.f32.mrb[0].mxu0
        %v3224 = vadd.f32 %v3120, %v3223
        %3225 = vmatprep.mubr.bf16.mxu0 %v2900
        %3226 = vmatmul.mubr.bf16.gmra.mrb[0].mxu0 %v2899
        %v3227 = vpop.f32.mrb[0].mxu0
        %v3228 = vadd.f32 %v3116, %v3227
        %v3229 = vpop.f32.mrb[0].mxu0
        %v3230 = vadd.f32 %v3120, %v3229
        %v3231 = vpop.f32.mrb[0].mxu0
        %v3232 = vadd.f32 %v3116, %v3231
        %v3233 = vpop.f32.mrb[0].mxu0
        %v3234 = vadd.f32 %v3120, %v3233
        %3235 = vmatprep.mubr.bf16.mxu0 %v2902
        %3236 = vmatmul.mubr.bf16.gmra.mrb[0].mxu0 %v2901
        %v3237 = vpop.f32.mrb[0].mxu0
        %v3238 = vadd.f32 %v3116, %v3237
        %v3239 = vpop.f32.mrb[0].mxu0
        %v3240 = vadd.f32 %v3120, %v3239
        %v3241 = vpop.f32.mrb[0].mxu0
        %v3242 = vadd.f32 %v3116, %v3241
        %v3243 = vpop.f32.mrb[0].mxu0
        %v3244 = vadd.f32 %v3120, %v3243
        %3245 = vmatprep.mubr.bf16.mxu0 %v2904
        %3246 = vmatmul.mubr.bf16.gmra.mrb[0].mxu0 %v2903
        %v3247 = vpop.f32.mrb[0].mxu0
        %v3248 = vadd.f32 %v3116, %v3247
        %v3249 = vpop.f32.mrb[0].mxu0
        %v3250 = vadd.f32 %v3120, %v3249
        %v3251 = vpop.f32.mrb[0].mxu0
        %v3252 = vadd.f32 %v3116, %v3251
        %v3253 = vpop.f32.mrb[0].mxu0
        %v3254 = vadd.f32 %v3120, %v3253
        %3255 = vmatprep.mubr.bf16.mxu0 %v2906
        %3256 = vmatmul.mubr.bf16.gmra.mrb[0].mxu0 %v2905
        %v3257 = vpop.f32.mrb[0].mxu0
        %v3258 = vadd.f32 %v3116, %v3257
        %v3259 = vpop.f32.mrb[0].mxu0
        %v3260 = vadd.f32 %v3120, %v3259
        %v3261 = vpop.f32.mrb[0].mxu0
        %v3262 = vadd.f32 %v3116, %v3261
        %v3263 = vpop.f32.mrb[0].mxu0
        %v3264 = vadd.f32 %v3120, %v3263
        %3265 = vmatprep.mubr.bf16.mxu0 %v2908
        %3266 = vmatmul.mubr.bf16.gmra.mrb[0].mxu0 %v2907
        %v3267 = vpop.f32.mrb[0].mxu0
        %v3268 = vadd.f32 %v3116, %v3267
        %v3269 = vpop.f32.mrb[0].mxu0
        %v3270 = vadd.f32 %v3120, %v3269
        %v3271 = vpop.f32.mrb[0].mxu0
        %v3272 = vadd.f32 %v3116, %v3271
        %v3273 = vpop.f32.mrb[0].mxu0
        %v3274 = vadd.f32 %v3120, %v3273
        %3275 = vmatprep.mubr.bf16.mxu0 %v2910
        %3276 = vmatmul.mubr.bf16.gmra.mrb[0].mxu0 %v2909
        %v3277 = vpop.f32.mrb[0].mxu0
        %v3278 = vadd.f32 %v3116, %v3277
        %v3279 = vpop.f32.mrb[0].mxu0
        %v3280 = vadd.f32 %v3120, %v3279
        %v3281 = vpop.f32.mrb[0].mxu0
        %v3282 = vadd.f32 %v3116, %v3281
        %v3283 = vpop.f32.mrb[0].mxu0
        %v3284 = vadd.f32 %v3120, %v3283
        %3285 = vmatprep.mubr.bf16.mxu0 %v2912
        %3286 = vmatmul.mubr.bf16.gmra.mrb[0].mxu0 %v2911
        %v3287 = vpop.f32.mrb[0].mxu0
        %v3288 = vadd.f32 %v3116, %v3287
        %v3289 = vpop.f32.mrb[0].mxu0
        %v3290 = vadd.f32 %v3120, %v3289
        %v3291 = vpop.f32.mrb[0].mxu0
        %v3292 = vadd.f32 %v3116, %v3291
        %v3293 = vpop.f32.mrb[0].mxu0
        %v3294 = vadd.f32 %v3120, %v3293
        %3295 = vmatprep.mubr.bf16.mxu0 %v2914
        %3296 = vmatmul.mubr.bf16.gmra.mrb[0].mxu0 %v2913
        %v3297 = vpop.f32.mrb[0].mxu0
        %v3298 = vadd.f32 %v3116, %v3297
        %v3299 = vpop.f32.mrb[0].mxu0
        %v3300 = vadd.f32 %v3120, %v3299
        %v3301 = vpop.f32.mrb[0].mxu0
        %v3302 = vadd.f32 %v3116, %v3301
        %v3303 = vpop.f32.mrb[0].mxu0
        %v3304 = vadd.f32 %v3120, %v3303
        %3305 = vmatprep.mubr.bf16.mxu0 %v2916
        %3306 = vmatmul.mubr.bf16.gmra.mrb[0].mxu0 %v2915
        %v3307 = vpop.f32.mrb[0].mxu0
        %v3308 = vadd.f32 %v3116, %v3307
        %v3309 = vpop.f32.mrb[0].mxu0
        %v3310 = vadd.f32 %v3120, %v3309
        %v3311 = vpop.f32.mrb[0].mxu0
        %v3312 = vadd.f32 %v3116, %v3311
        %v3313 = vpop.f32.mrb[0].mxu0
        %v3314 = vadd.f32 %v3120, %v3313
        %3315 = vmatprep.mubr.bf16.mxu0 %v2918
        %3316 = vmatmul.mubr.bf16.gmra.mrb[0].mxu0 %v2917
        %v3317 = vpop.f32.mrb[0].mxu0
        %v3318 = vadd.f32 %v3116, %v3317
        %v3319 = vpop.f32.mrb[0].mxu0
        %v3320 = vadd.f32 %v3120, %v3319
        %v3321 = vpop.f32.mrb[0].mxu0
        %v3322 = vadd.f32 %v3116, %v3321
        %v3323 = vpop.f32.mrb[0].mxu0
        %v3324 = vadd.f32 %v3120, %v3323
        %3325 = vdwg.mxu0
        %3326 = vmatprep.subr.bf16.mxu0 %v2922
        %3327 = vmatpush1.bf16.msra.mxu0 %v2921
        %3328 = vmatprep.subr.bf16.mxu0 %v2926
        %3329 = vmatpush1.bf16.msra.mxu0 %v2925
        %3330 = vmatprep.subr.bf16.mxu0 %v2930
        %3331 = vmatpush1.bf16.msra.mxu0 %v2929
        %3332 = vmatprep.subr.bf16.mxu0 %v2934
        %3333 = vmatpush1.bf16.msra.mxu0 %v2933
        %3334 = vmatprep.subr.bf16.mxu0 %v2938
        %3335 = vmatpush1.bf16.msra.mxu0 %v2937
        %3336 = vmatprep.subr.bf16.mxu0 %v2942
        %3337 = vmatpush1.bf16.msra.mxu0 %v2941
        %3338 = vmatprep.subr.bf16.mxu0 %v2946
        %3339 = vmatpush1.bf16.msra.mxu0 %v2945
        %3340 = vmatprep.subr.bf16.mxu0 %v2950
        %3341 = vmatpush1.bf16.msra.mxu0 %v2949
        %3342 = vmatprep.subr.bf16.mxu0 %v2954
        %3343 = vmatpush1.bf16.msra.mxu0 %v2953
        %3344 = vmatprep.subr.bf16.mxu0 %v2958
        %3345 = vmatpush1.bf16.msra.mxu0 %v2957
        %3346 = vmatprep.subr.bf16.mxu0 %v2962
        %3347 = vmatpush1.bf16.msra.mxu0 %v2961
        %3348 = vmatprep.subr.bf16.mxu0 %v2966
        %3349 = vmatpush1.bf16.msra.mxu0 %v2965
        %3350 = vmatprep.subr.bf16.mxu0 %v2970
        %3351 = vmatpush1.bf16.msra.mxu0 %v2969
        %3352 = vmatprep.subr.bf16.mxu0 %v2974
        %3353 = vmatpush1.bf16.msra.mxu0 %v2973
        %3354 = vmatprep.subr.bf16.mxu0 %v2978
        %3355 = vmatpush1.bf16.msra.mxu0 %v2977
        %3356 = vmatprep.subr.bf16.mxu0 %v2982
        %3357 = vmatpush1.bf16.msra.mxu0 %v2981
        %3358 = vmatprep.mubr.bf16.mxu0 %v2888
        %3359 = vmatmul.mubr.bf16.gmra.mrb[0].mxu0 %v2887
        %v3360 = vpop.f32.mrb[0].mxu0
        %v3361 = vadd.f32 %v3124, %v3360
        %v3362 = vpop.f32.mrb[0].mxu0
        %v3363 = vadd.f32 %v3128, %v3362
        %v3364 = vpop.f32.mrb[0].mxu0
        %v3365 = vadd.f32 %v3124, %v3364
        %v3366 = vpop.f32.mrb[0].mxu0
        %v3367 = vadd.f32 %v3128, %v3366
        %3368 = vmatprep.mubr.bf16.mxu0 %v2890
        %3369 = vmatmul.mubr.bf16.gmra.mrb[0].mxu0 %v2889
        %v3370 = vpop.f32.mrb[0].mxu0
        %v3371 = vadd.f32 %v3124, %v3370
        %v3372 = vpop.f32.mrb[0].mxu0
        %v3373 = vadd.f32 %v3128, %v3372
        %v3374 = vpop.f32.mrb[0].mxu0
        %v3375 = vadd.f32 %v3124, %v3374
        %v3376 = vpop.f32.mrb[0].mxu0
        %v3377 = vadd.f32 %v3128, %v3376
        %3378 = vmatprep.mubr.bf16.mxu0 %v2892
        %3379 = vmatmul.mubr.bf16.gmra.mrb[0].mxu0 %v2891
        %v3380 = vpop.f32.mrb[0].mxu0
        %v3381 = vadd.f32 %v3124, %v3380
        %v3382 = vpop.f32.mrb[0].mxu0
        %v3383 = vadd.f32 %v3128, %v3382
        %v3384 = vpop.f32.mrb[0].mxu0
        %v3385 = vadd.f32 %v3124, %v3384
        %v3386 = vpop.f32.mrb[0].mxu0
        %v3387 = vadd.f32 %v3128, %v3386
        %3388 = vmatprep.mubr.bf16.mxu0 %v2894
        %3389 = vmatmul.mubr.bf16.gmra.mrb[0].mxu0 %v2893
        %v3390 = vpop.f32.mrb[0].mxu0
        %v3391 = vadd.f32 %v3124, %v3390
        %v3392 = vpop.f32.mrb[0].mxu0
        %v3393 = vadd.f32 %v3128, %v3392
        %v3394 = vpop.f32.mrb[0].mxu0
        %v3395 = vadd.f32 %v3124, %v3394
        %v3396 = vpop.f32.mrb[0].mxu0
        %v3397 = vadd.f32 %v3128, %v3396
        %3398 = vmatprep.mubr.bf16.mxu0 %v2896
        %3399 = vmatmul.mubr.bf16.gmra.mrb[0].mxu0 %v2895
        %v3400 = vpop.f32.mrb[0].mxu0
        %v3401 = vadd.f32 %v3124, %v3400
        %v3402 = vpop.f32.mrb[0].mxu0
        %v3403 = vadd.f32 %v3128, %v3402
        %v3404 = vpop.f32.mrb[0].mxu0
        %v3405 = vadd.f32 %v3124, %v3404
        %v3406 = vpop.f32.mrb[0].mxu0
        %v3407 = vadd.f32 %v3128, %v3406
        %3408 = vmatprep.mubr.bf16.mxu0 %v2898
        %3409 = vmatmul.mubr.bf16.gmra.mrb[0].mxu0 %v2897
        %v3410 = vpop.f32.mrb[0].mxu0
        %v3411 = vadd.f32 %v3124, %v3410
        %v3412 = vpop.f32.mrb[0].mxu0
        %v3413 = vadd.f32 %v3128, %v3412
        %v3414 = vpop.f32.mrb[0].mxu0
        %v3415 = vadd.f32 %v3124, %v3414
        %v3416 = vpop.f32.mrb[0].mxu0
        %v3417 = vadd.f32 %v3128, %v3416
        %3418 = vmatprep.mubr.bf16.mxu0 %v2900
        %3419 = vmatmul.mubr.bf16.gmra.mrb[0].mxu0 %v2899
        %v3420 = vpop.f32.mrb[0].mxu0
        %v3421 = vadd.f32 %v3124, %v3420
        %v3422 = vpop.f32.mrb[0].mxu0
        %v3423 = vadd.f32 %v3128, %v3422
        %v3424 = vpop.f32.mrb[0].mxu0
        %v3425 = vadd.f32 %v3124, %v3424
        %v3426 = vpop.f32.mrb[0].mxu0
        %v3427 = vadd.f32 %v3128, %v3426
        %3428 = vmatprep.mubr.bf16.mxu0 %v2902
        %3429 = vmatmul.mubr.bf16.gmra.mrb[0].mxu0 %v2901
        %v3430 = vpop.f32.mrb[0].mxu0
        %v3431 = vadd.f32 %v3124, %v3430
        %v3432 = vpop.f32.mrb[0].mxu0
        %v3433 = vadd.f32 %v3128, %v3432
        %v3434 = vpop.f32.mrb[0].mxu0
        %v3435 = vadd.f32 %v3124, %v3434
        %v3436 = vpop.f32.mrb[0].mxu0
        %v3437 = vadd.f32 %v3128, %v3436
        %3438 = vmatprep.mubr.bf16.mxu0 %v2904
        %3439 = vmatmul.mubr.bf16.gmra.mrb[0].mxu0 %v2903
        %v3440 = vpop.f32.mrb[0].mxu0
        %v3441 = vadd.f32 %v3124, %v3440
        %v3442 = vpop.f32.mrb[0].mxu0
        %v3443 = vadd.f32 %v3128, %v3442
        %v3444 = vpop.f32.mrb[0].mxu0
        %v3445 = vadd.f32 %v3124, %v3444
        %v3446 = vpop.f32.mrb[0].mxu0
        %v3447 = vadd.f32 %v3128, %v3446
        %3448 = vmatprep.mubr.bf16.mxu0 %v2906
        %3449 = vmatmul.mubr.bf16.gmra.mrb[0].mxu0 %v2905
        %v3450 = vpop.f32.mrb[0].mxu0
        %v3451 = vadd.f32 %v3124, %v3450
        %v3452 = vpop.f32.mrb[0].mxu0
        %v3453 = vadd.f32 %v3128, %v3452
        %v3454 = vpop.f32.mrb[0].mxu0
        %v3455 = vadd.f32 %v3124, %v3454
        %v3456 = vpop.f32.mrb[0].mxu0
        %v3457 = vadd.f32 %v3128, %v3456
        %3458 = vmatprep.mubr.bf16.mxu0 %v2908
        %3459 = vmatmul.mubr.bf16.gmra.mrb[0].mxu0 %v2907
        %v3460 = vpop.f32.mrb[0].mxu0
        %v3461 = vadd.f32 %v3124, %v3460
        %v3462 = vpop.f32.mrb[0].mxu0
        %v3463 = vadd.f32 %v3128, %v3462
        %v3464 = vpop.f32.mrb[0].mxu0
        %v3465 = vadd.f32 %v3124, %v3464
        %v3466 = vpop.f32.mrb[0].mxu0
        %v3467 = vadd.f32 %v3128, %v3466
        %3468 = vmatprep.mubr.bf16.mxu0 %v2910
        %3469 = vmatmul.mubr.bf16.gmra.mrb[0].mxu0 %v2909
        %v3470 = vpop.f32.mrb[0].mxu0
        %v3471 = vadd.f32 %v3124, %v3470
        %v3472 = vpop.f32.mrb[0].mxu0
        %v3473 = vadd.f32 %v3128, %v3472
        %v3474 = vpop.f32.mrb[0].mxu0
        %v3475 = vadd.f32 %v3124, %v3474
        %v3476 = vpop.f32.mrb[0].mxu0
        %v3477 = vadd.f32 %v3128, %v3476
        %3478 = vmatprep.mubr.bf16.mxu0 %v2912
        %3479 = vmatmul.mubr.bf16.gmra.mrb[0].mxu0 %v2911
        %v3480 = vpop.f32.mrb[0].mxu0
        %v3481 = vadd.f32 %v3124, %v3480
        %v3482 = vpop.f32.mrb[0].mxu0
        %v3483 = vadd.f32 %v3128, %v3482
        %v3484 = vpop.f32.mrb[0].mxu0
        %v3485 = vadd.f32 %v3124, %v3484
        %v3486 = vpop.f32.mrb[0].mxu0
        %v3487 = vadd.f32 %v3128, %v3486
        %3488 = vmatprep.mubr.bf16.mxu0 %v2914
        %3489 = vmatmul.mubr.bf16.gmra.mrb[0].mxu0 %v2913
        %v3490 = vpop.f32.mrb[0].mxu0
        %v3491 = vadd.f32 %v3124, %v3490
        %v3492 = vpop.f32.mrb[0].mxu0
        %v3493 = vadd.f32 %v3128, %v3492
        %v3494 = vpop.f32.mrb[0].mxu0
        %v3495 = vadd.f32 %v3124, %v3494
        %v3496 = vpop.f32.mrb[0].mxu0
        %v3497 = vadd.f32 %v3128, %v3496
        %3498 = vmatprep.mubr.bf16.mxu0 %v2916
        %3499 = vmatmul.mubr.bf16.gmra.mrb[0].mxu0 %v2915
        %v3500 = vpop.f32.mrb[0].mxu0
        %v3501 = vadd.f32 %v3124, %v3500
        %v3502 = vpop.f32.mrb[0].mxu0
        %v3503 = vadd.f32 %v3128, %v3502
        %v3504 = vpop.f32.mrb[0].mxu0
        %v3505 = vadd.f32 %v3124, %v3504
        %v3506 = vpop.f32.mrb[0].mxu0
        %v3507 = vadd.f32 %v3128, %v3506
        %3508 = vmatprep.mubr.bf16.mxu0 %v2918
        %3509 = vmatmul.mubr.bf16.gmra.mrb[0].mxu0 %v2917
        %v3510 = vpop.f32.mrb[0].mxu0
        %v3511 = vadd.f32 %v3124, %v3510
        %v3512 = vpop.f32.mrb[0].mxu0
        %v3513 = vadd.f32 %v3128, %v3512
        %v3514 = vpop.f32.mrb[0].mxu0
        %v3515 = vadd.f32 %v3124, %v3514
        %v3516 = vpop.f32.mrb[0].mxu0
        %v3517 = vadd.f32 %v3128, %v3516
        %3518 = vdwg.mxu0
        %v3519 = vmax.f32 %v3168, 0.0
        %v3520 = vmax.f32 %v3170, 0.0
        %v3521 = vmax.f32 %v3361, 0.0
        %v3522 = vmax.f32 %v3363, 0.0
        %v3523 = vmax.f32 %v3172, 0.0
        %v3524 = vmax.f32 %v3174, 0.0
        %v3525 = vmax.f32 %v3365, 0.0
        %v3526 = vmax.f32 %v3367, 0.0
        %v3527 = vmax.f32 %v3178, 0.0
        %v3528 = vmax.f32 %v3180, 0.0
        %v3529 = vmax.f32 %v3371, 0.0
        %v3530 = vmax.f32 %v3373, 0.0
        %v3531 = vmax.f32 %v3182, 0.0
        %v3532 = vmax.f32 %v3184, 0.0
        %v3533 = vmax.f32 %v3375, 0.0
        %v3534 = vmax.f32 %v3377, 0.0
        %v3535 = vmax.f32 %v3188, 0.0
        %v3536 = vmax.f32 %v3190, 0.0
        %v3537 = vmax.f32 %v3381, 0.0
        %v3538 = vmax.f32 %v3383, 0.0
        %v3539 = vmax.f32 %v3192, 0.0
        %v3540 = vmax.f32 %v3194, 0.0
        %v3541 = vmax.f32 %v3385, 0.0
        %v3542 = vmax.f32 %v3387, 0.0
        %v3543 = vmax.f32 %v3198, 0.0
        %v3544 = vmax.f32 %v3200, 0.0
        %v3545 = vmax.f32 %v3391, 0.0
        %v3546 = vmax.f32 %v3393, 0.0
        %v3547 = vmax.f32 %v3202, 0.0
        %v3548 = vmax.f32 %v3204, 0.0
        %v3549 = vmax.f32 %v3395, 0.0
        %v3550 = vmax.f32 %v3397, 0.0
        %v3551 = vmax.f32 %v3208, 0.0
        %v3552 = vmax.f32 %v3210, 0.0
        %v3553 = vmax.f32 %v3401, 0.0
        %v3554 = vmax.f32 %v3403, 0.0
        %v3555 = vmax.f32 %v3212, 0.0
        %v3556 = vmax.f32 %v3214, 0.0
        %v3557 = vmax.f32 %v3405, 0.0
        %v3558 = vmax.f32 %v3407, 0.0
        %v3559 = vmax.f32 %v3218, 0.0
        %v3560 = vmax.f32 %v3220, 0.0
        %v3561 = vmax.f32 %v3411, 0.0
        %v3562 = vmax.f32 %v3413, 0.0
        %v3563 = vmax.f32 %v3222, 0.0
        %v3564 = vmax.f32 %v3224, 0.0
        %v3565 = vmax.f32 %v3415, 0.0
        %v3566 = vmax.f32 %v3417, 0.0
        %v3567 = vmax.f32 %v3228, 0.0
        %v3568 = vmax.f32 %v3230, 0.0
        %v3569 = vmax.f32 %v3421, 0.0
        %v3570 = vmax.f32 %v3423, 0.0
        %v3571 = vmax.f32 %v3232, 0.0
        %v3572 = vmax.f32 %v3234, 0.0
        %v3573 = vmax.f32 %v3425, 0.0
        %v3574 = vmax.f32 %v3427, 0.0
        %v3575 = vmax.f32 %v3238, 0.0
        %v3576 = vmax.f32 %v3240, 0.0
        %v3577 = vmax.f32 %v3431, 0.0
        %v3578 = vmax.f32 %v3433, 0.0
        %v3579 = vmax.f32 %v3242, 0.0
        %v3580 = vmax.f32 %v3244, 0.0
        %v3581 = vmax.f32 %v3435, 0.0
        %v3582 = vmax.f32 %v3437, 0.0
        %v3583 = vmax.f32 %v3248, 0.0
        %v3584 = vmax.f32 %v3250, 0.0
        %v3585 = vmax.f32 %v3441, 0.0
        %v3586 = vmax.f32 %v3443, 0.0
        %v3587 = vmax.f32 %v3252, 0.0
        %v3588 = vmax.f32 %v3254, 0.0
        %v3589 = vmax.f32 %v3445, 0.0
        %v3590 = vmax.f32 %v3447, 0.0
        %v3591 = vmax.f32 %v3258, 0.0
        %v3592 = vmax.f32 %v3260, 0.0
        %v3593 = vmax.f32 %v3451, 0.0
        %v3594 = vmax.f32 %v3453, 0.0
        %v3595 = vmax.f32 %v3262, 0.0
        %v3596 = vmax.f32 %v3264, 0.0
        %v3597 = vmax.f32 %v3455, 0.0
        %v3598 = vmax.f32 %v3457, 0.0
        %v3599 = vmax.f32 %v3268, 0.0
        %v3600 = vmax.f32 %v3270, 0.0
        %v3601 = vmax.f32 %v3461, 0.0
        %v3602 = vmax.f32 %v3463, 0.0
        %v3603 = vmax.f32 %v3272, 0.0
        %v3604 = vmax.f32 %v3274, 0.0
        %v3605 = vmax.f32 %v3465, 0.0
        %v3606 = vmax.f32 %v3467, 0.0
        %v3607 = vmax.f32 %v3278, 0.0
        %v3608 = vmax.f32 %v3280, 0.0
        %v3609 = vmax.f32 %v3471, 0.0
        %v3610 = vmax.f32 %v3473, 0.0
        %v3611 = vmax.f32 %v3282, 0.0
        %v3612 = vmax.f32 %v3284, 0.0
        %v3613 = vmax.f32 %v3475, 0.0
        %v3614 = vmax.f32 %v3477, 0.0
        %v3615 = vmax.f32 %v3288, 0.0
        %v3616 = vmax.f32 %v3290, 0.0
        %v3617 = vmax.f32 %v3481, 0.0
        %v3618 = vmax.f32 %v3483, 0.0
        %v3619 = vmax.f32 %v3292, 0.0
        %v3620 = vmax.f32 %v3294, 0.0
        %v3621 = vmax.f32 %v3485, 0.0
        %v3622 = vmax.f32 %v3487, 0.0
        %v3623 = vmax.f32 %v3298, 0.0
        %v3624 = vmax.f32 %v3300, 0.0
        %v3625 = vmax.f32 %v3491, 0.0
        %v3626 = vmax.f32 %v3493, 0.0
        %v3627 = vmax.f32 %v3302, 0.0
        %v3628 = vmax.f32 %v3304, 0.0
        %v3629 = vmax.f32 %v3495, 0.0
        %v3630 = vmax.f32 %v3497, 0.0
        %v3631 = vmax.f32 %v3308, 0.0
        %v3632 = vmax.f32 %v3310, 0.0
        %v3633 = vmax.f32 %v3501, 0.0
        %v3634 = vmax.f32 %v3503, 0.0
        %v3635 = vmax.f32 %v3312, 0.0
        %v3636 = vmax.f32 %v3314, 0.0
        %v3637 = vmax.f32 %v3505, 0.0
        %v3638 = vmax.f32 %v3507, 0.0
        %v3639 = vmax.f32 %v3318, 0.0
        %v3640 = vmax.f32 %v3320, 0.0
        %v3641 = vmax.f32 %v3511, 0.0
        %v3642 = vmax.f32 %v3513, 0.0
        %v3643 = vmax.f32 %v3322, 0.0
        %v3644 = vmax.f32 %v3324, 0.0
        %v3645 = vmax.f32 %v3515, 0.0
        %v3646 = vmax.f32 %v3517, 0.0
        %v3647 = vadd.f32 %v2983, %v3519
        %v3648 = vadd.f32 %v2984, %v3520
        %v3649 = vadd.f32 %v2985, %v3521
        %v3650 = vadd.f32 %v2986, %v3522
        %v3651 = vadd.f32 %v2987, %v3523
        %v3652 = vadd.f32 %v2988, %v3524
        %v3653 = vadd.f32 %v2989, %v3525
        %v3654 = vadd.f32 %v2990, %v3526
        %v3655 = vadd.f32 %v2991, %v3527
        %v3656 = vadd.f32 %v2992, %v3528
        %v3657 = vadd.f32 %v2993, %v3529
        %v3658 = vadd.f32 %v2994, %v3530
        %v3659 = vadd.f32 %v2995, %v3531
        %v3660 = vadd.f32 %v2996, %v3532
        %v3661 = vadd.f32 %v2997, %v3533
        %v3662 = vadd.f32 %v2998, %v3534
        %v3663 = vadd.f32 %v2999, %v3535
        %v3664 = vadd.f32 %v3000, %v3536
        %v3665 = vadd.f32 %v3001, %v3537
        %v3666 = vadd.f32 %v3002, %v3538
        %v3667 = vadd.f32 %v3003, %v3539
        %v3668 = vadd.f32 %v3004, %v3540
        %v3669 = vadd.f32 %v3005, %v3541
        %v3670 = vadd.f32 %v3006, %v3542
        %v3671 = vadd.f32 %v3007, %v3543
        %v3672 = vadd.f32 %v3008, %v3544
        %v3673 = vadd.f32 %v3009, %v3545
        %v3674 = vadd.f32 %v3010, %v3546
        %v3675 = vadd.f32 %v3011, %v3547
        %v3676 = vadd.f32 %v3012, %v3548
        %v3677 = vadd.f32 %v3013, %v3549
        %v3678 = vadd.f32 %v3014, %v3550
        %v3679 = vadd.f32 %v3015, %v3551
        %v3680 = vadd.f32 %v3016, %v3552
        %v3681 = vadd.f32 %v3017, %v3553
        %v3682 = vadd.f32 %v3018, %v3554
        %v3683 = vadd.f32 %v3019, %v3555
        %v3684 = vadd.f32 %v3020, %v3556
        %v3685 = vadd.f32 %v3021, %v3557
        %v3686 = vadd.f32 %v3022, %v3558
        %v3687 = vadd.f32 %v3023, %v3559
        %v3688 = vadd.f32 %v3024, %v3560
        %v3689 = vadd.f32 %v3025, %v3561
        %v3690 = vadd.f32 %v3026, %v3562
        %v3691 = vadd.f32 %v3027, %v3563
        %v3692 = vadd.f32 %v3028, %v3564
        %v3693 = vadd.f32 %v3029, %v3565
        %v3694 = vadd.f32 %v3030, %v3566
        %v3695 = vadd.f32 %v3031, %v3567
        %v3696 = vadd.f32 %v3032, %v3568
        %v3697 = vadd.f32 %v3033, %v3569
        %v3698 = vadd.f32 %v3034, %v3570
        %v3699 = vadd.f32 %v3035, %v3571
        %v3700 = vadd.f32 %v3036, %v3572
        %v3701 = vadd.f32 %v3037, %v3573
        %v3702 = vadd.f32 %v3038, %v3574
        %v3703 = vadd.f32 %v3039, %v3575
        %v3704 = vadd.f32 %v3040, %v3576
        %v3705 = vadd.f32 %v3041, %v3577
        %v3706 = vadd.f32 %v3042, %v3578
        %v3707 = vadd.f32 %v3043, %v3579
        %v3708 = vadd.f32 %v3044, %v3580
        %v3709 = vadd.f32 %v3045, %v3581
        %v3710 = vadd.f32 %v3046, %v3582
        %v3711 = vadd.f32 %v3047, %v3583
        %v3712 = vadd.f32 %v3048, %v3584
        %v3713 = vadd.f32 %v3049, %v3585
        %v3714 = vadd.f32 %v3050, %v3586
        %v3715 = vadd.f32 %v3051, %v3587
        %v3716 = vadd.f32 %v3052, %v3588
        %v3717 = vadd.f32 %v3053, %v3589
        %v3718 = vadd.f32 %v3054, %v3590
        %v3719 = vadd.f32 %v3055, %v3591
        %v3720 = vadd.f32 %v3056, %v3592
        %v3721 = vadd.f32 %v3057, %v3593
        %v3722 = vadd.f32 %v3058, %v3594
        %v3723 = vadd.f32 %v3059, %v3595
        %v3724 = vadd.f32 %v3060, %v3596
        %v3725 = vadd.f32 %v3061, %v3597
        %v3726 = vadd.f32 %v3062, %v3598
        %v3727 = vadd.f32 %v3063, %v3599
        %v3728 = vadd.f32 %v3064, %v3600
        %v3729 = vadd.f32 %v3065, %v3601
        %v3730 = vadd.f32 %v3066, %v3602
        %v3731 = vadd.f32 %v3067, %v3603
        %v3732 = vadd.f32 %v3068, %v3604
        %v3733 = vadd.f32 %v3069, %v3605
        %v3734 = vadd.f32 %v3070, %v3606
        %v3735 = vadd.f32 %v3071, %v3607
        %v3736 = vadd.f32 %v3072, %v3608
        %v3737 = vadd.f32 %v3073, %v3609
        %v3738 = vadd.f32 %v3074, %v3610
        %v3739 = vadd.f32 %v3075, %v3611
        %v3740 = vadd.f32 %v3076, %v3612
        %v3741 = vadd.f32 %v3077, %v3613
        %v3742 = vadd.f32 %v3078, %v3614
        %v3743 = vadd.f32 %v3079, %v3615
        %v3744 = vadd.f32 %v3080, %v3616
        %v3745 = vadd.f32 %v3081, %v3617
        %v3746 = vadd.f32 %v3082, %v3618
        %v3747 = vadd.f32 %v3083, %v3619
        %v3748 = vadd.f32 %v3084, %v3620
        %v3749 = vadd.f32 %v3085, %v3621
        %v3750 = vadd.f32 %v3086, %v3622
        %v3751 = vadd.f32 %v3087, %v3623
        %v3752 = vadd.f32 %v3088, %v3624
        %v3753 = vadd.f32 %v3089, %v3625
        %v3754 = vadd.f32 %v3090, %v3626
        %v3755 = vadd.f32 %v3091, %v3627
        %v3756 = vadd.f32 %v3092, %v3628
        %v3757 = vadd.f32 %v3093, %v3629
        %v3758 = vadd.f32 %v3094, %v3630
        %v3759 = vadd.f32 %v3095, %v3631
        %v3760 = vadd.f32 %v3096, %v3632
        %v3761 = vadd.f32 %v3097, %v3633
        %v3762 = vadd.f32 %v3098, %v3634
        %v3763 = vadd.f32 %v3099, %v3635
        %v3764 = vadd.f32 %v3100, %v3636
        %v3765 = vadd.f32 %v3101, %v3637
        %v3766 = vadd.f32 %v3102, %v3638
        %v3767 = vadd.f32 %v3103, %v3639
        %v3768 = vadd.f32 %v3104, %v3640
        %v3769 = vadd.f32 %v3105, %v3641
        %v3770 = vadd.f32 %v3106, %v3642
        %v3771 = vadd.f32 %v3107, %v3643
        %v3772 = vadd.f32 %v3108, %v3644
        %v3773 = vadd.f32 %v3109, %v3645
        %v3774 = vadd.f32 %v3110, %v3646
        %3775 = vst [vmem:[#allocation4] sm:$0xff] %v3647
        %3776 = vst [vmem:[#allocation4 + $0x8] sm:$0xff] %v3648
        %3777 = vst [vmem:[#allocation4 + $0x10] sm:$0xff] %v3649
        %3778 = vst [vmem:[#allocation4 + $0x18] sm:$0xff] %v3650
        %3779 = vst [vmem:[#allocation4 + $0x20] sm:$0xff] %v3651
        %3780 = vst [vmem:[#allocation4 + $0x28] sm:$0xff] %v3652
        %3781 = vst [vmem:[#allocation4 + $0x30] sm:$0xff] %v3653
        %3782 = vst [vmem:[#allocation4 + $0x38] sm:$0xff] %v3654
        %3783 = vst [vmem:[#allocation4 + $0x40] sm:$0xff] %v3655
        %3784 = vst [vmem:[#allocation4 + $0x48] sm:$0xff] %v3656
        %3785 = vst [vmem:[#allocation4 + $0x50] sm:$0xff] %v3657
        %3786 = vst [vmem:[#allocation4 + $0x58] sm:$0xff] %v3658
        %3787 = vst [vmem:[#allocation4 + $0x60] sm:$0xff] %v3659
        %3788 = vst [vmem:[#allocation4 + $0x68] sm:$0xff] %v3660
        %3789 = vst [vmem:[#allocation4 + $0x70] sm:$0xff] %v3661
        %3790 = vst [vmem:[#allocation4 + $0x78] sm:$0xff] %v3662
        %3791 = vst [vmem:[#allocation4 + $0x80] sm:$0xff] %v3663
        %3792 = vst [vmem:[#allocation4 + $0x88] sm:$0xff] %v3664
        %3793 = vst [vmem:[#allocation4 + $0x90] sm:$0xff] %v3665
        %3794 = vst [vmem:[#allocation4 + $0x98] sm:$0xff] %v3666
        %3795 = vst [vmem:[#allocation4 + $0xa0] sm:$0xff] %v3667
        %3796 = vst [vmem:[#allocation4 + $0xa8] sm:$0xff] %v3668
        %3797 = vst [vmem:[#allocation4 + $0xb0] sm:$0xff] %v3669
        %3798 = vst [vmem:[#allocation4 + $0xb8] sm:$0xff] %v3670
        %3799 = vst [vmem:[#allocation4 + $0xc0] sm:$0xff] %v3671
        %3800 = vst [vmem:[#allocation4 + $0xc8] sm:$0xff] %v3672
        %3801 = vst [vmem:[#allocation4 + $0xd0] sm:$0xff] %v3673
        %3802 = vst [vmem:[#allocation4 + $0xd8] sm:$0xff] %v3674
        %3803 = vst [vmem:[#allocation4 + $0xe0] sm:$0xff] %v3675
        %3804 = vst [vmem:[#allocation4 + $0xe8] sm:$0xff] %v3676
        %3805 = vst [vmem:[#allocation4 + $0xf0] sm:$0xff] %v3677
        %3806 = vst [vmem:[#allocation4 + $0xf8] sm:$0xff] %v3678
        %3807 = vst [vmem:[#allocation4 + $0x100] sm:$0xff] %v3679
        %3808 = vst [vmem:[#allocation4 + $0x108] sm:$0xff] %v3680
        %3809 = vst [vmem:[#allocation4 + $0x110] sm:$0xff] %v3681
        %3810 = vst [vmem:[#allocation4 + $0x118] sm:$0xff] %v3682
        %3811 = vst [vmem:[#allocation4 + $0x120] sm:$0xff] %v3683
        %3812 = vst [vmem:[#allocation4 + $0x128] sm:$0xff] %v3684
        %3813 = vst [vmem:[#allocation4 + $0x130] sm:$0xff] %v3685
        %3814 = vst [vmem:[#allocation4 + $0x138] sm:$0xff] %v3686
        %3815 = vst [vmem:[#allocation4 + $0x140] sm:$0xff] %v3687
        %3816 = vst [vmem:[#allocation4 + $0x148] sm:$0xff] %v3688
        %3817 = vst [vmem:[#allocation4 + $0x150] sm:$0xff] %v3689
        %3818 = vst [vmem:[#allocation4 + $0x158] sm:$0xff] %v3690
        %3819 = vst [vmem:[#allocation4 + $0x160] sm:$0xff] %v3691
        %3820 = vst [vmem:[#allocation4 + $0x168] sm:$0xff] %v3692
        %3821 = vst [vmem:[#allocation4 + $0x170] sm:$0xff] %v3693
        %3822 = vst [vmem:[#allocation4 + $0x178] sm:$0xff] %v3694
        %3823 = vst [vmem:[#allocation4 + $0x180] sm:$0xff] %v3695
        %3824 = vst [vmem:[#allocation4 + $0x188] sm:$0xff] %v3696
        %3825 = vst [vmem:[#allocation4 + $0x190] sm:$0xff] %v3697
        %3826 = vst [vmem:[#allocation4 + $0x198] sm:$0xff] %v3698
        %3827 = vst [vmem:[#allocation4 + $0x1a0] sm:$0xff] %v3699
        %3828 = vst [vmem:[#allocation4 + $0x1a8] sm:$0xff] %v3700
        %3829 = vst [vmem:[#allocation4 + $0x1b0] sm:$0xff] %v3701
        %3830 = vst [vmem:[#allocation4 + $0x1b8] sm:$0xff] %v3702
        %3831 = vst [vmem:[#allocation4 + $0x1c0] sm:$0xff] %v3703
        %3832 = vst [vmem:[#allocation4 + $0x1c8] sm:$0xff] %v3704
        %3833 = vst [vmem:[#allocation4 + $0x1d0] sm:$0xff] %v3705
        %3834 = vst [vmem:[#allocation4 + $0x1d8] sm:$0xff] %v3706
        %3835 = vst [vmem:[#allocation4 + $0x1e0] sm:$0xff] %v3707
        %3836 = vst [vmem:[#allocation4 + $0x1e8] sm:$0xff] %v3708
        %3837 = vst [vmem:[#allocation4 + $0x1f0] sm:$0xff] %v3709
        %3838 = vst [vmem:[#allocation4 + $0x1f8] sm:$0xff] %v3710
        %3839 = vst [vmem:[#allocation4 + $0x200] sm:$0xff] %v3711
        %3840 = vst [vmem:[#allocation4 + $0x208] sm:$0xff] %v3712
        %3841 = vst [vmem:[#allocation4 + $0x210] sm:$0xff] %v3713
        %3842 = vst [vmem:[#allocation4 + $0x218] sm:$0xff] %v3714
        %3843 = vst [vmem:[#allocation4 + $0x220] sm:$0xff] %v3715
        %3844 = vst [vmem:[#allocation4 + $0x228] sm:$0xff] %v3716
        %3845 = vst [vmem:[#allocation4 + $0x230] sm:$0xff] %v3717
        %3846 = vst [vmem:[#allocation4 + $0x238] sm:$0xff] %v3718
        %3847 = vst [vmem:[#allocation4 + $0x240] sm:$0xff] %v3719
        %3848 = vst [vmem:[#allocation4 + $0x248] sm:$0xff] %v3720
        %3849 = vst [vmem:[#allocation4 + $0x250] sm:$0xff] %v3721
        %3850 = vst [vmem:[#allocation4 + $0x258] sm:$0xff] %v3722
        %3851 = vst [vmem:[#allocation4 + $0x260] sm:$0xff] %v3723
        %3852 = vst [vmem:[#allocation4 + $0x268] sm:$0xff] %v3724
        %3853 = vst [vmem:[#allocation4 + $0x270] sm:$0xff] %v3725
        %3854 = vst [vmem:[#allocation4 + $0x278] sm:$0xff] %v3726
        %3855 = vst [vmem:[#allocation4 + $0x280] sm:$0xff] %v3727
        %3856 = vst [vmem:[#allocation4 + $0x288] sm:$0xff] %v3728
        %3857 = vst [vmem:[#allocation4 + $0x290] sm:$0xff] %v3729
        %3858 = vst [vmem:[#allocation4 + $0x298] sm:$0xff] %v3730
        %3859 = vst [vmem:[#allocation4 + $0x2a0] sm:$0xff] %v3731
        %3860 = vst [vmem:[#allocation4 + $0x2a8] sm:$0xff] %v3732
        %3861 = vst [vmem:[#allocation4 + $0x2b0] sm:$0xff] %v3733
        %3862 = vst [vmem:[#allocation4 + $0x2b8] sm:$0xff] %v3734
        %3863 = vst [vmem:[#allocation4 + $0x2c0] sm:$0xff] %v3735
        %3864 = vst [vmem:[#allocation4 + $0x2c8] sm:$0xff] %v3736
        %3865 = vst [vmem:[#allocation4 + $0x2d0] sm:$0xff] %v3737
        %3866 = vst [vmem:[#allocation4 + $0x2d8] sm:$0xff] %v3738
        %3867 = vst [vmem:[#allocation4 + $0x2e0] sm:$0xff] %v3739
        %3868 = vst [vmem:[#allocation4 + $0x2e8] sm:$0xff] %v3740
        %3869 = vst [vmem:[#allocation4 + $0x2f0] sm:$0xff] %v3741
        %3870 = vst [vmem:[#allocation4 + $0x2f8] sm:$0xff] %v3742
        %3871 = vst [vmem:[#allocation4 + $0x300] sm:$0xff] %v3743
        %3872 = vst [vmem:[#allocation4 + $0x308] sm:$0xff] %v3744
        %3873 = vst [vmem:[#allocation4 + $0x310] sm:$0xff] %v3745
        %3874 = vst [vmem:[#allocation4 + $0x318] sm:$0xff] %v3746
        %3875 = vst [vmem:[#allocation4 + $0x320] sm:$0xff] %v3747
        %3876 = vst [vmem:[#allocation4 + $0x328] sm:$0xff] %v3748
        %3877 = vst [vmem:[#allocation4 + $0x330] sm:$0xff] %v3749
        %3878 = vst [vmem:[#allocation4 + $0x338] sm:$0xff] %v3750
        %3879 = vst [vmem:[#allocation4 + $0x340] sm:$0xff] %v3751
        %3880 = vst [vmem:[#allocation4 + $0x348] sm:$0xff] %v3752
        %3881 = vst [vmem:[#allocation4 + $0x350] sm:$0xff] %v3753
        %3882 = vst [vmem:[#allocation4 + $0x358] sm:$0xff] %v3754
        %3883 = vst [vmem:[#allocation4 + $0x360] sm:$0xff] %v3755
        %3884 = vst [vmem:[#allocation4 + $0x368] sm:$0xff] %v3756
        %3885 = vst [vmem:[#allocation4 + $0x370] sm:$0xff] %v3757
        %3886 = vst [vmem:[#allocation4 + $0x378] sm:$0xff] %v3758
        %3887 = vst [vmem:[#allocation4 + $0x380] sm:$0xff] %v3759
        %3888 = vst [vmem:[#allocation4 + $0x388] sm:$0xff] %v3760
        %3889 = vst [vmem:[#allocation4 + $0x390] sm:$0xff] %v3761
        %3890 = vst [vmem:[#allocation4 + $0x398] sm:$0xff] %v3762
        %3891 = vst [vmem:[#allocation4 + $0x3a0] sm:$0xff] %v3763
        %3892 = vst [vmem:[#allocation4 + $0x3a8] sm:$0xff] %v3764
        %3893 = vst [vmem:[#allocation4 + $0x3b0] sm:$0xff] %v3765
        %3894 = vst [vmem:[#allocation4 + $0x3b8] sm:$0xff] %v3766
        %3895 = vst [vmem:[#allocation4 + $0x3c0] sm:$0xff] %v3767
        %3896 = vst [vmem:[#allocation4 + $0x3c8] sm:$0xff] %v3768
        %3897 = vst [vmem:[#allocation4 + $0x3d0] sm:$0xff] %v3769
        %3898 = vst [vmem:[#allocation4 + $0x3d8] sm:$0xff] %v3770
        %3899 = vst [vmem:[#allocation4 + $0x3e0] sm:$0xff] %v3771
        %3900 = vst [vmem:[#allocation4 + $0x3e8] sm:$0xff] %v3772
        %3901 = vst [vmem:[#allocation4 + $0x3f0] sm:$0xff] %v3773
        %3902 = vst [vmem:[#allocation4 + $0x3f8] sm:$0xff] %v3774
        %v3903 = vld [vmem:[#allocation4] sm:$0xff]
        %v3904 = vld [vmem:[#allocation4 + $0x8] sm:$0xff]
        %v3905 = vld [vmem:[#allocation4 + $0x10] sm:$0xff]
        %v3906 = vld [vmem:[#allocation4 + $0x18] sm:$0xff]
        %v3907 = vld [vmem:[#allocation4 + $0x20] sm:$0xff]
        %v3908 = vld [vmem:[#allocation4 + $0x28] sm:$0xff]
        %v3909 = vld [vmem:[#allocation4 + $0x30] sm:$0xff]
        %v3910 = vld [vmem:[#allocation4 + $0x38] sm:$0xff]
        %v3911 = vld [vmem:[#allocation4 + $0x40] sm:$0xff]
        %v3912 = vld [vmem:[#allocation4 + $0x48] sm:$0xff]
        %v3913 = vld [vmem:[#allocation4 + $0x50] sm:$0xff]
        %v3914 = vld [vmem:[#allocation4 + $0x58] sm:$0xff]
        %v3915 = vld [vmem:[#allocation4 + $0x60] sm:$0xff]
        %v3916 = vld [vmem:[#allocation4 + $0x68] sm:$0xff]
        %v3917 = vld [vmem:[#allocation4 + $0x70] sm:$0xff]
        %v3918 = vld [vmem:[#allocation4 + $0x78] sm:$0xff]
        %v3919 = vld [vmem:[#allocation4 + $0x80] sm:$0xff]
        %v3920 = vld [vmem:[#allocation4 + $0x88] sm:$0xff]
        %v3921 = vld [vmem:[#allocation4 + $0x90] sm:$0xff]
        %v3922 = vld [vmem:[#allocation4 + $0x98] sm:$0xff]
        %v3923 = vld [vmem:[#allocation4 + $0xa0] sm:$0xff]
        %v3924 = vld [vmem:[#allocation4 + $0xa8] sm:$0xff]
        %v3925 = vld [vmem:[#allocation4 + $0xb0] sm:$0xff]
        %v3926 = vld [vmem:[#allocation4 + $0xb8] sm:$0xff]
        %v3927 = vld [vmem:[#allocation4 + $0xc0] sm:$0xff]
        %v3928 = vld [vmem:[#allocation4 + $0xc8] sm:$0xff]
        %v3929 = vld [vmem:[#allocation4 + $0xd0] sm:$0xff]
        %v3930 = vld [vmem:[#allocation4 + $0xd8] sm:$0xff]
        %v3931 = vld [vmem:[#allocation4 + $0xe0] sm:$0xff]
        %v3932 = vld [vmem:[#allocation4 + $0xe8] sm:$0xff]
        %v3933 = vld [vmem:[#allocation4 + $0xf0] sm:$0xff]
        %v3934 = vld [vmem:[#allocation4 + $0xf8] sm:$0xff]
        %v3935 = vld [vmem:[#allocation4 + $0x100] sm:$0xff]
        %v3936 = vld [vmem:[#allocation4 + $0x108] sm:$0xff]
        %v3937 = vld [vmem:[#allocation4 + $0x110] sm:$0xff]
        %v3938 = vld [vmem:[#allocation4 + $0x118] sm:$0xff]
        %v3939 = vld [vmem:[#allocation4 + $0x120] sm:$0xff]
        %v3940 = vld [vmem:[#allocation4 + $0x128] sm:$0xff]
        %v3941 = vld [vmem:[#allocation4 + $0x130] sm:$0xff]
        %v3942 = vld [vmem:[#allocation4 + $0x138] sm:$0xff]
        %v3943 = vld [vmem:[#allocation4 + $0x140] sm:$0xff]
        %v3944 = vld [vmem:[#allocation4 + $0x148] sm:$0xff]
        %v3945 = vld [vmem:[#allocation4 + $0x150] sm:$0xff]
        %v3946 = vld [vmem:[#allocation4 + $0x158] sm:$0xff]
        %v3947 = vld [vmem:[#allocation4 + $0x160] sm:$0xff]
        %v3948 = vld [vmem:[#allocation4 + $0x168] sm:$0xff]
        %v3949 = vld [vmem:[#allocation4 + $0x170] sm:$0xff]
        %v3950 = vld [vmem:[#allocation4 + $0x178] sm:$0xff]
        %v3951 = vld [vmem:[#allocation4 + $0x180] sm:$0xff]
        %v3952 = vld [vmem:[#allocation4 + $0x188] sm:$0xff]
        %v3953 = vld [vmem:[#allocation4 + $0x190] sm:$0xff]
        %v3954 = vld [vmem:[#allocation4 + $0x198] sm:$0xff]
        %v3955 = vld [vmem:[#allocation4 + $0x1a0] sm:$0xff]
        %v3956 = vld [vmem:[#allocation4 + $0x1a8] sm:$0xff]
        %v3957 = vld [vmem:[#allocation4 + $0x1b0] sm:$0xff]
        %v3958 = vld [vmem:[#allocation4 + $0x1b8] sm:$0xff]
        %v3959 = vld [vmem:[#allocation4 + $0x1c0] sm:$0xff]
        %v3960 = vld [vmem:[#allocation4 + $0x1c8] sm:$0xff]
        %v3961 = vld [vmem:[#allocation4 + $0x1d0] sm:$0xff]
        %v3962 = vld [vmem:[#allocation4 + $0x1d8] sm:$0xff]
        %v3963 = vld [vmem:[#allocation4 + $0x1e0] sm:$0xff]
        %v3964 = vld [vmem:[#allocation4 + $0x1e8] sm:$0xff]
        %v3965 = vld [vmem:[#allocation4 + $0x1f0] sm:$0xff]
        %v3966 = vld [vmem:[#allocation4 + $0x1f8] sm:$0xff]
        %v3967 = vld [vmem:[#allocation4 + $0x200] sm:$0xff]
        %v3968 = vld [vmem:[#allocation4 + $0x208] sm:$0xff]
        %v3969 = vld [vmem:[#allocation4 + $0x210] sm:$0xff]
        %v3970 = vld [vmem:[#allocation4 + $0x218] sm:$0xff]
        %v3971 = vld [vmem:[#allocation4 + $0x220] sm:$0xff]
        %v3972 = vld [vmem:[#allocation4 + $0x228] sm:$0xff]
        %v3973 = vld [vmem:[#allocation4 + $0x230] sm:$0xff]
        %v3974 = vld [vmem:[#allocation4 + $0x238] sm:$0xff]
        %v3975 = vld [vmem:[#allocation4 + $0x240] sm:$0xff]
        %v3976 = vld [vmem:[#allocation4 + $0x248] sm:$0xff]
        %v3977 = vld [vmem:[#allocation4 + $0x250] sm:$0xff]
        %v3978 = vld [vmem:[#allocation4 + $0x258] sm:$0xff]
        %v3979 = vld [vmem:[#allocation4 + $0x260] sm:$0xff]
        %v3980 = vld [vmem:[#allocation4 + $0x268] sm:$0xff]
        %v3981 = vld [vmem:[#allocation4 + $0x270] sm:$0xff]
        %v3982 = vld [vmem:[#allocation4 + $0x278] sm:$0xff]
        %v3983 = vld [vmem:[#allocation4 + $0x280] sm:$0xff]
        %v3984 = vld [vmem:[#allocation4 + $0x288] sm:$0xff]
        %v3985 = vld [vmem:[#allocation4 + $0x290] sm:$0xff]
        %v3986 = vld [vmem:[#allocation4 + $0x298] sm:$0xff]
        %v3987 = vld [vmem:[#allocation4 + $0x2a0] sm:$0xff]
        %v3988 = vld [vmem:[#allocation4 + $0x2a8] sm:$0xff]
        %v3989 = vld [vmem:[#allocation4 + $0x2b0] sm:$0xff]
        %v3990 = vld [vmem:[#allocation4 + $0x2b8] sm:$0xff]
        %v3991 = vld [vmem:[#allocation4 + $0x2c0] sm:$0xff]
        %v3992 = vld [vmem:[#allocation4 + $0x2c8] sm:$0xff]
        %v3993 = vld [vmem:[#allocation4 + $0x2d0] sm:$0xff]
        %v3994 = vld [vmem:[#allocation4 + $0x2d8] sm:$0xff]
        %v3995 = vld [vmem:[#allocation4 + $0x2e0] sm:$0xff]
        %v3996 = vld [vmem:[#allocation4 + $0x2e8] sm:$0xff]
        %v3997 = vld [vmem:[#allocation4 + $0x2f0] sm:$0xff]
        %v3998 = vld [vmem:[#allocation4 + $0x2f8] sm:$0xff]
        %v3999 = vld [vmem:[#allocation4 + $0x300] sm:$0xff]
        %v4000 = vld [vmem:[#allocation4 + $0x308] sm:$0xff]
        %v4001 = vld [vmem:[#allocation4 + $0x310] sm:$0xff]
        %v4002 = vld [vmem:[#allocation4 + $0x318] sm:$0xff]
        %v4003 = vld [vmem:[#allocation4 + $0x320] sm:$0xff]
        %v4004 = vld [vmem:[#allocation4 + $0x328] sm:$0xff]
        %v4005 = vld [vmem:[#allocation4 + $0x330] sm:$0xff]
        %v4006 = vld [vmem:[#allocation4 + $0x338] sm:$0xff]
        %v4007 = vld [vmem:[#allocation4 + $0x340] sm:$0xff]
        %v4008 = vld [vmem:[#allocation4 + $0x348] sm:$0xff]
        %v4009 = vld [vmem:[#allocation4 + $0x350] sm:$0xff]
        %v4010 = vld [vmem:[#allocation4 + $0x358] sm:$0xff]
        %v4011 = vld [vmem:[#allocation4 + $0x360] sm:$0xff]
        %v4012 = vld [vmem:[#allocation4 + $0x368] sm:$0xff]
        %v4013 = vld [vmem:[#allocation4 + $0x370] sm:$0xff]
        %v4014 = vld [vmem:[#allocation4 + $0x378] sm:$0xff]
        %v4015 = vld [vmem:[#allocation4 + $0x380] sm:$0xff]
        %v4016 = vld [vmem:[#allocation4 + $0x388] sm:$0xff]
        %v4017 = vld [vmem:[#allocation4 + $0x390] sm:$0xff]
        %v4018 = vld [vmem:[#allocation4 + $0x398] sm:$0xff]
        %v4019 = vld [vmem:[#allocation4 + $0x3a0] sm:$0xff]
        %v4020 = vld [vmem:[#allocation4 + $0x3a8] sm:$0xff]
        %v4021 = vld [vmem:[#allocation4 + $0x3b0] sm:$0xff]
        %v4022 = vld [vmem:[#allocation4 + $0x3b8] sm:$0xff]
        %v4023 = vld [vmem:[#allocation4 + $0x3c0] sm:$0xff]
        %v4024 = vld [vmem:[#allocation4 + $0x3c8] sm:$0xff]
        %v4025 = vld [vmem:[#allocation4 + $0x3d0] sm:$0xff]
        %v4026 = vld [vmem:[#allocation4 + $0x3d8] sm:$0xff]
        %v4027 = vld [vmem:[#allocation4 + $0x3e0] sm:$0xff]
        %v4028 = vld [vmem:[#allocation4 + $0x3e8] sm:$0xff]
        %v4029 = vld [vmem:[#allocation4 + $0x3f0] sm:$0xff]
        %v4030 = vld [vmem:[#allocation4 + $0x3f8] sm:$0xff]
        %v4031 = vpack.c.bf16 %v3907, %v3903
        %v4032 = vpack.c.bf16 %v3908, %v3904
        %v4033 = vpack.c.bf16 %v3909, %v3905
        %v4034 = vpack.c.bf16 %v3910, %v3906
        %v4035 = vpack.c.bf16 %v3915, %v3911
        %v4036 = vpack.c.bf16 %v3916, %v3912
        %v4037 = vpack.c.bf16 %v3917, %v3913
        %v4038 = vpack.c.bf16 %v3918, %v3914
        %v4039 = vpack.c.bf16 %v3923, %v3919
        %v4040 = vpack.c.bf16 %v3924, %v3920
        %v4041 = vpack.c.bf16 %v3925, %v3921
        %v4042 = vpack.c.bf16 %v3926, %v3922
        %v4043 = vpack.c.bf16 %v3931, %v3927
        %v4044 = vpack.c.bf16 %v3932, %v3928
        %v4045 = vpack.c.bf16 %v3933, %v3929
        %v4046 = vpack.c.bf16 %v3934, %v3930
        %v4047 = vpack.c.bf16 %v3939, %v3935
        %v4048 = vpack.c.bf16 %v3940, %v3936
        %v4049 = vpack.c.bf16 %v3941, %v3937
        %v4050 = vpack.c.bf16 %v3942, %v3938
        %v4051 = vpack.c.bf16 %v3947, %v3943
        %v4052 = vpack.c.bf16 %v3948, %v3944
        %v4053 = vpack.c.bf16 %v3949, %v3945
        %v4054 = vpack.c.bf16 %v3950, %v3946
        %v4055 = vpack.c.bf16 %v3955, %v3951
        %v4056 = vpack.c.bf16 %v3956, %v3952
        %v4057 = vpack.c.bf16 %v3957, %v3953
        %v4058 = vpack.c.bf16 %v3958, %v3954
        %v4059 = vpack.c.bf16 %v3963, %v3959
        %v4060 = vpack.c.bf16 %v3964, %v3960
        %v4061 = vpack.c.bf16 %v3965, %v3961
        %v4062 = vpack.c.bf16 %v3966, %v3962
        %v4063 = vpack.c.bf16 %v3971, %v3967
        %v4064 = vpack.c.bf16 %v3972, %v3968
        %v4065 = vpack.c.bf16 %v3973, %v3969
        %v4066 = vpack.c.bf16 %v3974, %v3970
        %v4067 = vpack.c.bf16 %v3979, %v3975
        %v4068 = vpack.c.bf16 %v3980, %v3976
        %v4069 = vpack.c.bf16 %v3981, %v3977
        %v4070 = vpack.c.bf16 %v3982, %v3978
        %v4071 = vpack.c.bf16 %v3987, %v3983
        %v4072 = vpack.c.bf16 %v3988, %v3984
        %v4073 = vpack.c.bf16 %v3989, %v3985
        %v4074 = vpack.c.bf16 %v3990, %v3986
        %v4075 = vpack.c.bf16 %v3995, %v3991
        %v4076 = vpack.c.bf16 %v3996, %v3992
        %v4077 = vpack.c.bf16 %v3997, %v3993
        %v4078 = vpack.c.bf16 %v3998, %v3994
        %v4079 = vpack.c.bf16 %v4003, %v3999
        %v4080 = vpack.c.bf16 %v4004, %v4000
        %v4081 = vpack.c.bf16 %v4005, %v4001
        %v4082 = vpack.c.bf16 %v4006, %v4002
        %v4083 = vpack.c.bf16 %v4011, %v4007
        %v4084 = vpack.c.bf16 %v4012, %v4008
        %v4085 = vpack.c.bf16 %v4013, %v4009
        %v4086 = vpack.c.bf16 %v4014, %v4010
        %v4087 = vpack.c.bf16 %v4019, %v4015
        %v4088 = vpack.c.bf16 %v4020, %v4016
        %v4089 = vpack.c.bf16 %v4021, %v4017
        %v4090 = vpack.c.bf16 %v4022, %v4018
        %v4091 = vpack.c.bf16 %v4027, %v4023
        %v4092 = vpack.c.bf16 %v4028, %v4024
        %v4093 = vpack.c.bf16 %v4029, %v4025
        %v4094 = vpack.c.bf16 %v4030, %v4026
        %4095 = vst [vmem:[#allocation5] sm:$0xff] %v4031
        %4096 = vst [vmem:[#allocation5 + $0x8] sm:$0xff] %v4032
        %4097 = vst [vmem:[#allocation5 + $0x10] sm:$0xff] %v4033
        %4098 = vst [vmem:[#allocation5 + $0x18] sm:$0xff] %v4034
        %4099 = vst [vmem:[#allocation5 + $0x20] sm:$0xff] %v4035
        %4100 = vst [vmem:[#allocation5 + $0x28] sm:$0xff] %v4036
        %4101 = vst [vmem:[#allocation5 + $0x30] sm:$0xff] %v4037
        %4102 = vst [vmem:[#allocation5 + $0x38] sm:$0xff] %v4038
        %4103 = vst [vmem:[#allocation5 + $0x40] sm:$0xff] %v4039
        %4104 = vst [vmem:[#allocation5 + $0x48] sm:$0xff] %v4040
        %4105 = vst [vmem:[#allocation5 + $0x50] sm:$0xff] %v4041
        %4106 = vst [vmem:[#allocation5 + $0x58] sm:$0xff] %v4042
        %4107 = vst [vmem:[#allocation5 + $0x60] sm:$0xff] %v4043
        %4108 = vst [vmem:[#allocation5 + $0x68] sm:$0xff] %v4044
        %4109 = vst [vmem:[#allocation5 + $0x70] sm:$0xff] %v4045
        %4110 = vst [vmem:[#allocation5 + $0x78] sm:$0xff] %v4046
        %4111 = vst [vmem:[#allocation5 + $0x80] sm:$0xff] %v4047
        %4112 = vst [vmem:[#allocation5 + $0x88] sm:$0xff] %v4048
        %4113 = vst [vmem:[#allocation5 + $0x90] sm:$0xff] %v4049
        %4114 = vst [vmem:[#allocation5 + $0x98] sm:$0xff] %v4050
        %4115 = vst [vmem:[#allocation5 + $0xa0] sm:$0xff] %v4051
        %4116 = vst [vmem:[#allocation5 + $0xa8] sm:$0xff] %v4052
        %4117 = vst [vmem:[#allocation5 + $0xb0] sm:$0xff] %v4053
        %4118 = vst [vmem:[#allocation5 + $0xb8] sm:$0xff] %v4054
        %4119 = vst [vmem:[#allocation5 + $0xc0] sm:$0xff] %v4055
        %4120 = vst [vmem:[#allocation5 + $0xc8] sm:$0xff] %v4056
        %4121 = vst [vmem:[#allocation5 + $0xd0] sm:$0xff] %v4057
        %4122 = vst [vmem:[#allocation5 + $0xd8] sm:$0xff] %v4058
        %4123 = vst [vmem:[#allocation5 + $0xe0] sm:$0xff] %v4059
        %4124 = vst [vmem:[#allocation5 + $0xe8] sm:$0xff] %v4060
        %4125 = vst [vmem:[#allocation5 + $0xf0] sm:$0xff] %v4061
        %4126 = vst [vmem:[#allocation5 + $0xf8] sm:$0xff] %v4062
        %4127 = vst [vmem:[#allocation5 + $0x100] sm:$0xff] %v4063
        %4128 = vst [vmem:[#allocation5 + $0x108] sm:$0xff] %v4064
        %4129 = vst [vmem:[#allocation5 + $0x110] sm:$0xff] %v4065
        %4130 = vst [vmem:[#allocation5 + $0x118] sm:$0xff] %v4066
        %4131 = vst [vmem:[#allocation5 + $0x120] sm:$0xff] %v4067
        %4132 = vst [vmem:[#allocation5 + $0x128] sm:$0xff] %v4068
        %4133 = vst [vmem:[#allocation5 + $0x130] sm:$0xff] %v4069
        %4134 = vst [vmem:[#allocation5 + $0x138] sm:$0xff] %v4070
        %4135 = vst [vmem:[#allocation5 + $0x140] sm:$0xff] %v4071
        %4136 = vst [vmem:[#allocation5 + $0x148] sm:$0xff] %v4072
        %4137 = vst [vmem:[#allocation5 + $0x150] sm:$0xff] %v4073
        %4138 = vst [vmem:[#allocation5 + $0x158] sm:$0xff] %v4074
        %4139 = vst [vmem:[#allocation5 + $0x160] sm:$0xff] %v4075
        %4140 = vst [vmem:[#allocation5 + $0x168] sm:$0xff] %v4076
        %4141 = vst [vmem:[#allocation5 + $0x170] sm:$0xff] %v4077
        %4142 = vst [vmem:[#allocation5 + $0x178] sm:$0xff] %v4078
        %4143 = vst [vmem:[#allocation5 + $0x180] sm:$0xff] %v4079
        %4144 = vst [vmem:[#allocation5 + $0x188] sm:$0xff] %v4080
        %4145 = vst [vmem:[#allocation5 + $0x190] sm:$0xff] %v4081
        %4146 = vst [vmem:[#allocation5 + $0x198] sm:$0xff] %v4082
        %4147 = vst [vmem:[#allocation5 + $0x1a0] sm:$0xff] %v4083
        %4148 = vst [vmem:[#allocation5 + $0x1a8] sm:$0xff] %v4084
        %4149 = vst [vmem:[#allocation5 + $0x1b0] sm:$0xff] %v4085
        %4150 = vst [vmem:[#allocation5 + $0x1b8] sm:$0xff] %v4086
        %4151 = vst [vmem:[#allocation5 + $0x1c0] sm:$0xff] %v4087
        %4152 = vst [vmem:[#allocation5 + $0x1c8] sm:$0xff] %v4088
        %4153 = vst [vmem:[#allocation5 + $0x1d0] sm:$0xff] %v4089
        %4154 = vst [vmem:[#allocation5 + $0x1d8] sm:$0xff] %v4090
        %4155 = vst [vmem:[#allocation5 + $0x1e0] sm:$0xff] %v4091
        %4156 = vst [vmem:[#allocation5 + $0x1e8] sm:$0xff] %v4092
        %4157 = vst [vmem:[#allocation5 + $0x1f0] sm:$0xff] %v4093
        %4158 = vst [vmem:[#allocation5 + $0x1f8] sm:$0xff] %v4094
        %p4159 = scmp.eq.s32.totalorder %s25, 2
        // Predicated region
        $region106: #{graph_cnn_forward.1} parent=59 // pred_check
          %p4160 = pneg %p4159
        $region107: #{graph_cnn_forward.1} parent=59 // pred_check_branch
          %4162 = sbr.rel (%p4160) target = $region109
        $region108: #{graph_cnn_forward.1} parent=59 // pred_region
          %v4163 = vld [vmem:[#allocation4] sm:$0xff]
          %v4164 = vld [vmem:[#allocation4 + $0x8] sm:$0xff]
          %v4165 = vld [vmem:[#allocation4 + $0x10] sm:$0xff]
          %v4166 = vld [vmem:[#allocation4 + $0x18] sm:$0xff]
          %v4167 = vld [vmem:[#allocation4 + $0x20] sm:$0xff]
          %v4168 = vld [vmem:[#allocation4 + $0x28] sm:$0xff]
          %v4169 = vld [vmem:[#allocation4 + $0x30] sm:$0xff]
          %v4170 = vld [vmem:[#allocation4 + $0x38] sm:$0xff]
          %v4171 = vld [vmem:[#allocation4 + $0x40] sm:$0xff]
          %v4172 = vld [vmem:[#allocation4 + $0x48] sm:$0xff]
          %v4173 = vld [vmem:[#allocation4 + $0x50] sm:$0xff]
          %v4174 = vld [vmem:[#allocation4 + $0x58] sm:$0xff]
          %v4175 = vld [vmem:[#allocation4 + $0x60] sm:$0xff]
          %v4176 = vld [vmem:[#allocation4 + $0x68] sm:$0xff]
          %v4177 = vld [vmem:[#allocation4 + $0x70] sm:$0xff]
          %v4178 = vld [vmem:[#allocation4 + $0x78] sm:$0xff]
          %v4179 = vld [vmem:[#allocation4 + $0x80] sm:$0xff]
          %v4180 = vld [vmem:[#allocation4 + $0x88] sm:$0xff]
          %v4181 = vld [vmem:[#allocation4 + $0x90] sm:$0xff]
          %v4182 = vld [vmem:[#allocation4 + $0x98] sm:$0xff]
          %v4183 = vld [vmem:[#allocation4 + $0xa0] sm:$0xff]
          %v4184 = vld [vmem:[#allocation4 + $0xa8] sm:$0xff]
          %v4185 = vld [vmem:[#allocation4 + $0xb0] sm:$0xff]
          %v4186 = vld [vmem:[#allocation4 + $0xb8] sm:$0xff]
          %v4187 = vld [vmem:[#allocation4 + $0xc0] sm:$0xff]
          %v4188 = vld [vmem:[#allocation4 + $0xc8] sm:$0xff]
          %v4189 = vld [vmem:[#allocation4 + $0xd0] sm:$0xff]
          %v4190 = vld [vmem:[#allocation4 + $0xd8] sm:$0xff]
          %v4191 = vld [vmem:[#allocation4 + $0xe0] sm:$0xff]
          %v4192 = vld [vmem:[#allocation4 + $0xe8] sm:$0xff]
          %v4193 = vld [vmem:[#allocation4 + $0xf0] sm:$0xff]
          %v4194 = vld [vmem:[#allocation4 + $0xf8] sm:$0xff]
          %v4195 = vld [vmem:[#allocation4 + $0x100] sm:$0xff]
          %v4196 = vld [vmem:[#allocation4 + $0x108] sm:$0xff]
          %v4197 = vld [vmem:[#allocation4 + $0x110] sm:$0xff]
          %v4198 = vld [vmem:[#allocation4 + $0x118] sm:$0xff]
          %v4199 = vld [vmem:[#allocation4 + $0x120] sm:$0xff]
          %v4200 = vld [vmem:[#allocation4 + $0x128] sm:$0xff]
          %v4201 = vld [vmem:[#allocation4 + $0x130] sm:$0xff]
          %v4202 = vld [vmem:[#allocation4 + $0x138] sm:$0xff]
          %v4203 = vld [vmem:[#allocation4 + $0x140] sm:$0xff]
          %v4204 = vld [vmem:[#allocation4 + $0x148] sm:$0xff]
          %v4205 = vld [vmem:[#allocation4 + $0x150] sm:$0xff]
          %v4206 = vld [vmem:[#allocation4 + $0x158] sm:$0xff]
          %v4207 = vld [vmem:[#allocation4 + $0x160] sm:$0xff]
          %v4208 = vld [vmem:[#allocation4 + $0x168] sm:$0xff]
          %v4209 = vld [vmem:[#allocation4 + $0x170] sm:$0xff]
          %v4210 = vld [vmem:[#allocation4 + $0x178] sm:$0xff]
          %v4211 = vld [vmem:[#allocation4 + $0x180] sm:$0xff]
          %v4212 = vld [vmem:[#allocation4 + $0x188] sm:$0xff]
          %v4213 = vld [vmem:[#allocation4 + $0x190] sm:$0xff]
          %v4214 = vld [vmem:[#allocation4 + $0x198] sm:$0xff]
          %v4215 = vld [vmem:[#allocation4 + $0x1a0] sm:$0xff]
          %v4216 = vld [vmem:[#allocation4 + $0x1a8] sm:$0xff]
          %v4217 = vld [vmem:[#allocation4 + $0x1b0] sm:$0xff]
          %v4218 = vld [vmem:[#allocation4 + $0x1b8] sm:$0xff]
          %v4219 = vld [vmem:[#allocation4 + $0x1c0] sm:$0xff]
          %v4220 = vld [vmem:[#allocation4 + $0x1c8] sm:$0xff]
          %v4221 = vld [vmem:[#allocation4 + $0x1d0] sm:$0xff]
          %v4222 = vld [vmem:[#allocation4 + $0x1d8] sm:$0xff]
          %v4223 = vld [vmem:[#allocation4 + $0x1e0] sm:$0xff]
          %v4224 = vld [vmem:[#allocation4 + $0x1e8] sm:$0xff]
          %v4225 = vld [vmem:[#allocation4 + $0x1f0] sm:$0xff]
          %v4226 = vld [vmem:[#allocation4 + $0x1f8] sm:$0xff]
          %v4227 = vld [vmem:[#allocation4 + $0x200] sm:$0xff]
          %v4228 = vld [vmem:[#allocation4 + $0x208] sm:$0xff]
          %v4229 = vld [vmem:[#allocation4 + $0x210] sm:$0xff]
          %v4230 = vld [vmem:[#allocation4 + $0x218] sm:$0xff]
          %v4231 = vld [vmem:[#allocation4 + $0x220] sm:$0xff]
          %v4232 = vld [vmem:[#allocation4 + $0x228] sm:$0xff]
          %v4233 = vld [vmem:[#allocation4 + $0x230] sm:$0xff]
          %v4234 = vld [vmem:[#allocation4 + $0x238] sm:$0xff]
          %v4235 = vld [vmem:[#allocation4 + $0x240] sm:$0xff]
          %v4236 = vld [vmem:[#allocation4 + $0x248] sm:$0xff]
          %v4237 = vld [vmem:[#allocation4 + $0x250] sm:$0xff]
          %v4238 = vld [vmem:[#allocation4 + $0x258] sm:$0xff]
          %v4239 = vld [vmem:[#allocation4 + $0x260] sm:$0xff]
          %v4240 = vld [vmem:[#allocation4 + $0x268] sm:$0xff]
          %v4241 = vld [vmem:[#allocation4 + $0x270] sm:$0xff]
          %v4242 = vld [vmem:[#allocation4 + $0x278] sm:$0xff]
          %v4243 = vld [vmem:[#allocation4 + $0x280] sm:$0xff]
          %v4244 = vld [vmem:[#allocation4 + $0x288] sm:$0xff]
          %v4245 = vld [vmem:[#allocation4 + $0x290] sm:$0xff]
          %v4246 = vld [vmem:[#allocation4 + $0x298] sm:$0xff]
          %v4247 = vld [vmem:[#allocation4 + $0x2a0] sm:$0xff]
          %v4248 = vld [vmem:[#allocation4 + $0x2a8] sm:$0xff]
          %v4249 = vld [vmem:[#allocation4 + $0x2b0] sm:$0xff]
          %v4250 = vld [vmem:[#allocation4 + $0x2b8] sm:$0xff]
          %v4251 = vld [vmem:[#allocation4 + $0x2c0] sm:$0xff]
          %v4252 = vld [vmem:[#allocation4 + $0x2c8] sm:$0xff]
          %v4253 = vld [vmem:[#allocation4 + $0x2d0] sm:$0xff]
          %v4254 = vld [vmem:[#allocation4 + $0x2d8] sm:$0xff]
          %v4255 = vld [vmem:[#allocation4 + $0x2e0] sm:$0xff]
          %v4256 = vld [vmem:[#allocation4 + $0x2e8] sm:$0xff]
          %v4257 = vld [vmem:[#allocation4 + $0x2f0] sm:$0xff]
          %v4258 = vld [vmem:[#allocation4 + $0x2f8] sm:$0xff]
          %v4259 = vld [vmem:[#allocation4 + $0x300] sm:$0xff]
          %v4260 = vld [vmem:[#allocation4 + $0x308] sm:$0xff]
          %v4261 = vld [vmem:[#allocation4 + $0x310] sm:$0xff]
          %v4262 = vld [vmem:[#allocation4 + $0x318] sm:$0xff]
          %v4263 = vld [vmem:[#allocation4 + $0x320] sm:$0xff]
          %v4264 = vld [vmem:[#allocation4 + $0x328] sm:$0xff]
          %v4265 = vld [vmem:[#allocation4 + $0x330] sm:$0xff]
          %v4266 = vld [vmem:[#allocation4 + $0x338] sm:$0xff]
          %v4267 = vld [vmem:[#allocation4 + $0x340] sm:$0xff]
          %v4268 = vld [vmem:[#allocation4 + $0x348] sm:$0xff]
          %v4269 = vld [vmem:[#allocation4 + $0x350] sm:$0xff]
          %v4270 = vld [vmem:[#allocation4 + $0x358] sm:$0xff]
          %v4271 = vld [vmem:[#allocation4 + $0x360] sm:$0xff]
          %v4272 = vld [vmem:[#allocation4 + $0x368] sm:$0xff]
          %v4273 = vld [vmem:[#allocation4 + $0x370] sm:$0xff]
          %v4274 = vld [vmem:[#allocation4 + $0x378] sm:$0xff]
          %v4275 = vld [vmem:[#allocation4 + $0x380] sm:$0xff]
          %v4276 = vld [vmem:[#allocation4 + $0x388] sm:$0xff]
          %v4277 = vld [vmem:[#allocation4 + $0x390] sm:$0xff]
          %v4278 = vld [vmem:[#allocation4 + $0x398] sm:$0xff]
          %v4279 = vld [vmem:[#allocation4 + $0x3a0] sm:$0xff]
          %v4280 = vld [vmem:[#allocation4 + $0x3a8] sm:$0xff]
          %v4281 = vld [vmem:[#allocation4 + $0x3b0] sm:$0xff]
          %v4282 = vld [vmem:[#allocation4 + $0x3b8] sm:$0xff]
          %v4283 = vld [vmem:[#allocation4 + $0x3c0] sm:$0xff]
          %v4284 = vld [vmem:[#allocation4 + $0x3c8] sm:$0xff]
          %v4285 = vld [vmem:[#allocation4 + $0x3d0] sm:$0xff]
          %v4286 = vld [vmem:[#allocation4 + $0x3d8] sm:$0xff]
          %v4287 = vld [vmem:[#allocation4 + $0x3e0] sm:$0xff]
          %v4288 = vld [vmem:[#allocation4 + $0x3e8] sm:$0xff]
          %v4289 = vld [vmem:[#allocation4 + $0x3f0] sm:$0xff]
          %v4290 = vld [vmem:[#allocation4 + $0x3f8] sm:$0xff]
          %4291 = vst [vmem:[#allocation6] sm:$0xff] %v4163
          %4292 = vst [vmem:[#allocation6 + $0x8] sm:$0xff] %v4164
          %4293 = vst [vmem:[#allocation6 + $0x10] sm:$0xff] %v4165
          %4294 = vst [vmem:[#allocation6 + $0x18] sm:$0xff] %v4166
          %4295 = vst [vmem:[#allocation6 + $0x20] sm:$0xff] %v4167
          %4296 = vst [vmem:[#allocation6 + $0x28] sm:$0xff] %v4168
          %4297 = vst [vmem:[#allocation6 + $0x30] sm:$0xff] %v4169
          %4298 = vst [vmem:[#allocation6 + $0x38] sm:$0xff] %v4170
          %4299 = vst [vmem:[#allocation6 + $0x40] sm:$0xff] %v4171
          %4300 = vst [vmem:[#allocation6 + $0x48] sm:$0xff] %v4172
          %4301 = vst [vmem:[#allocation6 + $0x50] sm:$0xff] %v4173
          %4302 = vst [vmem:[#allocation6 + $0x58] sm:$0xff] %v4174
          %4303 = vst [vmem:[#allocation6 + $0x60] sm:$0xff] %v4175
          %4304 = vst [vmem:[#allocation6 + $0x68] sm:$0xff] %v4176
          %4305 = vst [vmem:[#allocation6 + $0x70] sm:$0xff] %v4177
          %4306 = vst [vmem:[#allocation6 + $0x78] sm:$0xff] %v4178
          %4307 = vst [vmem:[#allocation6 + $0x80] sm:$0xff] %v4179
          %4308 = vst [vmem:[#allocation6 + $0x88] sm:$0xff] %v4180
          %4309 = vst [vmem:[#allocation6 + $0x90] sm:$0xff] %v4181
          %4310 = vst [vmem:[#allocation6 + $0x98] sm:$0xff] %v4182
          %4311 = vst [vmem:[#allocation6 + $0xa0] sm:$0xff] %v4183
          %4312 = vst [vmem:[#allocation6 + $0xa8] sm:$0xff] %v4184
          %4313 = vst [vmem:[#allocation6 + $0xb0] sm:$0xff] %v4185
          %4314 = vst [vmem:[#allocation6 + $0xb8] sm:$0xff] %v4186
          %4315 = vst [vmem:[#allocation6 + $0xc0] sm:$0xff] %v4187
          %4316 = vst [vmem:[#allocation6 + $0xc8] sm:$0xff] %v4188
          %4317 = vst [vmem:[#allocation6 + $0xd0] sm:$0xff] %v4189
          %4318 = vst [vmem:[#allocation6 + $0xd8] sm:$0xff] %v4190
          %4319 = vst [vmem:[#allocation6 + $0xe0] sm:$0xff] %v4191
          %4320 = vst [vmem:[#allocation6 + $0xe8] sm:$0xff] %v4192
          %4321 = vst [vmem:[#allocation6 + $0xf0] sm:$0xff] %v4193
          %4322 = vst [vmem:[#allocation6 + $0xf8] sm:$0xff] %v4194
          %4323 = vst [vmem:[#allocation6 + $0x100] sm:$0xff] %v4195
          %4324 = vst [vmem:[#allocation6 + $0x108] sm:$0xff] %v4196
          %4325 = vst [vmem:[#allocation6 + $0x110] sm:$0xff] %v4197
          %4326 = vst [vmem:[#allocation6 + $0x118] sm:$0xff] %v4198
          %4327 = vst [vmem:[#allocation6 + $0x120] sm:$0xff] %v4199
          %4328 = vst [vmem:[#allocation6 + $0x128] sm:$0xff] %v4200
          %4329 = vst [vmem:[#allocation6 + $0x130] sm:$0xff] %v4201
          %4330 = vst [vmem:[#allocation6 + $0x138] sm:$0xff] %v4202
          %4331 = vst [vmem:[#allocation6 + $0x140] sm:$0xff] %v4203
          %4332 = vst [vmem:[#allocation6 + $0x148] sm:$0xff] %v4204
          %4333 = vst [vmem:[#allocation6 + $0x150] sm:$0xff] %v4205
          %4334 = vst [vmem:[#allocation6 + $0x158] sm:$0xff] %v4206
          %4335 = vst [vmem:[#allocation6 + $0x160] sm:$0xff] %v4207
          %4336 = vst [vmem:[#allocation6 + $0x168] sm:$0xff] %v4208
          %4337 = vst [vmem:[#allocation6 + $0x170] sm:$0xff] %v4209
          %4338 = vst [vmem:[#allocation6 + $0x178] sm:$0xff] %v4210
          %4339 = vst [vmem:[#allocation6 + $0x180] sm:$0xff] %v4211
          %4340 = vst [vmem:[#allocation6 + $0x188] sm:$0xff] %v4212
          %4341 = vst [vmem:[#allocation6 + $0x190] sm:$0xff] %v4213
          %4342 = vst [vmem:[#allocation6 + $0x198] sm:$0xff] %v4214
          %4343 = vst [vmem:[#allocation6 + $0x1a0] sm:$0xff] %v4215
          %4344 = vst [vmem:[#allocation6 + $0x1a8] sm:$0xff] %v4216
          %4345 = vst [vmem:[#allocation6 + $0x1b0] sm:$0xff] %v4217
          %4346 = vst [vmem:[#allocation6 + $0x1b8] sm:$0xff] %v4218
          %4347 = vst [vmem:[#allocation6 + $0x1c0] sm:$0xff] %v4219
          %4348 = vst [vmem:[#allocation6 + $0x1c8] sm:$0xff] %v4220
          %4349 = vst [vmem:[#allocation6 + $0x1d0] sm:$0xff] %v4221
          %4350 = vst [vmem:[#allocation6 + $0x1d8] sm:$0xff] %v4222
          %4351 = vst [vmem:[#allocation6 + $0x1e0] sm:$0xff] %v4223
          %4352 = vst [vmem:[#allocation6 + $0x1e8] sm:$0xff] %v4224
          %4353 = vst [vmem:[#allocation6 + $0x1f0] sm:$0xff] %v4225
          %4354 = vst [vmem:[#allocation6 + $0x1f8] sm:$0xff] %v4226
          %4355 = vst [vmem:[#allocation6 + $0x200] sm:$0xff] %v4227
          %4356 = vst [vmem:[#allocation6 + $0x208] sm:$0xff] %v4228
          %4357 = vst [vmem:[#allocation6 + $0x210] sm:$0xff] %v4229
          %4358 = vst [vmem:[#allocation6 + $0x218] sm:$0xff] %v4230
          %4359 = vst [vmem:[#allocation6 + $0x220] sm:$0xff] %v4231
          %4360 = vst [vmem:[#allocation6 + $0x228] sm:$0xff] %v4232
          %4361 = vst [vmem:[#allocation6 + $0x230] sm:$0xff] %v4233
          %4362 = vst [vmem:[#allocation6 + $0x238] sm:$0xff] %v4234
          %4363 = vst [vmem:[#allocation6 + $0x240] sm:$0xff] %v4235
          %4364 = vst [vmem:[#allocation6 + $0x248] sm:$0xff] %v4236
          %4365 = vst [vmem:[#allocation6 + $0x250] sm:$0xff] %v4237
          %4366 = vst [vmem:[#allocation6 + $0x258] sm:$0xff] %v4238
          %4367 = vst [vmem:[#allocation6 + $0x260] sm:$0xff] %v4239
          %4368 = vst [vmem:[#allocation6 + $0x268] sm:$0xff] %v4240
          %4369 = vst [vmem:[#allocation6 + $0x270] sm:$0xff] %v4241
          %4370 = vst [vmem:[#allocation6 + $0x278] sm:$0xff] %v4242
          %4371 = vst [vmem:[#allocation6 + $0x280] sm:$0xff] %v4243
          %4372 = vst [vmem:[#allocation6 + $0x288] sm:$0xff] %v4244
          %4373 = vst [vmem:[#allocation6 + $0x290] sm:$0xff] %v4245
          %4374 = vst [vmem:[#allocation6 + $0x298] sm:$0xff] %v4246
          %4375 = vst [vmem:[#allocation6 + $0x2a0] sm:$0xff] %v4247
          %4376 = vst [vmem:[#allocation6 + $0x2a8] sm:$0xff] %v4248
          %4377 = vst [vmem:[#allocation6 + $0x2b0] sm:$0xff] %v4249
          %4378 = vst [vmem:[#allocation6 + $0x2b8] sm:$0xff] %v4250
          %4379 = vst [vmem:[#allocation6 + $0x2c0] sm:$0xff] %v4251
          %4380 = vst [vmem:[#allocation6 + $0x2c8] sm:$0xff] %v4252
          %4381 = vst [vmem:[#allocation6 + $0x2d0] sm:$0xff] %v4253
          %4382 = vst [vmem:[#allocation6 + $0x2d8] sm:$0xff] %v4254
          %4383 = vst [vmem:[#allocation6 + $0x2e0] sm:$0xff] %v4255
          %4384 = vst [vmem:[#allocation6 + $0x2e8] sm:$0xff] %v4256
          %4385 = vst [vmem:[#allocation6 + $0x2f0] sm:$0xff] %v4257
          %4386 = vst [vmem:[#allocation6 + $0x2f8] sm:$0xff] %v4258
          %4387 = vst [vmem:[#allocation6 + $0x300] sm:$0xff] %v4259
          %4388 = vst [vmem:[#allocation6 + $0x308] sm:$0xff] %v4260
          %4389 = vst [vmem:[#allocation6 + $0x310] sm:$0xff] %v4261
          %4390 = vst [vmem:[#allocation6 + $0x318] sm:$0xff] %v4262
          %4391 = vst [vmem:[#allocation6 + $0x320] sm:$0xff] %v4263
          %4392 = vst [vmem:[#allocation6 + $0x328] sm:$0xff] %v4264
          %4393 = vst [vmem:[#allocation6 + $0x330] sm:$0xff] %v4265
          %4394 = vst [vmem:[#allocation6 + $0x338] sm:$0xff] %v4266
          %4395 = vst [vmem:[#allocation6 + $0x340] sm:$0xff] %v4267
          %4396 = vst [vmem:[#allocation6 + $0x348] sm:$0xff] %v4268
          %4397 = vst [vmem:[#allocation6 + $0x350] sm:$0xff] %v4269
          %4398 = vst [vmem:[#allocation6 + $0x358] sm:$0xff] %v4270
          %4399 = vst [vmem:[#allocation6 + $0x360] sm:$0xff] %v4271
          %4400 = vst [vmem:[#allocation6 + $0x368] sm:$0xff] %v4272
          %4401 = vst [vmem:[#allocation6 + $0x370] sm:$0xff] %v4273
          %4402 = vst [vmem:[#allocation6 + $0x378] sm:$0xff] %v4274
          %4403 = vst [vmem:[#allocation6 + $0x380] sm:$0xff] %v4275
          %4404 = vst [vmem:[#allocation6 + $0x388] sm:$0xff] %v4276
          %4405 = vst [vmem:[#allocation6 + $0x390] sm:$0xff] %v4277
          %4406 = vst [vmem:[#allocation6 + $0x398] sm:$0xff] %v4278
          %4407 = vst [vmem:[#allocation6 + $0x3a0] sm:$0xff] %v4279
          %4408 = vst [vmem:[#allocation6 + $0x3a8] sm:$0xff] %v4280
          %4409 = vst [vmem:[#allocation6 + $0x3b0] sm:$0xff] %v4281
          %4410 = vst [vmem:[#allocation6 + $0x3b8] sm:$0xff] %v4282
          %4411 = vst [vmem:[#allocation6 + $0x3c0] sm:$0xff] %v4283
          %4412 = vst [vmem:[#allocation6 + $0x3c8] sm:$0xff] %v4284
          %4413 = vst [vmem:[#allocation6 + $0x3d0] sm:$0xff] %v4285
          %4414 = vst [vmem:[#allocation6 + $0x3d8] sm:$0xff] %v4286
          %4415 = vst [vmem:[#allocation6 + $0x3e0] sm:$0xff] %v4287
          %4416 = vst [vmem:[#allocation6 + $0x3e8] sm:$0xff] %v4288
          %4417 = vst [vmem:[#allocation6 + $0x3f0] sm:$0xff] %v4289
          %4418 = vst [vmem:[#allocation6 + $0x3f8] sm:$0xff] %v4290
          %v4419 = vld [vmem:[#allocation5] sm:$0xff]
          %v4420 = vld [vmem:[#allocation5 + $0x8] sm:$0xff]
          %v4421 = vld [vmem:[#allocation5 + $0x10] sm:$0xff]
          %v4422 = vld [vmem:[#allocation5 + $0x18] sm:$0xff]
          %v4423 = vld [vmem:[#allocation5 + $0x20] sm:$0xff]
          %v4424 = vld [vmem:[#allocation5 + $0x28] sm:$0xff]
          %v4425 = vld [vmem:[#allocation5 + $0x30] sm:$0xff]
          %v4426 = vld [vmem:[#allocation5 + $0x38] sm:$0xff]
          %v4427 = vld [vmem:[#allocation5 + $0x40] sm:$0xff]
          %v4428 = vld [vmem:[#allocation5 + $0x48] sm:$0xff]
          %v4429 = vld [vmem:[#allocation5 + $0x50] sm:$0xff]
          %v4430 = vld [vmem:[#allocation5 + $0x58] sm:$0xff]
          %v4431 = vld [vmem:[#allocation5 + $0x60] sm:$0xff]
          %v4432 = vld [vmem:[#allocation5 + $0x68] sm:$0xff]
          %v4433 = vld [vmem:[#allocation5 + $0x70] sm:$0xff]
          %v4434 = vld [vmem:[#allocation5 + $0x78] sm:$0xff]
          %v4435 = vld [vmem:[#allocation5 + $0x80] sm:$0xff]
          %v4436 = vld [vmem:[#allocation5 + $0x88] sm:$0xff]
          %v4437 = vld [vmem:[#allocation5 + $0x90] sm:$0xff]
          %v4438 = vld [vmem:[#allocation5 + $0x98] sm:$0xff]
          %v4439 = vld [vmem:[#allocation5 + $0xa0] sm:$0xff]
          %v4440 = vld [vmem:[#allocation5 + $0xa8] sm:$0xff]
          %v4441 = vld [vmem:[#allocation5 + $0xb0] sm:$0xff]
          %v4442 = vld [vmem:[#allocation5 + $0xb8] sm:$0xff]
          %v4443 = vld [vmem:[#allocation5 + $0xc0] sm:$0xff]
          %v4444 = vld [vmem:[#allocation5 + $0xc8] sm:$0xff]
          %v4445 = vld [vmem:[#allocation5 + $0xd0] sm:$0xff]
          %v4446 = vld [vmem:[#allocation5 + $0xd8] sm:$0xff]
          %v4447 = vld [vmem:[#allocation5 + $0xe0] sm:$0xff]
          %v4448 = vld [vmem:[#allocation5 + $0xe8] sm:$0xff]
          %v4449 = vld [vmem:[#allocation5 + $0xf0] sm:$0xff]
          %v4450 = vld [vmem:[#allocation5 + $0xf8] sm:$0xff]
          %v4451 = vld [vmem:[#allocation5 + $0x100] sm:$0xff]
          %v4452 = vld [vmem:[#allocation5 + $0x108] sm:$0xff]
          %v4453 = vld [vmem:[#allocation5 + $0x110] sm:$0xff]
          %v4454 = vld [vmem:[#allocation5 + $0x118] sm:$0xff]
          %v4455 = vld [vmem:[#allocation5 + $0x120] sm:$0xff]
          %v4456 = vld [vmem:[#allocation5 + $0x128] sm:$0xff]
          %v4457 = vld [vmem:[#allocation5 + $0x130] sm:$0xff]
          %v4458 = vld [vmem:[#allocation5 + $0x138] sm:$0xff]
          %v4459 = vld [vmem:[#allocation5 + $0x140] sm:$0xff]
          %v4460 = vld [vmem:[#allocation5 + $0x148] sm:$0xff]
          %v4461 = vld [vmem:[#allocation5 + $0x150] sm:$0xff]
          %v4462 = vld [vmem:[#allocation5 + $0x158] sm:$0xff]
          %v4463 = vld [vmem:[#allocation5 + $0x160] sm:$0xff]
          %v4464 = vld [vmem:[#allocation5 + $0x168] sm:$0xff]
          %v4465 = vld [vmem:[#allocation5 + $0x170] sm:$0xff]
          %v4466 = vld [vmem:[#allocation5 + $0x178] sm:$0xff]
          %v4467 = vld [vmem:[#allocation5 + $0x180] sm:$0xff]
          %v4468 = vld [vmem:[#allocation5 + $0x188] sm:$0xff]
          %v4469 = vld [vmem:[#allocation5 + $0x190] sm:$0xff]
          %v4470 = vld [vmem:[#allocation5 + $0x198] sm:$0xff]
          %v4471 = vld [vmem:[#allocation5 + $0x1a0] sm:$0xff]
          %v4472 = vld [vmem:[#allocation5 + $0x1a8] sm:$0xff]
          %v4473 = vld [vmem:[#allocation5 + $0x1b0] sm:$0xff]
          %v4474 = vld [vmem:[#allocation5 + $0x1b8] sm:$0xff]
          %v4475 = vld [vmem:[#allocation5 + $0x1c0] sm:$0xff]
          %v4476 = vld [vmem:[#allocation5 + $0x1c8] sm:$0xff]
          %v4477 = vld [vmem:[#allocation5 + $0x1d0] sm:$0xff]
          %v4478 = vld [vmem:[#allocation5 + $0x1d8] sm:$0xff]
          %v4479 = vld [vmem:[#allocation5 + $0x1e0] sm:$0xff]
          %v4480 = vld [vmem:[#allocation5 + $0x1e8] sm:$0xff]
          %v4481 = vld [vmem:[#allocation5 + $0x1f0] sm:$0xff]
          %v4482 = vld [vmem:[#allocation5 + $0x1f8] sm:$0xff]
          %v4483 = vld [vmem:[%s4] sm:$0xff]
          %v4484 = vld [vmem:[%s4 + $0x8] sm:$0xff]
          %v4485 = vld [vmem:[%s4 + $0x10] sm:$0xff]
          %v4486 = vld [vmem:[%s4 + $0x18] sm:$0xff]
          %v4487 = vld [vmem:[%s4 + $0x20] sm:$0xff]
          %v4488 = vld [vmem:[%s4 + $0x28] sm:$0xff]
          %v4489 = vld [vmem:[%s4 + $0x30] sm:$0xff]
          %v4490 = vld [vmem:[%s4 + $0x38] sm:$0xff]
          %v4491 = vld [vmem:[%s4 + $0x40] sm:$0xff]
          %v4492 = vld [vmem:[%s4 + $0x48] sm:$0xff]
          %v4493 = vld [vmem:[%s4 + $0x50] sm:$0xff]
          %v4494 = vld [vmem:[%s4 + $0x58] sm:$0xff]
          %v4495 = vld [vmem:[%s4 + $0x60] sm:$0xff]
          %v4496 = vld [vmem:[%s4 + $0x68] sm:$0xff]
          %v4497 = vld [vmem:[%s4 + $0x70] sm:$0xff]
          %v4498 = vld [vmem:[%s4 + $0x78] sm:$0xff]
          %v4499 = vld [vmem:[%s4 + $0x80] sm:$0xff]
          %v4500 = vld [vmem:[%s4 + $0x88] sm:$0xff]
          %v4501 = vld [vmem:[%s4 + $0x90] sm:$0xff]
          %v4502 = vld [vmem:[%s4 + $0x98] sm:$0xff]
          %v4503 = vld [vmem:[%s4 + $0xa0] sm:$0xff]
          %v4504 = vld [vmem:[%s4 + $0xa8] sm:$0xff]
          %v4505 = vld [vmem:[%s4 + $0xb0] sm:$0xff]
          %v4506 = vld [vmem:[%s4 + $0xb8] sm:$0xff]
          %v4507 = vld [vmem:[%s4 + $0xc0] sm:$0xff]
          %v4508 = vld [vmem:[%s4 + $0xc8] sm:$0xff]
          %v4509 = vld [vmem:[%s4 + $0xd0] sm:$0xff]
          %v4510 = vld [vmem:[%s4 + $0xd8] sm:$0xff]
          %v4511 = vld [vmem:[%s4 + $0xe0] sm:$0xff]
          %v4512 = vld [vmem:[%s4 + $0xe8] sm:$0xff]
          %v4513 = vld [vmem:[%s4 + $0xf0] sm:$0xff]
          %v4514 = vld [vmem:[%s4 + $0xf8] sm:$0xff]
          %v4515 = vld [vmem:[%s4 + $0x100] sm:$0xff]
          %v4516 = vld [vmem:[%s4 + $0x108] sm:$0xff]
          %v4517 = vld [vmem:[%s4 + $0x110] sm:$0xff]
          %v4518 = vld [vmem:[%s4 + $0x118] sm:$0xff]
          %v4519 = vld [vmem:[%s4 + $0x120] sm:$0xff]
          %v4520 = vld [vmem:[%s4 + $0x128] sm:$0xff]
          %v4521 = vld [vmem:[%s4 + $0x130] sm:$0xff]
          %v4522 = vld [vmem:[%s4 + $0x138] sm:$0xff]
          %v4523 = vld [vmem:[%s4 + $0x140] sm:$0xff]
          %v4524 = vld [vmem:[%s4 + $0x148] sm:$0xff]
          %v4525 = vld [vmem:[%s4 + $0x150] sm:$0xff]
          %v4526 = vld [vmem:[%s4 + $0x158] sm:$0xff]
          %v4527 = vld [vmem:[%s4 + $0x160] sm:$0xff]
          %v4528 = vld [vmem:[%s4 + $0x168] sm:$0xff]
          %v4529 = vld [vmem:[%s4 + $0x170] sm:$0xff]
          %v4530 = vld [vmem:[%s4 + $0x178] sm:$0xff]
          %v4531 = vld [vmem:[%s4 + $0x180] sm:$0xff]
          %v4532 = vld [vmem:[%s4 + $0x188] sm:$0xff]
          %v4533 = vld [vmem:[%s4 + $0x190] sm:$0xff]
          %v4534 = vld [vmem:[%s4 + $0x198] sm:$0xff]
          %v4535 = vld [vmem:[%s4 + $0x1a0] sm:$0xff]
          %v4536 = vld [vmem:[%s4 + $0x1a8] sm:$0xff]
          %v4537 = vld [vmem:[%s4 + $0x1b0] sm:$0xff]
          %v4538 = vld [vmem:[%s4 + $0x1b8] sm:$0xff]
          %v4539 = vld [vmem:[%s4 + $0x1c0] sm:$0xff]
          %v4540 = vld [vmem:[%s4 + $0x1c8] sm:$0xff]
          %v4541 = vld [vmem:[%s4 + $0x1d0] sm:$0xff]
          %v4542 = vld [vmem:[%s4 + $0x1d8] sm:$0xff]
          %v4543 = vld [vmem:[%s4 + $0x1e0] sm:$0xff]
          %v4544 = vld [vmem:[%s4 + $0x1e8] sm:$0xff]
          %v4545 = vld [vmem:[%s4 + $0x1f0] sm:$0xff]
          %v4546 = vld [vmem:[%s4 + $0x1f8] sm:$0xff]
          %v4547 = vld [vmem:[%s4 + $0x200] sm:$0xff]
          %v4548 = vld [vmem:[%s4 + $0x208] sm:$0xff]
          %v4549 = vld [vmem:[%s4 + $0x210] sm:$0xff]
          %v4550 = vld [vmem:[%s4 + $0x218] sm:$0xff]
          %v4551 = vld [vmem:[%s4 + $0x220] sm:$0xff]
          %v4552 = vld [vmem:[%s4 + $0x228] sm:$0xff]
          %v4553 = vld [vmem:[%s4 + $0x230] sm:$0xff]
          %v4554 = vld [vmem:[%s4 + $0x238] sm:$0xff]
          %v4555 = vld [vmem:[%s4 + $0x240] sm:$0xff]
          %v4556 = vld [vmem:[%s4 + $0x248] sm:$0xff]
          %v4557 = vld [vmem:[%s4 + $0x250] sm:$0xff]
          %v4558 = vld [vmem:[%s4 + $0x258] sm:$0xff]
          %v4559 = vld [vmem:[%s4 + $0x260] sm:$0xff]
          %v4560 = vld [vmem:[%s4 + $0x268] sm:$0xff]
          %v4561 = vld [vmem:[%s4 + $0x270] sm:$0xff]
          %v4562 = vld [vmem:[%s4 + $0x278] sm:$0xff]
          %v4563 = vld [vmem:[%s4 + $0x280] sm:$0xff]
          %v4564 = vld [vmem:[%s4 + $0x288] sm:$0xff]
          %v4565 = vld [vmem:[%s4 + $0x290] sm:$0xff]
          %v4566 = vld [vmem:[%s4 + $0x298] sm:$0xff]
          %v4567 = vld [vmem:[%s4 + $0x2a0] sm:$0xff]
          %v4568 = vld [vmem:[%s4 + $0x2a8] sm:$0xff]
          %v4569 = vld [vmem:[%s4 + $0x2b0] sm:$0xff]
          %v4570 = vld [vmem:[%s4 + $0x2b8] sm:$0xff]
          %v4571 = vld [vmem:[%s4 + $0x2c0] sm:$0xff]
          %v4572 = vld [vmem:[%s4 + $0x2c8] sm:$0xff]
          %v4573 = vld [vmem:[%s4 + $0x2d0] sm:$0xff]
          %v4574 = vld [vmem:[%s4 + $0x2d8] sm:$0xff]
          %v4575 = vld [vmem:[%s4 + $0x2e0] sm:$0xff]
          %v4576 = vld [vmem:[%s4 + $0x2e8] sm:$0xff]
          %v4577 = vld [vmem:[%s4 + $0x2f0] sm:$0xff]
          %v4578 = vld [vmem:[%s4 + $0x2f8] sm:$0xff]
          %v4579 = vld [vmem:[%s4 + $0x300] sm:$0xff]
          %v4580 = vld [vmem:[%s4 + $0x308] sm:$0xff]
          %v4581 = vld [vmem:[%s4 + $0x310] sm:$0xff]
          %v4582 = vld [vmem:[%s4 + $0x318] sm:$0xff]
          %v4583 = vld [vmem:[%s4 + $0x320] sm:$0xff]
          %v4584 = vld [vmem:[%s4 + $0x328] sm:$0xff]
          %v4585 = vld [vmem:[%s4 + $0x330] sm:$0xff]
          %v4586 = vld [vmem:[%s4 + $0x338] sm:$0xff]
          %v4587 = vld [vmem:[%s4 + $0x340] sm:$0xff]
          %v4588 = vld [vmem:[%s4 + $0x348] sm:$0xff]
          %v4589 = vld [vmem:[%s4 + $0x350] sm:$0xff]
          %v4590 = vld [vmem:[%s4 + $0x358] sm:$0xff]
          %v4591 = vld [vmem:[%s4 + $0x360] sm:$0xff]
          %v4592 = vld [vmem:[%s4 + $0x368] sm:$0xff]
          %v4593 = vld [vmem:[%s4 + $0x370] sm:$0xff]
          %v4594 = vld [vmem:[%s4 + $0x378] sm:$0xff]
          %v4595 = vld [vmem:[%s4 + $0x380] sm:$0xff]
          %v4596 = vld [vmem:[%s4 + $0x388] sm:$0xff]
          %v4597 = vld [vmem:[%s4 + $0x390] sm:$0xff]
          %v4598 = vld [vmem:[%s4 + $0x398] sm:$0xff]
          %v4599 = vld [vmem:[%s4 + $0x3a0] sm:$0xff]
          %v4600 = vld [vmem:[%s4 + $0x3a8] sm:$0xff]
          %v4601 = vld [vmem:[%s4 + $0x3b0] sm:$0xff]
          %v4602 = vld [vmem:[%s4 + $0x3b8] sm:$0xff]
          %v4603 = vld [vmem:[%s4 + $0x3c0] sm:$0xff]
          %v4604 = vld [vmem:[%s4 + $0x3c8] sm:$0xff]
          %v4605 = vld [vmem:[%s4 + $0x3d0] sm:$0xff]
          %v4606 = vld [vmem:[%s4 + $0x3d8] sm:$0xff]
          %v4607 = vld [vmem:[%s4 + $0x3e0] sm:$0xff]
          %v4608 = vld [vmem:[%s4 + $0x3e8] sm:$0xff]
          %v4609 = vld [vmem:[%s4 + $0x3f0] sm:$0xff]
          %v4610 = vld [vmem:[%s4 + $0x3f8] sm:$0xff]
          %v4739 = vunpack.c.l.b16 %v4483
          %v4740 = vunpack.c.h.b16 %v4483
          %v4741 = vunpack.c.l.b16 %v4484
          %v4742 = vunpack.c.h.b16 %v4484
          %v4743 = vunpack.c.l.b16 %v4485
          %v4744 = vunpack.c.h.b16 %v4485
          %v4745 = vunpack.c.l.b16 %v4486
          %v4746 = vunpack.c.h.b16 %v4486
          %v4747 = vunpack.c.l.b16 %v4487
          %v4748 = vunpack.c.h.b16 %v4487
          %v4749 = vunpack.c.l.b16 %v4488
          %v4750 = vunpack.c.h.b16 %v4488
          %v4751 = vunpack.c.l.b16 %v4489
          %v4752 = vunpack.c.h.b16 %v4489
          %v4753 = vunpack.c.l.b16 %v4490
          %v4754 = vunpack.c.h.b16 %v4490
          %v4755 = vunpack.c.l.b16 %v4491
          %v4756 = vunpack.c.h.b16 %v4491
          %v4757 = vunpack.c.l.b16 %v4492
          %v4758 = vunpack.c.h.b16 %v4492
          %v4759 = vunpack.c.l.b16 %v4493
          %v4760 = vunpack.c.h.b16 %v4493
          %v4761 = vunpack.c.l.b16 %v4494
          %v4762 = vunpack.c.h.b16 %v4494
          %v4763 = vunpack.c.l.b16 %v4495
          %v4764 = vunpack.c.h.b16 %v4495
          %v4765 = vunpack.c.l.b16 %v4496
          %v4766 = vunpack.c.h.b16 %v4496
          %v4767 = vunpack.c.l.b16 %v4497
          %v4768 = vunpack.c.h.b16 %v4497
          %v4769 = vunpack.c.l.b16 %v4498
          %v4770 = vunpack.c.h.b16 %v4498
          %v4771 = vunpack.c.l.b16 %v4499
          %v4772 = vunpack.c.h.b16 %v4499
          %v4773 = vunpack.c.l.b16 %v4500
          %v4774 = vunpack.c.h.b16 %v4500
          %v4775 = vunpack.c.l.b16 %v4501
          %v4776 = vunpack.c.h.b16 %v4501
          %v4777 = vunpack.c.l.b16 %v4502
          %v4778 = vunpack.c.h.b16 %v4502
          %v4779 = vunpack.c.l.b16 %v4503
          %v4780 = vunpack.c.h.b16 %v4503
          %v4781 = vunpack.c.l.b16 %v4504
          %v4782 = vunpack.c.h.b16 %v4504
          %v4783 = vunpack.c.l.b16 %v4505
          %v4784 = vunpack.c.h.b16 %v4505
          %v4785 = vunpack.c.l.b16 %v4506
          %v4786 = vunpack.c.h.b16 %v4506
          %v4787 = vunpack.c.l.b16 %v4507
          %v4788 = vunpack.c.h.b16 %v4507
          %v4789 = vunpack.c.l.b16 %v4508
          %v4790 = vunpack.c.h.b16 %v4508
          %v4791 = vunpack.c.l.b16 %v4509
          %v4792 = vunpack.c.h.b16 %v4509
          %v4793 = vunpack.c.l.b16 %v4510
          %v4794 = vunpack.c.h.b16 %v4510
          %v4795 = vunpack.c.l.b16 %v4511
          %v4796 = vunpack.c.h.b16 %v4511
          %v4797 = vunpack.c.l.b16 %v4512
          %v4798 = vunpack.c.h.b16 %v4512
          %v4799 = vunpack.c.l.b16 %v4513
          %v4800 = vunpack.c.h.b16 %v4513
          %v4801 = vunpack.c.l.b16 %v4514
          %v4802 = vunpack.c.h.b16 %v4514
          %v4803 = vunpack.c.l.b16 %v4515
          %v4804 = vunpack.c.h.b16 %v4515
          %v4805 = vunpack.c.l.b16 %v4516
          %v4806 = vunpack.c.h.b16 %v4516
          %v4807 = vunpack.c.l.b16 %v4517
          %v4808 = vunpack.c.h.b16 %v4517
          %v4809 = vunpack.c.l.b16 %v4518
          %v4810 = vunpack.c.h.b16 %v4518
          %v4811 = vunpack.c.l.b16 %v4519
          %v4812 = vunpack.c.h.b16 %v4519
          %v4813 = vunpack.c.l.b16 %v4520
          %v4814 = vunpack.c.h.b16 %v4520
          %v4815 = vunpack.c.l.b16 %v4521
          %v4816 = vunpack.c.h.b16 %v4521
          %v4817 = vunpack.c.l.b16 %v4522
          %v4818 = vunpack.c.h.b16 %v4522
          %v4819 = vunpack.c.l.b16 %v4523
          %v4820 = vunpack.c.h.b16 %v4523
          %v4821 = vunpack.c.l.b16 %v4524
          %v4822 = vunpack.c.h.b16 %v4524
          %v4823 = vunpack.c.l.b16 %v4525
          %v4824 = vunpack.c.h.b16 %v4525
          %v4825 = vunpack.c.l.b16 %v4526
          %v4826 = vunpack.c.h.b16 %v4526
          %v4827 = vunpack.c.l.b16 %v4527
          %v4828 = vunpack.c.h.b16 %v4527
          %v4829 = vunpack.c.l.b16 %v4528
          %v4830 = vunpack.c.h.b16 %v4528
          %v4831 = vunpack.c.l.b16 %v4529
          %v4832 = vunpack.c.h.b16 %v4529
          %v4833 = vunpack.c.l.b16 %v4530
          %v4834 = vunpack.c.h.b16 %v4530
          %v4835 = vunpack.c.l.b16 %v4531
          %v4836 = vunpack.c.h.b16 %v4531
          %v4837 = vunpack.c.l.b16 %v4532
          %v4838 = vunpack.c.h.b16 %v4532
          %v4839 = vunpack.c.l.b16 %v4533
          %v4840 = vunpack.c.h.b16 %v4533
          %v4841 = vunpack.c.l.b16 %v4534
          %v4842 = vunpack.c.h.b16 %v4534
          %v4843 = vunpack.c.l.b16 %v4535
          %v4844 = vunpack.c.h.b16 %v4535
          %v4845 = vunpack.c.l.b16 %v4536
          %v4846 = vunpack.c.h.b16 %v4536
          %v4847 = vunpack.c.l.b16 %v4537
          %v4848 = vunpack.c.h.b16 %v4537
          %v4849 = vunpack.c.l.b16 %v4538
          %v4850 = vunpack.c.h.b16 %v4538
          %v4851 = vunpack.c.l.b16 %v4539
          %v4852 = vunpack.c.h.b16 %v4539
          %v4853 = vunpack.c.l.b16 %v4540
          %v4854 = vunpack.c.h.b16 %v4540
          %v4855 = vunpack.c.l.b16 %v4541
          %v4856 = vunpack.c.h.b16 %v4541
          %v4857 = vunpack.c.l.b16 %v4542
          %v4858 = vunpack.c.h.b16 %v4542
          %v4859 = vunpack.c.l.b16 %v4543
          %v4860 = vunpack.c.h.b16 %v4543
          %v4861 = vunpack.c.l.b16 %v4544
          %v4862 = vunpack.c.h.b16 %v4544
          %v4863 = vunpack.c.l.b16 %v4545
          %v4864 = vunpack.c.h.b16 %v4545
          %v4865 = vunpack.c.l.b16 %v4546
          %v4866 = vunpack.c.h.b16 %v4546
          %v4867 = vunpack.c.l.b16 %v4547
          %v4868 = vunpack.c.h.b16 %v4547
          %v4869 = vunpack.c.l.b16 %v4548
          %v4870 = vunpack.c.h.b16 %v4548
          %v4871 = vunpack.c.l.b16 %v4549
          %v4872 = vunpack.c.h.b16 %v4549
          %v4873 = vunpack.c.l.b16 %v4550
          %v4874 = vunpack.c.h.b16 %v4550
          %v4875 = vunpack.c.l.b16 %v4551
          %v4876 = vunpack.c.h.b16 %v4551
          %v4877 = vunpack.c.l.b16 %v4552
          %v4878 = vunpack.c.h.b16 %v4552
          %v4879 = vunpack.c.l.b16 %v4553
          %v4880 = vunpack.c.h.b16 %v4553
          %v4881 = vunpack.c.l.b16 %v4554
          %v4882 = vunpack.c.h.b16 %v4554
          %v4883 = vunpack.c.l.b16 %v4555
          %v4884 = vunpack.c.h.b16 %v4555
          %v4885 = vunpack.c.l.b16 %v4556
          %v4886 = vunpack.c.h.b16 %v4556
          %v4887 = vunpack.c.l.b16 %v4557
          %v4888 = vunpack.c.h.b16 %v4557
          %v4889 = vunpack.c.l.b16 %v4558
          %v4890 = vunpack.c.h.b16 %v4558
          %v4891 = vunpack.c.l.b16 %v4559
          %v4892 = vunpack.c.h.b16 %v4559
          %v4893 = vunpack.c.l.b16 %v4560
          %v4894 = vunpack.c.h.b16 %v4560
          %v4895 = vunpack.c.l.b16 %v4561
          %v4896 = vunpack.c.h.b16 %v4561
          %v4897 = vunpack.c.l.b16 %v4562
          %v4898 = vunpack.c.h.b16 %v4562
          %v4899 = vunpack.c.l.b16 %v4563
          %v4900 = vunpack.c.h.b16 %v4563
          %v4901 = vunpack.c.l.b16 %v4564
          %v4902 = vunpack.c.h.b16 %v4564
          %v4903 = vunpack.c.l.b16 %v4565
          %v4904 = vunpack.c.h.b16 %v4565
          %v4905 = vunpack.c.l.b16 %v4566
          %v4906 = vunpack.c.h.b16 %v4566
          %v4907 = vunpack.c.l.b16 %v4567
          %v4908 = vunpack.c.h.b16 %v4567
          %v4909 = vunpack.c.l.b16 %v4568
          %v4910 = vunpack.c.h.b16 %v4568
          %v4911 = vunpack.c.l.b16 %v4569
          %v4912 = vunpack.c.h.b16 %v4569
          %v4913 = vunpack.c.l.b16 %v4570
          %v4914 = vunpack.c.h.b16 %v4570
          %v4915 = vunpack.c.l.b16 %v4571
          %v4916 = vunpack.c.h.b16 %v4571
          %v4917 = vunpack.c.l.b16 %v4572
          %v4918 = vunpack.c.h.b16 %v4572
          %v4919 = vunpack.c.l.b16 %v4573
          %v4920 = vunpack.c.h.b16 %v4573
          %v4921 = vunpack.c.l.b16 %v4574
          %v4922 = vunpack.c.h.b16 %v4574
          %v4923 = vunpack.c.l.b16 %v4575
          %v4924 = vunpack.c.h.b16 %v4575
          %v4925 = vunpack.c.l.b16 %v4576
          %v4926 = vunpack.c.h.b16 %v4576
          %v4927 = vunpack.c.l.b16 %v4577
          %v4928 = vunpack.c.h.b16 %v4577
          %v4929 = vunpack.c.l.b16 %v4578
          %v4930 = vunpack.c.h.b16 %v4578
          %v4931 = vunpack.c.l.b16 %v4579
          %v4932 = vunpack.c.h.b16 %v4579
          %v4933 = vunpack.c.l.b16 %v4580
          %v4934 = vunpack.c.h.b16 %v4580
          %v4935 = vunpack.c.l.b16 %v4581
          %v4936 = vunpack.c.h.b16 %v4581
          %v4937 = vunpack.c.l.b16 %v4582
          %v4938 = vunpack.c.h.b16 %v4582
          %v4939 = vunpack.c.l.b16 %v4583
          %v4940 = vunpack.c.h.b16 %v4583
          %v4941 = vunpack.c.l.b16 %v4584
          %v4942 = vunpack.c.h.b16 %v4584
          %v4943 = vunpack.c.l.b16 %v4585
          %v4944 = vunpack.c.h.b16 %v4585
          %v4945 = vunpack.c.l.b16 %v4586
          %v4946 = vunpack.c.h.b16 %v4586
          %v4947 = vunpack.c.l.b16 %v4587
          %v4948 = vunpack.c.h.b16 %v4587
          %v4949 = vunpack.c.l.b16 %v4588
          %v4950 = vunpack.c.h.b16 %v4588
          %v4951 = vunpack.c.l.b16 %v4589
          %v4952 = vunpack.c.h.b16 %v4589
          %v4953 = vunpack.c.l.b16 %v4590
          %v4954 = vunpack.c.h.b16 %v4590
          %v4955 = vunpack.c.l.b16 %v4591
          %v4956 = vunpack.c.h.b16 %v4591
          %v4957 = vunpack.c.l.b16 %v4592
          %v4958 = vunpack.c.h.b16 %v4592
          %v4959 = vunpack.c.l.b16 %v4593
          %v4960 = vunpack.c.h.b16 %v4593
          %v4961 = vunpack.c.l.b16 %v4594
          %v4962 = vunpack.c.h.b16 %v4594
          %v4963 = vunpack.c.l.b16 %v4595
          %v4964 = vunpack.c.h.b16 %v4595
          %v4965 = vunpack.c.l.b16 %v4596
          %v4966 = vunpack.c.h.b16 %v4596
          %v4967 = vunpack.c.l.b16 %v4597
          %v4968 = vunpack.c.h.b16 %v4597
          %v4969 = vunpack.c.l.b16 %v4598
          %v4970 = vunpack.c.h.b16 %v4598
          %v4971 = vunpack.c.l.b16 %v4599
          %v4972 = vunpack.c.h.b16 %v4599
          %v4973 = vunpack.c.l.b16 %v4600
          %v4974 = vunpack.c.h.b16 %v4600
          %v4975 = vunpack.c.l.b16 %v4601
          %v4976 = vunpack.c.h.b16 %v4601
          %v4977 = vunpack.c.l.b16 %v4602
          %v4978 = vunpack.c.h.b16 %v4602
          %v4979 = vunpack.c.l.b16 %v4603
          %v4980 = vunpack.c.h.b16 %v4603
          %v4981 = vunpack.c.l.b16 %v4604
          %v4982 = vunpack.c.h.b16 %v4604
          %v4983 = vunpack.c.l.b16 %v4605
          %v4984 = vunpack.c.h.b16 %v4605
          %v4985 = vunpack.c.l.b16 %v4606
          %v4986 = vunpack.c.h.b16 %v4606
          %v4987 = vunpack.c.l.b16 %v4607
          %v4988 = vunpack.c.h.b16 %v4607
          %v4989 = vunpack.c.l.b16 %v4608
          %v4990 = vunpack.c.h.b16 %v4608
          %v4991 = vunpack.c.l.b16 %v4609
          %v4992 = vunpack.c.h.b16 %v4609
          %v4993 = vunpack.c.l.b16 %v4610
          %v4994 = vunpack.c.h.b16 %v4610
          %v4995 = vpack.c.b16 %v4743, %v4739
          %v4996 = vpack.c.b16 %v4744, %v4740
          %v4997 = vpack.c.b16 %v4745, %v4741
          %v4998 = vpack.c.b16 %v4746, %v4742
          %v4999 = vpack.c.b16 %v4751, %v4747
          %v5000 = vpack.c.b16 %v4752, %v4748
          %v5001 = vpack.c.b16 %v4753, %v4749
          %v5002 = vpack.c.b16 %v4754, %v4750
          %v5003 = vpack.c.b16 %v4759, %v4755
          %v5004 = vpack.c.b16 %v4760, %v4756
          %v5005 = vpack.c.b16 %v4761, %v4757
          %v5006 = vpack.c.b16 %v4762, %v4758
          %v5007 = vpack.c.b16 %v4767, %v4763
          %v5008 = vpack.c.b16 %v4768, %v4764
          %v5009 = vpack.c.b16 %v4769, %v4765
          %v5010 = vpack.c.b16 %v4770, %v4766
          %v5011 = vpack.c.b16 %v4775, %v4771
          %v5012 = vpack.c.b16 %v4776, %v4772
          %v5013 = vpack.c.b16 %v4777, %v4773
          %v5014 = vpack.c.b16 %v4778, %v4774
          %v5015 = vpack.c.b16 %v4783, %v4779
          %v5016 = vpack.c.b16 %v4784, %v4780
          %v5017 = vpack.c.b16 %v4785, %v4781
          %v5018 = vpack.c.b16 %v4786, %v4782
          %v5019 = vpack.c.b16 %v4791, %v4787
          %v5020 = vpack.c.b16 %v4792, %v4788
          %v5021 = vpack.c.b16 %v4793, %v4789
          %v5022 = vpack.c.b16 %v4794, %v4790
          %v5023 = vpack.c.b16 %v4799, %v4795
          %v5024 = vpack.c.b16 %v4800, %v4796
          %v5025 = vpack.c.b16 %v4801, %v4797
          %v5026 = vpack.c.b16 %v4802, %v4798
          %v5027 = vpack.c.b16 %v4807, %v4803
          %v5028 = vpack.c.b16 %v4808, %v4804
          %v5029 = vpack.c.b16 %v4809, %v4805
          %v5030 = vpack.c.b16 %v4810, %v4806
          %v5031 = vpack.c.b16 %v4815, %v4811
          %v5032 = vpack.c.b16 %v4816, %v4812
          %v5033 = vpack.c.b16 %v4817, %v4813
          %v5034 = vpack.c.b16 %v4818, %v4814
          %v5035 = vpack.c.b16 %v4823, %v4819
          %v5036 = vpack.c.b16 %v4824, %v4820
          %v5037 = vpack.c.b16 %v4825, %v4821
          %v5038 = vpack.c.b16 %v4826, %v4822
          %v5039 = vpack.c.b16 %v4831, %v4827
          %v5040 = vpack.c.b16 %v4832, %v4828
          %v5041 = vpack.c.b16 %v4833, %v4829
          %v5042 = vpack.c.b16 %v4834, %v4830
          %v5043 = vpack.c.b16 %v4839, %v4835
          %v5044 = vpack.c.b16 %v4840, %v4836
          %v5045 = vpack.c.b16 %v4841, %v4837
          %v5046 = vpack.c.b16 %v4842, %v4838
          %v5047 = vpack.c.b16 %v4847, %v4843
          %v5048 = vpack.c.b16 %v4848, %v4844
          %v5049 = vpack.c.b16 %v4849, %v4845
          %v5050 = vpack.c.b16 %v4850, %v4846
          %v5051 = vpack.c.b16 %v4855, %v4851
          %v5052 = vpack.c.b16 %v4856, %v4852
          %v5053 = vpack.c.b16 %v4857, %v4853
          %v5054 = vpack.c.b16 %v4858, %v4854
          %v5055 = vpack.c.b16 %v4863, %v4859
          %v5056 = vpack.c.b16 %v4864, %v4860
          %v5057 = vpack.c.b16 %v4865, %v4861
          %v5058 = vpack.c.b16 %v4866, %v4862
          %v5059 = vpack.c.b16 %v4871, %v4867
          %v5060 = vpack.c.b16 %v4872, %v4868
          %v5061 = vpack.c.b16 %v4873, %v4869
          %v5062 = vpack.c.b16 %v4874, %v4870
          %v5063 = vpack.c.b16 %v4879, %v4875
          %v5064 = vpack.c.b16 %v4880, %v4876
          %v5065 = vpack.c.b16 %v4881, %v4877
          %v5066 = vpack.c.b16 %v4882, %v4878
          %v5067 = vpack.c.b16 %v4887, %v4883
          %v5068 = vpack.c.b16 %v4888, %v4884
          %v5069 = vpack.c.b16 %v4889, %v4885
          %v5070 = vpack.c.b16 %v4890, %v4886
          %v5071 = vpack.c.b16 %v4895, %v4891
          %v5072 = vpack.c.b16 %v4896, %v4892
          %v5073 = vpack.c.b16 %v4897, %v4893
          %v5074 = vpack.c.b16 %v4898, %v4894
          %v5075 = vpack.c.b16 %v4903, %v4899
          %v5076 = vpack.c.b16 %v4904, %v4900
          %v5077 = vpack.c.b16 %v4905, %v4901
          %v5078 = vpack.c.b16 %v4906, %v4902
          %v5079 = vpack.c.b16 %v4911, %v4907
          %v5080 = vpack.c.b16 %v4912, %v4908
          %v5081 = vpack.c.b16 %v4913, %v4909
          %v5082 = vpack.c.b16 %v4914, %v4910
          %v5083 = vpack.c.b16 %v4919, %v4915
          %v5084 = vpack.c.b16 %v4920, %v4916
          %v5085 = vpack.c.b16 %v4921, %v4917
          %v5086 = vpack.c.b16 %v4922, %v4918
          %v5087 = vpack.c.b16 %v4927, %v4923
          %v5088 = vpack.c.b16 %v4928, %v4924
          %v5089 = vpack.c.b16 %v4929, %v4925
          %v5090 = vpack.c.b16 %v4930, %v4926
          %v5091 = vpack.c.b16 %v4935, %v4931
          %v5092 = vpack.c.b16 %v4936, %v4932
          %v5093 = vpack.c.b16 %v4937, %v4933
          %v5094 = vpack.c.b16 %v4938, %v4934
          %v5095 = vpack.c.b16 %v4943, %v4939
          %v5096 = vpack.c.b16 %v4944, %v4940
          %v5097 = vpack.c.b16 %v4945, %v4941
          %v5098 = vpack.c.b16 %v4946, %v4942
          %v5099 = vpack.c.b16 %v4951, %v4947
          %v5100 = vpack.c.b16 %v4952, %v4948
          %v5101 = vpack.c.b16 %v4953, %v4949
          %v5102 = vpack.c.b16 %v4954, %v4950
          %v5103 = vpack.c.b16 %v4959, %v4955
          %v5104 = vpack.c.b16 %v4960, %v4956
          %v5105 = vpack.c.b16 %v4961, %v4957
          %v5106 = vpack.c.b16 %v4962, %v4958
          %v5107 = vpack.c.b16 %v4967, %v4963
          %v5108 = vpack.c.b16 %v4968, %v4964
          %v5109 = vpack.c.b16 %v4969, %v4965
          %v5110 = vpack.c.b16 %v4970, %v4966
          %v5111 = vpack.c.b16 %v4975, %v4971
          %v5112 = vpack.c.b16 %v4976, %v4972
          %v5113 = vpack.c.b16 %v4977, %v4973
          %v5114 = vpack.c.b16 %v4978, %v4974
          %v5115 = vpack.c.b16 %v4983, %v4979
          %v5116 = vpack.c.b16 %v4984, %v4980
          %v5117 = vpack.c.b16 %v4985, %v4981
          %v5118 = vpack.c.b16 %v4986, %v4982
          %v5119 = vpack.c.b16 %v4991, %v4987
          %v5120 = vpack.c.b16 %v4992, %v4988
          %v5121 = vpack.c.b16 %v4993, %v4989
          %v5122 = vpack.c.b16 %v4994, %v4990
          %5251 = vmatprep.subr.bf16.mxu0 %v4996
          %5252 = vmatpush1.bf16.msra.mxu0 %v4995
          %5253 = vmatprep.subr.bf16.mxu0 %v5000
          %5254 = vmatpush1.bf16.msra.mxu0 %v4999
          %5255 = vmatprep.subr.bf16.mxu0 %v5004
          %5256 = vmatpush1.bf16.msra.mxu0 %v5003
          %5257 = vmatprep.subr.bf16.mxu0 %v5008
          %5258 = vmatpush1.bf16.msra.mxu0 %v5007
          %5259 = vmatprep.subr.bf16.mxu0 %v5012
          %5260 = vmatpush1.bf16.msra.mxu0 %v5011
          %5261 = vmatprep.subr.bf16.mxu0 %v5016
          %5262 = vmatpush1.bf16.msra.mxu0 %v5015
          %5263 = vmatprep.subr.bf16.mxu0 %v5020
          %5264 = vmatpush1.bf16.msra.mxu0 %v5019
          %5265 = vmatprep.subr.bf16.mxu0 %v5024
          %5266 = vmatpush1.bf16.msra.mxu0 %v5023
          %5267 = vmatprep.subr.bf16.mxu0 %v5028
          %5268 = vmatpush1.bf16.msra.mxu0 %v5027
          %5269 = vmatprep.subr.bf16.mxu0 %v5032
          %5270 = vmatpush1.bf16.msra.mxu0 %v5031
          %5271 = vmatprep.subr.bf16.mxu0 %v5036
          %5272 = vmatpush1.bf16.msra.mxu0 %v5035
          %5273 = vmatprep.subr.bf16.mxu0 %v5040
          %5274 = vmatpush1.bf16.msra.mxu0 %v5039
          %5275 = vmatprep.subr.bf16.mxu0 %v5044
          %5276 = vmatpush1.bf16.msra.mxu0 %v5043
          %5277 = vmatprep.subr.bf16.mxu0 %v5048
          %5278 = vmatpush1.bf16.msra.mxu0 %v5047
          %5279 = vmatprep.subr.bf16.mxu0 %v5052
          %5280 = vmatpush1.bf16.msra.mxu0 %v5051
          %5281 = vmatprep.subr.bf16.mxu0 %v5056
          %5282 = vmatpush1.bf16.msra.mxu0 %v5055
          %5283 = vmatprep.mubr.bf16.mxu0 %v4420
          %5284 = vmatmul.mubr.bf16.gmra.mrb[0].mxu0 %v4419
          %v5285 = vpop.f32.mrb[0].mxu0
          %v5286 = vadd.f32 0.0, %v5285
          %v5287 = vpop.f32.mrb[0].mxu0
          %v5288 = vadd.f32 0.0, %v5287
          %v5289 = vpop.f32.mrb[0].mxu0
          %v5290 = vadd.f32 0.0, %v5289
          %v5291 = vpop.f32.mrb[0].mxu0
          %v5292 = vadd.f32 0.0, %v5291
          %5293 = vmatprep.mubr.bf16.mxu0 %v4424
          %5294 = vmatmul.mubr.bf16.gmra.mrb[0].mxu0 %v4423
          %v5295 = vpop.f32.mrb[0].mxu0
          %v5296 = vadd.f32 0.0, %v5295
          %v5297 = vpop.f32.mrb[0].mxu0
          %v5298 = vadd.f32 0.0, %v5297
          %v5299 = vpop.f32.mrb[0].mxu0
          %v5300 = vadd.f32 0.0, %v5299
          %v5301 = vpop.f32.mrb[0].mxu0
          %v5302 = vadd.f32 0.0, %v5301
          %5303 = vmatprep.mubr.bf16.mxu0 %v4428
          %5304 = vmatmul.mubr.bf16.gmra.mrb[0].mxu0 %v4427
          %v5305 = vpop.f32.mrb[0].mxu0
          %v5306 = vadd.f32 0.0, %v5305
          %v5307 = vpop.f32.mrb[0].mxu0
          %v5308 = vadd.f32 0.0, %v5307
          %v5309 = vpop.f32.mrb[0].mxu0
          %v5310 = vadd.f32 0.0, %v5309
          %v5311 = vpop.f32.mrb[0].mxu0
          %v5312 = vadd.f32 0.0, %v5311
          %5313 = vmatprep.mubr.bf16.mxu0 %v4432
          %5314 = vmatmul.mubr.bf16.gmra.mrb[0].mxu0 %v4431
          %v5315 = vpop.f32.mrb[0].mxu0
          %v5316 = vadd.f32 0.0, %v5315
          %v5317 = vpop.f32.mrb[0].mxu0
          %v5318 = vadd.f32 0.0, %v5317
          %v5319 = vpop.f32.mrb[0].mxu0
          %v5320 = vadd.f32 0.0, %v5319
          %v5321 = vpop.f32.mrb[0].mxu0
          %v5322 = vadd.f32 0.0, %v5321
          %5323 = vmatprep.mubr.bf16.mxu0 %v4436
          %5324 = vmatmul.mubr.bf16.gmra.mrb[0].mxu0 %v4435
          %v5325 = vpop.f32.mrb[0].mxu0
          %v5326 = vadd.f32 0.0, %v5325
          %v5327 = vpop.f32.mrb[0].mxu0
          %v5328 = vadd.f32 0.0, %v5327
          %v5329 = vpop.f32.mrb[0].mxu0
          %v5330 = vadd.f32 0.0, %v5329
          %v5331 = vpop.f32.mrb[0].mxu0
          %v5332 = vadd.f32 0.0, %v5331
          %5333 = vmatprep.mubr.bf16.mxu0 %v4440
          %5334 = vmatmul.mubr.bf16.gmra.mrb[0].mxu0 %v4439
          %v5335 = vpop.f32.mrb[0].mxu0
          %v5336 = vadd.f32 0.0, %v5335
          %v5337 = vpop.f32.mrb[0].mxu0
          %v5338 = vadd.f32 0.0, %v5337
          %v5339 = vpop.f32.mrb[0].mxu0
          %v5340 = vadd.f32 0.0, %v5339
          %v5341 = vpop.f32.mrb[0].mxu0
          %v5342 = vadd.f32 0.0, %v5341
          %5343 = vmatprep.mubr.bf16.mxu0 %v4444
          %5344 = vmatmul.mubr.bf16.gmra.mrb[0].mxu0 %v4443
          %v5345 = vpop.f32.mrb[0].mxu0
          %v5346 = vadd.f32 0.0, %v5345
          %v5347 = vpop.f32.mrb[0].mxu0
          %v5348 = vadd.f32 0.0, %v5347
          %v5349 = vpop.f32.mrb[0].mxu0
          %v5350 = vadd.f32 0.0, %v5349
          %v5351 = vpop.f32.mrb[0].mxu0
          %v5352 = vadd.f32 0.0, %v5351
          %5353 = vmatprep.mubr.bf16.mxu0 %v4448
          %5354 = vmatmul.mubr.bf16.gmra.mrb[0].mxu0 %v4447
          %v5355 = vpop.f32.mrb[0].mxu0
          %v5356 = vadd.f32 0.0, %v5355
          %v5357 = vpop.f32.mrb[0].mxu0
          %v5358 = vadd.f32 0.0, %v5357
          %v5359 = vpop.f32.mrb[0].mxu0
          %v5360 = vadd.f32 0.0, %v5359
          %v5361 = vpop.f32.mrb[0].mxu0
          %v5362 = vadd.f32 0.0, %v5361
          %5363 = vmatprep.mubr.bf16.mxu0 %v4452
          %5364 = vmatmul.mubr.bf16.gmra.mrb[0].mxu0 %v4451
          %v5365 = vpop.f32.mrb[0].mxu0
          %v5366 = vadd.f32 0.0, %v5365
          %v5367 = vpop.f32.mrb[0].mxu0
          %v5368 = vadd.f32 0.0, %v5367
          %v5369 = vpop.f32.mrb[0].mxu0
          %v5370 = vadd.f32 0.0, %v5369
          %v5371 = vpop.f32.mrb[0].mxu0
          %v5372 = vadd.f32 0.0, %v5371
          %5373 = vmatprep.mubr.bf16.mxu0 %v4456
          %5374 = vmatmul.mubr.bf16.gmra.mrb[0].mxu0 %v4455
          %v5375 = vpop.f32.mrb[0].mxu0
          %v5376 = vadd.f32 0.0, %v5375
          %v5377 = vpop.f32.mrb[0].mxu0
          %v5378 = vadd.f32 0.0, %v5377
          %v5379 = vpop.f32.mrb[0].mxu0
          %v5380 = vadd.f32 0.0, %v5379
          %v5381 = vpop.f32.mrb[0].mxu0
          %v5382 = vadd.f32 0.0, %v5381
          %5383 = vmatprep.mubr.bf16.mxu0 %v4460
          %5384 = vmatmul.mubr.bf16.gmra.mrb[0].mxu0 %v4459
          %v5385 = vpop.f32.mrb[0].mxu0
          %v5386 = vadd.f32 0.0, %v5385
          %v5387 = vpop.f32.mrb[0].mxu0
          %v5388 = vadd.f32 0.0, %v5387
          %v5389 = vpop.f32.mrb[0].mxu0
          %v5390 = vadd.f32 0.0, %v5389
          %v5391 = vpop.f32.mrb[0].mxu0
          %v5392 = vadd.f32 0.0, %v5391
          %5393 = vmatprep.mubr.bf16.mxu0 %v4464
          %5394 = vmatmul.mubr.bf16.gmra.mrb[0].mxu0 %v4463
          %v5395 = vpop.f32.mrb[0].mxu0
          %v5396 = vadd.f32 0.0, %v5395
          %v5397 = vpop.f32.mrb[0].mxu0
          %v5398 = vadd.f32 0.0, %v5397
          %v5399 = vpop.f32.mrb[0].mxu0
          %v5400 = vadd.f32 0.0, %v5399
          %v5401 = vpop.f32.mrb[0].mxu0
          %v5402 = vadd.f32 0.0, %v5401
          %5403 = vmatprep.mubr.bf16.mxu0 %v4468
          %5404 = vmatmul.mubr.bf16.gmra.mrb[0].mxu0 %v4467
          %v5405 = vpop.f32.mrb[0].mxu0
          %v5406 = vadd.f32 0.0, %v5405
          %v5407 = vpop.f32.mrb[0].mxu0
          %v5408 = vadd.f32 0.0, %v5407
          %v5409 = vpop.f32.mrb[0].mxu0
          %v5410 = vadd.f32 0.0, %v5409
          %v5411 = vpop.f32.mrb[0].mxu0
          %v5412 = vadd.f32 0.0, %v5411
          %5413 = vmatprep.mubr.bf16.mxu0 %v4472
          %5414 = vmatmul.mubr.bf16.gmra.mrb[0].mxu0 %v4471
          %v5415 = vpop.f32.mrb[0].mxu0
          %v5416 = vadd.f32 0.0, %v5415
          %v5417 = vpop.f32.mrb[0].mxu0
          %v5418 = vadd.f32 0.0, %v5417
          %v5419 = vpop.f32.mrb[0].mxu0
          %v5420 = vadd.f32 0.0, %v5419
          %v5421 = vpop.f32.mrb[0].mxu0
          %v5422 = vadd.f32 0.0, %v5421
          %5423 = vmatprep.mubr.bf16.mxu0 %v4476
          %5424 = vmatmul.mubr.bf16.gmra.mrb[0].mxu0 %v4475
          %v5425 = vpop.f32.mrb[0].mxu0
          %v5426 = vadd.f32 0.0, %v5425
          %v5427 = vpop.f32.mrb[0].mxu0
          %v5428 = vadd.f32 0.0, %v5427
          %v5429 = vpop.f32.mrb[0].mxu0
          %v5430 = vadd.f32 0.0, %v5429
          %v5431 = vpop.f32.mrb[0].mxu0
          %v5432 = vadd.f32 0.0, %v5431
          %5433 = vmatprep.mubr.bf16.mxu0 %v4480
          %5434 = vmatmul.mubr.bf16.gmra.mrb[0].mxu0 %v4479
          %v5435 = vpop.f32.mrb[0].mxu0
          %v5436 = vadd.f32 0.0, %v5435
          %v5437 = vpop.f32.mrb[0].mxu0
          %v5438 = vadd.f32 0.0, %v5437
          %v5439 = vpop.f32.mrb[0].mxu0
          %v5440 = vadd.f32 0.0, %v5439
          %v5441 = vpop.f32.mrb[0].mxu0
          %v5442 = vadd.f32 0.0, %v5441
          %5443 = vdwg.mxu0
          %5444 = vmatprep.subr.bf16.mxu0 %v5060
          %5445 = vmatpush1.bf16.msra.mxu0 %v5059
          %5446 = vmatprep.subr.bf16.mxu0 %v5064
          %5447 = vmatpush1.bf16.msra.mxu0 %v5063
          %5448 = vmatprep.subr.bf16.mxu0 %v5068
          %5449 = vmatpush1.bf16.msra.mxu0 %v5067
          %5450 = vmatprep.subr.bf16.mxu0 %v5072
          %5451 = vmatpush1.bf16.msra.mxu0 %v5071
          %5452 = vmatprep.subr.bf16.mxu0 %v5076
          %5453 = vmatpush1.bf16.msra.mxu0 %v5075
          %5454 = vmatprep.subr.bf16.mxu0 %v5080
          %5455 = vmatpush1.bf16.msra.mxu0 %v5079
          %5456 = vmatprep.subr.bf16.mxu0 %v5084
          %5457 = vmatpush1.bf16.msra.mxu0 %v5083
          %5458 = vmatprep.subr.bf16.mxu0 %v5088
          %5459 = vmatpush1.bf16.msra.mxu0 %v5087
          %5460 = vmatprep.subr.bf16.mxu0 %v5092
          %5461 = vmatpush1.bf16.msra.mxu0 %v5091
          %5462 = vmatprep.subr.bf16.mxu0 %v5096
          %5463 = vmatpush1.bf16.msra.mxu0 %v5095
          %5464 = vmatprep.subr.bf16.mxu0 %v5100
          %5465 = vmatpush1.bf16.msra.mxu0 %v5099
          %5466 = vmatprep.subr.bf16.mxu0 %v5104
          %5467 = vmatpush1.bf16.msra.mxu0 %v5103
          %5468 = vmatprep.subr.bf16.mxu0 %v5108
          %5469 = vmatpush1.bf16.msra.mxu0 %v5107
          %5470 = vmatprep.subr.bf16.mxu0 %v5112
          %5471 = vmatpush1.bf16.msra.mxu0 %v5111
          %5472 = vmatprep.subr.bf16.mxu0 %v5116
          %5473 = vmatpush1.bf16.msra.mxu0 %v5115
          %5474 = vmatprep.subr.bf16.mxu0 %v5120
          %5475 = vmatpush1.bf16.msra.mxu0 %v5119
          %5476 = vmatprep.mubr.bf16.mxu0 %v4422
          %5477 = vmatmul.mubr.bf16.gmra.mrb[0].mxu0 %v4421
          %v5478 = vpop.f32.mrb[0].mxu0
          %v5479 = vadd.f32 %v5286, %v5478
          %v5480 = vpop.f32.mrb[0].mxu0
          %v5481 = vadd.f32 %v5288, %v5480
          %v5482 = vpop.f32.mrb[0].mxu0
          %v5483 = vadd.f32 %v5290, %v5482
          %v5484 = vpop.f32.mrb[0].mxu0
          %v5485 = vadd.f32 %v5292, %v5484
          %5486 = vmatprep.mubr.bf16.mxu0 %v4426
          %5487 = vmatmul.mubr.bf16.gmra.mrb[0].mxu0 %v4425
          %v5488 = vpop.f32.mrb[0].mxu0
          %v5489 = vadd.f32 %v5296, %v5488
          %v5490 = vpop.f32.mrb[0].mxu0
          %v5491 = vadd.f32 %v5298, %v5490
          %v5492 = vpop.f32.mrb[0].mxu0
          %v5493 = vadd.f32 %v5300, %v5492
          %v5494 = vpop.f32.mrb[0].mxu0
          %v5495 = vadd.f32 %v5302, %v5494
          %5496 = vmatprep.mubr.bf16.mxu0 %v4430
          %5497 = vmatmul.mubr.bf16.gmra.mrb[0].mxu0 %v4429
          %v5498 = vpop.f32.mrb[0].mxu0
          %v5499 = vadd.f32 %v5306, %v5498
          %v5500 = vpop.f32.mrb[0].mxu0
          %v5501 = vadd.f32 %v5308, %v5500
          %v5502 = vpop.f32.mrb[0].mxu0
          %v5503 = vadd.f32 %v5310, %v5502
          %v5504 = vpop.f32.mrb[0].mxu0
          %v5505 = vadd.f32 %v5312, %v5504
          %5506 = vmatprep.mubr.bf16.mxu0 %v4434
          %5507 = vmatmul.mubr.bf16.gmra.mrb[0].mxu0 %v4433
          %v5508 = vpop.f32.mrb[0].mxu0
          %v5509 = vadd.f32 %v5316, %v5508
          %v5510 = vpop.f32.mrb[0].mxu0
          %v5511 = vadd.f32 %v5318, %v5510
          %v5512 = vpop.f32.mrb[0].mxu0
          %v5513 = vadd.f32 %v5320, %v5512
          %v5514 = vpop.f32.mrb[0].mxu0
          %v5515 = vadd.f32 %v5322, %v5514
          %5516 = vmatprep.mubr.bf16.mxu0 %v4438
          %5517 = vmatmul.mubr.bf16.gmra.mrb[0].mxu0 %v4437
          %v5518 = vpop.f32.mrb[0].mxu0
          %v5519 = vadd.f32 %v5326, %v5518
          %v5520 = vpop.f32.mrb[0].mxu0
          %v5521 = vadd.f32 %v5328, %v5520
          %v5522 = vpop.f32.mrb[0].mxu0
          %v5523 = vadd.f32 %v5330, %v5522
          %v5524 = vpop.f32.mrb[0].mxu0
          %v5525 = vadd.f32 %v5332, %v5524
          %5526 = vmatprep.mubr.bf16.mxu0 %v4442
          %5527 = vmatmul.mubr.bf16.gmra.mrb[0].mxu0 %v4441
          %v5528 = vpop.f32.mrb[0].mxu0
          %v5529 = vadd.f32 %v5336, %v5528
          %v5530 = vpop.f32.mrb[0].mxu0
          %v5531 = vadd.f32 %v5338, %v5530
          %v5532 = vpop.f32.mrb[0].mxu0
          %v5533 = vadd.f32 %v5340, %v5532
          %v5534 = vpop.f32.mrb[0].mxu0
          %v5535 = vadd.f32 %v5342, %v5534
          %5536 = vmatprep.mubr.bf16.mxu0 %v4446
          %5537 = vmatmul.mubr.bf16.gmra.mrb[0].mxu0 %v4445
          %v5538 = vpop.f32.mrb[0].mxu0
          %v5539 = vadd.f32 %v5346, %v5538
          %v5540 = vpop.f32.mrb[0].mxu0
          %v5541 = vadd.f32 %v5348, %v5540
          %v5542 = vpop.f32.mrb[0].mxu0
          %v5543 = vadd.f32 %v5350, %v5542
          %v5544 = vpop.f32.mrb[0].mxu0
          %v5545 = vadd.f32 %v5352, %v5544
          %5546 = vmatprep.mubr.bf16.mxu0 %v4450
          %5547 = vmatmul.mubr.bf16.gmra.mrb[0].mxu0 %v4449
          %v5548 = vpop.f32.mrb[0].mxu0
          %v5549 = vadd.f32 %v5356, %v5548
          %v5550 = vpop.f32.mrb[0].mxu0
          %v5551 = vadd.f32 %v5358, %v5550
          %v5552 = vpop.f32.mrb[0].mxu0
          %v5553 = vadd.f32 %v5360, %v5552
          %v5554 = vpop.f32.mrb[0].mxu0
          %v5555 = vadd.f32 %v5362, %v5554
          %5556 = vmatprep.mubr.bf16.mxu0 %v4454
          %5557 = vmatmul.mubr.bf16.gmra.mrb[0].mxu0 %v4453
          %v5558 = vpop.f32.mrb[0].mxu0
          %v5559 = vadd.f32 %v5366, %v5558
          %v5560 = vpop.f32.mrb[0].mxu0
          %v5561 = vadd.f32 %v5368, %v5560
          %v5562 = vpop.f32.mrb[0].mxu0
          %v5563 = vadd.f32 %v5370, %v5562
          %v5564 = vpop.f32.mrb[0].mxu0
          %v5565 = vadd.f32 %v5372, %v5564
          %5566 = vmatprep.mubr.bf16.mxu0 %v4458
          %5567 = vmatmul.mubr.bf16.gmra.mrb[0].mxu0 %v4457
          %v5568 = vpop.f32.mrb[0].mxu0
          %v5569 = vadd.f32 %v5376, %v5568
          %v5570 = vpop.f32.mrb[0].mxu0
          %v5571 = vadd.f32 %v5378, %v5570
          %v5572 = vpop.f32.mrb[0].mxu0
          %v5573 = vadd.f32 %v5380, %v5572
          %v5574 = vpop.f32.mrb[0].mxu0
          %v5575 = vadd.f32 %v5382, %v5574
          %5576 = vmatprep.mubr.bf16.mxu0 %v4462
          %5577 = vmatmul.mubr.bf16.gmra.mrb[0].mxu0 %v4461
          %v5578 = vpop.f32.mrb[0].mxu0
          %v5579 = vadd.f32 %v5386, %v5578
          %v5580 = vpop.f32.mrb[0].mxu0
          %v5581 = vadd.f32 %v5388, %v5580
          %v5582 = vpop.f32.mrb[0].mxu0
          %v5583 = vadd.f32 %v5390, %v5582
          %v5584 = vpop.f32.mrb[0].mxu0
          %v5585 = vadd.f32 %v5392, %v5584
          %5586 = vmatprep.mubr.bf16.mxu0 %v4466
          %5587 = vmatmul.mubr.bf16.gmra.mrb[0].mxu0 %v4465
          %v5588 = vpop.f32.mrb[0].mxu0
          %v5589 = vadd.f32 %v5396, %v5588
          %v5590 = vpop.f32.mrb[0].mxu0
          %v5591 = vadd.f32 %v5398, %v5590
          %v5592 = vpop.f32.mrb[0].mxu0
          %v5593 = vadd.f32 %v5400, %v5592
          %v5594 = vpop.f32.mrb[0].mxu0
          %v5595 = vadd.f32 %v5402, %v5594
          %5596 = vmatprep.mubr.bf16.mxu0 %v4470
          %5597 = vmatmul.mubr.bf16.gmra.mrb[0].mxu0 %v4469
          %v5598 = vpop.f32.mrb[0].mxu0
          %v5599 = vadd.f32 %v5406, %v5598
          %v5600 = vpop.f32.mrb[0].mxu0
          %v5601 = vadd.f32 %v5408, %v5600
          %v5602 = vpop.f32.mrb[0].mxu0
          %v5603 = vadd.f32 %v5410, %v5602
          %v5604 = vpop.f32.mrb[0].mxu0
          %v5605 = vadd.f32 %v5412, %v5604
          %5606 = vmatprep.mubr.bf16.mxu0 %v4474
          %5607 = vmatmul.mubr.bf16.gmra.mrb[0].mxu0 %v4473
          %v5608 = vpop.f32.mrb[0].mxu0
          %v5609 = vadd.f32 %v5416, %v5608
          %v5610 = vpop.f32.mrb[0].mxu0
          %v5611 = vadd.f32 %v5418, %v5610
          %v5612 = vpop.f32.mrb[0].mxu0
          %v5613 = vadd.f32 %v5420, %v5612
          %v5614 = vpop.f32.mrb[0].mxu0
          %v5615 = vadd.f32 %v5422, %v5614
          %5616 = vmatprep.mubr.bf16.mxu0 %v4478
          %5617 = vmatmul.mubr.bf16.gmra.mrb[0].mxu0 %v4477
          %v5618 = vpop.f32.mrb[0].mxu0
          %v5619 = vadd.f32 %v5426, %v5618
          %v5620 = vpop.f32.mrb[0].mxu0
          %v5621 = vadd.f32 %v5428, %v5620
          %v5622 = vpop.f32.mrb[0].mxu0
          %v5623 = vadd.f32 %v5430, %v5622
          %v5624 = vpop.f32.mrb[0].mxu0
          %v5625 = vadd.f32 %v5432, %v5624
          %5626 = vmatprep.mubr.bf16.mxu0 %v4482
          %5627 = vmatmul.mubr.bf16.gmra.mrb[0].mxu0 %v4481
          %v5628 = vpop.f32.mrb[0].mxu0
          %v5629 = vadd.f32 %v5436, %v5628
          %v5630 = vpop.f32.mrb[0].mxu0
          %v5631 = vadd.f32 %v5438, %v5630
          %v5632 = vpop.f32.mrb[0].mxu0
          %v5633 = vadd.f32 %v5440, %v5632
          %v5634 = vpop.f32.mrb[0].mxu0
          %v5635 = vadd.f32 %v5442, %v5634
          %5636 = vdwg.mxu0
          %5637 = vmatprep.subr.bf16.mxu0 %v4998
          %5638 = vmatpush1.bf16.msra.mxu0 %v4997
          %5639 = vmatprep.subr.bf16.mxu0 %v5002
          %5640 = vmatpush1.bf16.msra.mxu0 %v5001
          %5641 = vmatprep.subr.bf16.mxu0 %v5006
          %5642 = vmatpush1.bf16.msra.mxu0 %v5005
          %5643 = vmatprep.subr.bf16.mxu0 %v5010
          %5644 = vmatpush1.bf16.msra.mxu0 %v5009
          %5645 = vmatprep.subr.bf16.mxu0 %v5014
          %5646 = vmatpush1.bf16.msra.mxu0 %v5013
          %5647 = vmatprep.subr.bf16.mxu0 %v5018
          %5648 = vmatpush1.bf16.msra.mxu0 %v5017
          %5649 = vmatprep.subr.bf16.mxu0 %v5022
          %5650 = vmatpush1.bf16.msra.mxu0 %v5021
          %5651 = vmatprep.subr.bf16.mxu0 %v5026
          %5652 = vmatpush1.bf16.msra.mxu0 %v5025
          %5653 = vmatprep.subr.bf16.mxu0 %v5030
          %5654 = vmatpush1.bf16.msra.mxu0 %v5029
          %5655 = vmatprep.subr.bf16.mxu0 %v5034
          %5656 = vmatpush1.bf16.msra.mxu0 %v5033
          %5657 = vmatprep.subr.bf16.mxu0 %v5038
          %5658 = vmatpush1.bf16.msra.mxu0 %v5037
          %5659 = vmatprep.subr.bf16.mxu0 %v5042
          %5660 = vmatpush1.bf16.msra.mxu0 %v5041
          %5661 = vmatprep.subr.bf16.mxu0 %v5046
          %5662 = vmatpush1.bf16.msra.mxu0 %v5045
          %5663 = vmatprep.subr.bf16.mxu0 %v5050
          %5664 = vmatpush1.bf16.msra.mxu0 %v5049
          %5665 = vmatprep.subr.bf16.mxu0 %v5054
          %5666 = vmatpush1.bf16.msra.mxu0 %v5053
          %5667 = vmatprep.subr.bf16.mxu0 %v5058
          %5668 = vmatpush1.bf16.msra.mxu0 %v5057
          %5669 = vmatprep.mubr.bf16.mxu0 %v4420
          %5670 = vmatmul.mubr.bf16.gmra.mrb[0].mxu0 %v4419
          %v5671 = vpop.f32.mrb[0].mxu0
          %v5672 = vadd.f32 0.0, %v5671
          %v5673 = vpop.f32.mrb[0].mxu0
          %v5674 = vadd.f32 0.0, %v5673
          %v5675 = vpop.f32.mrb[0].mxu0
          %v5676 = vadd.f32 0.0, %v5675
          %v5677 = vpop.f32.mrb[0].mxu0
          %v5678 = vadd.f32 0.0, %v5677
          %5679 = vmatprep.mubr.bf16.mxu0 %v4424
          %5680 = vmatmul.mubr.bf16.gmra.mrb[0].mxu0 %v4423
          %v5681 = vpop.f32.mrb[0].mxu0
          %v5682 = vadd.f32 0.0, %v5681
          %v5683 = vpop.f32.mrb[0].mxu0
          %v5684 = vadd.f32 0.0, %v5683
          %v5685 = vpop.f32.mrb[0].mxu0
          %v5686 = vadd.f32 0.0, %v5685
          %v5687 = vpop.f32.mrb[0].mxu0
          %v5688 = vadd.f32 0.0, %v5687
          %5689 = vmatprep.mubr.bf16.mxu0 %v4428
          %5690 = vmatmul.mubr.bf16.gmra.mrb[0].mxu0 %v4427
          %v5691 = vpop.f32.mrb[0].mxu0
          %v5692 = vadd.f32 0.0, %v5691
          %v5693 = vpop.f32.mrb[0].mxu0
          %v5694 = vadd.f32 0.0, %v5693
          %v5695 = vpop.f32.mrb[0].mxu0
          %v5696 = vadd.f32 0.0, %v5695
          %v5697 = vpop.f32.mrb[0].mxu0
          %v5698 = vadd.f32 0.0, %v5697
          %5699 = vmatprep.mubr.bf16.mxu0 %v4432
          %5700 = vmatmul.mubr.bf16.gmra.mrb[0].mxu0 %v4431
          %v5701 = vpop.f32.mrb[0].mxu0
          %v5702 = vadd.f32 0.0, %v5701
          %v5703 = vpop.f32.mrb[0].mxu0
          %v5704 = vadd.f32 0.0, %v5703
          %v5705 = vpop.f32.mrb[0].mxu0
          %v5706 = vadd.f32 0.0, %v5705
          %v5707 = vpop.f32.mrb[0].mxu0
          %v5708 = vadd.f32 0.0, %v5707
          %5709 = vmatprep.mubr.bf16.mxu0 %v4436
          %5710 = vmatmul.mubr.bf16.gmra.mrb[0].mxu0 %v4435
          %v5711 = vpop.f32.mrb[0].mxu0
          %v5712 = vadd.f32 0.0, %v5711
          %v5713 = vpop.f32.mrb[0].mxu0
          %v5714 = vadd.f32 0.0, %v5713
          %v5715 = vpop.f32.mrb[0].mxu0
          %v5716 = vadd.f32 0.0, %v5715
          %v5717 = vpop.f32.mrb[0].mxu0
          %v5718 = vadd.f32 0.0, %v5717
          %5719 = vmatprep.mubr.bf16.mxu0 %v4440
          %5720 = vmatmul.mubr.bf16.gmra.mrb[0].mxu0 %v4439
          %v5721 = vpop.f32.mrb[0].mxu0
          %v5722 = vadd.f32 0.0, %v5721
          %v5723 = vpop.f32.mrb[0].mxu0
          %v5724 = vadd.f32 0.0, %v5723
          %v5725 = vpop.f32.mrb[0].mxu0
          %v5726 = vadd.f32 0.0, %v5725
          %v5727 = vpop.f32.mrb[0].mxu0
          %v5728 = vadd.f32 0.0, %v5727
          %5729 = vmatprep.mubr.bf16.mxu0 %v4444
          %5730 = vmatmul.mubr.bf16.gmra.mrb[0].mxu0 %v4443
          %v5731 = vpop.f32.mrb[0].mxu0
          %v5732 = vadd.f32 0.0, %v5731
          %v5733 = vpop.f32.mrb[0].mxu0
          %v5734 = vadd.f32 0.0, %v5733
          %v5735 = vpop.f32.mrb[0].mxu0
          %v5736 = vadd.f32 0.0, %v5735
          %v5737 = vpop.f32.mrb[0].mxu0
          %v5738 = vadd.f32 0.0, %v5737
          %5739 = vmatprep.mubr.bf16.mxu0 %v4448
          %5740 = vmatmul.mubr.bf16.gmra.mrb[0].mxu0 %v4447
          %v5741 = vpop.f32.mrb[0].mxu0
          %v5742 = vadd.f32 0.0, %v5741
          %v5743 = vpop.f32.mrb[0].mxu0
          %v5744 = vadd.f32 0.0, %v5743
          %v5745 = vpop.f32.mrb[0].mxu0
          %v5746 = vadd.f32 0.0, %v5745
          %v5747 = vpop.f32.mrb[0].mxu0
          %v5748 = vadd.f32 0.0, %v5747
          %5749 = vmatprep.mubr.bf16.mxu0 %v4452
          %5750 = vmatmul.mubr.bf16.gmra.mrb[0].mxu0 %v4451
          %v5751 = vpop.f32.mrb[0].mxu0
          %v5752 = vadd.f32 0.0, %v5751
          %v5753 = vpop.f32.mrb[0].mxu0
          %v5754 = vadd.f32 0.0, %v5753
          %v5755 = vpop.f32.mrb[0].mxu0
          %v5756 = vadd.f32 0.0, %v5755
          %v5757 = vpop.f32.mrb[0].mxu0
          %v5758 = vadd.f32 0.0, %v5757
          %5759 = vmatprep.mubr.bf16.mxu0 %v4456
          %5760 = vmatmul.mubr.bf16.gmra.mrb[0].mxu0 %v4455
          %v5761 = vpop.f32.mrb[0].mxu0
          %v5762 = vadd.f32 0.0, %v5761
          %v5763 = vpop.f32.mrb[0].mxu0
          %v5764 = vadd.f32 0.0, %v5763
          %v5765 = vpop.f32.mrb[0].mxu0
          %v5766 = vadd.f32 0.0, %v5765
          %v5767 = vpop.f32.mrb[0].mxu0
          %v5768 = vadd.f32 0.0, %v5767
          %5769 = vmatprep.mubr.bf16.mxu0 %v4460
          %5770 = vmatmul.mubr.bf16.gmra.mrb[0].mxu0 %v4459
          %v5771 = vpop.f32.mrb[0].mxu0
          %v5772 = vadd.f32 0.0, %v5771
          %v5773 = vpop.f32.mrb[0].mxu0
          %v5774 = vadd.f32 0.0, %v5773
          %v5775 = vpop.f32.mrb[0].mxu0
          %v5776 = vadd.f32 0.0, %v5775
          %v5777 = vpop.f32.mrb[0].mxu0
          %v5778 = vadd.f32 0.0, %v5777
          %5779 = vmatprep.mubr.bf16.mxu0 %v4464
          %5780 = vmatmul.mubr.bf16.gmra.mrb[0].mxu0 %v4463
          %v5781 = vpop.f32.mrb[0].mxu0
          %v5782 = vadd.f32 0.0, %v5781
          %v5783 = vpop.f32.mrb[0].mxu0
          %v5784 = vadd.f32 0.0, %v5783
          %v5785 = vpop.f32.mrb[0].mxu0
          %v5786 = vadd.f32 0.0, %v5785
          %v5787 = vpop.f32.mrb[0].mxu0
          %v5788 = vadd.f32 0.0, %v5787
          %5789 = vmatprep.mubr.bf16.mxu0 %v4468
          %5790 = vmatmul.mubr.bf16.gmra.mrb[0].mxu0 %v4467
          %v5791 = vpop.f32.mrb[0].mxu0
          %v5792 = vadd.f32 0.0, %v5791
          %v5793 = vpop.f32.mrb[0].mxu0
          %v5794 = vadd.f32 0.0, %v5793
          %v5795 = vpop.f32.mrb[0].mxu0
          %v5796 = vadd.f32 0.0, %v5795
          %v5797 = vpop.f32.mrb[0].mxu0
          %v5798 = vadd.f32 0.0, %v5797
          %5799 = vmatprep.mubr.bf16.mxu0 %v4472
          %5800 = vmatmul.mubr.bf16.gmra.mrb[0].mxu0 %v4471
          %v5801 = vpop.f32.mrb[0].mxu0
          %v5802 = vadd.f32 0.0, %v5801
          %v5803 = vpop.f32.mrb[0].mxu0
          %v5804 = vadd.f32 0.0, %v5803
          %v5805 = vpop.f32.mrb[0].mxu0
          %v5806 = vadd.f32 0.0, %v5805
          %v5807 = vpop.f32.mrb[0].mxu0
          %v5808 = vadd.f32 0.0, %v5807
          %5809 = vmatprep.mubr.bf16.mxu0 %v4476
          %5810 = vmatmul.mubr.bf16.gmra.mrb[0].mxu0 %v4475
          %v5811 = vpop.f32.mrb[0].mxu0
          %v5812 = vadd.f32 0.0, %v5811
          %v5813 = vpop.f32.mrb[0].mxu0
          %v5814 = vadd.f32 0.0, %v5813
          %v5815 = vpop.f32.mrb[0].mxu0
          %v5816 = vadd.f32 0.0, %v5815
          %v5817 = vpop.f32.mrb[0].mxu0
          %v5818 = vadd.f32 0.0, %v5817
          %5819 = vmatprep.mubr.bf16.mxu0 %v4480
          %5820 = vmatmul.mubr.bf16.gmra.mrb[0].mxu0 %v4479
          %v5821 = vpop.f32.mrb[0].mxu0
          %v5822 = vadd.f32 0.0, %v5821
          %v5823 = vpop.f32.mrb[0].mxu0
          %v5824 = vadd.f32 0.0, %v5823
          %v5825 = vpop.f32.mrb[0].mxu0
          %v5826 = vadd.f32 0.0, %v5825
          %v5827 = vpop.f32.mrb[0].mxu0
          %v5828 = vadd.f32 0.0, %v5827
          %5829 = vdwg.mxu0
          %5830 = vmatprep.subr.bf16.mxu0 %v5062
          %5831 = vmatpush1.bf16.msra.mxu0 %v5061
          %5832 = vmatprep.subr.bf16.mxu0 %v5066
          %5833 = vmatpush1.bf16.msra.mxu0 %v5065
          %5834 = vmatprep.subr.bf16.mxu0 %v5070
          %5835 = vmatpush1.bf16.msra.mxu0 %v5069
          %5836 = vmatprep.subr.bf16.mxu0 %v5074
          %5837 = vmatpush1.bf16.msra.mxu0 %v5073
          %5838 = vmatprep.subr.bf16.mxu0 %v5078
          %5839 = vmatpush1.bf16.msra.mxu0 %v5077
          %5840 = vmatprep.subr.bf16.mxu0 %v5082
          %5841 = vmatpush1.bf16.msra.mxu0 %v5081
          %5842 = vmatprep.subr.bf16.mxu0 %v5086
          %5843 = vmatpush1.bf16.msra.mxu0 %v5085
          %5844 = vmatprep.subr.bf16.mxu0 %v5090
          %5845 = vmatpush1.bf16.msra.mxu0 %v5089
          %5846 = vmatprep.subr.bf16.mxu0 %v5094
          %5847 = vmatpush1.bf16.msra.mxu0 %v5093
          %5848 = vmatprep.subr.bf16.mxu0 %v5098
          %5849 = vmatpush1.bf16.msra.mxu0 %v5097
          %5850 = vmatprep.subr.bf16.mxu0 %v5102
          %5851 = vmatpush1.bf16.msra.mxu0 %v5101
          %5852 = vmatprep.subr.bf16.mxu0 %v5106
          %5853 = vmatpush1.bf16.msra.mxu0 %v5105
          %5854 = vmatprep.subr.bf16.mxu0 %v5110
          %5855 = vmatpush1.bf16.msra.mxu0 %v5109
          %5856 = vmatprep.subr.bf16.mxu0 %v5114
          %5857 = vmatpush1.bf16.msra.mxu0 %v5113
          %5858 = vmatprep.subr.bf16.mxu0 %v5118
          %5859 = vmatpush1.bf16.msra.mxu0 %v5117
          %5860 = vmatprep.subr.bf16.mxu0 %v5122
          %5861 = vmatpush1.bf16.msra.mxu0 %v5121
          %5862 = vmatprep.mubr.bf16.mxu0 %v4422
          %5863 = vmatmul.mubr.bf16.gmra.mrb[0].mxu0 %v4421
          %v5864 = vpop.f32.mrb[0].mxu0
          %v5865 = vadd.f32 %v5672, %v5864
          %v5866 = vpop.f32.mrb[0].mxu0
          %v5867 = vadd.f32 %v5674, %v5866
          %v5868 = vpop.f32.mrb[0].mxu0
          %v5869 = vadd.f32 %v5676, %v5868
          %v5870 = vpop.f32.mrb[0].mxu0
          %v5871 = vadd.f32 %v5678, %v5870
          %5872 = vmatprep.mubr.bf16.mxu0 %v4426
          %5873 = vmatmul.mubr.bf16.gmra.mrb[0].mxu0 %v4425
          %v5874 = vpop.f32.mrb[0].mxu0
          %v5875 = vadd.f32 %v5682, %v5874
          %v5876 = vpop.f32.mrb[0].mxu0
          %v5877 = vadd.f32 %v5684, %v5876
          %v5878 = vpop.f32.mrb[0].mxu0
          %v5879 = vadd.f32 %v5686, %v5878
          %v5880 = vpop.f32.mrb[0].mxu0
          %v5881 = vadd.f32 %v5688, %v5880
          %5882 = vmatprep.mubr.bf16.mxu0 %v4430
          %5883 = vmatmul.mubr.bf16.gmra.mrb[0].mxu0 %v4429
          %v5884 = vpop.f32.mrb[0].mxu0
          %v5885 = vadd.f32 %v5692, %v5884
          %v5886 = vpop.f32.mrb[0].mxu0
          %v5887 = vadd.f32 %v5694, %v5886
          %v5888 = vpop.f32.mrb[0].mxu0
          %v5889 = vadd.f32 %v5696, %v5888
          %v5890 = vpop.f32.mrb[0].mxu0
          %v5891 = vadd.f32 %v5698, %v5890
          %5892 = vmatprep.mubr.bf16.mxu0 %v4434
          %5893 = vmatmul.mubr.bf16.gmra.mrb[0].mxu0 %v4433
          %v5894 = vpop.f32.mrb[0].mxu0
          %v5895 = vadd.f32 %v5702, %v5894
          %v5896 = vpop.f32.mrb[0].mxu0
          %v5897 = vadd.f32 %v5704, %v5896
          %v5898 = vpop.f32.mrb[0].mxu0
          %v5899 = vadd.f32 %v5706, %v5898
          %v5900 = vpop.f32.mrb[0].mxu0
          %v5901 = vadd.f32 %v5708, %v5900
          %5902 = vmatprep.mubr.bf16.mxu0 %v4438
          %5903 = vmatmul.mubr.bf16.gmra.mrb[0].mxu0 %v4437
          %v5904 = vpop.f32.mrb[0].mxu0
          %v5905 = vadd.f32 %v5712, %v5904
          %v5906 = vpop.f32.mrb[0].mxu0
          %v5907 = vadd.f32 %v5714, %v5906
          %v5908 = vpop.f32.mrb[0].mxu0
          %v5909 = vadd.f32 %v5716, %v5908
          %v5910 = vpop.f32.mrb[0].mxu0
          %v5911 = vadd.f32 %v5718, %v5910
          %5912 = vmatprep.mubr.bf16.mxu0 %v4442
          %5913 = vmatmul.mubr.bf16.gmra.mrb[0].mxu0 %v4441
          %v5914 = vpop.f32.mrb[0].mxu0
          %v5915 = vadd.f32 %v5722, %v5914
          %v5916 = vpop.f32.mrb[0].mxu0
          %v5917 = vadd.f32 %v5724, %v5916
          %v5918 = vpop.f32.mrb[0].mxu0
          %v5919 = vadd.f32 %v5726, %v5918
          %v5920 = vpop.f32.mrb[0].mxu0
          %v5921 = vadd.f32 %v5728, %v5920
          %5922 = vmatprep.mubr.bf16.mxu0 %v4446
          %5923 = vmatmul.mubr.bf16.gmra.mrb[0].mxu0 %v4445
          %v5924 = vpop.f32.mrb[0].mxu0
          %v5925 = vadd.f32 %v5732, %v5924
          %v5926 = vpop.f32.mrb[0].mxu0
          %v5927 = vadd.f32 %v5734, %v5926
          %v5928 = vpop.f32.mrb[0].mxu0
          %v5929 = vadd.f32 %v5736, %v5928
          %v5930 = vpop.f32.mrb[0].mxu0
          %v5931 = vadd.f32 %v5738, %v5930
          %5932 = vmatprep.mubr.bf16.mxu0 %v4450
          %5933 = vmatmul.mubr.bf16.gmra.mrb[0].mxu0 %v4449
          %v5934 = vpop.f32.mrb[0].mxu0
          %v5935 = vadd.f32 %v5742, %v5934
          %v5936 = vpop.f32.mrb[0].mxu0
          %v5937 = vadd.f32 %v5744, %v5936
          %v5938 = vpop.f32.mrb[0].mxu0
          %v5939 = vadd.f32 %v5746, %v5938
          %v5940 = vpop.f32.mrb[0].mxu0
          %v5941 = vadd.f32 %v5748, %v5940
          %5942 = vmatprep.mubr.bf16.mxu0 %v4454
          %5943 = vmatmul.mubr.bf16.gmra.mrb[0].mxu0 %v4453
          %v5944 = vpop.f32.mrb[0].mxu0
          %v5945 = vadd.f32 %v5752, %v5944
          %v5946 = vpop.f32.mrb[0].mxu0
          %v5947 = vadd.f32 %v5754, %v5946
          %v5948 = vpop.f32.mrb[0].mxu0
          %v5949 = vadd.f32 %v5756, %v5948
          %v5950 = vpop.f32.mrb[0].mxu0
          %v5951 = vadd.f32 %v5758, %v5950
          %5952 = vmatprep.mubr.bf16.mxu0 %v4458
          %5953 = vmatmul.mubr.bf16.gmra.mrb[0].mxu0 %v4457
          %v5954 = vpop.f32.mrb[0].mxu0
          %v5955 = vadd.f32 %v5762, %v5954
          %v5956 = vpop.f32.mrb[0].mxu0
          %v5957 = vadd.f32 %v5764, %v5956
          %v5958 = vpop.f32.mrb[0].mxu0
          %v5959 = vadd.f32 %v5766, %v5958
          %v5960 = vpop.f32.mrb[0].mxu0
          %v5961 = vadd.f32 %v5768, %v5960
          %5962 = vmatprep.mubr.bf16.mxu0 %v4462
          %5963 = vmatmul.mubr.bf16.gmra.mrb[0].mxu0 %v4461
          %v5964 = vpop.f32.mrb[0].mxu0
          %v5965 = vadd.f32 %v5772, %v5964
          %v5966 = vpop.f32.mrb[0].mxu0
          %v5967 = vadd.f32 %v5774, %v5966
          %v5968 = vpop.f32.mrb[0].mxu0
          %v5969 = vadd.f32 %v5776, %v5968
          %v5970 = vpop.f32.mrb[0].mxu0
          %v5971 = vadd.f32 %v5778, %v5970
          %5972 = vmatprep.mubr.bf16.mxu0 %v4466
          %5973 = vmatmul.mubr.bf16.gmra.mrb[0].mxu0 %v4465
          %v5974 = vpop.f32.mrb[0].mxu0
          %v5975 = vadd.f32 %v5782, %v5974
          %v5976 = vpop.f32.mrb[0].mxu0
          %v5977 = vadd.f32 %v5784, %v5976
          %v5978 = vpop.f32.mrb[0].mxu0
          %v5979 = vadd.f32 %v5786, %v5978
          %v5980 = vpop.f32.mrb[0].mxu0
          %v5981 = vadd.f32 %v5788, %v5980
          %5982 = vmatprep.mubr.bf16.mxu0 %v4470
          %5983 = vmatmul.mubr.bf16.gmra.mrb[0].mxu0 %v4469
          %v5984 = vpop.f32.mrb[0].mxu0
          %v5985 = vadd.f32 %v5792, %v5984
          %v5986 = vpop.f32.mrb[0].mxu0
          %v5987 = vadd.f32 %v5794, %v5986
          %v5988 = vpop.f32.mrb[0].mxu0
          %v5989 = vadd.f32 %v5796, %v5988
          %v5990 = vpop.f32.mrb[0].mxu0
          %v5991 = vadd.f32 %v5798, %v5990
          %5992 = vmatprep.mubr.bf16.mxu0 %v4474
          %5993 = vmatmul.mubr.bf16.gmra.mrb[0].mxu0 %v4473
          %v5994 = vpop.f32.mrb[0].mxu0
          %v5995 = vadd.f32 %v5802, %v5994
          %v5996 = vpop.f32.mrb[0].mxu0
          %v5997 = vadd.f32 %v5804, %v5996
          %v5998 = vpop.f32.mrb[0].mxu0
          %v5999 = vadd.f32 %v5806, %v5998
          %v6000 = vpop.f32.mrb[0].mxu0
          %v6001 = vadd.f32 %v5808, %v6000
          %6002 = vmatprep.mubr.bf16.mxu0 %v4478
          %6003 = vmatmul.mubr.bf16.gmra.mrb[0].mxu0 %v4477
          %v6004 = vpop.f32.mrb[0].mxu0
          %v6005 = vadd.f32 %v5812, %v6004
          %v6006 = vpop.f32.mrb[0].mxu0
          %v6007 = vadd.f32 %v5814, %v6006
          %v6008 = vpop.f32.mrb[0].mxu0
          %v6009 = vadd.f32 %v5816, %v6008
          %v6010 = vpop.f32.mrb[0].mxu0
          %v6011 = vadd.f32 %v5818, %v6010
          %6012 = vmatprep.mubr.bf16.mxu0 %v4482
          %6013 = vmatmul.mubr.bf16.gmra.mrb[0].mxu0 %v4481
          %v6014 = vpop.f32.mrb[0].mxu0
          %v6015 = vadd.f32 %v5822, %v6014
          %v6016 = vpop.f32.mrb[0].mxu0
          %v6017 = vadd.f32 %v5824, %v6016
          %v6018 = vpop.f32.mrb[0].mxu0
          %v6019 = vadd.f32 %v5826, %v6018
          %v6020 = vpop.f32.mrb[0].mxu0
          %v6021 = vadd.f32 %v5828, %v6020
          %6022 = vdwg.mxu0
          %v6023 = vld [vmem:[%s5] sm:$0xf]
          %v6024 = vld [vmem:[%s5 + $0x4] sm:$0xf]
          %v6025 = vld [vmem:[%s5 + $0x8] sm:$0xf]
          %v6026 = vld [vmem:[%s5 + $0xc] sm:$0xf]
          %v6027 = vld [vmem:[%s5 + $0x10] sm:$0xf]
          %v6028 = vld [vmem:[%s5 + $0x14] sm:$0xf]
          %v6029 = vld [vmem:[%s5 + $0x18] sm:$0xf]
          %v6030 = vld [vmem:[%s5 + $0x1c] sm:$0xf]
          %v6031 = vld [vmem:[%s5 + $0x20] sm:$0xf]
          %v6032 = vld [vmem:[%s5 + $0x24] sm:$0xf]
          %v6033 = vld [vmem:[%s5 + $0x28] sm:$0xf]
          %v6034 = vld [vmem:[%s5 + $0x2c] sm:$0xf]
          %v6035 = vld [vmem:[%s5 + $0x30] sm:$0xf]
          %v6036 = vld [vmem:[%s5 + $0x34] sm:$0xf]
          %v6037 = vld [vmem:[%s5 + $0x38] sm:$0xf]
          %v6038 = vld [vmem:[%s5 + $0x3c] sm:$0xf]
          %v6039 = vld [vmem:[%s5 + $0x40] sm:$0xf]
          %v6040 = vld [vmem:[%s5 + $0x44] sm:$0xf]
          %v6041 = vld [vmem:[%s5 + $0x48] sm:$0xf]
          %v6042 = vld [vmem:[%s5 + $0x4c] sm:$0xf]
          %v6043 = vld [vmem:[%s5 + $0x50] sm:$0xf]
          %v6044 = vld [vmem:[%s5 + $0x54] sm:$0xf]
          %v6045 = vld [vmem:[%s5 + $0x58] sm:$0xf]
          %v6046 = vld [vmem:[%s5 + $0x5c] sm:$0xf]
          %v6047 = vld [vmem:[%s5 + $0x60] sm:$0xf]
          %v6048 = vld [vmem:[%s5 + $0x64] sm:$0xf]
          %v6049 = vld [vmem:[%s5 + $0x68] sm:$0xf]
          %v6050 = vld [vmem:[%s5 + $0x6c] sm:$0xf]
          %v6051 = vld [vmem:[%s5 + $0x70] sm:$0xf]
          %v6052 = vld [vmem:[%s5 + $0x74] sm:$0xf]
          %v6053 = vld [vmem:[%s5 + $0x78] sm:$0xf]
          %v6054 = vld [vmem:[%s5 + $0x7c] sm:$0xf]
          %v6055 = vld [vmem:[%s5 + $0x80] sm:$0xf]
          %v6056 = vld [vmem:[%s5 + $0x84] sm:$0xf]
          %v6057 = vld [vmem:[%s5 + $0x88] sm:$0xf]
          %v6058 = vld [vmem:[%s5 + $0x8c] sm:$0xf]
          %v6059 = vld [vmem:[%s5 + $0x90] sm:$0xf]
          %v6060 = vld [vmem:[%s5 + $0x94] sm:$0xf]
          %v6061 = vld [vmem:[%s5 + $0x98] sm:$0xf]
          %v6062 = vld [vmem:[%s5 + $0x9c] sm:$0xf]
          %v6063 = vld [vmem:[%s5 + $0xa0] sm:$0xf]
          %v6064 = vld [vmem:[%s5 + $0xa4] sm:$0xf]
          %v6065 = vld [vmem:[%s5 + $0xa8] sm:$0xf]
          %v6066 = vld [vmem:[%s5 + $0xac] sm:$0xf]
          %v6067 = vld [vmem:[%s5 + $0xb0] sm:$0xf]
          %v6068 = vld [vmem:[%s5 + $0xb4] sm:$0xf]
          %v6069 = vld [vmem:[%s5 + $0xb8] sm:$0xf]
          %v6070 = vld [vmem:[%s5 + $0xbc] sm:$0xf]
          %v6071 = vld [vmem:[%s5 + $0xc0] sm:$0xf]
          %v6072 = vld [vmem:[%s5 + $0xc4] sm:$0xf]
          %v6073 = vld [vmem:[%s5 + $0xc8] sm:$0xf]
          %v6074 = vld [vmem:[%s5 + $0xcc] sm:$0xf]
          %v6075 = vld [vmem:[%s5 + $0xd0] sm:$0xf]
          %v6076 = vld [vmem:[%s5 + $0xd4] sm:$0xf]
          %v6077 = vld [vmem:[%s5 + $0xd8] sm:$0xf]
          %v6078 = vld [vmem:[%s5 + $0xdc] sm:$0xf]
          %v6079 = vld [vmem:[%s5 + $0xe0] sm:$0xf]
          %v6080 = vld [vmem:[%s5 + $0xe4] sm:$0xf]
          %v6081 = vld [vmem:[%s5 + $0xe8] sm:$0xf]
          %v6082 = vld [vmem:[%s5 + $0xec] sm:$0xf]
          %v6083 = vld [vmem:[%s5 + $0xf0] sm:$0xf]
          %v6084 = vld [vmem:[%s5 + $0xf4] sm:$0xf]
          %v6085 = vld [vmem:[%s5 + $0xf8] sm:$0xf]
          %v6086 = vld [vmem:[%s5 + $0xfc] sm:$0xf]
          %v6151 = vunpack.c.l.b16 %v6023
          %v6152 = vunpack.c.l.b16 %v6024
          %v6153 = vunpack.c.l.b16 %v6025
          %v6154 = vunpack.c.l.b16 %v6026
          %v6155 = vunpack.c.l.b16 %v6027
          %v6156 = vunpack.c.l.b16 %v6028
          %v6157 = vunpack.c.l.b16 %v6029
          %v6158 = vunpack.c.l.b16 %v6030
          %v6159 = vunpack.c.l.b16 %v6031
          %v6160 = vunpack.c.l.b16 %v6032
          %v6161 = vunpack.c.l.b16 %v6033
          %v6162 = vunpack.c.l.b16 %v6034
          %v6163 = vunpack.c.l.b16 %v6035
          %v6164 = vunpack.c.l.b16 %v6036
          %v6165 = vunpack.c.l.b16 %v6037
          %v6166 = vunpack.c.l.b16 %v6038
          %v6167 = vunpack.c.l.b16 %v6039
          %v6168 = vunpack.c.l.b16 %v6040
          %v6169 = vunpack.c.l.b16 %v6041
          %v6170 = vunpack.c.l.b16 %v6042
          %v6171 = vunpack.c.l.b16 %v6043
          %v6172 = vunpack.c.l.b16 %v6044
          %v6173 = vunpack.c.l.b16 %v6045
          %v6174 = vunpack.c.l.b16 %v6046
          %v6175 = vunpack.c.l.b16 %v6047
          %v6176 = vunpack.c.l.b16 %v6048
          %v6177 = vunpack.c.l.b16 %v6049
          %v6178 = vunpack.c.l.b16 %v6050
          %v6179 = vunpack.c.l.b16 %v6051
          %v6180 = vunpack.c.l.b16 %v6052
          %v6181 = vunpack.c.l.b16 %v6053
          %v6182 = vunpack.c.l.b16 %v6054
          %v6183 = vunpack.c.l.b16 %v6055
          %v6184 = vunpack.c.l.b16 %v6056
          %v6185 = vunpack.c.l.b16 %v6057
          %v6186 = vunpack.c.l.b16 %v6058
          %v6187 = vunpack.c.l.b16 %v6059
          %v6188 = vunpack.c.l.b16 %v6060
          %v6189 = vunpack.c.l.b16 %v6061
          %v6190 = vunpack.c.l.b16 %v6062
          %v6191 = vunpack.c.l.b16 %v6063
          %v6192 = vunpack.c.l.b16 %v6064
          %v6193 = vunpack.c.l.b16 %v6065
          %v6194 = vunpack.c.l.b16 %v6066
          %v6195 = vunpack.c.l.b16 %v6067
          %v6196 = vunpack.c.l.b16 %v6068
          %v6197 = vunpack.c.l.b16 %v6069
          %v6198 = vunpack.c.l.b16 %v6070
          %v6199 = vunpack.c.l.b16 %v6071
          %v6200 = vunpack.c.l.b16 %v6072
          %v6201 = vunpack.c.l.b16 %v6073
          %v6202 = vunpack.c.l.b16 %v6074
          %v6203 = vunpack.c.l.b16 %v6075
          %v6204 = vunpack.c.l.b16 %v6076
          %v6205 = vunpack.c.l.b16 %v6077
          %v6206 = vunpack.c.l.b16 %v6078
          %v6207 = vunpack.c.l.b16 %v6079
          %v6208 = vunpack.c.l.b16 %v6080
          %v6209 = vunpack.c.l.b16 %v6081
          %v6210 = vunpack.c.l.b16 %v6082
          %v6211 = vunpack.c.l.b16 %v6083
          %v6212 = vunpack.c.l.b16 %v6084
          %v6213 = vunpack.c.l.b16 %v6085
          %v6214 = vunpack.c.l.b16 %v6086
          %v6215 = vpack.c.b16 %v6152, %v6151
          %v6216 = vpack.c.b16 %v6154, %v6153
          %v6217 = vpack.c.b16 %v6156, %v6155
          %v6218 = vpack.c.b16 %v6158, %v6157
          %v6219 = vpack.c.b16 %v6160, %v6159
          %v6220 = vpack.c.b16 %v6162, %v6161
          %v6221 = vpack.c.b16 %v6164, %v6163
          %v6222 = vpack.c.b16 %v6166, %v6165
          %v6223 = vpack.c.b16 %v6168, %v6167
          %v6224 = vpack.c.b16 %v6170, %v6169
          %v6225 = vpack.c.b16 %v6172, %v6171
          %v6226 = vpack.c.b16 %v6174, %v6173
          %v6227 = vpack.c.b16 %v6176, %v6175
          %v6228 = vpack.c.b16 %v6178, %v6177
          %v6229 = vpack.c.b16 %v6180, %v6179
          %v6230 = vpack.c.b16 %v6182, %v6181
          %v6231 = vpack.c.b16 %v6184, %v6183
          %v6232 = vpack.c.b16 %v6186, %v6185
          %v6233 = vpack.c.b16 %v6188, %v6187
          %v6234 = vpack.c.b16 %v6190, %v6189
          %v6235 = vpack.c.b16 %v6192, %v6191
          %v6236 = vpack.c.b16 %v6194, %v6193
          %v6237 = vpack.c.b16 %v6196, %v6195
          %v6238 = vpack.c.b16 %v6198, %v6197
          %v6239 = vpack.c.b16 %v6200, %v6199
          %v6240 = vpack.c.b16 %v6202, %v6201
          %v6241 = vpack.c.b16 %v6204, %v6203
          %v6242 = vpack.c.b16 %v6206, %v6205
          %v6243 = vpack.c.b16 %v6208, %v6207
          %v6244 = vpack.c.b16 %v6210, %v6209
          %v6245 = vpack.c.b16 %v6212, %v6211
          %v6246 = vpack.c.b16 %v6214, %v6213
          %6279 = vmatprep.subr.bf16.mxu0 0
          %6280 = vmatpush1.bf16.msra.mxu0 %v6215
          %6281 = vmatprep.subr.bf16.mxu0 0
          %6282 = vmatpush1.bf16.msra.mxu0 %v6216
          %6283 = vmatprep.subr.bf16.mxu0 0
          %6284 = vmatpush1.bf16.msra.mxu0 %v6217
          %6285 = vmatprep.subr.bf16.mxu0 0
          %6286 = vmatpush1.bf16.msra.mxu0 %v6218
          %6287 = vmatprep.subr.bf16.mxu0 0
          %6288 = vmatpush1.bf16.msra.mxu0 %v6219
          %6289 = vmatprep.subr.bf16.mxu0 0
          %6290 = vmatpush1.bf16.msra.mxu0 %v6220
          %6291 = vmatprep.subr.bf16.mxu0 0
          %6292 = vmatpush1.bf16.msra.mxu0 %v6221
          %6293 = vmatprep.subr.bf16.mxu0 0
          %6294 = vmatpush1.bf16.msra.mxu0 %v6222
          %6295 = vmatprep.subr.bf16.mxu0 0
          %6296 = vmatpush1.bf16.msra.mxu0 %v6223
          %6297 = vmatprep.subr.bf16.mxu0 0
          %6298 = vmatpush1.bf16.msra.mxu0 %v6224
          %6299 = vmatprep.subr.bf16.mxu0 0
          %6300 = vmatpush1.bf16.msra.mxu0 %v6225
          %6301 = vmatprep.subr.bf16.mxu0 0
          %6302 = vmatpush1.bf16.msra.mxu0 %v6226
          %6303 = vmatprep.subr.bf16.mxu0 0
          %6304 = vmatpush1.bf16.msra.mxu0 %v6227
          %6305 = vmatprep.subr.bf16.mxu0 0
          %6306 = vmatpush1.bf16.msra.mxu0 %v6228
          %6307 = vmatprep.subr.bf16.mxu0 0
          %6308 = vmatpush1.bf16.msra.mxu0 %v6229
          %6309 = vmatprep.subr.bf16.mxu0 0
          %6310 = vmatpush1.bf16.msra.mxu0 %v6230
          %6311 = vmatprep.mubr.bf16.mxu0 %v4420
          %6312 = vmatmul.mubr.bf16.gmra.mrb[0].mxu0 %v4419
          %v6313 = vpop.f32.mrb[0].mxu0
          %v6314 = vadd.f32 0.0, %v6313
          %v6315 = vpop.f32.mrb[0].mxu0
          %v6316 = vpop.f32.mrb[0].mxu0
          %v6317 = vadd.f32 0.0, %v6316
          %v6318 = vpop.f32.mrb[0].mxu0
          %6319 = vmatprep.mubr.bf16.mxu0 %v4424
          %6320 = vmatmul.mubr.bf16.gmra.mrb[0].mxu0 %v4423
          %v6321 = vpop.f32.mrb[0].mxu0
          %v6322 = vadd.f32 0.0, %v6321
          %v6323 = vpop.f32.mrb[0].mxu0
          %v6324 = vpop.f32.mrb[0].mxu0
          %v6325 = vadd.f32 0.0, %v6324
          %v6326 = vpop.f32.mrb[0].mxu0
          %6327 = vmatprep.mubr.bf16.mxu0 %v4428
          %6328 = vmatmul.mubr.bf16.gmra.mrb[0].mxu0 %v4427
          %v6329 = vpop.f32.mrb[0].mxu0
          %v6330 = vadd.f32 0.0, %v6329
          %v6331 = vpop.f32.mrb[0].mxu0
          %v6332 = vpop.f32.mrb[0].mxu0
          %v6333 = vadd.f32 0.0, %v6332
          %v6334 = vpop.f32.mrb[0].mxu0
          %6335 = vmatprep.mubr.bf16.mxu0 %v4432
          %6336 = vmatmul.mubr.bf16.gmra.mrb[0].mxu0 %v4431
          %v6337 = vpop.f32.mrb[0].mxu0
          %v6338 = vadd.f32 0.0, %v6337
          %v6339 = vpop.f32.mrb[0].mxu0
          %v6340 = vpop.f32.mrb[0].mxu0
          %v6341 = vadd.f32 0.0, %v6340
          %v6342 = vpop.f32.mrb[0].mxu0
          %6343 = vmatprep.mubr.bf16.mxu0 %v4436
          %6344 = vmatmul.mubr.bf16.gmra.mrb[0].mxu0 %v4435
          %v6345 = vpop.f32.mrb[0].mxu0
          %v6346 = vadd.f32 0.0, %v6345
          %v6347 = vpop.f32.mrb[0].mxu0
          %v6348 = vpop.f32.mrb[0].mxu0
          %v6349 = vadd.f32 0.0, %v6348
          %v6350 = vpop.f32.mrb[0].mxu0
          %6351 = vmatprep.mubr.bf16.mxu0 %v4440
          %6352 = vmatmul.mubr.bf16.gmra.mrb[0].mxu0 %v4439
          %v6353 = vpop.f32.mrb[0].mxu0
          %v6354 = vadd.f32 0.0, %v6353
          %v6355 = vpop.f32.mrb[0].mxu0
          %v6356 = vpop.f32.mrb[0].mxu0
          %v6357 = vadd.f32 0.0, %v6356
          %v6358 = vpop.f32.mrb[0].mxu0
          %6359 = vmatprep.mubr.bf16.mxu0 %v4444
          %6360 = vmatmul.mubr.bf16.gmra.mrb[0].mxu0 %v4443
          %v6361 = vpop.f32.mrb[0].mxu0
          %v6362 = vadd.f32 0.0, %v6361
          %v6363 = vpop.f32.mrb[0].mxu0
          %v6364 = vpop.f32.mrb[0].mxu0
          %v6365 = vadd.f32 0.0, %v6364
          %v6366 = vpop.f32.mrb[0].mxu0
          %6367 = vmatprep.mubr.bf16.mxu0 %v4448
          %6368 = vmatmul.mubr.bf16.gmra.mrb[0].mxu0 %v4447
          %v6369 = vpop.f32.mrb[0].mxu0
          %v6370 = vadd.f32 0.0, %v6369
          %v6371 = vpop.f32.mrb[0].mxu0
          %v6372 = vpop.f32.mrb[0].mxu0
          %v6373 = vadd.f32 0.0, %v6372
          %v6374 = vpop.f32.mrb[0].mxu0
          %6375 = vmatprep.mubr.bf16.mxu0 %v4452
          %6376 = vmatmul.mubr.bf16.gmra.mrb[0].mxu0 %v4451
          %v6377 = vpop.f32.mrb[0].mxu0
          %v6378 = vadd.f32 0.0, %v6377
          %v6379 = vpop.f32.mrb[0].mxu0
          %v6380 = vpop.f32.mrb[0].mxu0
          %v6381 = vadd.f32 0.0, %v6380
          %v6382 = vpop.f32.mrb[0].mxu0
          %6383 = vmatprep.mubr.bf16.mxu0 %v4456
          %6384 = vmatmul.mubr.bf16.gmra.mrb[0].mxu0 %v4455
          %v6385 = vpop.f32.mrb[0].mxu0
          %v6386 = vadd.f32 0.0, %v6385
          %v6387 = vpop.f32.mrb[0].mxu0
          %v6388 = vpop.f32.mrb[0].mxu0
          %v6389 = vadd.f32 0.0, %v6388
          %v6390 = vpop.f32.mrb[0].mxu0
          %6391 = vmatprep.mubr.bf16.mxu0 %v4460
          %6392 = vmatmul.mubr.bf16.gmra.mrb[0].mxu0 %v4459
          %v6393 = vpop.f32.mrb[0].mxu0
          %v6394 = vadd.f32 0.0, %v6393
          %v6395 = vpop.f32.mrb[0].mxu0
          %v6396 = vpop.f32.mrb[0].mxu0
          %v6397 = vadd.f32 0.0, %v6396
          %v6398 = vpop.f32.mrb[0].mxu0
          %6399 = vmatprep.mubr.bf16.mxu0 %v4464
          %6400 = vmatmul.mubr.bf16.gmra.mrb[0].mxu0 %v4463
          %v6401 = vpop.f32.mrb[0].mxu0
          %v6402 = vadd.f32 0.0, %v6401
          %v6403 = vpop.f32.mrb[0].mxu0
          %v6404 = vpop.f32.mrb[0].mxu0
          %v6405 = vadd.f32 0.0, %v6404
          %v6406 = vpop.f32.mrb[0].mxu0
          %6407 = vmatprep.mubr.bf16.mxu0 %v4468
          %6408 = vmatmul.mubr.bf16.gmra.mrb[0].mxu0 %v4467
          %v6409 = vpop.f32.mrb[0].mxu0
          %v6410 = vadd.f32 0.0, %v6409
          %v6411 = vpop.f32.mrb[0].mxu0
          %v6412 = vpop.f32.mrb[0].mxu0
          %v6413 = vadd.f32 0.0, %v6412
          %v6414 = vpop.f32.mrb[0].mxu0
          %6415 = vmatprep.mubr.bf16.mxu0 %v4472
          %6416 = vmatmul.mubr.bf16.gmra.mrb[0].mxu0 %v4471
          %v6417 = vpop.f32.mrb[0].mxu0
          %v6418 = vadd.f32 0.0, %v6417
          %v6419 = vpop.f32.mrb[0].mxu0
          %v6420 = vpop.f32.mrb[0].mxu0
          %v6421 = vadd.f32 0.0, %v6420
          %v6422 = vpop.f32.mrb[0].mxu0
          %6423 = vmatprep.mubr.bf16.mxu0 %v4476
          %6424 = vmatmul.mubr.bf16.gmra.mrb[0].mxu0 %v4475
          %v6425 = vpop.f32.mrb[0].mxu0
          %v6426 = vadd.f32 0.0, %v6425
          %v6427 = vpop.f32.mrb[0].mxu0
          %v6428 = vpop.f32.mrb[0].mxu0
          %v6429 = vadd.f32 0.0, %v6428
          %v6430 = vpop.f32.mrb[0].mxu0
          %6431 = vmatprep.mubr.bf16.mxu0 %v4480
          %6432 = vmatmul.mubr.bf16.gmra.mrb[0].mxu0 %v4479
          %v6433 = vpop.f32.mrb[0].mxu0
          %v6434 = vadd.f32 0.0, %v6433
          %v6435 = vpop.f32.mrb[0].mxu0
          %v6436 = vpop.f32.mrb[0].mxu0
          %v6437 = vadd.f32 0.0, %v6436
          %v6438 = vpop.f32.mrb[0].mxu0
          %6439 = vdwg.mxu0
          %6440 = vmatprep.subr.bf16.mxu0 0
          %6441 = vmatpush1.bf16.msra.mxu0 %v6231
          %6442 = vmatprep.subr.bf16.mxu0 0
          %6443 = vmatpush1.bf16.msra.mxu0 %v6232
          %6444 = vmatprep.subr.bf16.mxu0 0
          %6445 = vmatpush1.bf16.msra.mxu0 %v6233
          %6446 = vmatprep.subr.bf16.mxu0 0
          %6447 = vmatpush1.bf16.msra.mxu0 %v6234
          %6448 = vmatprep.subr.bf16.mxu0 0
          %6449 = vmatpush1.bf16.msra.mxu0 %v6235
          %6450 = vmatprep.subr.bf16.mxu0 0
          %6451 = vmatpush1.bf16.msra.mxu0 %v6236
          %6452 = vmatprep.subr.bf16.mxu0 0
          %6453 = vmatpush1.bf16.msra.mxu0 %v6237
          %6454 = vmatprep.subr.bf16.mxu0 0
          %6455 = vmatpush1.bf16.msra.mxu0 %v6238
          %6456 = vmatprep.subr.bf16.mxu0 0
          %6457 = vmatpush1.bf16.msra.mxu0 %v6239
          %6458 = vmatprep.subr.bf16.mxu0 0
          %6459 = vmatpush1.bf16.msra.mxu0 %v6240
          %6460 = vmatprep.subr.bf16.mxu0 0
          %6461 = vmatpush1.bf16.msra.mxu0 %v6241
          %6462 = vmatprep.subr.bf16.mxu0 0
          %6463 = vmatpush1.bf16.msra.mxu0 %v6242
          %6464 = vmatprep.subr.bf16.mxu0 0
          %6465 = vmatpush1.bf16.msra.mxu0 %v6243
          %6466 = vmatprep.subr.bf16.mxu0 0
          %6467 = vmatpush1.bf16.msra.mxu0 %v6244
          %6468 = vmatprep.subr.bf16.mxu0 0
          %6469 = vmatpush1.bf16.msra.mxu0 %v6245
          %6470 = vmatprep.subr.bf16.mxu0 0
          %6471 = vmatpush1.bf16.msra.mxu0 %v6246
          %6472 = vmatprep.mubr.bf16.mxu0 %v4422
          %6473 = vmatmul.mubr.bf16.gmra.mrb[0].mxu0 %v4421
          %v6474 = vpop.f32.mrb[0].mxu0
          %v6475 = vadd.f32 %v6314, %v6474
          %v6476 = vpop.f32.mrb[0].mxu0
          %v6477 = vpop.f32.mrb[0].mxu0
          %v6478 = vadd.f32 %v6317, %v6477
          %v6479 = vpop.f32.mrb[0].mxu0
          %6480 = vmatprep.mubr.bf16.mxu0 %v4426
          %6481 = vmatmul.mubr.bf16.gmra.mrb[0].mxu0 %v4425
          %v6482 = vpop.f32.mrb[0].mxu0
          %v6483 = vadd.f32 %v6322, %v6482
          %v6484 = vpop.f32.mrb[0].mxu0
          %v6485 = vpop.f32.mrb[0].mxu0
          %v6486 = vadd.f32 %v6325, %v6485
          %v6487 = vpop.f32.mrb[0].mxu0
          %6488 = vmatprep.mubr.bf16.mxu0 %v4430
          %6489 = vmatmul.mubr.bf16.gmra.mrb[0].mxu0 %v4429
          %v6490 = vpop.f32.mrb[0].mxu0
          %v6491 = vadd.f32 %v6330, %v6490
          %v6492 = vpop.f32.mrb[0].mxu0
          %v6493 = vpop.f32.mrb[0].mxu0
          %v6494 = vadd.f32 %v6333, %v6493
          %v6495 = vpop.f32.mrb[0].mxu0
          %6496 = vmatprep.mubr.bf16.mxu0 %v4434
          %6497 = vmatmul.mubr.bf16.gmra.mrb[0].mxu0 %v4433
          %v6498 = vpop.f32.mrb[0].mxu0
          %v6499 = vadd.f32 %v6338, %v6498
          %v6500 = vpop.f32.mrb[0].mxu0
          %v6501 = vpop.f32.mrb[0].mxu0
          %v6502 = vadd.f32 %v6341, %v6501
          %v6503 = vpop.f32.mrb[0].mxu0
          %6504 = vmatprep.mubr.bf16.mxu0 %v4438
          %6505 = vmatmul.mubr.bf16.gmra.mrb[0].mxu0 %v4437
          %v6506 = vpop.f32.mrb[0].mxu0
          %v6507 = vadd.f32 %v6346, %v6506
          %v6508 = vpop.f32.mrb[0].mxu0
          %v6509 = vpop.f32.mrb[0].mxu0
          %v6510 = vadd.f32 %v6349, %v6509
          %v6511 = vpop.f32.mrb[0].mxu0
          %6512 = vmatprep.mubr.bf16.mxu0 %v4442
          %6513 = vmatmul.mubr.bf16.gmra.mrb[0].mxu0 %v4441
          %v6514 = vpop.f32.mrb[0].mxu0
          %v6515 = vadd.f32 %v6354, %v6514
          %v6516 = vpop.f32.mrb[0].mxu0
          %v6517 = vpop.f32.mrb[0].mxu0
          %v6518 = vadd.f32 %v6357, %v6517
          %v6519 = vpop.f32.mrb[0].mxu0
          %6520 = vmatprep.mubr.bf16.mxu0 %v4446
          %6521 = vmatmul.mubr.bf16.gmra.mrb[0].mxu0 %v4445
          %v6522 = vpop.f32.mrb[0].mxu0
          %v6523 = vadd.f32 %v6362, %v6522
          %v6524 = vpop.f32.mrb[0].mxu0
          %v6525 = vpop.f32.mrb[0].mxu0
          %v6526 = vadd.f32 %v6365, %v6525
          %v6527 = vpop.f32.mrb[0].mxu0
          %6528 = vmatprep.mubr.bf16.mxu0 %v4450
          %6529 = vmatmul.mubr.bf16.gmra.mrb[0].mxu0 %v4449
          %v6530 = vpop.f32.mrb[0].mxu0
          %v6531 = vadd.f32 %v6370, %v6530
          %v6532 = vpop.f32.mrb[0].mxu0
          %v6533 = vpop.f32.mrb[0].mxu0
          %v6534 = vadd.f32 %v6373, %v6533
          %v6535 = vpop.f32.mrb[0].mxu0
          %6536 = vmatprep.mubr.bf16.mxu0 %v4454
          %6537 = vmatmul.mubr.bf16.gmra.mrb[0].mxu0 %v4453
          %v6538 = vpop.f32.mrb[0].mxu0
          %v6539 = vadd.f32 %v6378, %v6538
          %v6540 = vpop.f32.mrb[0].mxu0
          %v6541 = vpop.f32.mrb[0].mxu0
          %v6542 = vadd.f32 %v6381, %v6541
          %v6543 = vpop.f32.mrb[0].mxu0
          %6544 = vmatprep.mubr.bf16.mxu0 %v4458
          %6545 = vmatmul.mubr.bf16.gmra.mrb[0].mxu0 %v4457
          %v6546 = vpop.f32.mrb[0].mxu0
          %v6547 = vadd.f32 %v6386, %v6546
          %v6548 = vpop.f32.mrb[0].mxu0
          %v6549 = vpop.f32.mrb[0].mxu0
          %v6550 = vadd.f32 %v6389, %v6549
          %v6551 = vpop.f32.mrb[0].mxu0
          %6552 = vmatprep.mubr.bf16.mxu0 %v4462
          %6553 = vmatmul.mubr.bf16.gmra.mrb[0].mxu0 %v4461
          %v6554 = vpop.f32.mrb[0].mxu0
          %v6555 = vadd.f32 %v6394, %v6554
          %v6556 = vpop.f32.mrb[0].mxu0
          %v6557 = vpop.f32.mrb[0].mxu0
          %v6558 = vadd.f32 %v6397, %v6557
          %v6559 = vpop.f32.mrb[0].mxu0
          %6560 = vmatprep.mubr.bf16.mxu0 %v4466
          %6561 = vmatmul.mubr.bf16.gmra.mrb[0].mxu0 %v4465
          %v6562 = vpop.f32.mrb[0].mxu0
          %v6563 = vadd.f32 %v6402, %v6562
          %v6564 = vpop.f32.mrb[0].mxu0
          %v6565 = vpop.f32.mrb[0].mxu0
          %v6566 = vadd.f32 %v6405, %v6565
          %v6567 = vpop.f32.mrb[0].mxu0
          %6568 = vmatprep.mubr.bf16.mxu0 %v4470
          %6569 = vmatmul.mubr.bf16.gmra.mrb[0].mxu0 %v4469
          %v6570 = vpop.f32.mrb[0].mxu0
          %v6571 = vadd.f32 %v6410, %v6570
          %v6572 = vpop.f32.mrb[0].mxu0
          %v6573 = vpop.f32.mrb[0].mxu0
          %v6574 = vadd.f32 %v6413, %v6573
          %v6575 = vpop.f32.mrb[0].mxu0
          %6576 = vmatprep.mubr.bf16.mxu0 %v4474
          %6577 = vmatmul.mubr.bf16.gmra.mrb[0].mxu0 %v4473
          %v6578 = vpop.f32.mrb[0].mxu0
          %v6579 = vadd.f32 %v6418, %v6578
          %v6580 = vpop.f32.mrb[0].mxu0
          %v6581 = vpop.f32.mrb[0].mxu0
          %v6582 = vadd.f32 %v6421, %v6581
          %v6583 = vpop.f32.mrb[0].mxu0
          %6584 = vmatprep.mubr.bf16.mxu0 %v4478
          %6585 = vmatmul.mubr.bf16.gmra.mrb[0].mxu0 %v4477
          %v6586 = vpop.f32.mrb[0].mxu0
          %v6587 = vadd.f32 %v6426, %v6586
          %v6588 = vpop.f32.mrb[0].mxu0
          %v6589 = vpop.f32.mrb[0].mxu0
          %v6590 = vadd.f32 %v6429, %v6589
          %v6591 = vpop.f32.mrb[0].mxu0
          %6592 = vmatprep.mubr.bf16.mxu0 %v4482
          %6593 = vmatmul.mubr.bf16.gmra.mrb[0].mxu0 %v4481
          %v6594 = vpop.f32.mrb[0].mxu0
          %v6595 = vadd.f32 %v6434, %v6594
          %v6596 = vpop.f32.mrb[0].mxu0
          %v6597 = vpop.f32.mrb[0].mxu0
          %v6598 = vadd.f32 %v6437, %v6597
          %v6599 = vpop.f32.mrb[0].mxu0
          %6600 = vdwg.mxu0
          %v6601 = vld [vmem:[%s3] sm:$0xff]
          %v6604 = vunpack.c.l.s4 1966171168
          %v6605 = vunpack.c.0.s8 %v6604
          %v6606 = vlaneseq
          %v6607 = vshrl.u32 %v6606, 7
          %v6608 = vsub.s32 %v6605, %v6607
          %v6609 = vrot.slane %v6601, %v6608
          %v6610 = vcombine.high %v6609, %v6609
          %v6612 = vunpack.c.l.s4 1966171168
          %v6613 = vunpack.c.0.s8 %v6612
          %v6614 = vlaneseq
          %v6615 = vshrl.u32 %v6614, 7
          %v6616 = vsub.s32 %v6613, %v6615
          %v6617 = vrot.slane %v6609, %v6616
          %v6619 = vunpack.c.l.s4 1966171168
          %v6620 = vunpack.c.0.s8 %v6619
          %v6621 = vlaneseq
          %v6622 = vshrl.u32 %v6621, 7
          %v6623 = vsub.s32 %v6620, %v6622
          %v6624 = vrot.slane %v6610, %v6623
          %v6625 = vcombine.high %v6617, %v6617
          %v6626 = vcombine.high %v6624, %v6624
          %v6627 = vunpack.i.l.s16 %v6617
          %v6628 = vunpack.i.h.s16 %v6617
          %v6629 = vunpack.i.l.s16 %v6624
          %v6630 = vunpack.i.h.s16 %v6624
          %v6631 = vunpack.i.l.s16 %v6625
          %v6632 = vunpack.i.h.s16 %v6625
          %v6633 = vunpack.i.l.s16 %v6626
          %v6634 = vunpack.i.h.s16 %v6626
          %v6635 = vpack.c.b16 %v6627, %v6627
          %v6636 = vpack.c.b16 %v6628, %v6628
          %v6637 = vpack.c.b16 %v6629, %v6629
          %v6638 = vpack.c.b16 %v6630, %v6630
          %v6639 = vpack.c.b16 %v6631, %v6631
          %v6640 = vpack.c.b16 %v6632, %v6632
          %v6641 = vpack.c.b16 %v6633, %v6633
          %v6642 = vpack.c.b16 %v6634, %v6634
          %vm6651 = vcmp.gt.bf16.partialorder %v6635, 0
          %vm6652 = vcmp.gt.bf16.partialorder %v6636, 0
          %vm6653 = vcmp.gt.bf16.partialorder %v6637, 0
          %vm6654 = vcmp.gt.bf16.partialorder %v6638, 0
          %vm6655 = vcmp.gt.bf16.partialorder %v6639, 0
          %vm6656 = vcmp.gt.bf16.partialorder %v6640, 0
          %vm6657 = vcmp.gt.bf16.partialorder %v6641, 0
          %vm6658 = vcmp.gt.bf16.partialorder %v6642, 0
          %6659 = vxpose.xlu0.b32.start [1/16] %v6475, 128
          %6660 = vxpose.xlu0.b32.cont [2/16] %v6478, 128
          %6661 = vxpose.xlu0.b32.cont [3/16] %v6483, 128
          %6662 = vxpose.xlu0.b32.cont [4/16] %v6486, 128
          %6663 = vxpose.xlu0.b32.cont [5/16] %v6491, 128
          %6664 = vxpose.xlu0.b32.cont [6/16] %v6494, 128
          %6665 = vxpose.xlu0.b32.cont [7/16] %v6499, 128
          %6666 = vxpose.xlu0.b32.cont [8/16] %v6502, 128
          %6667 = vxpose.xlu0.b32.cont [9/16] %v6507, 128
          %6668 = vxpose.xlu0.b32.cont [10/16] %v6510, 128
          %6669 = vxpose.xlu0.b32.cont [11/16] %v6515, 128
          %6670 = vxpose.xlu0.b32.cont [12/16] %v6518, 128
          %6671 = vxpose.xlu0.b32.cont [13/16] %v6523, 128
          %6672 = vxpose.xlu0.b32.cont [14/16] %v6526, 128
          %6673 = vxpose.xlu0.b32.cont [15/16] %v6531, 128
          %6674 = vxpose.xlu0.b32.end [16/16] %v6534, 128
          %v6675 = vpop.trf.xlu0
          %v6676 = vpop.trf.xlu0
          %v6677 = vpop.trf.xlu0
          %v6678 = vpop.trf.xlu0
          %v6679 = vpop.trf.xlu0
          %v6680 = vpop.trf.xlu0
          %v6681 = vpop.trf.xlu0
          %v6682 = vpop.trf.xlu0
          %v6683 = vpop.trf.xlu0
          %v6684 = vpop.trf.xlu0
          %v6685 = vpop.trf.xlu0
          %v6686 = vpop.trf.xlu0
          %v6687 = vpop.trf.xlu0
          %v6688 = vpop.trf.xlu0
          %v6689 = vpop.trf.xlu0
          %v6690 = vpop.trf.xlu0
          %6691 = vxpose.xlu0.b32.start [1/16] %v6539, 128
          %6692 = vxpose.xlu0.b32.cont [2/16] %v6542, 128
          %6693 = vxpose.xlu0.b32.cont [3/16] %v6547, 128
          %6694 = vxpose.xlu0.b32.cont [4/16] %v6550, 128
          %6695 = vxpose.xlu0.b32.cont [5/16] %v6555, 128
          %6696 = vxpose.xlu0.b32.cont [6/16] %v6558, 128
          %6697 = vxpose.xlu0.b32.cont [7/16] %v6563, 128
          %6698 = vxpose.xlu0.b32.cont [8/16] %v6566, 128
          %6699 = vxpose.xlu0.b32.cont [9/16] %v6571, 128
          %6700 = vxpose.xlu0.b32.cont [10/16] %v6574, 128
          %6701 = vxpose.xlu0.b32.cont [11/16] %v6579, 128
          %6702 = vxpose.xlu0.b32.cont [12/16] %v6582, 128
          %6703 = vxpose.xlu0.b32.cont [13/16] %v6587, 128
          %6704 = vxpose.xlu0.b32.cont [14/16] %v6590, 128
          %6705 = vxpose.xlu0.b32.cont [15/16] %v6595, 128
          %6706 = vxpose.xlu0.b32.end [16/16] %v6598, 128
          %v6707 = vpop.trf.xlu0
          %v6708 = vpop.trf.xlu0
          %v6709 = vpop.trf.xlu0
          %v6710 = vpop.trf.xlu0
          %v6711 = vpop.trf.xlu0
          %v6712 = vpop.trf.xlu0
          %v6713 = vpop.trf.xlu0
          %v6714 = vpop.trf.xlu0
          %v6715 = vpop.trf.xlu0
          %v6716 = vpop.trf.xlu0
          %v6717 = vpop.trf.xlu0
          %v6718 = vpop.trf.xlu0
          %v6719 = vpop.trf.xlu0
          %v6720 = vpop.trf.xlu0
          %v6721 = vpop.trf.xlu0
          %v6722 = vpop.trf.xlu0
          %v6723 = vsel %vm6651, 65537, 0
          %v6724 = vsel %vm6652, 65537, 0
          %v6725 = vsel %vm6653, 65537, 0
          %v6726 = vsel %vm6654, 65537, 0
          %v6727 = vsel %vm6655, 65537, 0
          %v6728 = vsel %vm6656, 65537, 0
          %v6729 = vsel %vm6657, 65537, 0
          %v6730 = vsel %vm6658, 65537, 0
          %v6731 = vunpack.c.l.b16 %v6723
          %v6732 = vunpack.c.l.b16 %v6724
          %v6733 = vunpack.c.l.b16 %v6725
          %v6734 = vunpack.c.l.b16 %v6726
          %v6735 = vunpack.c.l.b16 %v6727
          %v6736 = vunpack.c.l.b16 %v6728
          %v6737 = vunpack.c.l.b16 %v6729
          %v6738 = vunpack.c.l.b16 %v6730
          %v6739 = vpack.i.b16 %v6731, %v6731
          %v6740 = vpack.i.b16 %v6732, %v6732
          %v6741 = vpack.i.b16 %v6733, %v6733
          %v6742 = vpack.i.b16 %v6734, %v6734
          %v6743 = vpack.i.b16 %v6735, %v6735
          %v6744 = vpack.i.b16 %v6736, %v6736
          %v6745 = vpack.i.b16 %v6737, %v6737
          %v6746 = vpack.i.b16 %v6738, %v6738
          %vm6747 = vcmp.ne.s16.totalorder %v6739, 0
          %vm6748 = vcmp.ne.s16.totalorder %v6740, 0
          %vm6749 = vcmp.ne.s16.totalorder %v6741, 0
          %vm6750 = vcmp.ne.s16.totalorder %v6742, 0
          %vm6751 = vcmp.ne.s16.totalorder %v6743, 0
          %vm6752 = vcmp.ne.s16.totalorder %v6744, 0
          %vm6753 = vcmp.ne.s16.totalorder %v6745, 0
          %vm6754 = vcmp.ne.s16.totalorder %v6746, 0
          %v6755 = vsel %vm6747, 65537, 0
          %v6756 = vsel %vm6748, 65537, 0
          %v6757 = vsel %vm6749, 65537, 0
          %v6758 = vsel %vm6750, 65537, 0
          %v6759 = vsel %vm6751, 65537, 0
          %v6760 = vsel %vm6752, 65537, 0
          %v6761 = vsel %vm6753, 65537, 0
          %v6762 = vsel %vm6754, 65537, 0
          %v6763 = vunpack.c.l.b16 %v6755
          %v6764 = vunpack.c.l.b16 %v6756
          %v6765 = vunpack.c.l.b16 %v6757
          %v6766 = vunpack.c.l.b16 %v6758
          %v6767 = vunpack.c.l.b16 %v6759
          %v6768 = vunpack.c.l.b16 %v6760
          %v6769 = vunpack.c.l.b16 %v6761
          %v6770 = vunpack.c.l.b16 %v6762
          %vm6771 = vcmp.ne.s32.totalorder %v6763, 0
          %vm6772 = vcmp.ne.s32.totalorder %v6764, 0
          %vm6773 = vcmp.ne.s32.totalorder %v6765, 0
          %vm6774 = vcmp.ne.s32.totalorder %v6766, 0
          %vm6775 = vcmp.ne.s32.totalorder %v6767, 0
          %vm6776 = vcmp.ne.s32.totalorder %v6768, 0
          %vm6777 = vcmp.ne.s32.totalorder %v6769, 0
          %vm6778 = vcmp.ne.s32.totalorder %v6770, 0
          %v6779 = vsel %vm6771, 1, 0
          %v6780 = vsel %vm6772, 1, 0
          %v6781 = vsel %vm6773, 1, 0
          %v6782 = vsel %vm6774, 1, 0
          %v6783 = vsel %vm6775, 1, 0
          %v6784 = vsel %vm6776, 1, 0
          %v6785 = vsel %vm6777, 1, 0
          %v6786 = vsel %vm6778, 1, 0
          %v6787 = vlaneseq
          %v6788 = vshrl.u32 %v6787, 7
          %v6789 = vsub.s32 0, %v6788
          %v6790 = vrot.slane %v6779, %v6789
          %v6791 = vlaneseq
          %v6792 = vshrl.u32 %v6791, 7
          %v6793 = vsub.s32 2, %v6792
          %v6794 = vrot.slane %v6779, %v6793
          %v6795 = vlaneseq
          %v6796 = vshrl.u32 %v6795, 7
          %v6797 = vsub.s32 0, %v6796
          %v6798 = vrot.slane %v6780, %v6797
          %v6799 = vlaneseq
          %v6800 = vshrl.u32 %v6799, 7
          %v6801 = vsub.s32 2, %v6800
          %v6802 = vrot.slane %v6780, %v6801
          %v6803 = vlaneseq
          %v6804 = vshrl.u32 %v6803, 7
          %v6805 = vsub.s32 0, %v6804
          %v6806 = vrot.slane %v6781, %v6805
          %v6807 = vlaneseq
          %v6808 = vshrl.u32 %v6807, 7
          %v6809 = vsub.s32 2, %v6808
          %v6810 = vrot.slane %v6781, %v6809
          %v6811 = vlaneseq
          %v6812 = vshrl.u32 %v6811, 7
          %v6813 = vsub.s32 0, %v6812
          %v6814 = vrot.slane %v6782, %v6813
          %v6815 = vlaneseq
          %v6816 = vshrl.u32 %v6815, 7
          %v6817 = vsub.s32 2, %v6816
          %v6818 = vrot.slane %v6782, %v6817
          %v6819 = vlaneseq
          %v6820 = vshrl.u32 %v6819, 7
          %v6821 = vsub.s32 0, %v6820
          %v6822 = vrot.slane %v6783, %v6821
          %v6823 = vlaneseq
          %v6824 = vshrl.u32 %v6823, 7
          %v6825 = vsub.s32 2, %v6824
          %v6826 = vrot.slane %v6783, %v6825
          %v6827 = vlaneseq
          %v6828 = vshrl.u32 %v6827, 7
          %v6829 = vsub.s32 0, %v6828
          %v6830 = vrot.slane %v6784, %v6829
          %v6831 = vlaneseq
          %v6832 = vshrl.u32 %v6831, 7
          %v6833 = vsub.s32 2, %v6832
          %v6834 = vrot.slane %v6784, %v6833
          %v6835 = vlaneseq
          %v6836 = vshrl.u32 %v6835, 7
          %v6837 = vsub.s32 0, %v6836
          %v6838 = vrot.slane %v6785, %v6837
          %v6839 = vlaneseq
          %v6840 = vshrl.u32 %v6839, 7
          %v6841 = vsub.s32 2, %v6840
          %v6842 = vrot.slane %v6785, %v6841
          %v6843 = vlaneseq
          %v6844 = vshrl.u32 %v6843, 7
          %v6845 = vsub.s32 0, %v6844
          %v6846 = vrot.slane %v6786, %v6845
          %v6847 = vlaneseq
          %v6848 = vshrl.u32 %v6847, 7
          %v6849 = vsub.s32 2, %v6848
          %v6850 = vrot.slane %v6786, %v6849
          %vm6851 = vcmp.ne.s32.totalorder %v6790, 0
          %vm6852 = vcmp.ne.s32.totalorder %v6794, 0
          %vm6853 = vcmp.ne.s32.totalorder %v6798, 0
          %vm6854 = vcmp.ne.s32.totalorder %v6802, 0
          %vm6855 = vcmp.ne.s32.totalorder %v6806, 0
          %vm6856 = vcmp.ne.s32.totalorder %v6810, 0
          %vm6857 = vcmp.ne.s32.totalorder %v6814, 0
          %vm6858 = vcmp.ne.s32.totalorder %v6818, 0
          %vm6859 = vcmp.ne.s32.totalorder %v6822, 0
          %vm6860 = vcmp.ne.s32.totalorder %v6826, 0
          %vm6861 = vcmp.ne.s32.totalorder %v6830, 0
          %vm6862 = vcmp.ne.s32.totalorder %v6834, 0
          %vm6863 = vcmp.ne.s32.totalorder %v6838, 0
          %vm6864 = vcmp.ne.s32.totalorder %v6842, 0
          %vm6865 = vcmp.ne.s32.totalorder %v6846, 0
          %vm6866 = vcmp.ne.s32.totalorder %v6850, 0
          %v6867 = vsel %vm6851, 1, 0
          %v6868 = vsel %vm6852, 1, 0
          %v6869 = vsel %vm6853, 1, 0
          %v6870 = vsel %vm6854, 1, 0
          %v6871 = vsel %vm6855, 1, 0
          %v6872 = vsel %vm6856, 1, 0
          %v6873 = vsel %vm6857, 1, 0
          %v6874 = vsel %vm6858, 1, 0
          %v6875 = vsel %vm6859, 1, 0
          %v6876 = vsel %vm6860, 1, 0
          %v6877 = vsel %vm6861, 1, 0
          %v6878 = vsel %vm6862, 1, 0
          %v6879 = vsel %vm6863, 1, 0
          %v6880 = vsel %vm6864, 1, 0
          %v6881 = vsel %vm6865, 1, 0
          %v6882 = vsel %vm6866, 1, 0
          %v6883 = vlaneseq
          %v6884 = vshrl.u32 %v6883, 7
          %v6885 = vsub.s32 0, %v6884
          %v6886 = vrot.slane %v6867, %v6885
          %v6887 = vlaneseq
          %v6888 = vshrl.u32 %v6887, 7
          %v6889 = vsub.s32 0, %v6888
          %v6890 = vrot.slane %v6868, %v6889
          %v6891 = vlaneseq
          %v6892 = vshrl.u32 %v6891, 7
          %v6893 = vsub.s32 0, %v6892
          %v6894 = vrot.slane %v6869, %v6893
          %v6895 = vlaneseq
          %v6896 = vshrl.u32 %v6895, 7
          %v6897 = vsub.s32 0, %v6896
          %v6898 = vrot.slane %v6870, %v6897
          %v6899 = vlaneseq
          %v6900 = vshrl.u32 %v6899, 7
          %v6901 = vsub.s32 0, %v6900
          %v6902 = vrot.slane %v6871, %v6901
          %v6903 = vlaneseq
          %v6904 = vshrl.u32 %v6903, 7
          %v6905 = vsub.s32 0, %v6904
          %v6906 = vrot.slane %v6872, %v6905
          %v6907 = vlaneseq
          %v6908 = vshrl.u32 %v6907, 7
          %v6909 = vsub.s32 0, %v6908
          %v6910 = vrot.slane %v6873, %v6909
          %v6911 = vlaneseq
          %v6912 = vshrl.u32 %v6911, 7
          %v6913 = vsub.s32 0, %v6912
          %v6914 = vrot.slane %v6874, %v6913
          %v6915 = vlaneseq
          %v6916 = vshrl.u32 %v6915, 7
          %v6917 = vsub.s32 0, %v6916
          %v6918 = vrot.slane %v6875, %v6917
          %v6919 = vlaneseq
          %v6920 = vshrl.u32 %v6919, 7
          %v6921 = vsub.s32 0, %v6920
          %v6922 = vrot.slane %v6876, %v6921
          %v6923 = vlaneseq
          %v6924 = vshrl.u32 %v6923, 7
          %v6925 = vsub.s32 0, %v6924
          %v6926 = vrot.slane %v6877, %v6925
          %v6927 = vlaneseq
          %v6928 = vshrl.u32 %v6927, 7
          %v6929 = vsub.s32 0, %v6928
          %v6930 = vrot.slane %v6878, %v6929
          %v6931 = vlaneseq
          %v6932 = vshrl.u32 %v6931, 7
          %v6933 = vsub.s32 0, %v6932
          %v6934 = vrot.slane %v6879, %v6933
          %v6935 = vlaneseq
          %v6936 = vshrl.u32 %v6935, 7
          %v6937 = vsub.s32 0, %v6936
          %v6938 = vrot.slane %v6880, %v6937
          %v6939 = vlaneseq
          %v6940 = vshrl.u32 %v6939, 7
          %v6941 = vsub.s32 0, %v6940
          %v6942 = vrot.slane %v6881, %v6941
          %v6943 = vlaneseq
          %v6944 = vshrl.u32 %v6943, 7
          %v6945 = vsub.s32 0, %v6944
          %v6946 = vrot.slane %v6882, %v6945
          %vm6947 = vcmp.eq.s32.totalorder %v6886, 1
          %vm6948 = vcmp.eq.s32.totalorder %v6890, 1
          %vm6949 = vcmp.eq.s32.totalorder %v6894, 1
          %vm6950 = vcmp.eq.s32.totalorder %v6898, 1
          %vm6951 = vcmp.eq.s32.totalorder %v6902, 1
          %vm6952 = vcmp.eq.s32.totalorder %v6906, 1
          %vm6953 = vcmp.eq.s32.totalorder %v6910, 1
          %vm6954 = vcmp.eq.s32.totalorder %v6914, 1
          %vm6955 = vcmp.eq.s32.totalorder %v6918, 1
          %vm6956 = vcmp.eq.s32.totalorder %v6922, 1
          %vm6957 = vcmp.eq.s32.totalorder %v6926, 1
          %vm6958 = vcmp.eq.s32.totalorder %v6930, 1
          %vm6959 = vcmp.eq.s32.totalorder %v6934, 1
          %vm6960 = vcmp.eq.s32.totalorder %v6938, 1
          %vm6961 = vcmp.eq.s32.totalorder %v6942, 1
          %vm6962 = vcmp.eq.s32.totalorder %v6946, 1
          %v6963 = vsel %vm6947, %v6675, -1e+30
          %v6964 = vsel %vm6948, %v6707, -1e+30
          %v6965 = vsel %vm6949, %v6675, -1e+30
          %v6966 = vsel %vm6950, %v6707, -1e+30
          %v6967 = vsel %vm6951, %v6675, -1e+30
          %v6968 = vsel %vm6952, %v6707, -1e+30
          %v6969 = vsel %vm6953, %v6675, -1e+30
          %v6970 = vsel %vm6954, %v6707, -1e+30
          %v6971 = vsel %vm6955, %v6675, -1e+30
          %v6972 = vsel %vm6956, %v6707, -1e+30
          %v6973 = vsel %vm6957, %v6675, -1e+30
          %v6974 = vsel %vm6958, %v6707, -1e+30
          %v6975 = vsel %vm6959, %v6675, -1e+30
          %v6976 = vsel %vm6960, %v6707, -1e+30
          %v6977 = vsel %vm6961, %v6675, -1e+30
          %v6978 = vsel %vm6962, %v6707, -1e+30
          %v6979 = vmax.f32 %v6963, %v6964
          %6980 = vmax.xlane.f32.xlu0 %v6979
          %v6981 = vpop.xlane.xlu0 %6980
          %v6982 = vmax.f32 %v6965, %v6966
          %6983 = vmax.xlane.f32.xlu0 %v6982
          %v6984 = vpop.xlane.xlu0 %6983
          %v6985 = vmax.f32 %v6967, %v6968
          %6986 = vmax.xlane.f32.xlu0 %v6985
          %v6987 = vpop.xlane.xlu0 %6986
          %v6988 = vmax.f32 %v6969, %v6970
          %6989 = vmax.xlane.f32.xlu0 %v6988
          %v6990 = vpop.xlane.xlu0 %6989
          %v6991 = vmax.f32 %v6971, %v6972
          %6992 = vmax.xlane.f32.xlu0 %v6991
          %v6993 = vpop.xlane.xlu0 %6992
          %v6994 = vmax.f32 %v6973, %v6974
          %6995 = vmax.xlane.f32.xlu0 %v6994
          %v6996 = vpop.xlane.xlu0 %6995
          %v6997 = vmax.f32 %v6975, %v6976
          %6998 = vmax.xlane.f32.xlu0 %v6997
          %v6999 = vpop.xlane.xlu0 %6998
          %v7000 = vmax.f32 %v6977, %v6978
          %7001 = vmax.xlane.f32.xlu0 %v7000
          %v7002 = vpop.xlane.xlu0 %7001
          %v7003 = vunpack.c.l.bf16 %v6601
          %v7004 = vunpack.c.h.bf16 %v6601
          %7005 = vxpose.xlu0.b32.start [1/16] %v7003, 128
          %7006 = vxpose.xlu0.b32.cont [2/16] 0.0, 128
          %7007 = vxpose.xlu0.b32.cont [3/16] 0.0, 128
          %7008 = vxpose.xlu0.b32.cont [4/16] 0.0, 128
          %7009 = vxpose.xlu0.b32.cont [5/16] 0.0, 128
          %7010 = vxpose.xlu0.b32.cont [6/16] 0.0, 128
          %7011 = vxpose.xlu0.b32.cont [7/16] 0.0, 128
          %7012 = vxpose.xlu0.b32.cont [8/16] 0.0, 128
          %7013 = vxpose.xlu0.b32.cont [9/16] 0.0, 128
          %7014 = vxpose.xlu0.b32.cont [10/16] 0.0, 128
          %7015 = vxpose.xlu0.b32.cont [11/16] 0.0, 128
          %7016 = vxpose.xlu0.b32.cont [12/16] 0.0, 128
          %7017 = vxpose.xlu0.b32.cont [13/16] 0.0, 128
          %7018 = vxpose.xlu0.b32.cont [14/16] 0.0, 128
          %7019 = vxpose.xlu0.b32.cont [15/16] 0.0, 128
          %7020 = vxpose.xlu0.b32.end [16/16] 0.0, 128
          %v7021 = vpop.trf.xlu0
          %v7022 = vpop.trf.xlu0
          %v7023 = vpop.trf.xlu0
          %v7024 = vpop.trf.xlu0
          %v7025 = vpop.trf.xlu0
          %v7026 = vpop.trf.xlu0
          %v7027 = vpop.trf.xlu0
          %v7028 = vpop.trf.xlu0
          %v7029 = vpop.trf.xlu0
          %v7030 = vpop.trf.xlu0
          %v7031 = vpop.trf.xlu0
          %v7032 = vpop.trf.xlu0
          %v7033 = vpop.trf.xlu0
          %v7034 = vpop.trf.xlu0
          %v7035 = vpop.trf.xlu0
          %v7036 = vpop.trf.xlu0
          %7037 = vxpose.xlu0.b32.start [1/16] %v7004, 128
          %7038 = vxpose.xlu0.b32.cont [2/16] 0.0, 128
          %7039 = vxpose.xlu0.b32.cont [3/16] 0.0, 128
          %7040 = vxpose.xlu0.b32.cont [4/16] 0.0, 128
          %7041 = vxpose.xlu0.b32.cont [5/16] 0.0, 128
          %7042 = vxpose.xlu0.b32.cont [6/16] 0.0, 128
          %7043 = vxpose.xlu0.b32.cont [7/16] 0.0, 128
          %7044 = vxpose.xlu0.b32.cont [8/16] 0.0, 128
          %7045 = vxpose.xlu0.b32.cont [9/16] 0.0, 128
          %7046 = vxpose.xlu0.b32.cont [10/16] 0.0, 128
          %7047 = vxpose.xlu0.b32.cont [11/16] 0.0, 128
          %7048 = vxpose.xlu0.b32.cont [12/16] 0.0, 128
          %7049 = vxpose.xlu0.b32.cont [13/16] 0.0, 128
          %7050 = vxpose.xlu0.b32.cont [14/16] 0.0, 128
          %7051 = vxpose.xlu0.b32.cont [15/16] 0.0, 128
          %7052 = vxpose.xlu0.b32.end [16/16] 0.0, 128
          %v7053 = vpop.trf.xlu0
          %v7054 = vpop.trf.xlu0
          %v7055 = vpop.trf.xlu0
          %v7056 = vpop.trf.xlu0
          %v7057 = vpop.trf.xlu0
          %v7058 = vpop.trf.xlu0
          %v7059 = vpop.trf.xlu0
          %v7060 = vpop.trf.xlu0
          %v7061 = vpop.trf.xlu0
          %v7062 = vpop.trf.xlu0
          %v7063 = vpop.trf.xlu0
          %v7064 = vpop.trf.xlu0
          %v7065 = vpop.trf.xlu0
          %v7066 = vpop.trf.xlu0
          %v7067 = vpop.trf.xlu0
          %v7068 = vpop.trf.xlu0
          %v7077 = vlaneseq
          %v7078 = vand.u32 %v7077, 127
          %v7079 = vlaneseq
          %v7080 = vshrl.u32 %v7079, 7
          %v7081 = vsub.s32 %v7078, %v7080
          %v7082 = vrot.slane %v6981, %v7081
          %v7083 = vlaneseq
          %v7084 = vshrl.u32 %v7083, 7
          %v7085 = vsub.s32 %v7078, %v7084
          %v7086 = vrot.slane %v6984, %v7085
          %v7087 = vlaneseq
          %v7088 = vshrl.u32 %v7087, 7
          %v7089 = vsub.s32 %v7078, %v7088
          %v7090 = vrot.slane %v6987, %v7089
          %v7091 = vlaneseq
          %v7092 = vshrl.u32 %v7091, 7
          %v7093 = vsub.s32 %v7078, %v7092
          %v7094 = vrot.slane %v6990, %v7093
          %v7095 = vlaneseq
          %v7096 = vshrl.u32 %v7095, 7
          %v7097 = vsub.s32 %v7078, %v7096
          %v7098 = vrot.slane %v6993, %v7097
          %v7099 = vlaneseq
          %v7100 = vshrl.u32 %v7099, 7
          %v7101 = vsub.s32 %v7078, %v7100
          %v7102 = vrot.slane %v6996, %v7101
          %v7103 = vlaneseq
          %v7104 = vshrl.u32 %v7103, 7
          %v7105 = vsub.s32 %v7078, %v7104
          %v7106 = vrot.slane %v6999, %v7105
          %v7107 = vlaneseq
          %v7108 = vshrl.u32 %v7107, 7
          %v7109 = vsub.s32 %v7078, %v7108
          %v7110 = vrot.slane %v7002, %v7109
          %vm7111 = vcmask 1041409
          %v7112 = vsel %vm7111, %v7086, %v7082
          %vm7113 = vcmask 1042434
          %v7114 = vsel %vm7113, %v7090, %v7112
          %vm7115 = vcmask 1043459
          %v7116 = vsel %vm7115, %v7094, %v7114
          %vm7117 = vcmask 1044484
          %v7118 = vsel %vm7117, %v7098, %v7116
          %vm7119 = vcmask 1045509
          %v7120 = vsel %vm7119, %v7102, %v7118
          %vm7121 = vcmask 1046534
          %v7122 = vsel %vm7121, %v7106, %v7120
          %vm7123 = vcmask 1047559
          %v7124 = vsel %vm7123, %v7110, %v7122
          %vm7126 = vcmask 64512
          %v7128 = vsel %vm7126, %v7021, 0
          %v7131 = vsel %vm7126, %v7022, 0
          %v7134 = vsel %vm7126, %v7023, 0
          %v7137 = vsel %vm7126, %v7024, 0
          %v7140 = vsel %vm7126, %v7025, 0
          %v7143 = vsel %vm7126, %v7026, 0
          %v7146 = vsel %vm7126, %v7027, 0
          %v7149 = vsel %vm7126, %v7028, 0
          %v7152 = vsel %vm7126, %v7029, 0
          %v7155 = vsel %vm7126, %v7030, 0
          %v7158 = vsel %vm7126, %v7031, 0
          %v7161 = vsel %vm7126, %v7032, 0
          %v7164 = vsel %vm7126, %v7033, 0
          %v7167 = vsel %vm7126, %v7034, 0
          %v7170 = vsel %vm7126, %v7035, 0
          %v7173 = vsel %vm7126, %v7036, 0
          %v7176 = vsel %vm7126, %v7053, 0
          %v7179 = vsel %vm7126, %v7054, 0
          %v7182 = vsel %vm7126, %v7055, 0
          %v7185 = vsel %vm7126, %v7056, 0
          %v7188 = vsel %vm7126, %v7057, 0
          %v7191 = vsel %vm7126, %v7058, 0
          %v7194 = vsel %vm7126, %v7059, 0
          %v7197 = vsel %vm7126, %v7060, 0
          %v7200 = vsel %vm7126, %v7061, 0
          %v7203 = vsel %vm7126, %v7062, 0
          %v7206 = vsel %vm7126, %v7063, 0
          %v7209 = vsel %vm7126, %v7064, 0
          %v7212 = vsel %vm7126, %v7065, 0
          %v7215 = vsel %vm7126, %v7066, 0
          %v7218 = vsel %vm7126, %v7067, 0
          %v7221 = vsel %vm7126, %v7068, 0
          %7223 = vmatprep.subr.mxu0 0.0
          %7224 = vmatpush1.msra.mxu0 %v7124
          %7225 = vmatprep.subr.mxu0 0.0
          %7226 = vmatpush1.msra.mxu0 0.0
          %7227 = vmatprep.subr.mxu0 0.0
          %7228 = vmatpush1.msra.mxu0 0.0
          %7229 = vmatprep.subr.mxu0 0.0
          %7230 = vmatpush1.msra.mxu0 0.0
          %7231 = vmatprep.subr.mxu0 0.0
          %7232 = vmatpush1.msra.mxu0 0.0
          %7233 = vmatprep.subr.mxu0 0.0
          %7234 = vmatpush1.msra.mxu0 0.0
          %7235 = vmatprep.subr.mxu0 0.0
          %7236 = vmatpush1.msra.mxu0 0.0
          %7237 = vmatprep.subr.mxu0 0.0
          %7238 = vmatpush1.msra.mxu0 0.0
          %7239 = vmatprep.subr.mxu0 0.0
          %7240 = vmatpush1.msra.mxu0 0.0
          %7241 = vmatprep.subr.mxu0 0.0
          %7242 = vmatpush1.msra.mxu0 0.0
          %7243 = vmatprep.subr.mxu0 0.0
          %7244 = vmatpush1.msra.mxu0 0.0
          %7245 = vmatprep.subr.mxu0 0.0
          %7246 = vmatpush1.msra.mxu0 0.0
          %7247 = vmatprep.subr.mxu0 0.0
          %7248 = vmatpush1.msra.mxu0 0.0
          %7249 = vmatprep.subr.mxu0 0.0
          %7250 = vmatpush1.msra.mxu0 0.0
          %7251 = vmatprep.subr.mxu0 0.0
          %7252 = vmatpush1.msra.mxu0 0.0
          %7253 = vmatprep.subr.mxu0 0.0
          %7254 = vmatpush1.msra.mxu0 0.0
          %7255 = vmatprep.subr.mxu0 0.0
          %7256 = vmatpush1.msra.mxu0 0.0
          %7257 = vmatprep.subr.mxu0 0.0
          %7258 = vmatpush1.msra.mxu0 0.0
          %7259 = vmatprep.subr.mxu0 0.0
          %7260 = vmatpush1.msra.mxu0 0.0
          %7261 = vmatprep.subr.mxu0 0.0
          %7262 = vmatpush1.msra.mxu0 0.0
          %7263 = vmatprep.subr.mxu0 0.0
          %7264 = vmatpush1.msra.mxu0 0.0
          %7265 = vmatprep.subr.mxu0 0.0
          %7266 = vmatpush1.msra.mxu0 0.0
          %7267 = vmatprep.subr.mxu0 0.0
          %7268 = vmatpush1.msra.mxu0 0.0
          %7269 = vmatprep.subr.mxu0 0.0
          %7270 = vmatpush1.msra.mxu0 0.0
          %7271 = vmatprep.subr.mxu0 0.0
          %7272 = vmatpush1.msra.mxu0 0.0
          %7273 = vmatprep.subr.mxu0 0.0
          %7274 = vmatpush1.msra.mxu0 0.0
          %7275 = vmatprep.subr.mxu0 0.0
          %7276 = vmatpush1.msra.mxu0 0.0
          %7277 = vmatprep.subr.mxu0 0.0
          %7278 = vmatpush1.msra.mxu0 0.0
          %7279 = vmatprep.subr.mxu0 0.0
          %7280 = vmatpush1.msra.mxu0 0.0
          %7281 = vmatprep.subr.mxu0 0.0
          %7282 = vmatpush1.msra.mxu0 0.0
          %7283 = vmatprep.subr.mxu0 0.0
          %7284 = vmatpush1.msra.mxu0 0.0
          %7285 = vmatprep.subr.mxu0 0.0
          %7286 = vmatpush1.msra.mxu0 0.0
          %7287 = vmatprep.mubr.f32.mxu0 0.0
          %7288 = vmatmul.mubr.f32.gmra.mrb[0].mxu0 %v7128
          %v7289 = vpop.f32.mrb[0].mxu0
          %v7290 = vadd.f32 0.0, %v7289
          %v7291 = vpop.f32.mrb[0].mxu0
          %7292 = vmatprep.mubr.f32.mxu0 0.0
          %7293 = vmatmul.mubr.f32.gmra.mrb[0].mxu0 %v7131
          %v7294 = vpop.f32.mrb[0].mxu0
          %v7295 = vadd.f32 0.0, %v7294
          %v7296 = vpop.f32.mrb[0].mxu0
          %7297 = vmatprep.mubr.f32.mxu0 0.0
          %7298 = vmatmul.mubr.f32.gmra.mrb[0].mxu0 %v7134
          %v7299 = vpop.f32.mrb[0].mxu0
          %v7300 = vadd.f32 0.0, %v7299
          %v7301 = vpop.f32.mrb[0].mxu0
          %7302 = vmatprep.mubr.f32.mxu0 0.0
          %7303 = vmatmul.mubr.f32.gmra.mrb[0].mxu0 %v7137
          %v7304 = vpop.f32.mrb[0].mxu0
          %v7305 = vadd.f32 0.0, %v7304
          %v7306 = vpop.f32.mrb[0].mxu0
          %7307 = vmatprep.mubr.f32.mxu0 0.0
          %7308 = vmatmul.mubr.f32.gmra.mrb[0].mxu0 %v7140
          %v7309 = vpop.f32.mrb[0].mxu0
          %v7310 = vadd.f32 0.0, %v7309
          %v7311 = vpop.f32.mrb[0].mxu0
          %7312 = vmatprep.mubr.f32.mxu0 0.0
          %7313 = vmatmul.mubr.f32.gmra.mrb[0].mxu0 %v7143
          %v7314 = vpop.f32.mrb[0].mxu0
          %v7315 = vadd.f32 0.0, %v7314
          %v7316 = vpop.f32.mrb[0].mxu0
          %7317 = vmatprep.mubr.f32.mxu0 0.0
          %7318 = vmatmul.mubr.f32.gmra.mrb[0].mxu0 %v7146
          %v7319 = vpop.f32.mrb[0].mxu0
          %v7320 = vadd.f32 0.0, %v7319
          %v7321 = vpop.f32.mrb[0].mxu0
          %7322 = vmatprep.mubr.f32.mxu0 0.0
          %7323 = vmatmul.mubr.f32.gmra.mrb[0].mxu0 %v7149
          %v7324 = vpop.f32.mrb[0].mxu0
          %v7325 = vadd.f32 0.0, %v7324
          %v7326 = vpop.f32.mrb[0].mxu0
          %7327 = vmatprep.mubr.f32.mxu0 0.0
          %7328 = vmatmul.mubr.f32.gmra.mrb[0].mxu0 %v7152
          %v7329 = vpop.f32.mrb[0].mxu0
          %v7330 = vadd.f32 0.0, %v7329
          %v7331 = vpop.f32.mrb[0].mxu0
          %7332 = vmatprep.mubr.f32.mxu0 0.0
          %7333 = vmatmul.mubr.f32.gmra.mrb[0].mxu0 %v7155
          %v7334 = vpop.f32.mrb[0].mxu0
          %v7335 = vadd.f32 0.0, %v7334
          %v7336 = vpop.f32.mrb[0].mxu0
          %7337 = vmatprep.mubr.f32.mxu0 0.0
          %7338 = vmatmul.mubr.f32.gmra.mrb[0].mxu0 %v7158
          %v7339 = vpop.f32.mrb[0].mxu0
          %v7340 = vadd.f32 0.0, %v7339
          %v7341 = vpop.f32.mrb[0].mxu0
          %7342 = vmatprep.mubr.f32.mxu0 0.0
          %7343 = vmatmul.mubr.f32.gmra.mrb[0].mxu0 %v7161
          %v7344 = vpop.f32.mrb[0].mxu0
          %v7345 = vadd.f32 0.0, %v7344
          %v7346 = vpop.f32.mrb[0].mxu0
          %7347 = vmatprep.mubr.f32.mxu0 0.0
          %7348 = vmatmul.mubr.f32.gmra.mrb[0].mxu0 %v7164
          %v7349 = vpop.f32.mrb[0].mxu0
          %v7350 = vadd.f32 0.0, %v7349
          %v7351 = vpop.f32.mrb[0].mxu0
          %7352 = vmatprep.mubr.f32.mxu0 0.0
          %7353 = vmatmul.mubr.f32.gmra.mrb[0].mxu0 %v7167
          %v7354 = vpop.f32.mrb[0].mxu0
          %v7355 = vadd.f32 0.0, %v7354
          %v7356 = vpop.f32.mrb[0].mxu0
          %7357 = vmatprep.mubr.f32.mxu0 0.0
          %7358 = vmatmul.mubr.f32.gmra.mrb[0].mxu0 %v7170
          %v7359 = vpop.f32.mrb[0].mxu0
          %v7360 = vadd.f32 0.0, %v7359
          %v7361 = vpop.f32.mrb[0].mxu0
          %7362 = vmatprep.mubr.f32.mxu0 0.0
          %7363 = vmatmul.mubr.f32.gmra.mrb[0].mxu0 %v7173
          %v7364 = vpop.f32.mrb[0].mxu0
          %v7365 = vadd.f32 0.0, %v7364
          %v7366 = vpop.f32.mrb[0].mxu0
          %7367 = vmatprep.mubr.f32.mxu0 0.0
          %7368 = vmatmul.mubr.f32.gmra.mrb[0].mxu0 %v7176
          %v7369 = vpop.f32.mrb[0].mxu0
          %v7370 = vadd.f32 0.0, %v7369
          %v7371 = vpop.f32.mrb[0].mxu0
          %7372 = vmatprep.mubr.f32.mxu0 0.0
          %7373 = vmatmul.mubr.f32.gmra.mrb[0].mxu0 %v7179
          %v7374 = vpop.f32.mrb[0].mxu0
          %v7375 = vadd.f32 0.0, %v7374
          %v7376 = vpop.f32.mrb[0].mxu0
          %7377 = vmatprep.mubr.f32.mxu0 0.0
          %7378 = vmatmul.mubr.f32.gmra.mrb[0].mxu0 %v7182
          %v7379 = vpop.f32.mrb[0].mxu0
          %v7380 = vadd.f32 0.0, %v7379
          %v7381 = vpop.f32.mrb[0].mxu0
          %7382 = vmatprep.mubr.f32.mxu0 0.0
          %7383 = vmatmul.mubr.f32.gmra.mrb[0].mxu0 %v7185
          %v7384 = vpop.f32.mrb[0].mxu0
          %v7385 = vadd.f32 0.0, %v7384
          %v7386 = vpop.f32.mrb[0].mxu0
          %7387 = vmatprep.mubr.f32.mxu0 0.0
          %7388 = vmatmul.mubr.f32.gmra.mrb[0].mxu0 %v7188
          %v7389 = vpop.f32.mrb[0].mxu0
          %v7390 = vadd.f32 0.0, %v7389
          %v7391 = vpop.f32.mrb[0].mxu0
          %7392 = vmatprep.mubr.f32.mxu0 0.0
          %7393 = vmatmul.mubr.f32.gmra.mrb[0].mxu0 %v7191
          %v7394 = vpop.f32.mrb[0].mxu0
          %v7395 = vadd.f32 0.0, %v7394
          %v7396 = vpop.f32.mrb[0].mxu0
          %7397 = vmatprep.mubr.f32.mxu0 0.0
          %7398 = vmatmul.mubr.f32.gmra.mrb[0].mxu0 %v7194
          %v7399 = vpop.f32.mrb[0].mxu0
          %v7400 = vadd.f32 0.0, %v7399
          %v7401 = vpop.f32.mrb[0].mxu0
          %7402 = vmatprep.mubr.f32.mxu0 0.0
          %7403 = vmatmul.mubr.f32.gmra.mrb[0].mxu0 %v7197
          %v7404 = vpop.f32.mrb[0].mxu0
          %v7405 = vadd.f32 0.0, %v7404
          %v7406 = vpop.f32.mrb[0].mxu0
          %7407 = vmatprep.mubr.f32.mxu0 0.0
          %7408 = vmatmul.mubr.f32.gmra.mrb[0].mxu0 %v7200
          %v7409 = vpop.f32.mrb[0].mxu0
          %v7410 = vadd.f32 0.0, %v7409
          %v7411 = vpop.f32.mrb[0].mxu0
          %7412 = vmatprep.mubr.f32.mxu0 0.0
          %7413 = vmatmul.mubr.f32.gmra.mrb[0].mxu0 %v7203
          %v7414 = vpop.f32.mrb[0].mxu0
          %v7415 = vadd.f32 0.0, %v7414
          %v7416 = vpop.f32.mrb[0].mxu0
          %7417 = vmatprep.mubr.f32.mxu0 0.0
          %7418 = vmatmul.mubr.f32.gmra.mrb[0].mxu0 %v7206
          %v7419 = vpop.f32.mrb[0].mxu0
          %v7420 = vadd.f32 0.0, %v7419
          %v7421 = vpop.f32.mrb[0].mxu0
          %7422 = vmatprep.mubr.f32.mxu0 0.0
          %7423 = vmatmul.mubr.f32.gmra.mrb[0].mxu0 %v7209
          %v7424 = vpop.f32.mrb[0].mxu0
          %v7425 = vadd.f32 0.0, %v7424
          %v7426 = vpop.f32.mrb[0].mxu0
          %7427 = vmatprep.mubr.f32.mxu0 0.0
          %7428 = vmatmul.mubr.f32.gmra.mrb[0].mxu0 %v7212
          %v7429 = vpop.f32.mrb[0].mxu0
          %v7430 = vadd.f32 0.0, %v7429
          %v7431 = vpop.f32.mrb[0].mxu0
          %7432 = vmatprep.mubr.f32.mxu0 0.0
          %7433 = vmatmul.mubr.f32.gmra.mrb[0].mxu0 %v7215
          %v7434 = vpop.f32.mrb[0].mxu0
          %v7435 = vadd.f32 0.0, %v7434
          %v7436 = vpop.f32.mrb[0].mxu0
          %7437 = vmatprep.mubr.f32.mxu0 0.0
          %7438 = vmatmul.mubr.f32.gmra.mrb[0].mxu0 %v7218
          %v7439 = vpop.f32.mrb[0].mxu0
          %v7440 = vadd.f32 0.0, %v7439
          %v7441 = vpop.f32.mrb[0].mxu0
          %7442 = vmatprep.mubr.f32.mxu0 0.0
          %7443 = vmatmul.mubr.f32.gmra.mrb[0].mxu0 %v7221
          %v7444 = vpop.f32.mrb[0].mxu0
          %v7445 = vadd.f32 0.0, %v7444
          %v7446 = vpop.f32.mrb[0].mxu0
          %7447 = vdwg.mxu0
          %v7448 = vsub.f32 %v6475, %v7290
          %v7449 = vsub.f32 %v6478, %v7295
          %v7450 = vsub.f32 %v6483, %v7300
          %v7451 = vsub.f32 %v6486, %v7305
          %v7452 = vsub.f32 %v6491, %v7310
          %v7453 = vsub.f32 %v6494, %v7315
          %v7454 = vsub.f32 %v6499, %v7320
          %v7455 = vsub.f32 %v6502, %v7325
          %v7456 = vsub.f32 %v6507, %v7330
          %v7457 = vsub.f32 %v6510, %v7335
          %v7458 = vsub.f32 %v6515, %v7340
          %v7459 = vsub.f32 %v6518, %v7345
          %v7460 = vsub.f32 %v6523, %v7350
          %v7461 = vsub.f32 %v6526, %v7355
          %v7462 = vsub.f32 %v6531, %v7360
          %v7463 = vsub.f32 %v6534, %v7365
          %v7464 = vsub.f32 %v6539, %v7370
          %v7465 = vsub.f32 %v6542, %v7375
          %v7466 = vsub.f32 %v6547, %v7380
          %v7467 = vsub.f32 %v6550, %v7385
          %v7468 = vsub.f32 %v6555, %v7390
          %v7469 = vsub.f32 %v6558, %v7395
          %v7470 = vsub.f32 %v6563, %v7400
          %v7471 = vsub.f32 %v6566, %v7405
          %v7472 = vsub.f32 %v6571, %v7410
          %v7473 = vsub.f32 %v6574, %v7415
          %v7474 = vsub.f32 %v6579, %v7420
          %v7475 = vsub.f32 %v6582, %v7425
          %v7476 = vsub.f32 %v6587, %v7430
          %v7477 = vsub.f32 %v6590, %v7435
          %v7478 = vsub.f32 %v6595, %v7440
          %v7479 = vsub.f32 %v6598, %v7445
          %v7480 = vmul.f32 %v7448, 1.442695
          %v7481 = vpow.pop %v7480
          %v7482 = vmul.f32 %v7449, 1.442695
          %v7483 = vpow.pop %v7482
          %v7484 = vmul.f32 %v7450, 1.442695
          %v7485 = vpow.pop %v7484
          %v7486 = vmul.f32 %v7451, 1.442695
          %v7487 = vpow.pop %v7486
          %v7488 = vmul.f32 %v7452, 1.442695
          %v7489 = vpow.pop %v7488
          %v7490 = vmul.f32 %v7453, 1.442695
          %v7491 = vpow.pop %v7490
          %v7492 = vmul.f32 %v7454, 1.442695
          %v7493 = vpow.pop %v7492
          %v7494 = vmul.f32 %v7455, 1.442695
          %v7495 = vpow.pop %v7494
          %v7496 = vmul.f32 %v7456, 1.442695
          %v7497 = vpow.pop %v7496
          %v7498 = vmul.f32 %v7457, 1.442695
          %v7499 = vpow.pop %v7498
          %v7500 = vmul.f32 %v7458, 1.442695
          %v7501 = vpow.pop %v7500
          %v7502 = vmul.f32 %v7459, 1.442695
          %v7503 = vpow.pop %v7502
          %v7504 = vmul.f32 %v7460, 1.442695
          %v7505 = vpow.pop %v7504
          %v7506 = vmul.f32 %v7461, 1.442695
          %v7507 = vpow.pop %v7506
          %v7508 = vmul.f32 %v7462, 1.442695
          %v7509 = vpow.pop %v7508
          %v7510 = vmul.f32 %v7463, 1.442695
          %v7511 = vpow.pop %v7510
          %v7512 = vmul.f32 %v7464, 1.442695
          %v7513 = vpow.pop %v7512
          %v7514 = vmul.f32 %v7465, 1.442695
          %v7515 = vpow.pop %v7514
          %v7516 = vmul.f32 %v7466, 1.442695
          %v7517 = vpow.pop %v7516
          %v7518 = vmul.f32 %v7467, 1.442695
          %v7519 = vpow.pop %v7518
          %v7520 = vmul.f32 %v7468, 1.442695
          %v7521 = vpow.pop %v7520
          %v7522 = vmul.f32 %v7469, 1.442695
          %v7523 = vpow.pop %v7522
          %v7524 = vmul.f32 %v7470, 1.442695
          %v7525 = vpow.pop %v7524
          %v7526 = vmul.f32 %v7471, 1.442695
          %v7527 = vpow.pop %v7526
          %v7528 = vmul.f32 %v7472, 1.442695
          %v7529 = vpow.pop %v7528
          %v7530 = vmul.f32 %v7473, 1.442695
          %v7531 = vpow.pop %v7530
          %v7532 = vmul.f32 %v7474, 1.442695
          %v7533 = vpow.pop %v7532
          %v7534 = vmul.f32 %v7475, 1.442695
          %v7535 = vpow.pop %v7534
          %v7536 = vmul.f32 %v7476, 1.442695
          %v7537 = vpow.pop %v7536
          %v7538 = vmul.f32 %v7477, 1.442695
          %v7539 = vpow.pop %v7538
          %v7540 = vmul.f32 %v7478, 1.442695
          %v7541 = vpow.pop %v7540
          %v7542 = vmul.f32 %v7479, 1.442695
          %v7543 = vpow.pop %v7542
          %v7544 = vpack.c.bf16 %v7483, %v7481
          %v7545 = vpack.c.bf16 %v7487, %v7485
          %v7546 = vpack.c.bf16 %v7491, %v7489
          %v7547 = vpack.c.bf16 %v7495, %v7493
          %v7548 = vpack.c.bf16 %v7499, %v7497
          %v7549 = vpack.c.bf16 %v7503, %v7501
          %v7550 = vpack.c.bf16 %v7507, %v7505
          %v7551 = vpack.c.bf16 %v7511, %v7509
          %v7552 = vpack.c.bf16 %v7515, %v7513
          %v7553 = vpack.c.bf16 %v7519, %v7517
          %v7554 = vpack.c.bf16 %v7523, %v7521
          %v7555 = vpack.c.bf16 %v7527, %v7525
          %v7556 = vpack.c.bf16 %v7531, %v7529
          %v7557 = vpack.c.bf16 %v7535, %v7533
          %v7558 = vpack.c.bf16 %v7539, %v7537
          %v7559 = vpack.c.bf16 %v7543, %v7541
          %v7560 = vunpack.c.l.b16 %v6601
          %v7561 = vunpack.c.h.b16 %v6601
          %v7562 = vpack.c.b16 %v7560, %v7560
          %v7563 = vpack.c.b16 %v7561, %v7561
          %7566 = vmatprep.subr.bf16.mxu0 0
          %7567 = vmatpush1.bf16.msra.mxu0 %v7544
          %7568 = vmatprep.subr.bf16.mxu0 0
          %7569 = vmatpush1.bf16.msra.mxu0 %v7545
          %7570 = vmatprep.subr.bf16.mxu0 0
          %7571 = vmatpush1.bf16.msra.mxu0 %v7546
          %7572 = vmatprep.subr.bf16.mxu0 0
          %7573 = vmatpush1.bf16.msra.mxu0 %v7547
          %7574 = vmatprep.subr.bf16.mxu0 0
          %7575 = vmatpush1.bf16.msra.mxu0 %v7548
          %7576 = vmatprep.subr.bf16.mxu0 0
          %7577 = vmatpush1.bf16.msra.mxu0 %v7549
          %7578 = vmatprep.subr.bf16.mxu0 0
          %7579 = vmatpush1.bf16.msra.mxu0 %v7550
          %7580 = vmatprep.subr.bf16.mxu0 0
          %7581 = vmatpush1.bf16.msra.mxu0 %v7551
          %7582 = vmatprep.subr.bf16.mxu0 0
          %7583 = vmatpush1.bf16.msra.mxu0 %v7552
          %7584 = vmatprep.subr.bf16.mxu0 0
          %7585 = vmatpush1.bf16.msra.mxu0 %v7553
          %7586 = vmatprep.subr.bf16.mxu0 0
          %7587 = vmatpush1.bf16.msra.mxu0 %v7554
          %7588 = vmatprep.subr.bf16.mxu0 0
          %7589 = vmatpush1.bf16.msra.mxu0 %v7555
          %7590 = vmatprep.subr.bf16.mxu0 0
          %7591 = vmatpush1.bf16.msra.mxu0 %v7556
          %7592 = vmatprep.subr.bf16.mxu0 0
          %7593 = vmatpush1.bf16.msra.mxu0 %v7557
          %7594 = vmatprep.subr.bf16.mxu0 0
          %7595 = vmatpush1.bf16.msra.mxu0 %v7558
          %7596 = vmatprep.subr.bf16.mxu0 0
          %7597 = vmatpush1.bf16.msra.mxu0 %v7559
          %7598 = vmatprep.mubr.bf16.mxu0 %v7563
          %7599 = vmatmul.mubr.bf16.gmra.mrb[0].mxu0 %v7562
          %v7600 = vpop.f32.mrb[0].mxu0
          %v7601 = vadd.f32 0.0, %v7600
          %v7602 = vpop.f32.mrb[0].mxu0
          %v7603 = vpop.f32.mrb[0].mxu0
          %v7604 = vpop.f32.mrb[0].mxu0
          %7605 = vdwg.mxu0
          %v7606 = vmax.f32 %v7601, 1e-20
          %v7607 = vrcp.pop %v7606
          %v7608 = vld [vmem:[%s6] sm:$0xff]
          %v7609 = vld [vmem:[%s6 + $0x8] sm:$0xff]
          %v7612 = vunpack.c.l.b16 %v7608
          %v7613 = vunpack.c.h.b16 %v7608
          %v7614 = vunpack.c.l.b16 %v7609
          %v7615 = vunpack.c.h.b16 %v7609
          %v7616 = vpack.c.b16 %v7612, %v7612
          %v7617 = vpack.c.b16 %v7613, %v7613
          %v7618 = vpack.c.b16 %v7614, %v7614
          %v7619 = vpack.c.b16 %v7615, %v7615
          %v7621 = vsel %vm7126, %v7544, 0
          %v7624 = vsel %vm7126, %v7545, 0
          %v7627 = vsel %vm7126, %v7546, 0
          %v7630 = vsel %vm7126, %v7547, 0
          %v7633 = vsel %vm7126, %v7548, 0
          %v7636 = vsel %vm7126, %v7549, 0
          %v7639 = vsel %vm7126, %v7550, 0
          %v7642 = vsel %vm7126, %v7551, 0
          %v7645 = vsel %vm7126, %v7552, 0
          %v7648 = vsel %vm7126, %v7553, 0
          %v7651 = vsel %vm7126, %v7554, 0
          %v7654 = vsel %vm7126, %v7555, 0
          %v7657 = vsel %vm7126, %v7556, 0
          %v7660 = vsel %vm7126, %v7557, 0
          %v7663 = vsel %vm7126, %v7558, 0
          %v7666 = vsel %vm7126, %v7559, 0
          %vm7668 = vcmask 1043456
          %v7670 = vsel %vm7668, %v7616, 0
          %v7673 = vsel %vm7668, %v7617, 0
          %v7676 = vsel %vm7668, %v7618, 0
          %v7679 = vsel %vm7668, %v7619, 0
          %7681 = vmatprep.subr.bf16.mxu0 %v7673
          %7682 = vmatpush1.bf16.msra.mxu0 %v7670
          %7683 = vmatprep.subr.bf16.mxu0 0
          %7684 = vmatpush1.bf16.msra.mxu0 0
          %7685 = vmatprep.subr.bf16.mxu0 0
          %7686 = vmatpush1.bf16.msra.mxu0 0
          %7687 = vmatprep.subr.bf16.mxu0 0
          %7688 = vmatpush1.bf16.msra.mxu0 0
          %7689 = vmatprep.subr.bf16.mxu0 0
          %7690 = vmatpush1.bf16.msra.mxu0 0
          %7691 = vmatprep.subr.bf16.mxu0 0
          %7692 = vmatpush1.bf16.msra.mxu0 0
          %7693 = vmatprep.subr.bf16.mxu0 0
          %7694 = vmatpush1.bf16.msra.mxu0 0
          %7695 = vmatprep.subr.bf16.mxu0 0
          %7696 = vmatpush1.bf16.msra.mxu0 0
          %7697 = vmatprep.subr.bf16.mxu0 0
          %7698 = vmatpush1.bf16.msra.mxu0 0
          %7699 = vmatprep.subr.bf16.mxu0 0
          %7700 = vmatpush1.bf16.msra.mxu0 0
          %7701 = vmatprep.subr.bf16.mxu0 0
          %7702 = vmatpush1.bf16.msra.mxu0 0
          %7703 = vmatprep.subr.bf16.mxu0 0
          %7704 = vmatpush1.bf16.msra.mxu0 0
          %7705 = vmatprep.subr.bf16.mxu0 0
          %7706 = vmatpush1.bf16.msra.mxu0 0
          %7707 = vmatprep.subr.bf16.mxu0 0
          %7708 = vmatpush1.bf16.msra.mxu0 0
          %7709 = vmatprep.subr.bf16.mxu0 0
          %7710 = vmatpush1.bf16.msra.mxu0 0
          %7711 = vmatprep.subr.bf16.mxu0 0
          %7712 = vmatpush1.bf16.msra.mxu0 0
          %7713 = vmatprep.mubr.bf16.mxu0 0
          %7714 = vmatmul.mubr.bf16.gmra.mrb[0].mxu0 %v7621
          %v7715 = vpop.f32.mrb[0].mxu0
          %v7716 = vadd.f32 0.0, %v7715
          %v7717 = vpop.f32.mrb[0].mxu0
          %v7718 = vadd.f32 0.0, %v7717
          %v7719 = vpop.f32.mrb[0].mxu0
          %v7720 = vadd.f32 0.0, %v7719
          %v7721 = vpop.f32.mrb[0].mxu0
          %v7722 = vadd.f32 0.0, %v7721
          %7723 = vmatprep.mubr.bf16.mxu0 0
          %7724 = vmatmul.mubr.bf16.gmra.mrb[0].mxu0 %v7624
          %v7725 = vpop.f32.mrb[0].mxu0
          %v7726 = vadd.f32 0.0, %v7725
          %v7727 = vpop.f32.mrb[0].mxu0
          %v7728 = vadd.f32 0.0, %v7727
          %v7729 = vpop.f32.mrb[0].mxu0
          %v7730 = vadd.f32 0.0, %v7729
          %v7731 = vpop.f32.mrb[0].mxu0
          %v7732 = vadd.f32 0.0, %v7731
          %7733 = vmatprep.mubr.bf16.mxu0 0
          %7734 = vmatmul.mubr.bf16.gmra.mrb[0].mxu0 %v7627
          %v7735 = vpop.f32.mrb[0].mxu0
          %v7736 = vadd.f32 0.0, %v7735
          %v7737 = vpop.f32.mrb[0].mxu0
          %v7738 = vadd.f32 0.0, %v7737
          %v7739 = vpop.f32.mrb[0].mxu0
          %v7740 = vadd.f32 0.0, %v7739
          %v7741 = vpop.f32.mrb[0].mxu0
          %v7742 = vadd.f32 0.0, %v7741
          %7743 = vmatprep.mubr.bf16.mxu0 0
          %7744 = vmatmul.mubr.bf16.gmra.mrb[0].mxu0 %v7630
          %v7745 = vpop.f32.mrb[0].mxu0
          %v7746 = vadd.f32 0.0, %v7745
          %v7747 = vpop.f32.mrb[0].mxu0
          %v7748 = vadd.f32 0.0, %v7747
          %v7749 = vpop.f32.mrb[0].mxu0
          %v7750 = vadd.f32 0.0, %v7749
          %v7751 = vpop.f32.mrb[0].mxu0
          %v7752 = vadd.f32 0.0, %v7751
          %7753 = vmatprep.mubr.bf16.mxu0 0
          %7754 = vmatmul.mubr.bf16.gmra.mrb[0].mxu0 %v7633
          %v7755 = vpop.f32.mrb[0].mxu0
          %v7756 = vadd.f32 0.0, %v7755
          %v7757 = vpop.f32.mrb[0].mxu0
          %v7758 = vadd.f32 0.0, %v7757
          %v7759 = vpop.f32.mrb[0].mxu0
          %v7760 = vadd.f32 0.0, %v7759
          %v7761 = vpop.f32.mrb[0].mxu0
          %v7762 = vadd.f32 0.0, %v7761
          %7763 = vmatprep.mubr.bf16.mxu0 0
          %7764 = vmatmul.mubr.bf16.gmra.mrb[0].mxu0 %v7636
          %v7765 = vpop.f32.mrb[0].mxu0
          %v7766 = vadd.f32 0.0, %v7765
          %v7767 = vpop.f32.mrb[0].mxu0
          %v7768 = vadd.f32 0.0, %v7767
          %v7769 = vpop.f32.mrb[0].mxu0
          %v7770 = vadd.f32 0.0, %v7769
          %v7771 = vpop.f32.mrb[0].mxu0
          %v7772 = vadd.f32 0.0, %v7771
          %7773 = vmatprep.mubr.bf16.mxu0 0
          %7774 = vmatmul.mubr.bf16.gmra.mrb[0].mxu0 %v7639
          %v7775 = vpop.f32.mrb[0].mxu0
          %v7776 = vadd.f32 0.0, %v7775
          %v7777 = vpop.f32.mrb[0].mxu0
          %v7778 = vadd.f32 0.0, %v7777
          %v7779 = vpop.f32.mrb[0].mxu0
          %v7780 = vadd.f32 0.0, %v7779
          %v7781 = vpop.f32.mrb[0].mxu0
          %v7782 = vadd.f32 0.0, %v7781
          %7783 = vmatprep.mubr.bf16.mxu0 0
          %7784 = vmatmul.mubr.bf16.gmra.mrb[0].mxu0 %v7642
          %v7785 = vpop.f32.mrb[0].mxu0
          %v7786 = vadd.f32 0.0, %v7785
          %v7787 = vpop.f32.mrb[0].mxu0
          %v7788 = vadd.f32 0.0, %v7787
          %v7789 = vpop.f32.mrb[0].mxu0
          %v7790 = vadd.f32 0.0, %v7789
          %v7791 = vpop.f32.mrb[0].mxu0
          %v7792 = vadd.f32 0.0, %v7791
          %7793 = vmatprep.mubr.bf16.mxu0 0
          %7794 = vmatmul.mubr.bf16.gmra.mrb[0].mxu0 %v7645
          %v7795 = vpop.f32.mrb[0].mxu0
          %v7796 = vadd.f32 0.0, %v7795
          %v7797 = vpop.f32.mrb[0].mxu0
          %v7798 = vadd.f32 0.0, %v7797
          %v7799 = vpop.f32.mrb[0].mxu0
          %v7800 = vadd.f32 0.0, %v7799
          %v7801 = vpop.f32.mrb[0].mxu0
          %v7802 = vadd.f32 0.0, %v7801
          %7803 = vmatprep.mubr.bf16.mxu0 0
          %7804 = vmatmul.mubr.bf16.gmra.mrb[0].mxu0 %v7648
          %v7805 = vpop.f32.mrb[0].mxu0
          %v7806 = vadd.f32 0.0, %v7805
          %v7807 = vpop.f32.mrb[0].mxu0
          %v7808 = vadd.f32 0.0, %v7807
          %v7809 = vpop.f32.mrb[0].mxu0
          %v7810 = vadd.f32 0.0, %v7809
          %v7811 = vpop.f32.mrb[0].mxu0
          %v7812 = vadd.f32 0.0, %v7811
          %7813 = vmatprep.mubr.bf16.mxu0 0
          %7814 = vmatmul.mubr.bf16.gmra.mrb[0].mxu0 %v7651
          %v7815 = vpop.f32.mrb[0].mxu0
          %v7816 = vadd.f32 0.0, %v7815
          %v7817 = vpop.f32.mrb[0].mxu0
          %v7818 = vadd.f32 0.0, %v7817
          %v7819 = vpop.f32.mrb[0].mxu0
          %v7820 = vadd.f32 0.0, %v7819
          %v7821 = vpop.f32.mrb[0].mxu0
          %v7822 = vadd.f32 0.0, %v7821
          %7823 = vmatprep.mubr.bf16.mxu0 0
          %7824 = vmatmul.mubr.bf16.gmra.mrb[0].mxu0 %v7654
          %v7825 = vpop.f32.mrb[0].mxu0
          %v7826 = vadd.f32 0.0, %v7825
          %v7827 = vpop.f32.mrb[0].mxu0
          %v7828 = vadd.f32 0.0, %v7827
          %v7829 = vpop.f32.mrb[0].mxu0
          %v7830 = vadd.f32 0.0, %v7829
          %v7831 = vpop.f32.mrb[0].mxu0
          %v7832 = vadd.f32 0.0, %v7831
          %7833 = vmatprep.mubr.bf16.mxu0 0
          %7834 = vmatmul.mubr.bf16.gmra.mrb[0].mxu0 %v7657
          %v7835 = vpop.f32.mrb[0].mxu0
          %v7836 = vadd.f32 0.0, %v7835
          %v7837 = vpop.f32.mrb[0].mxu0
          %v7838 = vadd.f32 0.0, %v7837
          %v7839 = vpop.f32.mrb[0].mxu0
          %v7840 = vadd.f32 0.0, %v7839
          %v7841 = vpop.f32.mrb[0].mxu0
          %v7842 = vadd.f32 0.0, %v7841
          %7843 = vmatprep.mubr.bf16.mxu0 0
          %7844 = vmatmul.mubr.bf16.gmra.mrb[0].mxu0 %v7660
          %v7845 = vpop.f32.mrb[0].mxu0
          %v7846 = vadd.f32 0.0, %v7845
          %v7847 = vpop.f32.mrb[0].mxu0
          %v7848 = vadd.f32 0.0, %v7847
          %v7849 = vpop.f32.mrb[0].mxu0
          %v7850 = vadd.f32 0.0, %v7849
          %v7851 = vpop.f32.mrb[0].mxu0
          %v7852 = vadd.f32 0.0, %v7851
          %7853 = vmatprep.mubr.bf16.mxu0 0
          %7854 = vmatmul.mubr.bf16.gmra.mrb[0].mxu0 %v7663
          %v7855 = vpop.f32.mrb[0].mxu0
          %v7856 = vadd.f32 0.0, %v7855
          %v7857 = vpop.f32.mrb[0].mxu0
          %v7858 = vadd.f32 0.0, %v7857
          %v7859 = vpop.f32.mrb[0].mxu0
          %v7860 = vadd.f32 0.0, %v7859
          %v7861 = vpop.f32.mrb[0].mxu0
          %v7862 = vadd.f32 0.0, %v7861
          %7863 = vmatprep.mubr.bf16.mxu0 0
          %7864 = vmatmul.mubr.bf16.gmra.mrb[0].mxu0 %v7666
          %v7865 = vpop.f32.mrb[0].mxu0
          %v7866 = vadd.f32 0.0, %v7865
          %v7867 = vpop.f32.mrb[0].mxu0
          %v7868 = vadd.f32 0.0, %v7867
          %v7869 = vpop.f32.mrb[0].mxu0
          %v7870 = vadd.f32 0.0, %v7869
          %v7871 = vpop.f32.mrb[0].mxu0
          %v7872 = vadd.f32 0.0, %v7871
          %7873 = vdwg.mxu0
          %7874 = vmatprep.subr.bf16.mxu0 %v7679
          %7875 = vmatpush1.bf16.msra.mxu0 %v7676
          %7876 = vmatprep.subr.bf16.mxu0 0
          %7877 = vmatpush1.bf16.msra.mxu0 0
          %7878 = vmatprep.subr.bf16.mxu0 0
          %7879 = vmatpush1.bf16.msra.mxu0 0
          %7880 = vmatprep.subr.bf16.mxu0 0
          %7881 = vmatpush1.bf16.msra.mxu0 0
          %7882 = vmatprep.subr.bf16.mxu0 0
          %7883 = vmatpush1.bf16.msra.mxu0 0
          %7884 = vmatprep.subr.bf16.mxu0 0
          %7885 = vmatpush1.bf16.msra.mxu0 0
          %7886 = vmatprep.subr.bf16.mxu0 0
          %7887 = vmatpush1.bf16.msra.mxu0 0
          %7888 = vmatprep.subr.bf16.mxu0 0
          %7889 = vmatpush1.bf16.msra.mxu0 0
          %7890 = vmatprep.subr.bf16.mxu0 0
          %7891 = vmatpush1.bf16.msra.mxu0 0
          %7892 = vmatprep.subr.bf16.mxu0 0
          %7893 = vmatpush1.bf16.msra.mxu0 0
          %7894 = vmatprep.subr.bf16.mxu0 0
          %7895 = vmatpush1.bf16.msra.mxu0 0
          %7896 = vmatprep.subr.bf16.mxu0 0
          %7897 = vmatpush1.bf16.msra.mxu0 0
          %7898 = vmatprep.subr.bf16.mxu0 0
          %7899 = vmatpush1.bf16.msra.mxu0 0
          %7900 = vmatprep.subr.bf16.mxu0 0
          %7901 = vmatpush1.bf16.msra.mxu0 0
          %7902 = vmatprep.subr.bf16.mxu0 0
          %7903 = vmatpush1.bf16.msra.mxu0 0
          %7904 = vmatprep.subr.bf16.mxu0 0
          %7905 = vmatpush1.bf16.msra.mxu0 0
          %7906 = vmatprep.mubr.bf16.mxu0 0
          %7907 = vmatmul.mubr.bf16.gmra.mrb[0].mxu0 %v7621
          %v7908 = vpop.f32.mrb[0].mxu0
          %v7909 = vadd.f32 0.0, %v7908
          %v7910 = vpop.f32.mrb[0].mxu0
          %v7911 = vadd.f32 0.0, %v7910
          %v7912 = vpop.f32.mrb[0].mxu0
          %v7913 = vadd.f32 0.0, %v7912
          %v7914 = vpop.f32.mrb[0].mxu0
          %v7915 = vadd.f32 0.0, %v7914
          %7916 = vmatprep.mubr.bf16.mxu0 0
          %7917 = vmatmul.mubr.bf16.gmra.mrb[0].mxu0 %v7624
          %v7918 = vpop.f32.mrb[0].mxu0
          %v7919 = vadd.f32 0.0, %v7918
          %v7920 = vpop.f32.mrb[0].mxu0
          %v7921 = vadd.f32 0.0, %v7920
          %v7922 = vpop.f32.mrb[0].mxu0
          %v7923 = vadd.f32 0.0, %v7922
          %v7924 = vpop.f32.mrb[0].mxu0
          %v7925 = vadd.f32 0.0, %v7924
          %7926 = vmatprep.mubr.bf16.mxu0 0
          %7927 = vmatmul.mubr.bf16.gmra.mrb[0].mxu0 %v7627
          %v7928 = vpop.f32.mrb[0].mxu0
          %v7929 = vadd.f32 0.0, %v7928
          %v7930 = vpop.f32.mrb[0].mxu0
          %v7931 = vadd.f32 0.0, %v7930
          %v7932 = vpop.f32.mrb[0].mxu0
          %v7933 = vadd.f32 0.0, %v7932
          %v7934 = vpop.f32.mrb[0].mxu0
          %v7935 = vadd.f32 0.0, %v7934
          %7936 = vmatprep.mubr.bf16.mxu0 0
          %7937 = vmatmul.mubr.bf16.gmra.mrb[0].mxu0 %v7630
          %v7938 = vpop.f32.mrb[0].mxu0
          %v7939 = vadd.f32 0.0, %v7938
          %v7940 = vpop.f32.mrb[0].mxu0
          %v7941 = vadd.f32 0.0, %v7940
          %v7942 = vpop.f32.mrb[0].mxu0
          %v7943 = vadd.f32 0.0, %v7942
          %v7944 = vpop.f32.mrb[0].mxu0
          %v7945 = vadd.f32 0.0, %v7944
          %7946 = vmatprep.mubr.bf16.mxu0 0
          %7947 = vmatmul.mubr.bf16.gmra.mrb[0].mxu0 %v7633
          %v7948 = vpop.f32.mrb[0].mxu0
          %v7949 = vadd.f32 0.0, %v7948
          %v7950 = vpop.f32.mrb[0].mxu0
          %v7951 = vadd.f32 0.0, %v7950
          %v7952 = vpop.f32.mrb[0].mxu0
          %v7953 = vadd.f32 0.0, %v7952
          %v7954 = vpop.f32.mrb[0].mxu0
          %v7955 = vadd.f32 0.0, %v7954
          %7956 = vmatprep.mubr.bf16.mxu0 0
          %7957 = vmatmul.mubr.bf16.gmra.mrb[0].mxu0 %v7636
          %v7958 = vpop.f32.mrb[0].mxu0
          %v7959 = vadd.f32 0.0, %v7958
          %v7960 = vpop.f32.mrb[0].mxu0
          %v7961 = vadd.f32 0.0, %v7960
          %v7962 = vpop.f32.mrb[0].mxu0
          %v7963 = vadd.f32 0.0, %v7962
          %v7964 = vpop.f32.mrb[0].mxu0
          %v7965 = vadd.f32 0.0, %v7964
          %7966 = vmatprep.mubr.bf16.mxu0 0
          %7967 = vmatmul.mubr.bf16.gmra.mrb[0].mxu0 %v7639
          %v7968 = vpop.f32.mrb[0].mxu0
          %v7969 = vadd.f32 0.0, %v7968
          %v7970 = vpop.f32.mrb[0].mxu0
          %v7971 = vadd.f32 0.0, %v7970
          %v7972 = vpop.f32.mrb[0].mxu0
          %v7973 = vadd.f32 0.0, %v7972
          %v7974 = vpop.f32.mrb[0].mxu0
          %v7975 = vadd.f32 0.0, %v7974
          %7976 = vmatprep.mubr.bf16.mxu0 0
          %7977 = vmatmul.mubr.bf16.gmra.mrb[0].mxu0 %v7642
          %v7978 = vpop.f32.mrb[0].mxu0
          %v7979 = vadd.f32 0.0, %v7978
          %v7980 = vpop.f32.mrb[0].mxu0
          %v7981 = vadd.f32 0.0, %v7980
          %v7982 = vpop.f32.mrb[0].mxu0
          %v7983 = vadd.f32 0.0, %v7982
          %v7984 = vpop.f32.mrb[0].mxu0
          %v7985 = vadd.f32 0.0, %v7984
          %7986 = vmatprep.mubr.bf16.mxu0 0
          %7987 = vmatmul.mubr.bf16.gmra.mrb[0].mxu0 %v7645
          %v7988 = vpop.f32.mrb[0].mxu0
          %v7989 = vadd.f32 0.0, %v7988
          %v7990 = vpop.f32.mrb[0].mxu0
          %v7991 = vadd.f32 0.0, %v7990
          %v7992 = vpop.f32.mrb[0].mxu0
          %v7993 = vadd.f32 0.0, %v7992
          %v7994 = vpop.f32.mrb[0].mxu0
          %v7995 = vadd.f32 0.0, %v7994
          %7996 = vmatprep.mubr.bf16.mxu0 0
          %7997 = vmatmul.mubr.bf16.gmra.mrb[0].mxu0 %v7648
          %v7998 = vpop.f32.mrb[0].mxu0
          %v7999 = vadd.f32 0.0, %v7998
          %v8000 = vpop.f32.mrb[0].mxu0
          %v8001 = vadd.f32 0.0, %v8000
          %v8002 = vpop.f32.mrb[0].mxu0
          %v8003 = vadd.f32 0.0, %v8002
          %v8004 = vpop.f32.mrb[0].mxu0
          %v8005 = vadd.f32 0.0, %v8004
          %8006 = vmatprep.mubr.bf16.mxu0 0
          %8007 = vmatmul.mubr.bf16.gmra.mrb[0].mxu0 %v7651
          %v8008 = vpop.f32.mrb[0].mxu0
          %v8009 = vadd.f32 0.0, %v8008
          %v8010 = vpop.f32.mrb[0].mxu0
          %v8011 = vadd.f32 0.0, %v8010
          %v8012 = vpop.f32.mrb[0].mxu0
          %v8013 = vadd.f32 0.0, %v8012
          %v8014 = vpop.f32.mrb[0].mxu0
          %v8015 = vadd.f32 0.0, %v8014
          %8016 = vmatprep.mubr.bf16.mxu0 0
          %8017 = vmatmul.mubr.bf16.gmra.mrb[0].mxu0 %v7654
          %v8018 = vpop.f32.mrb[0].mxu0
          %v8019 = vadd.f32 0.0, %v8018
          %v8020 = vpop.f32.mrb[0].mxu0
          %v8021 = vadd.f32 0.0, %v8020
          %v8022 = vpop.f32.mrb[0].mxu0
          %v8023 = vadd.f32 0.0, %v8022
          %v8024 = vpop.f32.mrb[0].mxu0
          %v8025 = vadd.f32 0.0, %v8024
          %8026 = vmatprep.mubr.bf16.mxu0 0
          %8027 = vmatmul.mubr.bf16.gmra.mrb[0].mxu0 %v7657
          %v8028 = vpop.f32.mrb[0].mxu0
          %v8029 = vadd.f32 0.0, %v8028
          %v8030 = vpop.f32.mrb[0].mxu0
          %v8031 = vadd.f32 0.0, %v8030
          %v8032 = vpop.f32.mrb[0].mxu0
          %v8033 = vadd.f32 0.0, %v8032
          %v8034 = vpop.f32.mrb[0].mxu0
          %v8035 = vadd.f32 0.0, %v8034
          %8036 = vmatprep.mubr.bf16.mxu0 0
          %8037 = vmatmul.mubr.bf16.gmra.mrb[0].mxu0 %v7660
          %v8038 = vpop.f32.mrb[0].mxu0
          %v8039 = vadd.f32 0.0, %v8038
          %v8040 = vpop.f32.mrb[0].mxu0
          %v8041 = vadd.f32 0.0, %v8040
          %v8042 = vpop.f32.mrb[0].mxu0
          %v8043 = vadd.f32 0.0, %v8042
          %v8044 = vpop.f32.mrb[0].mxu0
          %v8045 = vadd.f32 0.0, %v8044
          %8046 = vmatprep.mubr.bf16.mxu0 0
          %8047 = vmatmul.mubr.bf16.gmra.mrb[0].mxu0 %v7663
          %v8048 = vpop.f32.mrb[0].mxu0
          %v8049 = vadd.f32 0.0, %v8048
          %v8050 = vpop.f32.mrb[0].mxu0
          %v8051 = vadd.f32 0.0, %v8050
          %v8052 = vpop.f32.mrb[0].mxu0
          %v8053 = vadd.f32 0.0, %v8052
          %v8054 = vpop.f32.mrb[0].mxu0
          %v8055 = vadd.f32 0.0, %v8054
          %8056 = vmatprep.mubr.bf16.mxu0 0
          %8057 = vmatmul.mubr.bf16.gmra.mrb[0].mxu0 %v7666
          %v8058 = vpop.f32.mrb[0].mxu0
          %v8059 = vadd.f32 0.0, %v8058
          %v8060 = vpop.f32.mrb[0].mxu0
          %v8061 = vadd.f32 0.0, %v8060
          %v8062 = vpop.f32.mrb[0].mxu0
          %v8063 = vadd.f32 0.0, %v8062
          %v8064 = vpop.f32.mrb[0].mxu0
          %v8065 = vadd.f32 0.0, %v8064
          %8066 = vdwg.mxu0
          %v8067 = vmul.f32 %v7716, %v5479
          %v8068 = vmul.f32 %v7718, %v5481
          %v8069 = vmul.f32 %v7909, %v5865
          %v8070 = vmul.f32 %v7911, %v5867
          %v8071 = vmul.f32 %v7720, %v5483
          %v8072 = vmul.f32 %v7722, %v5485
          %v8073 = vmul.f32 %v7913, %v5869
          %v8074 = vmul.f32 %v7915, %v5871
          %v8075 = vmul.f32 %v7726, %v5489
          %v8076 = vmul.f32 %v7728, %v5491
          %v8077 = vmul.f32 %v7919, %v5875
          %v8078 = vmul.f32 %v7921, %v5877
          %v8079 = vmul.f32 %v7730, %v5493
          %v8080 = vmul.f32 %v7732, %v5495
          %v8081 = vmul.f32 %v7923, %v5879
          %v8082 = vmul.f32 %v7925, %v5881
          %v8083 = vmul.f32 %v7736, %v5499
          %v8084 = vmul.f32 %v7738, %v5501
          %v8085 = vmul.f32 %v7929, %v5885
          %v8086 = vmul.f32 %v7931, %v5887
          %v8087 = vmul.f32 %v7740, %v5503
          %v8088 = vmul.f32 %v7742, %v5505
          %v8089 = vmul.f32 %v7933, %v5889
          %v8090 = vmul.f32 %v7935, %v5891
          %v8091 = vmul.f32 %v7746, %v5509
          %v8092 = vmul.f32 %v7748, %v5511
          %v8093 = vmul.f32 %v7939, %v5895
          %v8094 = vmul.f32 %v7941, %v5897
          %v8095 = vmul.f32 %v7750, %v5513
          %v8096 = vmul.f32 %v7752, %v5515
          %v8097 = vmul.f32 %v7943, %v5899
          %v8098 = vmul.f32 %v7945, %v5901
          %v8099 = vmul.f32 %v7756, %v5519
          %v8100 = vmul.f32 %v7758, %v5521
          %v8101 = vmul.f32 %v7949, %v5905
          %v8102 = vmul.f32 %v7951, %v5907
          %v8103 = vmul.f32 %v7760, %v5523
          %v8104 = vmul.f32 %v7762, %v5525
          %v8105 = vmul.f32 %v7953, %v5909
          %v8106 = vmul.f32 %v7955, %v5911
          %v8107 = vmul.f32 %v7766, %v5529
          %v8108 = vmul.f32 %v7768, %v5531
          %v8109 = vmul.f32 %v7959, %v5915
          %v8110 = vmul.f32 %v7961, %v5917
          %v8111 = vmul.f32 %v7770, %v5533
          %v8112 = vmul.f32 %v7772, %v5535
          %v8113 = vmul.f32 %v7963, %v5919
          %v8114 = vmul.f32 %v7965, %v5921
          %v8115 = vmul.f32 %v7776, %v5539
          %v8116 = vmul.f32 %v7778, %v5541
          %v8117 = vmul.f32 %v7969, %v5925
          %v8118 = vmul.f32 %v7971, %v5927
          %v8119 = vmul.f32 %v7780, %v5543
          %v8120 = vmul.f32 %v7782, %v5545
          %v8121 = vmul.f32 %v7973, %v5929
          %v8122 = vmul.f32 %v7975, %v5931
          %v8123 = vmul.f32 %v7786, %v5549
          %v8124 = vmul.f32 %v7788, %v5551
          %v8125 = vmul.f32 %v7979, %v5935
          %v8126 = vmul.f32 %v7981, %v5937
          %v8127 = vmul.f32 %v7790, %v5553
          %v8128 = vmul.f32 %v7792, %v5555
          %v8129 = vmul.f32 %v7983, %v5939
          %v8130 = vmul.f32 %v7985, %v5941
          %v8131 = vmul.f32 %v7796, %v5559
          %v8132 = vmul.f32 %v7798, %v5561
          %v8133 = vmul.f32 %v7989, %v5945
          %v8134 = vmul.f32 %v7991, %v5947
          %v8135 = vmul.f32 %v7800, %v5563
          %v8136 = vmul.f32 %v7802, %v5565
          %v8137 = vmul.f32 %v7993, %v5949
          %v8138 = vmul.f32 %v7995, %v5951
          %v8139 = vmul.f32 %v7806, %v5569
          %v8140 = vmul.f32 %v7808, %v5571
          %v8141 = vmul.f32 %v7999, %v5955
          %v8142 = vmul.f32 %v8001, %v5957
          %v8143 = vmul.f32 %v7810, %v5573
          %v8144 = vmul.f32 %v7812, %v5575
          %v8145 = vmul.f32 %v8003, %v5959
          %v8146 = vmul.f32 %v8005, %v5961
          %v8147 = vmul.f32 %v7816, %v5579
          %v8148 = vmul.f32 %v7818, %v5581
          %v8149 = vmul.f32 %v8009, %v5965
          %v8150 = vmul.f32 %v8011, %v5967
          %v8151 = vmul.f32 %v7820, %v5583
          %v8152 = vmul.f32 %v7822, %v5585
          %v8153 = vmul.f32 %v8013, %v5969
          %v8154 = vmul.f32 %v8015, %v5971
          %v8155 = vmul.f32 %v7826, %v5589
          %v8156 = vmul.f32 %v7828, %v5591
          %v8157 = vmul.f32 %v8019, %v5975
          %v8158 = vmul.f32 %v8021, %v5977
          %v8159 = vmul.f32 %v7830, %v5593
          %v8160 = vmul.f32 %v7832, %v5595
          %v8161 = vmul.f32 %v8023, %v5979
          %v8162 = vmul.f32 %v8025, %v5981
          %v8163 = vmul.f32 %v7836, %v5599
          %v8164 = vmul.f32 %v7838, %v5601
          %v8165 = vmul.f32 %v8029, %v5985
          %v8166 = vmul.f32 %v8031, %v5987
          %v8167 = vmul.f32 %v7840, %v5603
          %v8168 = vmul.f32 %v7842, %v5605
          %v8169 = vmul.f32 %v8033, %v5989
          %v8170 = vmul.f32 %v8035, %v5991
          %v8171 = vmul.f32 %v7846, %v5609
          %v8172 = vmul.f32 %v7848, %v5611
          %v8173 = vmul.f32 %v8039, %v5995
          %v8174 = vmul.f32 %v8041, %v5997
          %v8175 = vmul.f32 %v7850, %v5613
          %v8176 = vmul.f32 %v7852, %v5615
          %v8177 = vmul.f32 %v8043, %v5999
          %v8178 = vmul.f32 %v8045, %v6001
          %v8179 = vmul.f32 %v7856, %v5619
          %v8180 = vmul.f32 %v7858, %v5621
          %v8181 = vmul.f32 %v8049, %v6005
          %v8182 = vmul.f32 %v8051, %v6007
          %v8183 = vmul.f32 %v7860, %v5623
          %v8184 = vmul.f32 %v7862, %v5625
          %v8185 = vmul.f32 %v8053, %v6009
          %v8186 = vmul.f32 %v8055, %v6011
          %v8187 = vmul.f32 %v7866, %v5629
          %v8188 = vmul.f32 %v7868, %v5631
          %v8189 = vmul.f32 %v8059, %v6015
          %v8190 = vmul.f32 %v8061, %v6017
          %v8191 = vmul.f32 %v7870, %v5633
          %v8192 = vmul.f32 %v7872, %v5635
          %v8193 = vmul.f32 %v8063, %v6019
          %v8194 = vmul.f32 %v8065, %v6021
          %v8195 = vpack.c.bf16 %v8071, %v8067
          %v8196 = vpack.c.bf16 %v8072, %v8068
          %v8197 = vpack.c.bf16 %v8073, %v8069
          %v8198 = vpack.c.bf16 %v8074, %v8070
          %v8199 = vpack.c.bf16 %v8079, %v8075
          %v8200 = vpack.c.bf16 %v8080, %v8076
          %v8201 = vpack.c.bf16 %v8081, %v8077
          %v8202 = vpack.c.bf16 %v8082, %v8078
          %v8203 = vpack.c.bf16 %v8087, %v8083
          %v8204 = vpack.c.bf16 %v8088, %v8084
          %v8205 = vpack.c.bf16 %v8089, %v8085
          %v8206 = vpack.c.bf16 %v8090, %v8086
          %v8207 = vpack.c.bf16 %v8095, %v8091
          %v8208 = vpack.c.bf16 %v8096, %v8092
          %v8209 = vpack.c.bf16 %v8097, %v8093
          %v8210 = vpack.c.bf16 %v8098, %v8094
          %v8211 = vpack.c.bf16 %v8103, %v8099
          %v8212 = vpack.c.bf16 %v8104, %v8100
          %v8213 = vpack.c.bf16 %v8105, %v8101
          %v8214 = vpack.c.bf16 %v8106, %v8102
          %v8215 = vpack.c.bf16 %v8111, %v8107
          %v8216 = vpack.c.bf16 %v8112, %v8108
          %v8217 = vpack.c.bf16 %v8113, %v8109
          %v8218 = vpack.c.bf16 %v8114, %v8110
          %v8219 = vpack.c.bf16 %v8119, %v8115
          %v8220 = vpack.c.bf16 %v8120, %v8116
          %v8221 = vpack.c.bf16 %v8121, %v8117
          %v8222 = vpack.c.bf16 %v8122, %v8118
          %v8223 = vpack.c.bf16 %v8127, %v8123
          %v8224 = vpack.c.bf16 %v8128, %v8124
          %v8225 = vpack.c.bf16 %v8129, %v8125
          %v8226 = vpack.c.bf16 %v8130, %v8126
          %v8227 = vpack.c.bf16 %v8135, %v8131
          %v8228 = vpack.c.bf16 %v8136, %v8132
          %v8229 = vpack.c.bf16 %v8137, %v8133
          %v8230 = vpack.c.bf16 %v8138, %v8134
          %v8231 = vpack.c.bf16 %v8143, %v8139
          %v8232 = vpack.c.bf16 %v8144, %v8140
          %v8233 = vpack.c.bf16 %v8145, %v8141
          %v8234 = vpack.c.bf16 %v8146, %v8142
          %v8235 = vpack.c.bf16 %v8151, %v8147
          %v8236 = vpack.c.bf16 %v8152, %v8148
          %v8237 = vpack.c.bf16 %v8153, %v8149
          %v8238 = vpack.c.bf16 %v8154, %v8150
          %v8239 = vpack.c.bf16 %v8159, %v8155
          %v8240 = vpack.c.bf16 %v8160, %v8156
          %v8241 = vpack.c.bf16 %v8161, %v8157
          %v8242 = vpack.c.bf16 %v8162, %v8158
          %v8243 = vpack.c.bf16 %v8167, %v8163
          %v8244 = vpack.c.bf16 %v8168, %v8164
          %v8245 = vpack.c.bf16 %v8169, %v8165
          %v8246 = vpack.c.bf16 %v8170, %v8166
          %v8247 = vpack.c.bf16 %v8175, %v8171
          %v8248 = vpack.c.bf16 %v8176, %v8172
          %v8249 = vpack.c.bf16 %v8177, %v8173
          %v8250 = vpack.c.bf16 %v8178, %v8174
          %v8251 = vpack.c.bf16 %v8183, %v8179
          %v8252 = vpack.c.bf16 %v8184, %v8180
          %v8253 = vpack.c.bf16 %v8185, %v8181
          %v8254 = vpack.c.bf16 %v8186, %v8182
          %v8255 = vpack.c.bf16 %v8191, %v8187
          %v8256 = vpack.c.bf16 %v8192, %v8188
          %v8257 = vpack.c.bf16 %v8193, %v8189
          %v8258 = vpack.c.bf16 %v8194, %v8190
          %8259 = vmatprep.subr.bf16.mxu0 %v8196
          %8260 = vmatpush1.bf16.msra.mxu0 %v8195
          %8261 = vmatprep.subr.bf16.mxu0 %v8200
          %8262 = vmatpush1.bf16.msra.mxu0 %v8199
          %8263 = vmatprep.subr.bf16.mxu0 %v8204
          %8264 = vmatpush1.bf16.msra.mxu0 %v8203
          %8265 = vmatprep.subr.bf16.mxu0 %v8208
          %8266 = vmatpush1.bf16.msra.mxu0 %v8207
          %8267 = vmatprep.subr.bf16.mxu0 %v8212
          %8268 = vmatpush1.bf16.msra.mxu0 %v8211
          %8269 = vmatprep.subr.bf16.mxu0 %v8216
          %8270 = vmatpush1.bf16.msra.mxu0 %v8215
          %8271 = vmatprep.subr.bf16.mxu0 %v8220
          %8272 = vmatpush1.bf16.msra.mxu0 %v8219
          %8273 = vmatprep.subr.bf16.mxu0 %v8224
          %8274 = vmatpush1.bf16.msra.mxu0 %v8223
          %8275 = vmatprep.subr.bf16.mxu0 %v8228
          %8276 = vmatpush1.bf16.msra.mxu0 %v8227
          %8277 = vmatprep.subr.bf16.mxu0 %v8232
          %8278 = vmatpush1.bf16.msra.mxu0 %v8231
          %8279 = vmatprep.subr.bf16.mxu0 %v8236
          %8280 = vmatpush1.bf16.msra.mxu0 %v8235
          %8281 = vmatprep.subr.bf16.mxu0 %v8240
          %8282 = vmatpush1.bf16.msra.mxu0 %v8239
          %8283 = vmatprep.subr.bf16.mxu0 %v8244
          %8284 = vmatpush1.bf16.msra.mxu0 %v8243
          %8285 = vmatprep.subr.bf16.mxu0 %v8248
          %8286 = vmatpush1.bf16.msra.mxu0 %v8247
          %8287 = vmatprep.subr.bf16.mxu0 %v8252
          %8288 = vmatpush1.bf16.msra.mxu0 %v8251
          %8289 = vmatprep.subr.bf16.mxu0 %v8256
          %8290 = vmatpush1.bf16.msra.mxu0 %v8255
          %8291 = vmatprep.mubr.bf16.mxu0 %v7563
          %8292 = vmatmul.mubr.bf16.gmra.mrb[0].mxu0 %v7562
          %v8293 = vpop.f32.mrb[0].mxu0
          %v8294 = vadd.f32 0.0, %v8293
          %v8295 = vpop.f32.mrb[0].mxu0
          %v8296 = vadd.f32 0.0, %v8295
          %v8297 = vpop.f32.mrb[0].mxu0
          %v8298 = vpop.f32.mrb[0].mxu0
          %8299 = vdwg.mxu0
          %8300 = vmatprep.subr.bf16.mxu0 %v8198
          %8301 = vmatpush1.bf16.msra.mxu0 %v8197
          %8302 = vmatprep.subr.bf16.mxu0 %v8202
          %8303 = vmatpush1.bf16.msra.mxu0 %v8201
          %8304 = vmatprep.subr.bf16.mxu0 %v8206
          %8305 = vmatpush1.bf16.msra.mxu0 %v8205
          %8306 = vmatprep.subr.bf16.mxu0 %v8210
          %8307 = vmatpush1.bf16.msra.mxu0 %v8209
          %8308 = vmatprep.subr.bf16.mxu0 %v8214
          %8309 = vmatpush1.bf16.msra.mxu0 %v8213
          %8310 = vmatprep.subr.bf16.mxu0 %v8218
          %8311 = vmatpush1.bf16.msra.mxu0 %v8217
          %8312 = vmatprep.subr.bf16.mxu0 %v8222
          %8313 = vmatpush1.bf16.msra.mxu0 %v8221
          %8314 = vmatprep.subr.bf16.mxu0 %v8226
          %8315 = vmatpush1.bf16.msra.mxu0 %v8225
          %8316 = vmatprep.subr.bf16.mxu0 %v8230
          %8317 = vmatpush1.bf16.msra.mxu0 %v8229
          %8318 = vmatprep.subr.bf16.mxu0 %v8234
          %8319 = vmatpush1.bf16.msra.mxu0 %v8233
          %8320 = vmatprep.subr.bf16.mxu0 %v8238
          %8321 = vmatpush1.bf16.msra.mxu0 %v8237
          %8322 = vmatprep.subr.bf16.mxu0 %v8242
          %8323 = vmatpush1.bf16.msra.mxu0 %v8241
          %8324 = vmatprep.subr.bf16.mxu0 %v8246
          %8325 = vmatpush1.bf16.msra.mxu0 %v8245
          %8326 = vmatprep.subr.bf16.mxu0 %v8250
          %8327 = vmatpush1.bf16.msra.mxu0 %v8249
          %8328 = vmatprep.subr.bf16.mxu0 %v8254
          %8329 = vmatpush1.bf16.msra.mxu0 %v8253
          %8330 = vmatprep.subr.bf16.mxu0 %v8258
          %8331 = vmatpush1.bf16.msra.mxu0 %v8257
          %8332 = vmatprep.mubr.bf16.mxu0 %v7563
          %8333 = vmatmul.mubr.bf16.gmra.mrb[0].mxu0 %v7562
          %v8334 = vpop.f32.mrb[0].mxu0
          %v8335 = vadd.f32 0.0, %v8334
          %v8336 = vpop.f32.mrb[0].mxu0
          %v8337 = vadd.f32 0.0, %v8336
          %v8338 = vpop.f32.mrb[0].mxu0
          %v8339 = vpop.f32.mrb[0].mxu0
          %8340 = vdwg.mxu0
          %v8341 = vpack.c.bf16 %v7607, %v7607
          %v8343 = vsel %vm7126, %v8341, 0
          %8345 = vmatprep.subr.bf16.mxu0 %v7673
          %8346 = vmatpush1.bf16.msra.mxu0 %v7670
          %8347 = vmatprep.subr.bf16.mxu0 0
          %8348 = vmatpush1.bf16.msra.mxu0 0
          %8349 = vmatprep.subr.bf16.mxu0 0
          %8350 = vmatpush1.bf16.msra.mxu0 0
          %8351 = vmatprep.subr.bf16.mxu0 0
          %8352 = vmatpush1.bf16.msra.mxu0 0
          %8353 = vmatprep.subr.bf16.mxu0 0
          %8354 = vmatpush1.bf16.msra.mxu0 0
          %8355 = vmatprep.subr.bf16.mxu0 0
          %8356 = vmatpush1.bf16.msra.mxu0 0
          %8357 = vmatprep.subr.bf16.mxu0 0
          %8358 = vmatpush1.bf16.msra.mxu0 0
          %8359 = vmatprep.subr.bf16.mxu0 0
          %8360 = vmatpush1.bf16.msra.mxu0 0
          %8361 = vmatprep.subr.bf16.mxu0 0
          %8362 = vmatpush1.bf16.msra.mxu0 0
          %8363 = vmatprep.subr.bf16.mxu0 0
          %8364 = vmatpush1.bf16.msra.mxu0 0
          %8365 = vmatprep.subr.bf16.mxu0 0
          %8366 = vmatpush1.bf16.msra.mxu0 0
          %8367 = vmatprep.subr.bf16.mxu0 0
          %8368 = vmatpush1.bf16.msra.mxu0 0
          %8369 = vmatprep.subr.bf16.mxu0 0
          %8370 = vmatpush1.bf16.msra.mxu0 0
          %8371 = vmatprep.subr.bf16.mxu0 0
          %8372 = vmatpush1.bf16.msra.mxu0 0
          %8373 = vmatprep.subr.bf16.mxu0 0
          %8374 = vmatpush1.bf16.msra.mxu0 0
          %8375 = vmatprep.subr.bf16.mxu0 0
          %8376 = vmatpush1.bf16.msra.mxu0 0
          %8377 = vmatprep.mubr.bf16.mxu0 0
          %8378 = vmatmul.mubr.bf16.gmra.mrb[0].mxu0 %v8343
          %v8379 = vpop.f32.mrb[0].mxu0
          %v8380 = vadd.f32 0.0, %v8379
          %v8381 = vpop.f32.mrb[0].mxu0
          %v8382 = vadd.f32 0.0, %v8381
          %v8383 = vpop.f32.mrb[0].mxu0
          %v8384 = vpop.f32.mrb[0].mxu0
          %8385 = vdwg.mxu0
          %8386 = vmatprep.subr.bf16.mxu0 %v7679
          %8387 = vmatpush1.bf16.msra.mxu0 %v7676
          %8388 = vmatprep.subr.bf16.mxu0 0
          %8389 = vmatpush1.bf16.msra.mxu0 0
          %8390 = vmatprep.subr.bf16.mxu0 0
          %8391 = vmatpush1.bf16.msra.mxu0 0
          %8392 = vmatprep.subr.bf16.mxu0 0
          %8393 = vmatpush1.bf16.msra.mxu0 0
          %8394 = vmatprep.subr.bf16.mxu0 0
          %8395 = vmatpush1.bf16.msra.mxu0 0
          %8396 = vmatprep.subr.bf16.mxu0 0
          %8397 = vmatpush1.bf16.msra.mxu0 0
          %8398 = vmatprep.subr.bf16.mxu0 0
          %8399 = vmatpush1.bf16.msra.mxu0 0
          %8400 = vmatprep.subr.bf16.mxu0 0
          %8401 = vmatpush1.bf16.msra.mxu0 0
          %8402 = vmatprep.subr.bf16.mxu0 0
          %8403 = vmatpush1.bf16.msra.mxu0 0
          %8404 = vmatprep.subr.bf16.mxu0 0
          %8405 = vmatpush1.bf16.msra.mxu0 0
          %8406 = vmatprep.subr.bf16.mxu0 0
          %8407 = vmatpush1.bf16.msra.mxu0 0
          %8408 = vmatprep.subr.bf16.mxu0 0
          %8409 = vmatpush1.bf16.msra.mxu0 0
          %8410 = vmatprep.subr.bf16.mxu0 0
          %8411 = vmatpush1.bf16.msra.mxu0 0
          %8412 = vmatprep.subr.bf16.mxu0 0
          %8413 = vmatpush1.bf16.msra.mxu0 0
          %8414 = vmatprep.subr.bf16.mxu0 0
          %8415 = vmatpush1.bf16.msra.mxu0 0
          %8416 = vmatprep.subr.bf16.mxu0 0
          %8417 = vmatpush1.bf16.msra.mxu0 0
          %8418 = vmatprep.mubr.bf16.mxu0 0
          %8419 = vmatmul.mubr.bf16.gmra.mrb[0].mxu0 %v8343
          %v8420 = vpop.f32.mrb[0].mxu0
          %v8421 = vadd.f32 0.0, %v8420
          %v8422 = vpop.f32.mrb[0].mxu0
          %v8423 = vadd.f32 0.0, %v8422
          %v8424 = vpop.f32.mrb[0].mxu0
          %v8425 = vpop.f32.mrb[0].mxu0
          %8426 = vdwg.mxu0
          %v8427 = vmul.f32 %v8294, %v8380
          %v8428 = vmul.f32 %v8296, %v8382
          %v8429 = vmul.f32 %v8335, %v8421
          %v8430 = vmul.f32 %v8337, %v8423
          %v8431 = vpack.c.bf16 %v8427, %v8427
          %v8432 = vpack.c.bf16 %v8428, %v8428
          %v8433 = vpack.c.bf16 %v8429, %v8429
          %v8434 = vpack.c.bf16 %v8430, %v8430
          %v8435 = vld [vmem:[%s7] sm:$0xff]
          %v8436 = vld [vmem:[%s7 + $0x8] sm:$0xff]
          %v8437 = vld [vmem:[%s7 + $0x10] sm:$0xff]
          %v8438 = vld [vmem:[%s7 + $0x18] sm:$0xff]
          %v8439 = vld [vmem:[%s7 + $0x20] sm:$0xff]
          %v8440 = vld [vmem:[%s7 + $0x28] sm:$0xff]
          %v8441 = vld [vmem:[%s7 + $0x30] sm:$0xff]
          %v8442 = vld [vmem:[%s7 + $0x38] sm:$0xff]
          %v8443 = vld [vmem:[%s7 + $0x40] sm:$0xff]
          %v8444 = vld [vmem:[%s7 + $0x48] sm:$0xff]
          %v8445 = vld [vmem:[%s7 + $0x50] sm:$0xff]
          %v8446 = vld [vmem:[%s7 + $0x58] sm:$0xff]
          %v8447 = vld [vmem:[%s7 + $0x60] sm:$0xff]
          %v8448 = vld [vmem:[%s7 + $0x68] sm:$0xff]
          %v8449 = vld [vmem:[%s7 + $0x70] sm:$0xff]
          %v8450 = vld [vmem:[%s7 + $0x78] sm:$0xff]
          %v8451 = vld [vmem:[%s7 + $0x80] sm:$0xff]
          %v8452 = vld [vmem:[%s7 + $0x88] sm:$0xff]
          %v8453 = vld [vmem:[%s7 + $0x90] sm:$0xff]
          %v8454 = vld [vmem:[%s7 + $0x98] sm:$0xff]
          %v8455 = vld [vmem:[%s7 + $0xa0] sm:$0xff]
          %v8456 = vld [vmem:[%s7 + $0xa8] sm:$0xff]
          %v8457 = vld [vmem:[%s7 + $0xb0] sm:$0xff]
          %v8458 = vld [vmem:[%s7 + $0xb8] sm:$0xff]
          %v8459 = vld [vmem:[%s7 + $0xc0] sm:$0xff]
          %v8460 = vld [vmem:[%s7 + $0xc8] sm:$0xff]
          %v8461 = vld [vmem:[%s7 + $0xd0] sm:$0xff]
          %v8462 = vld [vmem:[%s7 + $0xd8] sm:$0xff]
          %v8463 = vld [vmem:[%s7 + $0xe0] sm:$0xff]
          %v8464 = vld [vmem:[%s7 + $0xe8] sm:$0xff]
          %v8465 = vld [vmem:[%s7 + $0xf0] sm:$0xff]
          %v8466 = vld [vmem:[%s7 + $0xf8] sm:$0xff]
          %v8467 = vld [vmem:[%s7 + $0x100] sm:$0xff]
          %v8468 = vld [vmem:[%s7 + $0x108] sm:$0xff]
          %v8469 = vld [vmem:[%s7 + $0x110] sm:$0xff]
          %v8470 = vld [vmem:[%s7 + $0x118] sm:$0xff]
          %v8471 = vld [vmem:[%s7 + $0x120] sm:$0xff]
          %v8472 = vld [vmem:[%s7 + $0x128] sm:$0xff]
          %v8473 = vld [vmem:[%s7 + $0x130] sm:$0xff]
          %v8474 = vld [vmem:[%s7 + $0x138] sm:$0xff]
          %v8475 = vld [vmem:[%s7 + $0x140] sm:$0xff]
          %v8476 = vld [vmem:[%s7 + $0x148] sm:$0xff]
          %v8477 = vld [vmem:[%s7 + $0x150] sm:$0xff]
          %v8478 = vld [vmem:[%s7 + $0x158] sm:$0xff]
          %v8479 = vld [vmem:[%s7 + $0x160] sm:$0xff]
          %v8480 = vld [vmem:[%s7 + $0x168] sm:$0xff]
          %v8481 = vld [vmem:[%s7 + $0x170] sm:$0xff]
          %v8482 = vld [vmem:[%s7 + $0x178] sm:$0xff]
          %v8483 = vld [vmem:[%s7 + $0x180] sm:$0xff]
          %v8484 = vld [vmem:[%s7 + $0x188] sm:$0xff]
          %v8485 = vld [vmem:[%s7 + $0x190] sm:$0xff]
          %v8486 = vld [vmem:[%s7 + $0x198] sm:$0xff]
          %v8487 = vld [vmem:[%s7 + $0x1a0] sm:$0xff]
          %v8488 = vld [vmem:[%s7 + $0x1a8] sm:$0xff]
          %v8489 = vld [vmem:[%s7 + $0x1b0] sm:$0xff]
          %v8490 = vld [vmem:[%s7 + $0x1b8] sm:$0xff]
          %v8491 = vld [vmem:[%s7 + $0x1c0] sm:$0xff]
          %v8492 = vld [vmem:[%s7 + $0x1c8] sm:$0xff]
          %v8493 = vld [vmem:[%s7 + $0x1d0] sm:$0xff]
          %v8494 = vld [vmem:[%s7 + $0x1d8] sm:$0xff]
          %v8495 = vld [vmem:[%s7 + $0x1e0] sm:$0xff]
          %v8496 = vld [vmem:[%s7 + $0x1e8] sm:$0xff]
          %v8497 = vld [vmem:[%s7 + $0x1f0] sm:$0xff]
          %v8498 = vld [vmem:[%s7 + $0x1f8] sm:$0xff]
          %v8499 = vld [vmem:[%s7 + $0x200] sm:$0xff]
          %v8500 = vld [vmem:[%s7 + $0x208] sm:$0xff]
          %v8501 = vld [vmem:[%s7 + $0x210] sm:$0xff]
          %v8502 = vld [vmem:[%s7 + $0x218] sm:$0xff]
          %v8503 = vld [vmem:[%s7 + $0x220] sm:$0xff]
          %v8504 = vld [vmem:[%s7 + $0x228] sm:$0xff]
          %v8505 = vld [vmem:[%s7 + $0x230] sm:$0xff]
          %v8506 = vld [vmem:[%s7 + $0x238] sm:$0xff]
          %v8507 = vld [vmem:[%s7 + $0x240] sm:$0xff]
          %v8508 = vld [vmem:[%s7 + $0x248] sm:$0xff]
          %v8509 = vld [vmem:[%s7 + $0x250] sm:$0xff]
          %v8510 = vld [vmem:[%s7 + $0x258] sm:$0xff]
          %v8511 = vld [vmem:[%s7 + $0x260] sm:$0xff]
          %v8512 = vld [vmem:[%s7 + $0x268] sm:$0xff]
          %v8513 = vld [vmem:[%s7 + $0x270] sm:$0xff]
          %v8514 = vld [vmem:[%s7 + $0x278] sm:$0xff]
          %v8515 = vld [vmem:[%s7 + $0x280] sm:$0xff]
          %v8516 = vld [vmem:[%s7 + $0x288] sm:$0xff]
          %v8517 = vld [vmem:[%s7 + $0x290] sm:$0xff]
          %v8518 = vld [vmem:[%s7 + $0x298] sm:$0xff]
          %v8519 = vld [vmem:[%s7 + $0x2a0] sm:$0xff]
          %v8520 = vld [vmem:[%s7 + $0x2a8] sm:$0xff]
          %v8521 = vld [vmem:[%s7 + $0x2b0] sm:$0xff]
          %v8522 = vld [vmem:[%s7 + $0x2b8] sm:$0xff]
          %v8523 = vld [vmem:[%s7 + $0x2c0] sm:$0xff]
          %v8524 = vld [vmem:[%s7 + $0x2c8] sm:$0xff]
          %v8525 = vld [vmem:[%s7 + $0x2d0] sm:$0xff]
          %v8526 = vld [vmem:[%s7 + $0x2d8] sm:$0xff]
          %v8527 = vld [vmem:[%s7 + $0x2e0] sm:$0xff]
          %v8528 = vld [vmem:[%s7 + $0x2e8] sm:$0xff]
          %v8529 = vld [vmem:[%s7 + $0x2f0] sm:$0xff]
          %v8530 = vld [vmem:[%s7 + $0x2f8] sm:$0xff]
          %v8531 = vld [vmem:[%s7 + $0x300] sm:$0xff]
          %v8532 = vld [vmem:[%s7 + $0x308] sm:$0xff]
          %v8533 = vld [vmem:[%s7 + $0x310] sm:$0xff]
          %v8534 = vld [vmem:[%s7 + $0x318] sm:$0xff]
          %v8535 = vld [vmem:[%s7 + $0x320] sm:$0xff]
          %v8536 = vld [vmem:[%s7 + $0x328] sm:$0xff]
          %v8537 = vld [vmem:[%s7 + $0x330] sm:$0xff]
          %v8538 = vld [vmem:[%s7 + $0x338] sm:$0xff]
          %v8539 = vld [vmem:[%s7 + $0x340] sm:$0xff]
          %v8540 = vld [vmem:[%s7 + $0x348] sm:$0xff]
          %v8541 = vld [vmem:[%s7 + $0x350] sm:$0xff]
          %v8542 = vld [vmem:[%s7 + $0x358] sm:$0xff]
          %v8543 = vld [vmem:[%s7 + $0x360] sm:$0xff]
          %v8544 = vld [vmem:[%s7 + $0x368] sm:$0xff]
          %v8545 = vld [vmem:[%s7 + $0x370] sm:$0xff]
          %v8546 = vld [vmem:[%s7 + $0x378] sm:$0xff]
          %v8547 = vld [vmem:[%s7 + $0x380] sm:$0xff]
          %v8548 = vld [vmem:[%s7 + $0x388] sm:$0xff]
          %v8549 = vld [vmem:[%s7 + $0x390] sm:$0xff]
          %v8550 = vld [vmem:[%s7 + $0x398] sm:$0xff]
          %v8551 = vld [vmem:[%s7 + $0x3a0] sm:$0xff]
          %v8552 = vld [vmem:[%s7 + $0x3a8] sm:$0xff]
          %v8553 = vld [vmem:[%s7 + $0x3b0] sm:$0xff]
          %v8554 = vld [vmem:[%s7 + $0x3b8] sm:$0xff]
          %v8555 = vld [vmem:[%s7 + $0x3c0] sm:$0xff]
          %v8556 = vld [vmem:[%s7 + $0x3c8] sm:$0xff]
          %v8557 = vld [vmem:[%s7 + $0x3d0] sm:$0xff]
          %v8558 = vld [vmem:[%s7 + $0x3d8] sm:$0xff]
          %v8559 = vld [vmem:[%s7 + $0x3e0] sm:$0xff]
          %v8560 = vld [vmem:[%s7 + $0x3e8] sm:$0xff]
          %v8561 = vld [vmem:[%s7 + $0x3f0] sm:$0xff]
          %v8562 = vld [vmem:[%s7 + $0x3f8] sm:$0xff]
          %v8691 = vunpack.c.l.b16 %v8435
          %v8692 = vunpack.c.h.b16 %v8435
          %v8693 = vunpack.c.l.b16 %v8436
          %v8694 = vunpack.c.h.b16 %v8436
          %v8695 = vunpack.c.l.b16 %v8437
          %v8696 = vunpack.c.h.b16 %v8437
          %v8697 = vunpack.c.l.b16 %v8438
          %v8698 = vunpack.c.h.b16 %v8438
          %v8699 = vunpack.c.l.b16 %v8439
          %v8700 = vunpack.c.h.b16 %v8439
          %v8701 = vunpack.c.l.b16 %v8440
          %v8702 = vunpack.c.h.b16 %v8440
          %v8703 = vunpack.c.l.b16 %v8441
          %v8704 = vunpack.c.h.b16 %v8441
          %v8705 = vunpack.c.l.b16 %v8442
          %v8706 = vunpack.c.h.b16 %v8442
          %v8707 = vunpack.c.l.b16 %v8443
          %v8708 = vunpack.c.h.b16 %v8443
          %v8709 = vunpack.c.l.b16 %v8444
          %v8710 = vunpack.c.h.b16 %v8444
          %v8711 = vunpack.c.l.b16 %v8445
          %v8712 = vunpack.c.h.b16 %v8445
          %v8713 = vunpack.c.l.b16 %v8446
          %v8714 = vunpack.c.h.b16 %v8446
          %v8715 = vunpack.c.l.b16 %v8447
          %v8716 = vunpack.c.h.b16 %v8447
          %v8717 = vunpack.c.l.b16 %v8448
          %v8718 = vunpack.c.h.b16 %v8448
          %v8719 = vunpack.c.l.b16 %v8449
          %v8720 = vunpack.c.h.b16 %v8449
          %v8721 = vunpack.c.l.b16 %v8450
          %v8722 = vunpack.c.h.b16 %v8450
          %v8723 = vunpack.c.l.b16 %v8451
          %v8724 = vunpack.c.h.b16 %v8451
          %v8725 = vunpack.c.l.b16 %v8452
          %v8726 = vunpack.c.h.b16 %v8452
          %v8727 = vunpack.c.l.b16 %v8453
          %v8728 = vunpack.c.h.b16 %v8453
          %v8729 = vunpack.c.l.b16 %v8454
          %v8730 = vunpack.c.h.b16 %v8454
          %v8731 = vunpack.c.l.b16 %v8455
          %v8732 = vunpack.c.h.b16 %v8455
          %v8733 = vunpack.c.l.b16 %v8456
          %v8734 = vunpack.c.h.b16 %v8456
          %v8735 = vunpack.c.l.b16 %v8457
          %v8736 = vunpack.c.h.b16 %v8457
          %v8737 = vunpack.c.l.b16 %v8458
          %v8738 = vunpack.c.h.b16 %v8458
          %v8739 = vunpack.c.l.b16 %v8459
          %v8740 = vunpack.c.h.b16 %v8459
          %v8741 = vunpack.c.l.b16 %v8460
          %v8742 = vunpack.c.h.b16 %v8460
          %v8743 = vunpack.c.l.b16 %v8461
          %v8744 = vunpack.c.h.b16 %v8461
          %v8745 = vunpack.c.l.b16 %v8462
          %v8746 = vunpack.c.h.b16 %v8462
          %v8747 = vunpack.c.l.b16 %v8463
          %v8748 = vunpack.c.h.b16 %v8463
          %v8749 = vunpack.c.l.b16 %v8464
          %v8750 = vunpack.c.h.b16 %v8464
          %v8751 = vunpack.c.l.b16 %v8465
          %v8752 = vunpack.c.h.b16 %v8465
          %v8753 = vunpack.c.l.b16 %v8466
          %v8754 = vunpack.c.h.b16 %v8466
          %v8755 = vunpack.c.l.b16 %v8467
          %v8756 = vunpack.c.h.b16 %v8467
          %v8757 = vunpack.c.l.b16 %v8468
          %v8758 = vunpack.c.h.b16 %v8468
          %v8759 = vunpack.c.l.b16 %v8469
          %v8760 = vunpack.c.h.b16 %v8469
          %v8761 = vunpack.c.l.b16 %v8470
          %v8762 = vunpack.c.h.b16 %v8470
          %v8763 = vunpack.c.l.b16 %v8471
          %v8764 = vunpack.c.h.b16 %v8471
          %v8765 = vunpack.c.l.b16 %v8472
          %v8766 = vunpack.c.h.b16 %v8472
          %v8767 = vunpack.c.l.b16 %v8473
          %v8768 = vunpack.c.h.b16 %v8473
          %v8769 = vunpack.c.l.b16 %v8474
          %v8770 = vunpack.c.h.b16 %v8474
          %v8771 = vunpack.c.l.b16 %v8475
          %v8772 = vunpack.c.h.b16 %v8475
          %v8773 = vunpack.c.l.b16 %v8476
          %v8774 = vunpack.c.h.b16 %v8476
          %v8775 = vunpack.c.l.b16 %v8477
          %v8776 = vunpack.c.h.b16 %v8477
          %v8777 = vunpack.c.l.b16 %v8478
          %v8778 = vunpack.c.h.b16 %v8478
          %v8779 = vunpack.c.l.b16 %v8479
          %v8780 = vunpack.c.h.b16 %v8479
          %v8781 = vunpack.c.l.b16 %v8480
          %v8782 = vunpack.c.h.b16 %v8480
          %v8783 = vunpack.c.l.b16 %v8481
          %v8784 = vunpack.c.h.b16 %v8481
          %v8785 = vunpack.c.l.b16 %v8482
          %v8786 = vunpack.c.h.b16 %v8482
          %v8787 = vunpack.c.l.b16 %v8483
          %v8788 = vunpack.c.h.b16 %v8483
          %v8789 = vunpack.c.l.b16 %v8484
          %v8790 = vunpack.c.h.b16 %v8484
          %v8791 = vunpack.c.l.b16 %v8485
          %v8792 = vunpack.c.h.b16 %v8485
          %v8793 = vunpack.c.l.b16 %v8486
          %v8794 = vunpack.c.h.b16 %v8486
          %v8795 = vunpack.c.l.b16 %v8487
          %v8796 = vunpack.c.h.b16 %v8487
          %v8797 = vunpack.c.l.b16 %v8488
          %v8798 = vunpack.c.h.b16 %v8488
          %v8799 = vunpack.c.l.b16 %v8489
          %v8800 = vunpack.c.h.b16 %v8489
          %v8801 = vunpack.c.l.b16 %v8490
          %v8802 = vunpack.c.h.b16 %v8490
          %v8803 = vunpack.c.l.b16 %v8491
          %v8804 = vunpack.c.h.b16 %v8491
          %v8805 = vunpack.c.l.b16 %v8492
          %v8806 = vunpack.c.h.b16 %v8492
          %v8807 = vunpack.c.l.b16 %v8493
          %v8808 = vunpack.c.h.b16 %v8493
          %v8809 = vunpack.c.l.b16 %v8494
          %v8810 = vunpack.c.h.b16 %v8494
          %v8811 = vunpack.c.l.b16 %v8495
          %v8812 = vunpack.c.h.b16 %v8495
          %v8813 = vunpack.c.l.b16 %v8496
          %v8814 = vunpack.c.h.b16 %v8496
          %v8815 = vunpack.c.l.b16 %v8497
          %v8816 = vunpack.c.h.b16 %v8497
          %v8817 = vunpack.c.l.b16 %v8498
          %v8818 = vunpack.c.h.b16 %v8498
          %v8819 = vunpack.c.l.b16 %v8499
          %v8820 = vunpack.c.h.b16 %v8499
          %v8821 = vunpack.c.l.b16 %v8500
          %v8822 = vunpack.c.h.b16 %v8500
          %v8823 = vunpack.c.l.b16 %v8501
          %v8824 = vunpack.c.h.b16 %v8501
          %v8825 = vunpack.c.l.b16 %v8502
          %v8826 = vunpack.c.h.b16 %v8502
          %v8827 = vunpack.c.l.b16 %v8503
          %v8828 = vunpack.c.h.b16 %v8503
          %v8829 = vunpack.c.l.b16 %v8504
          %v8830 = vunpack.c.h.b16 %v8504
          %v8831 = vunpack.c.l.b16 %v8505
          %v8832 = vunpack.c.h.b16 %v8505
          %v8833 = vunpack.c.l.b16 %v8506
          %v8834 = vunpack.c.h.b16 %v8506
          %v8835 = vunpack.c.l.b16 %v8507
          %v8836 = vunpack.c.h.b16 %v8507
          %v8837 = vunpack.c.l.b16 %v8508
          %v8838 = vunpack.c.h.b16 %v8508
          %v8839 = vunpack.c.l.b16 %v8509
          %v8840 = vunpack.c.h.b16 %v8509
          %v8841 = vunpack.c.l.b16 %v8510
          %v8842 = vunpack.c.h.b16 %v8510
          %v8843 = vunpack.c.l.b16 %v8511
          %v8844 = vunpack.c.h.b16 %v8511
          %v8845 = vunpack.c.l.b16 %v8512
          %v8846 = vunpack.c.h.b16 %v8512
          %v8847 = vunpack.c.l.b16 %v8513
          %v8848 = vunpack.c.h.b16 %v8513
          %v8849 = vunpack.c.l.b16 %v8514
          %v8850 = vunpack.c.h.b16 %v8514
          %v8851 = vunpack.c.l.b16 %v8515
          %v8852 = vunpack.c.h.b16 %v8515
          %v8853 = vunpack.c.l.b16 %v8516
          %v8854 = vunpack.c.h.b16 %v8516
          %v8855 = vunpack.c.l.b16 %v8517
          %v8856 = vunpack.c.h.b16 %v8517
          %v8857 = vunpack.c.l.b16 %v8518
          %v8858 = vunpack.c.h.b16 %v8518
          %v8859 = vunpack.c.l.b16 %v8519
          %v8860 = vunpack.c.h.b16 %v8519
          %v8861 = vunpack.c.l.b16 %v8520
          %v8862 = vunpack.c.h.b16 %v8520
          %v8863 = vunpack.c.l.b16 %v8521
          %v8864 = vunpack.c.h.b16 %v8521
          %v8865 = vunpack.c.l.b16 %v8522
          %v8866 = vunpack.c.h.b16 %v8522
          %v8867 = vunpack.c.l.b16 %v8523
          %v8868 = vunpack.c.h.b16 %v8523
          %v8869 = vunpack.c.l.b16 %v8524
          %v8870 = vunpack.c.h.b16 %v8524
          %v8871 = vunpack.c.l.b16 %v8525
          %v8872 = vunpack.c.h.b16 %v8525
          %v8873 = vunpack.c.l.b16 %v8526
          %v8874 = vunpack.c.h.b16 %v8526
          %v8875 = vunpack.c.l.b16 %v8527
          %v8876 = vunpack.c.h.b16 %v8527
          %v8877 = vunpack.c.l.b16 %v8528
          %v8878 = vunpack.c.h.b16 %v8528
          %v8879 = vunpack.c.l.b16 %v8529
          %v8880 = vunpack.c.h.b16 %v8529
          %v8881 = vunpack.c.l.b16 %v8530
          %v8882 = vunpack.c.h.b16 %v8530
          %v8883 = vunpack.c.l.b16 %v8531
          %v8884 = vunpack.c.h.b16 %v8531
          %v8885 = vunpack.c.l.b16 %v8532
          %v8886 = vunpack.c.h.b16 %v8532
          %v8887 = vunpack.c.l.b16 %v8533
          %v8888 = vunpack.c.h.b16 %v8533
          %v8889 = vunpack.c.l.b16 %v8534
          %v8890 = vunpack.c.h.b16 %v8534
          %v8891 = vunpack.c.l.b16 %v8535
          %v8892 = vunpack.c.h.b16 %v8535
          %v8893 = vunpack.c.l.b16 %v8536
          %v8894 = vunpack.c.h.b16 %v8536
          %v8895 = vunpack.c.l.b16 %v8537
          %v8896 = vunpack.c.h.b16 %v8537
          %v8897 = vunpack.c.l.b16 %v8538
          %v8898 = vunpack.c.h.b16 %v8538
          %v8899 = vunpack.c.l.b16 %v8539
          %v8900 = vunpack.c.h.b16 %v8539
          %v8901 = vunpack.c.l.b16 %v8540
          %v8902 = vunpack.c.h.b16 %v8540
          %v8903 = vunpack.c.l.b16 %v8541
          %v8904 = vunpack.c.h.b16 %v8541
          %v8905 = vunpack.c.l.b16 %v8542
          %v8906 = vunpack.c.h.b16 %v8542
          %v8907 = vunpack.c.l.b16 %v8543
          %v8908 = vunpack.c.h.b16 %v8543
          %v8909 = vunpack.c.l.b16 %v8544
          %v8910 = vunpack.c.h.b16 %v8544
          %v8911 = vunpack.c.l.b16 %v8545
          %v8912 = vunpack.c.h.b16 %v8545
          %v8913 = vunpack.c.l.b16 %v8546
          %v8914 = vunpack.c.h.b16 %v8546
          %v8915 = vunpack.c.l.b16 %v8547
          %v8916 = vunpack.c.h.b16 %v8547
          %v8917 = vunpack.c.l.b16 %v8548
          %v8918 = vunpack.c.h.b16 %v8548
          %v8919 = vunpack.c.l.b16 %v8549
          %v8920 = vunpack.c.h.b16 %v8549
          %v8921 = vunpack.c.l.b16 %v8550
          %v8922 = vunpack.c.h.b16 %v8550
          %v8923 = vunpack.c.l.b16 %v8551
          %v8924 = vunpack.c.h.b16 %v8551
          %v8925 = vunpack.c.l.b16 %v8552
          %v8926 = vunpack.c.h.b16 %v8552
          %v8927 = vunpack.c.l.b16 %v8553
          %v8928 = vunpack.c.h.b16 %v8553
          %v8929 = vunpack.c.l.b16 %v8554
          %v8930 = vunpack.c.h.b16 %v8554
          %v8931 = vunpack.c.l.b16 %v8555
          %v8932 = vunpack.c.h.b16 %v8555
          %v8933 = vunpack.c.l.b16 %v8556
          %v8934 = vunpack.c.h.b16 %v8556
          %v8935 = vunpack.c.l.b16 %v8557
          %v8936 = vunpack.c.h.b16 %v8557
          %v8937 = vunpack.c.l.b16 %v8558
          %v8938 = vunpack.c.h.b16 %v8558
          %v8939 = vunpack.c.l.b16 %v8559
          %v8940 = vunpack.c.h.b16 %v8559
          %v8941 = vunpack.c.l.b16 %v8560
          %v8942 = vunpack.c.h.b16 %v8560
          %v8943 = vunpack.c.l.b16 %v8561
          %v8944 = vunpack.c.h.b16 %v8561
          %v8945 = vunpack.c.l.b16 %v8562
          %v8946 = vunpack.c.h.b16 %v8562
          %v8947 = vpack.c.b16 %v8695, %v8691
          %v8948 = vpack.c.b16 %v8696, %v8692
          %v8949 = vpack.c.b16 %v8697, %v8693
          %v8950 = vpack.c.b16 %v8698, %v8694
          %v8951 = vpack.c.b16 %v8703, %v8699
          %v8952 = vpack.c.b16 %v8704, %v8700
          %v8953 = vpack.c.b16 %v8705, %v8701
          %v8954 = vpack.c.b16 %v8706, %v8702
          %v8955 = vpack.c.b16 %v8711, %v8707
          %v8956 = vpack.c.b16 %v8712, %v8708
          %v8957 = vpack.c.b16 %v8713, %v8709
          %v8958 = vpack.c.b16 %v8714, %v8710
          %v8959 = vpack.c.b16 %v8719, %v8715
          %v8960 = vpack.c.b16 %v8720, %v8716
          %v8961 = vpack.c.b16 %v8721, %v8717
          %v8962 = vpack.c.b16 %v8722, %v8718
          %v8963 = vpack.c.b16 %v8727, %v8723
          %v8964 = vpack.c.b16 %v8728, %v8724
          %v8965 = vpack.c.b16 %v8729, %v8725
          %v8966 = vpack.c.b16 %v8730, %v8726
          %v8967 = vpack.c.b16 %v8735, %v8731
          %v8968 = vpack.c.b16 %v8736, %v8732
          %v8969 = vpack.c.b16 %v8737, %v8733
          %v8970 = vpack.c.b16 %v8738, %v8734
          %v8971 = vpack.c.b16 %v8743, %v8739
          %v8972 = vpack.c.b16 %v8744, %v8740
          %v8973 = vpack.c.b16 %v8745, %v8741
          %v8974 = vpack.c.b16 %v8746, %v8742
          %v8975 = vpack.c.b16 %v8751, %v8747
          %v8976 = vpack.c.b16 %v8752, %v8748
          %v8977 = vpack.c.b16 %v8753, %v8749
          %v8978 = vpack.c.b16 %v8754, %v8750
          %v8979 = vpack.c.b16 %v8759, %v8755
          %v8980 = vpack.c.b16 %v8760, %v8756
          %v8981 = vpack.c.b16 %v8761, %v8757
          %v8982 = vpack.c.b16 %v8762, %v8758
          %v8983 = vpack.c.b16 %v8767, %v8763
          %v8984 = vpack.c.b16 %v8768, %v8764
          %v8985 = vpack.c.b16 %v8769, %v8765
          %v8986 = vpack.c.b16 %v8770, %v8766
          %v8987 = vpack.c.b16 %v8775, %v8771
          %v8988 = vpack.c.b16 %v8776, %v8772
          %v8989 = vpack.c.b16 %v8777, %v8773
          %v8990 = vpack.c.b16 %v8778, %v8774
          %v8991 = vpack.c.b16 %v8783, %v8779
          %v8992 = vpack.c.b16 %v8784, %v8780
          %v8993 = vpack.c.b16 %v8785, %v8781
          %v8994 = vpack.c.b16 %v8786, %v8782
          %v8995 = vpack.c.b16 %v8791, %v8787
          %v8996 = vpack.c.b16 %v8792, %v8788
          %v8997 = vpack.c.b16 %v8793, %v8789
          %v8998 = vpack.c.b16 %v8794, %v8790
          %v8999 = vpack.c.b16 %v8799, %v8795
          %v9000 = vpack.c.b16 %v8800, %v8796
          %v9001 = vpack.c.b16 %v8801, %v8797
          %v9002 = vpack.c.b16 %v8802, %v8798
          %v9003 = vpack.c.b16 %v8807, %v8803
          %v9004 = vpack.c.b16 %v8808, %v8804
          %v9005 = vpack.c.b16 %v8809, %v8805
          %v9006 = vpack.c.b16 %v8810, %v8806
          %v9007 = vpack.c.b16 %v8815, %v8811
          %v9008 = vpack.c.b16 %v8816, %v8812
          %v9009 = vpack.c.b16 %v8817, %v8813
          %v9010 = vpack.c.b16 %v8818, %v8814
          %v9011 = vpack.c.b16 %v8823, %v8819
          %v9012 = vpack.c.b16 %v8824, %v8820
          %v9013 = vpack.c.b16 %v8825, %v8821
          %v9014 = vpack.c.b16 %v8826, %v8822
          %v9015 = vpack.c.b16 %v8831, %v8827
          %v9016 = vpack.c.b16 %v8832, %v8828
          %v9017 = vpack.c.b16 %v8833, %v8829
          %v9018 = vpack.c.b16 %v8834, %v8830
          %v9019 = vpack.c.b16 %v8839, %v8835
          %v9020 = vpack.c.b16 %v8840, %v8836
          %v9021 = vpack.c.b16 %v8841, %v8837
          %v9022 = vpack.c.b16 %v8842, %v8838
          %v9023 = vpack.c.b16 %v8847, %v8843
          %v9024 = vpack.c.b16 %v8848, %v8844
          %v9025 = vpack.c.b16 %v8849, %v8845
          %v9026 = vpack.c.b16 %v8850, %v8846
          %v9027 = vpack.c.b16 %v8855, %v8851
          %v9028 = vpack.c.b16 %v8856, %v8852
          %v9029 = vpack.c.b16 %v8857, %v8853
          %v9030 = vpack.c.b16 %v8858, %v8854
          %v9031 = vpack.c.b16 %v8863, %v8859
          %v9032 = vpack.c.b16 %v8864, %v8860
          %v9033 = vpack.c.b16 %v8865, %v8861
          %v9034 = vpack.c.b16 %v8866, %v8862
          %v9035 = vpack.c.b16 %v8871, %v8867
          %v9036 = vpack.c.b16 %v8872, %v8868
          %v9037 = vpack.c.b16 %v8873, %v8869
          %v9038 = vpack.c.b16 %v8874, %v8870
          %v9039 = vpack.c.b16 %v8879, %v8875
          %v9040 = vpack.c.b16 %v8880, %v8876
          %v9041 = vpack.c.b16 %v8881, %v8877
          %v9042 = vpack.c.b16 %v8882, %v8878
          %v9043 = vpack.c.b16 %v8887, %v8883
          %v9044 = vpack.c.b16 %v8888, %v8884
          %v9045 = vpack.c.b16 %v8889, %v8885
          %v9046 = vpack.c.b16 %v8890, %v8886
          %v9047 = vpack.c.b16 %v8895, %v8891
          %v9048 = vpack.c.b16 %v8896, %v8892
          %v9049 = vpack.c.b16 %v8897, %v8893
          %v9050 = vpack.c.b16 %v8898, %v8894
          %v9051 = vpack.c.b16 %v8903, %v8899
          %v9052 = vpack.c.b16 %v8904, %v8900
          %v9053 = vpack.c.b16 %v8905, %v8901
          %v9054 = vpack.c.b16 %v8906, %v8902
          %v9055 = vpack.c.b16 %v8911, %v8907
          %v9056 = vpack.c.b16 %v8912, %v8908
          %v9057 = vpack.c.b16 %v8913, %v8909
          %v9058 = vpack.c.b16 %v8914, %v8910
          %v9059 = vpack.c.b16 %v8919, %v8915
          %v9060 = vpack.c.b16 %v8920, %v8916
          %v9061 = vpack.c.b16 %v8921, %v8917
          %v9062 = vpack.c.b16 %v8922, %v8918
          %v9063 = vpack.c.b16 %v8927, %v8923
          %v9064 = vpack.c.b16 %v8928, %v8924
          %v9065 = vpack.c.b16 %v8929, %v8925
          %v9066 = vpack.c.b16 %v8930, %v8926
          %v9067 = vpack.c.b16 %v8935, %v8931
          %v9068 = vpack.c.b16 %v8936, %v8932
          %v9069 = vpack.c.b16 %v8937, %v8933
          %v9070 = vpack.c.b16 %v8938, %v8934
          %v9071 = vpack.c.b16 %v8943, %v8939
          %v9072 = vpack.c.b16 %v8944, %v8940
          %v9073 = vpack.c.b16 %v8945, %v8941
          %v9074 = vpack.c.b16 %v8946, %v8942
          %9203 = vmatprep.subr.bf16.mxu0 %v8948
          %9204 = vmatpush1.bf16.msra.mxu0 %v8947
          %9205 = vmatprep.subr.bf16.mxu0 %v8952
          %9206 = vmatpush1.bf16.msra.mxu0 %v8951
          %9207 = vmatprep.subr.bf16.mxu0 %v8956
          %9208 = vmatpush1.bf16.msra.mxu0 %v8955
          %9209 = vmatprep.subr.bf16.mxu0 %v8960
          %9210 = vmatpush1.bf16.msra.mxu0 %v8959
          %9211 = vmatprep.subr.bf16.mxu0 %v8964
          %9212 = vmatpush1.bf16.msra.mxu0 %v8963
          %9213 = vmatprep.subr.bf16.mxu0 %v8968
          %9214 = vmatpush1.bf16.msra.mxu0 %v8967
          %9215 = vmatprep.subr.bf16.mxu0 %v8972
          %9216 = vmatpush1.bf16.msra.mxu0 %v8971
          %9217 = vmatprep.subr.bf16.mxu0 %v8976
          %9218 = vmatpush1.bf16.msra.mxu0 %v8975
          %9219 = vmatprep.subr.bf16.mxu0 %v8980
          %9220 = vmatpush1.bf16.msra.mxu0 %v8979
          %9221 = vmatprep.subr.bf16.mxu0 %v8984
          %9222 = vmatpush1.bf16.msra.mxu0 %v8983
          %9223 = vmatprep.subr.bf16.mxu0 %v8988
          %9224 = vmatpush1.bf16.msra.mxu0 %v8987
          %9225 = vmatprep.subr.bf16.mxu0 %v8992
          %9226 = vmatpush1.bf16.msra.mxu0 %v8991
          %9227 = vmatprep.subr.bf16.mxu0 %v8996
          %9228 = vmatpush1.bf16.msra.mxu0 %v8995
          %9229 = vmatprep.subr.bf16.mxu0 %v9000
          %9230 = vmatpush1.bf16.msra.mxu0 %v8999
          %9231 = vmatprep.subr.bf16.mxu0 %v9004
          %9232 = vmatpush1.bf16.msra.mxu0 %v9003
          %9233 = vmatprep.subr.bf16.mxu0 %v9008
          %9234 = vmatpush1.bf16.msra.mxu0 %v9007
          %9235 = vmatprep.mubr.bf16.mxu0 %v8432
          %9236 = vmatmul.mubr.bf16.gmra.mrb[0].mxu0 %v8431
          %v9237 = vpop.f32.mrb[0].mxu0
          %v9238 = vadd.f32 0.0, %v9237
          %v9239 = vpop.f32.mrb[0].mxu0
          %v9240 = vadd.f32 0.0, %v9239
          %v9241 = vpop.f32.mrb[0].mxu0
          %v9242 = vpop.f32.mrb[0].mxu0
          %9243 = vdwg.mxu0
          %9244 = vmatprep.subr.bf16.mxu0 %v9012
          %9245 = vmatpush1.bf16.msra.mxu0 %v9011
          %9246 = vmatprep.subr.bf16.mxu0 %v9016
          %9247 = vmatpush1.bf16.msra.mxu0 %v9015
          %9248 = vmatprep.subr.bf16.mxu0 %v9020
          %9249 = vmatpush1.bf16.msra.mxu0 %v9019
          %9250 = vmatprep.subr.bf16.mxu0 %v9024
          %9251 = vmatpush1.bf16.msra.mxu0 %v9023
          %9252 = vmatprep.subr.bf16.mxu0 %v9028
          %9253 = vmatpush1.bf16.msra.mxu0 %v9027
          %9254 = vmatprep.subr.bf16.mxu0 %v9032
          %9255 = vmatpush1.bf16.msra.mxu0 %v9031
          %9256 = vmatprep.subr.bf16.mxu0 %v9036
          %9257 = vmatpush1.bf16.msra.mxu0 %v9035
          %9258 = vmatprep.subr.bf16.mxu0 %v9040
          %9259 = vmatpush1.bf16.msra.mxu0 %v9039
          %9260 = vmatprep.subr.bf16.mxu0 %v9044
          %9261 = vmatpush1.bf16.msra.mxu0 %v9043
          %9262 = vmatprep.subr.bf16.mxu0 %v9048
          %9263 = vmatpush1.bf16.msra.mxu0 %v9047
          %9264 = vmatprep.subr.bf16.mxu0 %v9052
          %9265 = vmatpush1.bf16.msra.mxu0 %v9051
          %9266 = vmatprep.subr.bf16.mxu0 %v9056
          %9267 = vmatpush1.bf16.msra.mxu0 %v9055
          %9268 = vmatprep.subr.bf16.mxu0 %v9060
          %9269 = vmatpush1.bf16.msra.mxu0 %v9059
          %9270 = vmatprep.subr.bf16.mxu0 %v9064
          %9271 = vmatpush1.bf16.msra.mxu0 %v9063
          %9272 = vmatprep.subr.bf16.mxu0 %v9068
          %9273 = vmatpush1.bf16.msra.mxu0 %v9067
          %9274 = vmatprep.subr.bf16.mxu0 %v9072
          %9275 = vmatpush1.bf16.msra.mxu0 %v9071
          %9276 = vmatprep.mubr.bf16.mxu0 %v8434
          %9277 = vmatmul.mubr.bf16.gmra.mrb[0].mxu0 %v8433
          %v9278 = vpop.f32.mrb[0].mxu0
          %v9279 = vadd.f32 %v9238, %v9278
          %v9280 = vpop.f32.mrb[0].mxu0
          %v9281 = vadd.f32 %v9240, %v9280
          %v9282 = vpop.f32.mrb[0].mxu0
          %v9283 = vpop.f32.mrb[0].mxu0
          %9284 = vdwg.mxu0
          %9285 = vmatprep.subr.bf16.mxu0 %v8950
          %9286 = vmatpush1.bf16.msra.mxu0 %v8949
          %9287 = vmatprep.subr.bf16.mxu0 %v8954
          %9288 = vmatpush1.bf16.msra.mxu0 %v8953
          %9289 = vmatprep.subr.bf16.mxu0 %v8958
          %9290 = vmatpush1.bf16.msra.mxu0 %v8957
          %9291 = vmatprep.subr.bf16.mxu0 %v8962
          %9292 = vmatpush1.bf16.msra.mxu0 %v8961
          %9293 = vmatprep.subr.bf16.mxu0 %v8966
          %9294 = vmatpush1.bf16.msra.mxu0 %v8965
          %9295 = vmatprep.subr.bf16.mxu0 %v8970
          %9296 = vmatpush1.bf16.msra.mxu0 %v8969
          %9297 = vmatprep.subr.bf16.mxu0 %v8974
          %9298 = vmatpush1.bf16.msra.mxu0 %v8973
          %9299 = vmatprep.subr.bf16.mxu0 %v8978
          %9300 = vmatpush1.bf16.msra.mxu0 %v8977
          %9301 = vmatprep.subr.bf16.mxu0 %v8982
          %9302 = vmatpush1.bf16.msra.mxu0 %v8981
          %9303 = vmatprep.subr.bf16.mxu0 %v8986
          %9304 = vmatpush1.bf16.msra.mxu0 %v8985
          %9305 = vmatprep.subr.bf16.mxu0 %v8990
          %9306 = vmatpush1.bf16.msra.mxu0 %v8989
          %9307 = vmatprep.subr.bf16.mxu0 %v8994
          %9308 = vmatpush1.bf16.msra.mxu0 %v8993
          %9309 = vmatprep.subr.bf16.mxu0 %v8998
          %9310 = vmatpush1.bf16.msra.mxu0 %v8997
          %9311 = vmatprep.subr.bf16.mxu0 %v9002
          %9312 = vmatpush1.bf16.msra.mxu0 %v9001
          %9313 = vmatprep.subr.bf16.mxu0 %v9006
          %9314 = vmatpush1.bf16.msra.mxu0 %v9005
          %9315 = vmatprep.subr.bf16.mxu0 %v9010
          %9316 = vmatpush1.bf16.msra.mxu0 %v9009
          %9317 = vmatprep.mubr.bf16.mxu0 %v8432
          %9318 = vmatmul.mubr.bf16.gmra.mrb[0].mxu0 %v8431
          %v9319 = vpop.f32.mrb[0].mxu0
          %v9320 = vadd.f32 0.0, %v9319
          %v9321 = vpop.f32.mrb[0].mxu0
          %v9322 = vadd.f32 0.0, %v9321
          %v9323 = vpop.f32.mrb[0].mxu0
          %v9324 = vpop.f32.mrb[0].mxu0
          %9325 = vdwg.mxu0
          %9326 = vmatprep.subr.bf16.mxu0 %v9014
          %9327 = vmatpush1.bf16.msra.mxu0 %v9013
          %9328 = vmatprep.subr.bf16.mxu0 %v9018
          %9329 = vmatpush1.bf16.msra.mxu0 %v9017
          %9330 = vmatprep.subr.bf16.mxu0 %v9022
          %9331 = vmatpush1.bf16.msra.mxu0 %v9021
          %9332 = vmatprep.subr.bf16.mxu0 %v9026
          %9333 = vmatpush1.bf16.msra.mxu0 %v9025
          %9334 = vmatprep.subr.bf16.mxu0 %v9030
          %9335 = vmatpush1.bf16.msra.mxu0 %v9029
          %9336 = vmatprep.subr.bf16.mxu0 %v9034
          %9337 = vmatpush1.bf16.msra.mxu0 %v9033
          %9338 = vmatprep.subr.bf16.mxu0 %v9038
          %9339 = vmatpush1.bf16.msra.mxu0 %v9037
          %9340 = vmatprep.subr.bf16.mxu0 %v9042
          %9341 = vmatpush1.bf16.msra.mxu0 %v9041
          %9342 = vmatprep.subr.bf16.mxu0 %v9046
          %9343 = vmatpush1.bf16.msra.mxu0 %v9045
          %9344 = vmatprep.subr.bf16.mxu0 %v9050
          %9345 = vmatpush1.bf16.msra.mxu0 %v9049
          %9346 = vmatprep.subr.bf16.mxu0 %v9054
          %9347 = vmatpush1.bf16.msra.mxu0 %v9053
          %9348 = vmatprep.subr.bf16.mxu0 %v9058
          %9349 = vmatpush1.bf16.msra.mxu0 %v9057
          %9350 = vmatprep.subr.bf16.mxu0 %v9062
          %9351 = vmatpush1.bf16.msra.mxu0 %v9061
          %9352 = vmatprep.subr.bf16.mxu0 %v9066
          %9353 = vmatpush1.bf16.msra.mxu0 %v9065
          %9354 = vmatprep.subr.bf16.mxu0 %v9070
          %9355 = vmatpush1.bf16.msra.mxu0 %v9069
          %9356 = vmatprep.subr.bf16.mxu0 %v9074
          %9357 = vmatpush1.bf16.msra.mxu0 %v9073
          %9358 = vmatprep.mubr.bf16.mxu0 %v8434
          %9359 = vmatmul.mubr.bf16.gmra.mrb[0].mxu0 %v8433
          %v9360 = vpop.f32.mrb[0].mxu0
          %v9361 = vadd.f32 %v9320, %v9360
          %v9362 = vpop.f32.mrb[0].mxu0
          %v9363 = vadd.f32 %v9322, %v9362
          %v9364 = vpop.f32.mrb[0].mxu0
          %v9365 = vpop.f32.mrb[0].mxu0
          %9366 = vdwg.mxu0
          %v9367 = vadd.f32 %v9279, %v9281
          %v9368 = vadd.f32 %v9367, %v9361
          %v9369 = vadd.f32 %v9368, %v9363
          %9370 = vadd.xlane.f32.xlu0 %v9369
          %v9371 = vpop.xlane.xlu0 %9370
          %v9372 = vrcp.pop 512.0
          %v9373 = vmul.f32 %v9371, %v9372
          %v9374 = vsub.f32 %v9279, %v9373
          %v9375 = vsub.f32 %v9281, %v9373
          %v9376 = vsub.f32 %v9361, %v9373
          %v9377 = vsub.f32 %v9363, %v9373
          %v9378 = vmul.f32 %v9374, %v9374
          %v9379 = vmul.f32 %v9375, %v9375
          %v9380 = vmul.f32 %v9376, %v9376
          %v9381 = vmul.f32 %v9377, %v9377
          %v9382 = vadd.f32 %v9378, %v9379
          %v9383 = vadd.f32 %v9382, %v9380
          %v9384 = vadd.f32 %v9383, %v9381
          %9385 = vadd.xlane.f32.xlu0 %v9384
          %v9386 = vpop.xlane.xlu0 %9385
          %v9387 = vmul.f32 %v9386, %v9372
          %v9388 = vadd.f32 %v9387, 1e-05
          %v9389 = vrsqrt.pop %v9388
          %v9390 = vmul.f32 %v9374, %v9389
          %v9391 = vmul.f32 %v9375, %v9389
          %v9392 = vmul.f32 %v9376, %v9389
          %v9393 = vmul.f32 %v9377, %v9389
          %v9394 = vld [vmem:[%s8] sm:$0xf]
          %v9396 = vlaneseq
          %v9397 = vshrl.u32 %v9396, 7
          %v9398 = vsub.s32 0, %v9397
          %v9399 = vrot.slane %v9394, %v9398
          %v9400 = vlaneseq
          %v9401 = vshrl.u32 %v9400, 7
          %v9402 = vsub.s32 1, %v9401
          %v9403 = vrot.slane %v9394, %v9402
          %v9404 = vlaneseq
          %v9405 = vshrl.u32 %v9404, 7
          %v9406 = vsub.s32 2, %v9405
          %v9407 = vrot.slane %v9394, %v9406
          %v9408 = vlaneseq
          %v9409 = vshrl.u32 %v9408, 7
          %v9410 = vsub.s32 3, %v9409
          %v9411 = vrot.slane %v9394, %v9410
          %v9416 = vmul.f32 %v9390, %v9399
          %v9417 = vmul.f32 %v9391, %v9403
          %v9418 = vmul.f32 %v9392, %v9407
          %v9419 = vmul.f32 %v9393, %v9411
          %v9420 = vld [vmem:[%s9] sm:$0xf]
          %v9422 = vlaneseq
          %v9423 = vshrl.u32 %v9422, 7
          %v9424 = vsub.s32 0, %v9423
          %v9425 = vrot.slane %v9420, %v9424
          %v9426 = vlaneseq
          %v9427 = vshrl.u32 %v9426, 7
          %v9428 = vsub.s32 1, %v9427
          %v9429 = vrot.slane %v9420, %v9428
          %v9430 = vlaneseq
          %v9431 = vshrl.u32 %v9430, 7
          %v9432 = vsub.s32 2, %v9431
          %v9433 = vrot.slane %v9420, %v9432
          %v9434 = vlaneseq
          %v9435 = vshrl.u32 %v9434, 7
          %v9436 = vsub.s32 3, %v9435
          %v9437 = vrot.slane %v9420, %v9436
          %v9442 = vadd.f32 %v9416, %v9425
          %v9443 = vadd.f32 %v9417, %v9429
          %v9444 = vadd.f32 %v9418, %v9433
          %v9445 = vadd.f32 %v9419, %v9437
          %9446 = vst [vmem:[%s12] sm:$0xff] %v9442
          %9447 = vst [vmem:[%s12 + $0x8] sm:$0xff] %v9443
          %9448 = vst [vmem:[%s12 + $0x10] sm:$0xff] %v9444
          %9449 = vst [vmem:[%s12 + $0x18] sm:$0xff] %v9445
        $region109: #{graph_cnn_forward.1} parent=59 // pred_fallthru
          _
        // Predicated region
        $region110: #{graph_cnn_forward.1} parent=59 // pred_check
          %p9450 = pneg %p258
        $region111: #{graph_cnn_forward.1} parent=59 // pred_check_branch
          %9452 = sbr.rel (%p9450) target = $region113
        $region112: #{graph_cnn_forward.1} parent=59 // pred_region
          %s9454 = ssub.s32 16384, 16384
          %9455 = vsyncadd [#allocation7], %s9454
          %s9456 = sshll.u32 [#allocation6], 4
          %s9457 = int_to_ptr.vmem [resolvable:$true] %s9456
          %9462 = dma.vmem_to_hbm [thread:$0]  %s9457, 16384, %s11, [#allocation7], 512, 512, 32
        $region113: #{graph_cnn_forward.1} parent=59 // pred_fallthru
          _
        // Predicated region
        $region114: #{graph_cnn_forward.1} parent=59 // pred_check
          %p9463 = pneg %p279
        $region115: #{graph_cnn_forward.1} parent=59 // pred_check_branch
          %9465 = sbr.rel (%p9463) target = $region117
        $region116: #{graph_cnn_forward.1} parent=59 // pred_region
          _
        $region117: #{graph_cnn_forward.1} parent=59 // pred_fallthru
          _
        // Predicated region
        $region118: #{graph_cnn_forward.1} parent=59 // pred_check
          %p9466 = pneg %p258
        $region119: #{graph_cnn_forward.1} parent=59 // pred_check_branch
          %9468 = sbr.rel (%p9466) target = $region121
        $region120: #{graph_cnn_forward.1} parent=59 // pred_region
          %9469 = dma.done [#allocation7], 16384
        $region121: #{graph_cnn_forward.1} parent=59 // pred_fallthru
          _
        // Predicated region
        $region122: #{graph_cnn_forward.1} parent=59 // pred_check
          %p9470 = pneg %p279
        $region123: #{graph_cnn_forward.1} parent=59 // pred_check_branch
          %9472 = sbr.rel (%p9470) target = $region125
        $region124: #{graph_cnn_forward.1} parent=59 // pred_region
          _
        $region125: #{graph_cnn_forward.1} parent=59 // pred_fallthru
          _
      $region60: #{graph_cnn_forward.1} parent=5 // pred_fallthru
        _
      %p9473 = scmp.le.s32.totalorder 2, %s20
      // Predicated region
      $region126: #{graph_cnn_forward.1} parent=5 // pred_check
        %p9474 = pneg %p9473
      $region127: #{graph_cnn_forward.1} parent=5 // pred_check_branch
        %9476 = sbr.rel (%p9474) target = $region129
      $region128: #{graph_cnn_forward.1} parent=5 // pred_region
        %s9477 = ssub.s32 %s20, 2
      $region129: #{graph_cnn_forward.1} parent=5 // pred_fallthru
        _
    $region6: #{graph_cnn_forward.1} parent=1 // loop_footer
      %s24 = sadd.s32 1, %s20
    $region7: #{graph_cnn_forward.1} parent=1 // loop_footer_branch
      %19 = sbr.rel target = $region3
    $region8: #{graph_cnn_forward.1} parent=1 // loop_exit
      _
    %9478 = vsyncpa [#allocation7], 1
    %s9479 = scalar_lea.sflag [#allocation7], 1
    %9480 = vsyncpa %s9479, 1
  %9481 = vsyncmov [#allocation3]
  %s9482 = vpop.sfrf %9481
  %p9483 = scmp.eq.s32.totalorder %s9482, 0
  %p9484 = pneg %p9483
  %9486 = shalt.err (%p9484)

</llo_original>
